<compile_context>
chip_gen: v7x
topology: tpu7x:2x2x1
jax: 0.10.0
libtpu: 0.0.40
codegen_flags: <defaults>
</compile_context>

<pallas_src>
import numpy as np
import jax
import jax.numpy as jnp
from jax import lax
from jax.experimental import pallas as pl
from jax.experimental.pallas import tpu as pltpu


# ----------------------------- fused kernel ---------------------------------

def _build_fems_kernel(H, W, M, Cin, MID, Cout, PAD):
    """M = (images per grid block) * H * W flattened rows."""

    def kernel(x_ref, w1_ref, w3s_ref, wc_ref, bmid_ref, bout_ref,
               o_ref, pad_ref, cat3_ref, cat5_ref):
        f32 = jnp.float32
        bf16 = jnp.bfloat16

        # Zero only the outer halo of the flat zero-padded slab; interior rows
        # are always overwritten before each use.
        zhalo = jnp.zeros((PAD, MID), bf16)
        pad_ref[:PAD, :] = zhalo
        pad_ref[PAD + M:, :] = zhalo

        # Per-output-row image-local column / row indices.  They drive the 0/1
        # bf16 validity masks that (a) implement the 'same' zero padding of
        # every 3-tap conv and (b) fence H-direction taps at image boundaries
        # so folding the batch into M cannot leak across images.
        m_idx = lax.broadcasted_iota(jnp.int32, (M, MID), 0)
        if (W & (W - 1)) == 0:
            w_idx = m_idx & (W - 1)
            r_idx = m_idx >> (W.bit_length() - 1)
        else:                                   # general (non power-of-two) W
            w_idx = m_idx % W
            r_idx = m_idx // W
        if (H & (H - 1)) == 0:
            h_idx = r_idx & (H - 1)
        else:
            h_idx = r_idx % H

        mask_cache = {}

        def tap_mask(axis, off):
            """0/1 bf16 mask: rows whose tap at image-local offset `off`
            (columns for axis=1, rows for axis=0) stays inside the image."""
            key = (axis, off)
            if key not in mask_cache:
                idx, lim = (h_idx, H) if axis == 0 else (w_idx, W)
                valid = jnp.logical_and(idx + off >= 0, idx + off < lim)
                mask_cache[key] = valid.astype(bf16)
            return mask_cache[key]

        def sconv(val, layer, *, axis, dil):
            """3-tap 'same' conv along H (axis=0) or W (axis=1), dilation
            `dil`, fused bias + ReLU.  The three shifted taps are staged
            (masked, bf16) into the (M, 3*MID) scratch so the conv is one
            K = 3*MID MXU pass.  BN scale is pre-folded into the weights."""
            val_bf = val.astype(bf16)
            pad_ref[PAD:PAD + M, :] = val_bf
            cat3_ref[:, MID:2 * MID] = val_bf              # centre tap (off 0)
            step = dil * W if axis == 0 else dil            # flattened shift
            for t in (0, 2):                                # side taps
                off = PAD + (t - 1) * step
                tap = pad_ref[off:off + M, :]
                cat3_ref[:, t * MID:(t + 1) * MID] = tap * tap_mask(
                    axis, (t - 1) * dil)
            acc = jnp.dot(cat3_ref[...], w3s_ref[layer],
                          preferred_element_type=f32)
            return jnp.maximum(acc + bmid_ref[layer + 1:layer + 2, :], 0.0)

        # conv1x1 : Cin -> MID  (BN scale folded into w1; bias row 0)
        x_bf = x_ref[...]                                   # (M, Cin) bf16
        x1 = jnp.maximum(
            jnp.dot(x_bf, w1_ref[...], preferred_element_type=f32)
            + bmid_ref[0:1, :], 0.0)

        # conv (= conv_a then conv_b), convs1..convs4; each y_k is parked in
        # the (M, 5*MID) concat scratch as soon as it is produced.
        t0 = sconv(x1, 0, axis=1, dil=1)       # conv_a  (1,3) pad (0,1)
        y0 = sconv(t0, 1, axis=0, dil=1)       # conv_b  (3,1) pad (1,0)
        cat5_ref[:, 0:MID] = y0.astype(bf16)
        y1 = sconv(y0, 2, axis=0, dil=1)       # convs1(y0+y0): x2 folded in w
        cat5_ref[:, MID:2 * MID] = y1.astype(bf16)
        y2 = sconv(x1 + y1, 3, axis=1, dil=1)  # convs2(x + y1)
        cat5_ref[:, 2 * MID:3 * MID] = y2.astype(bf16)
        y3 = sconv(x1 + y2, 4, axis=1, dil=7)  # convs3(x + y2), dil (1,7)
        cat5_ref[:, 3 * MID:4 * MID] = y3.astype(bf16)
        y4 = sconv(x1 + y3, 5, axis=0, dil=3)  # convs4(x + y3), dil (3,1)
        cat5_ref[:, 4 * MID:5 * MID] = y4.astype(bf16)

        # convchange over concat([y0..y4]) as ONE K = 5*MID = 640 matmul.
        out = jnp.dot(cat5_ref[...], wc_ref[...], preferred_element_type=f32)
        out = jnp.maximum(out + bout_ref[...], 0.0)         # folded bias + ReLU
        out = jnp.maximum(out + x_bf.astype(f32), 0.0)      # relu(out + identity)
        o_ref[...] = out.astype(o_ref.dtype)

    return kernel


def _default_num_blocks(N):
    """v7x has 2 TensorCores/chip: give each core one batch-block via a
    'parallel' grid.  Single-core chips (v5e/v6e) fold the whole batch into
    M (one grid step, fuller MXU, no per-step overhead)."""
    try:
        kind = jax.devices()[0].device_kind.lower()
        if "v7" in kind and N % 2 == 0:
            return 2
    except Exception:
        pass
    return 1


def fems_forward(x_nchw, p, *, num_blocks=None):
    N, Cin, H, W = x_nchw.shape
    MID = p['conv1x1']['w'].shape[-1]
    Cout = p['convchange']['w'].shape[-1]
    assert Cout == Cin, "identity residual requires convchange out == inplanes"
    HW = H * W

    if num_blocks is None:
        num_blocks = _default_num_blocks(N)
    if N % num_blocks != 0 or ((N // num_blocks) * HW) % 8 != 0:
        num_blocks = 1
    B = N // num_blocks
    M = B * HW
    assert M % 8 == 0, "flattened block rows must be sublane aligned"

    max_shift = max(3 * W, 7)              # convs4 dil (3,1) / convs3 dil (1,7)
    PAD = ((max_shift + 31) // 32) * 32    # outer halo rows (multiple of 32)

    bf16, f32 = jnp.bfloat16, jnp.float32

    def fold3(name, extra=1.0):
        # (kh, kw, MID, MID) -> (3*MID, MID) with BN scale (and `extra`) folded.
        w = p[name]['w'].reshape(3, MID, MID).astype(f32)
        s = (p[name]['scale'] * extra).reshape(1, 1, MID)
        return (w * s).reshape(3 * MID, MID).astype(bf16)

    w1 = (p['conv1x1']['w'].reshape(Cin, MID)
          * p['conv1x1']['scale'].reshape(1, MID)).astype(bf16)
    # Stack order: conv_a, conv_b, convs1 (x2 of y0+y0 folded), convs2..convs4.
    w3s = jnp.stack([fold3('conv_a'), fold3('conv_b'), fold3('convs1', 2.0),
                     fold3('convs2'), fold3('convs3'), fold3('convs4')])
    wc = (p['convchange']['w'].reshape(5 * MID, Cout)
          * p['convchange']['scale'].reshape(1, Cout)).astype(bf16)
    names = ['conv1x1', 'conv_a', 'conv_b', 'convs1', 'convs2', 'convs3', 'convs4']
    bmid = jnp.stack([p[n]['bias'] for n in names]).astype(f32)      # (7, MID)
    bout = p['convchange']['bias'].reshape(1, Cout).astype(f32)      # (1, Cout)

    # NCHW -> flattened channels-last (N*H*W, Cin); bf16 across the boundary
    # (halves activation DMA; identity residual tolerates bf16).
    x = jnp.transpose(x_nchw, (0, 2, 3, 1)).reshape(N * HW, Cin).astype(bf16)

    kernel = _build_fems_kernel(H, W, M, Cin, MID, Cout, PAD)

    out = pl.pallas_call(
        kernel,
        out_shape=jax.ShapeDtypeStruct((N * HW, Cout), jnp.float32),
        grid=(num_blocks,),
        in_specs=[
            pl.BlockSpec((M, Cin), lambda n: (n, 0)),              # x
            pl.BlockSpec((Cin, MID), lambda n: (0, 0)),            # w1
            pl.BlockSpec((6, 3 * MID, MID), lambda n: (0, 0, 0)),  # w3s stack
            pl.BlockSpec((5 * MID, Cout), lambda n: (0, 0)),       # wc
            pl.BlockSpec((7, MID), lambda n: (0, 0)),              # bmid
            pl.BlockSpec((1, Cout), lambda n: (0, 0)),             # bout
        ],
        out_specs=pl.BlockSpec((M, Cout), lambda n: (n, 0)),
        scratch_shapes=[
            pltpu.VMEM((M + 2 * PAD, MID), jnp.bfloat16),          # zero-halo slab
            pltpu.VMEM((M, 3 * MID), jnp.bfloat16),                # per-conv im2col
            pltpu.VMEM((M, 5 * MID), jnp.bfloat16),                # convchange concat
        ],
        compiler_params=pltpu.CompilerParams(
            dimension_semantics=("parallel",),   # v7x: blocks split across TCs
            vmem_limit_bytes=32 * 1024 * 1024),
    )(x, w1, w3s, wc, bmid, bout)

    return jnp.transpose(out.reshape(N, H, W, Cout), (0, 3, 1, 2))   # -> NCHW


# ----------------------------- parameters -----------------------------------

def init_basic_conv(key, cin, cout, kh, kw):
    k_w, k_g, k_b, k_m, k_v = jax.random.split(key, 5)
    w = jax.random.normal(k_w, (kh, kw, cin, cout), jnp.float32) / np.sqrt(cin * kh * kw)
    gamma = 1.0 + 0.1 * jax.random.normal(k_g, (cout,), jnp.float32)
    beta = 0.1 * jax.random.normal(k_b, (cout,), jnp.float32)
    mean = 0.1 * jax.random.normal(k_m, (cout,), jnp.float32)
    var = 0.9 + 0.2 * jax.random.uniform(k_v, (cout,), jnp.float32)
    scale = gamma / jnp.sqrt(var + 1e-5)        # folded eval-mode BN
    bias = beta - mean * scale
    return {'w': w, 'scale': scale, 'bias': bias}


def init_fems_params(key, inplanes, outplanes, scales=4):
    mid = inplanes // scales
    keys = jax.random.split(key, 10)
    p = {}
    p['conv1x1'] = init_basic_conv(keys[0], inplanes, mid, 1, 1)
    p['conv_a'] = init_basic_conv(keys[1], mid, mid, 1, 3)      # (1,3) pad (0,1)
    p['conv_b'] = init_basic_conv(keys[2], mid, mid, 3, 1)      # (3,1) pad (1,0)
    p['convs1'] = init_basic_conv(keys[3], mid, mid, 3, 1)
    p['convs2'] = init_basic_conv(keys[4], mid, mid, 1, 3)
    p['convs3'] = init_basic_conv(keys[5], mid, mid, 1, 3)      # dilation (1,7)
    p['convs4'] = init_basic_conv(keys[6], mid, mid, 3, 1)      # dilation (3,1)
    # PyTorch hard-codes 640 input channels for convchange: 640 == 5*(512//4).
    p['convchange'] = init_basic_conv(keys[7], 5 * mid, inplanes, 1, 1)
    p['conv3'] = init_basic_conv(keys[8], inplanes, outplanes, 1, 1)   # unused (change=None)
    p['conv4'] = init_basic_conv(keys[9], inplanes, outplanes, 3, 3)   # unused (downsample=None)
    return p


# ----------------------------- pure-JAX reference ----------------------------

def _ref_cbr(x, prm, dh=1, dw=1, ph=0, pw=0):
    y = jax.lax.conv_general_dilated(
        x, prm['w'], window_strides=(1, 1), padding=((ph, ph), (pw, pw)),
        rhs_dilation=(dh, dw), dimension_numbers=('NHWC', 'HWIO', 'NHWC'))
    return jnp.maximum(y * prm['scale'] + prm['bias'], 0.0)


def ref_forward(x_nchw, p):
    x = jnp.transpose(x_nchw, (0, 2, 3, 1))
    identity = x
    x1 = _ref_cbr(x, p['conv1x1'])
    xs0 = _ref_cbr(x1, p['conv_a'], pw=1)
    xs0 = _ref_cbr(xs0, p['conv_b'], ph=1)
    y0 = xs0
    y1 = _ref_cbr(xs0 + y0, p['convs1'], ph=1)
    y2 = _ref_cbr(x1 + y1, p['convs2'], pw=1)
    y3 = _ref_cbr(x1 + y2, p['convs3'], dw=7, pw=7)
    y4 = _ref_cbr(x1 + y3, p['convs4'], dh=3, ph=3)
    cat = jnp.concatenate([y0, y1, y2, y3, y4], axis=-1)
    out = _ref_cbr(cat, p['convchange'])
    out = jnp.maximum(out + identity, 0.0)
    # change=None and downsample=None (module defaults) -> conv3 / conv4 skipped.
    return jnp.transpose(out, (0, 3, 1, 2))


if __name__ == "__main__":
    key = jax.random.PRNGKey(0)
    # inplanes=512, scales=4 so that 5*(inplanes//scales)=640 matches the
    # hard-coded convchange input channels in the PyTorch module.
    inplanes, outplanes, scales = 512, 512, 4
    N, H, W = 2, 8, 8
    kx, kp = jax.random.split(key)
    x = jax.random.normal(kx, (N, inplanes, H, W), jnp.float32)   # NCHW like PyTorch
    params = init_fems_params(kp, inplanes, outplanes, scales)

    fwd = jax.jit(fems_forward)
    out = jax.block_until_ready(fwd(x, params))
    ref = jax.block_until_ready(ref_forward(x, params))

    assert out.shape == (N, inplanes, H, W), out.shape
    # bf16 MXU inputs / bf16 activations with f32 accumulation -> relaxed
    # tolerance against the full-f32 reference.
    np.testing.assert_allclose(np.asarray(out), np.asarray(ref), rtol=5e-2, atol=5e-2)
    print("KERNEL_OK")
</pallas_src>

<mosaic_0001>
module attributes {stable_mosaic.version = 11 : i64} {
  func.func @kernel(%arg0: i32, %arg1: memref<128x512xbf16, #tpu.memory_space<vmem>>, %arg2: memref<512x128xbf16, #tpu.memory_space<vmem>>, %arg3: memref<6x384x128xbf16, #tpu.memory_space<vmem>>, %arg4: memref<640x512xbf16, #tpu.memory_space<vmem>>, %arg5: memref<7x128xf32, #tpu.memory_space<vmem>>, %arg6: memref<1x512xf32, #tpu.memory_space<vmem>>, %arg7: memref<128x512xf32, #tpu.memory_space<vmem>>, %arg8: memref<192x128xbf16, #tpu.memory_space<vmem>>, %arg9: memref<128x384xbf16, #tpu.memory_space<vmem>>, %arg10: memref<128x640xbf16, #tpu.memory_space<vmem>>) attributes {dimension_semantics = [#tpu.dimension_semantics<parallel>], iteration_bounds = array<i64: 1>, scalar_prefetch = 0 : i64, scratch_operands = 3 : i64, tpu.core_type = #tpu.core_type<tc>, window_params = [{transform_indices = @transform_0, window_bounds = array<i64: 128, 512>}, {pipeline_mode = #tpu.pipeline_mode<synchronous>, transform_indices = @transform_1, window_bounds = array<i64: 512, 128>}, {pipeline_mode = #tpu.pipeline_mode<synchronous>, transform_indices = @transform_2, window_bounds = array<i64: 6, 384, 128>}, {pipeline_mode = #tpu.pipeline_mode<synchronous>, transform_indices = @transform_3, window_bounds = array<i64: 640, 512>}, {pipeline_mode = #tpu.pipeline_mode<synchronous>, transform_indices = @transform_4, window_bounds = array<i64: 7, 128>}, {pipeline_mode = #tpu.pipeline_mode<synchronous>, transform_indices = @transform_5, window_bounds = array<i64: 1, 512>}, {transform_indices = @transform_6, window_bounds = array<i64: 128, 512>}]} {
    %cst = arith.constant 0.000000e+00 : bf16
    %0 = vector.broadcast %cst : bf16 to vector<32x128xbf16>
    %c0 = arith.constant 0 : index
    %c0_0 = arith.constant 0 : index
    %1 = vector.load %arg8[%c0, %c0_0] : memref<192x128xbf16, #tpu.memory_space<vmem>>, vector<32x128xbf16>
    tpu.vector_store %arg8[%c0, %c0_0], %0 {strides = array<i32>} : memref<192x128xbf16, #tpu.memory_space<vmem>>, vector<32x128xbf16>,
    %c160 = arith.constant 160 : index
    %c0_1 = arith.constant 0 : index
    %2 = vector.load %arg8[%c160, %c0_1] : memref<192x128xbf16, #tpu.memory_space<vmem>>, vector<32x128xbf16>
    tpu.vector_store %arg8[%c160, %c0_1], %0 {strides = array<i32>} : memref<192x128xbf16, #tpu.memory_space<vmem>>, vector<32x128xbf16>,
    %3 = tpu.iota {dimensions = array<i32: 0>} : vector<128x128xi32>
    %c7_i32 = arith.constant 7 : i32
    %4 = vector.broadcast %c7_i32 : i32 to vector<128x128xi32>
    %5 = arith.andi %3, %4 : vector<128x128xi32>
    %c3_i32 = arith.constant 3 : i32
    %6 = vector.broadcast %c3_i32 : i32 to vector<128x128xi32>
    %7 = arith.shrsi %3, %6 : vector<128x128xi32>
    %c7_i32_2 = arith.constant 7 : i32
    %8 = vector.broadcast %c7_i32_2 : i32 to vector<128x128xi32>
    %9 = arith.andi %7, %8 : vector<128x128xi32>
    %c0_3 = arith.constant 0 : index
    %c0_4 = arith.constant 0 : index
    %10 = vector.load %arg1[%c0_3, %c0_4] : memref<128x512xbf16, #tpu.memory_space<vmem>>, vector<128x512xbf16>
    %c0_5 = arith.constant 0 : index
    %c0_6 = arith.constant 0 : index
    %11 = vector.load %arg2[%c0_5, %c0_6] : memref<512x128xbf16, #tpu.memory_space<vmem>>, vector<512x128xbf16>
    %cst_7 = arith.constant dense<0.000000e+00> : vector<128x128xf32>
    %12 = tpu.matmul %10, %11, %cst_7 {dimension_numbers = #tpu.dot_dimension_numbers<[1], [0], [0], [1], [0, 0, 1, 1], [], []>} : vector<128x512xbf16>, vector<512x128xbf16>, vector<128x128xf32> -> vector<128x128xf32>
    %c0_8 = arith.constant 0 : index
    %c0_9 = arith.constant 0 : index
    %13 = vector.load %arg5[%c0_8, %c0_9] : memref<7x128xf32, #tpu.memory_space<vmem>>, vector<1x128xf32>
    %14 = vector.broadcast %13 : vector<1x128xf32> to vector<128x128xf32>
    %15 = arith.addf %12, %14 : vector<128x128xf32>
    %cst_10 = arith.constant 0.000000e+00 : f32
    %16 = vector.broadcast %cst_10 : f32 to vector<128x128xf32>
    %17 = arith.maximumf %15, %16 : vector<128x128xf32>
    %18 = arith.truncf %17 : vector<128x128xf32> to vector<128x128xbf16>
    %c32 = arith.constant 32 : index
    %c0_11 = arith.constant 0 : index
    %19 = vector.load %arg8[%c32, %c0_11] : memref<192x128xbf16, #tpu.memory_space<vmem>>, vector<128x128xbf16>
    tpu.vector_store %arg8[%c32, %c0_11], %18 {strides = array<i32>} : memref<192x128xbf16, #tpu.memory_space<vmem>>, vector<128x128xbf16>,
    %c0_12 = arith.constant 0 : index
    %c128 = arith.constant 128 : index
    %20 = vector.load %arg9[%c0_12, %c128] : memref<128x384xbf16, #tpu.memory_space<vmem>>, vector<128x128xbf16>
    tpu.vector_store %arg9[%c0_12, %c128], %18 {strides = array<i32>} : memref<128x384xbf16, #tpu.memory_space<vmem>>, vector<128x128xbf16>,
    %c31 = arith.constant 31 : index
    %c0_13 = arith.constant 0 : index
    %21 = vector.load %arg8[%c31, %c0_13] : memref<192x128xbf16, #tpu.memory_space<vmem>>, vector<128x128xbf16>
    %c-1_i32 = arith.constant -1 : i32
    %22 = vector.broadcast %c-1_i32 : i32 to vector<128x128xi32>
    %23 = arith.addi %5, %22 : vector<128x128xi32>
    %c0_i32 = arith.constant 0 : i32
    %24 = vector.broadcast %c0_i32 : i32 to vector<128x128xi32>
    %25 = arith.cmpi sge, %23, %24 : vector<128x128xi32>
    %c-1_i32_14 = arith.constant -1 : i32
    %26 = vector.broadcast %c-1_i32_14 : i32 to vector<128x128xi32>
    %27 = arith.addi %5, %26 : vector<128x128xi32>
    %c8_i32 = arith.constant 8 : i32
    %28 = vector.broadcast %c8_i32 : i32 to vector<128x128xi32>
    %29 = arith.cmpi slt, %27, %28 : vector<128x128xi32>
    %30 = arith.andi %25, %29 : vector<128x128xi1>
    %31 = arith.extui %30 : vector<128x128xi1> to vector<128x128xi32>
    %32 = arith.sitofp %31 : vector<128x128xi32> to vector<128x128xf32>
    %33 = arith.truncf %32 : vector<128x128xf32> to vector<128x128xbf16>
    %34 = arith.mulf %21, %33 : vector<128x128xbf16>
    %c0_15 = arith.constant 0 : index
    %c0_16 = arith.constant 0 : index
    %35 = vector.load %arg9[%c0_15, %c0_16] : memref<128x384xbf16, #tpu.memory_space<vmem>>, vector<128x128xbf16>
    tpu.vector_store %arg9[%c0_15, %c0_16], %34 {strides = array<i32>} : memref<128x384xbf16, #tpu.memory_space<vmem>>, vector<128x128xbf16>,
    %c33 = arith.constant 33 : index
    %c0_17 = arith.constant 0 : index
    %36 = vector.load %arg8[%c33, %c0_17] : memref<192x128xbf16, #tpu.memory_space<vmem>>, vector<128x128xbf16>
    %c1_i32 = arith.constant 1 : i32
    %37 = vector.broadcast %c1_i32 : i32 to vector<128x128xi32>
    %38 = arith.addi %5, %37 : vector<128x128xi32>
    %c0_i32_18 = arith.constant 0 : i32
    %39 = vector.broadcast %c0_i32_18 : i32 to vector<128x128xi32>
    %40 = arith.cmpi sge, %38, %39 : vector<128x128xi32>
    %c1_i32_19 = arith.constant 1 : i32
    %41 = vector.broadcast %c1_i32_19 : i32 to vector<128x128xi32>
    %42 = arith.addi %5, %41 : vector<128x128xi32>
    %c8_i32_20 = arith.constant 8 : i32
    %43 = vector.broadcast %c8_i32_20 : i32 to vector<128x128xi32>
    %44 = arith.cmpi slt, %42, %43 : vector<128x128xi32>
    %45 = arith.andi %40, %44 : vector<128x128xi1>
    %46 = arith.extui %45 : vector<128x128xi1> to vector<128x128xi32>
    %47 = arith.sitofp %46 : vector<128x128xi32> to vector<128x128xf32>
    %48 = arith.truncf %47 : vector<128x128xf32> to vector<128x128xbf16>
    %49 = arith.mulf %36, %48 : vector<128x128xbf16>
    %c0_21 = arith.constant 0 : index
    %c256 = arith.constant 256 : index
    %50 = vector.load %arg9[%c0_21, %c256] : memref<128x384xbf16, #tpu.memory_space<vmem>>, vector<128x128xbf16>
    tpu.vector_store %arg9[%c0_21, %c256], %49 {strides = array<i32>} : memref<128x384xbf16, #tpu.memory_space<vmem>>, vector<128x128xbf16>,
    %c0_22 = arith.constant 0 : index
    %c0_23 = arith.constant 0 : index
    %51 = vector.load %arg9[%c0_22, %c0_23] : memref<128x384xbf16, #tpu.memory_space<vmem>>, vector<128x384xbf16>
    %c0_24 = arith.constant 0 : index
    %c0_25 = arith.constant 0 : index
    %c0_26 = arith.constant 0 : index
    %52 = vector.load %arg3[%c0_24, %c0_25, %c0_26] : memref<6x384x128xbf16, #tpu.memory_space<vmem>>, vector<1x384x128xbf16>
    %53 = vector.shape_cast %52 : vector<1x384x128xbf16> to vector<384x128xbf16>
    %cst_27 = arith.constant dense<0.000000e+00> : vector<128x128xf32>
    %54 = tpu.matmul %51, %53, %cst_27 {dimension_numbers = #tpu.dot_dimension_numbers<[1], [0], [0], [1], [0, 0, 1, 1], [], []>} : vector<128x384xbf16>, vector<384x128xbf16>, vector<128x128xf32> -> vector<128x128xf32>
    %c1 = arith.constant 1 : index
    %c0_28 = arith.constant 0 : index
    %55 = vector.load %arg5[%c1, %c0_28] : memref<7x128xf32, #tpu.memory_space<vmem>>, vector<1x128xf32>
    %56 = vector.broadcast %55 : vector<1x128xf32> to vector<128x128xf32>
    %57 = arith.addf %54, %56 : vector<128x128xf32>
    %cst_29 = arith.constant 0.000000e+00 : f32
    %58 = vector.broadcast %cst_29 : f32 to vector<128x128xf32>
    %59 = arith.maximumf %57, %58 : vector<128x128xf32>
    %60 = arith.truncf %59 : vector<128x128xf32> to vector<128x128xbf16>
    %c32_30 = arith.constant 32 : index
    %c0_31 = arith.constant 0 : index
    %61 = vector.load %arg8[%c32_30, %c0_31] : memref<192x128xbf16, #tpu.memory_space<vmem>>, vector<128x128xbf16>
    tpu.vector_store %arg8[%c32_30, %c0_31], %60 {strides = array<i32>} : memref<192x128xbf16, #tpu.memory_space<vmem>>, vector<128x128xbf16>,
    %c0_32 = arith.constant 0 : index
    %c128_33 = arith.constant 128 : index
    %62 = vector.load %arg9[%c0_32, %c128_33] : memref<128x384xbf16, #tpu.memory_space<vmem>>, vector<128x128xbf16>
    tpu.vector_store %arg9[%c0_32, %c128_33], %60 {strides = array<i32>} : memref<128x384xbf16, #tpu.memory_space<vmem>>, vector<128x128xbf16>,
    %c24 = arith.constant 24 : index
    %c0_34 = arith.constant 0 : index
    %63 = vector.load %arg8[%c24, %c0_34] : memref<192x128xbf16, #tpu.memory_space<vmem>>, vector<128x128xbf16>
    %c-1_i32_35 = arith.constant -1 : i32
    %64 = vector.broadcast %c-1_i32_35 : i32 to vector<128x128xi32>
    %65 = arith.addi %9, %64 : vector<128x128xi32>
    %c0_i32_36 = arith.constant 0 : i32
    %66 = vector.broadcast %c0_i32_36 : i32 to vector<128x128xi32>
    %67 = arith.cmpi sge, %65, %66 : vector<128x128xi32>
    %c-1_i32_37 = arith.constant -1 : i32
    %68 = vector.broadcast %c-1_i32_37 : i32 to vector<128x128xi32>
    %69 = arith.addi %9, %68 : vector<128x128xi32>
    %c8_i32_38 = arith.constant 8 : i32
    %70 = vector.broadcast %c8_i32_38 : i32 to vector<128x128xi32>
    %71 = arith.cmpi slt, %69, %70 : vector<128x128xi32>
    %72 = arith.andi %67, %71 : vector<128x128xi1>
    %73 = arith.extui %72 : vector<128x128xi1> to vector<128x128xi32>
    %74 = arith.sitofp %73 : vector<128x128xi32> to vector<128x128xf32>
    %75 = arith.truncf %74 : vector<128x128xf32> to vector<128x128xbf16>
    %76 = arith.mulf %63, %75 : vector<128x128xbf16>
    %c0_39 = arith.constant 0 : index
    %c0_40 = arith.constant 0 : index
    %77 = vector.load %arg9[%c0_39, %c0_40] : memref<128x384xbf16, #tpu.memory_space<vmem>>, vector<128x128xbf16>
    tpu.vector_store %arg9[%c0_39, %c0_40], %76 {strides = array<i32>} : memref<128x384xbf16, #tpu.memory_space<vmem>>, vector<128x128xbf16>,
    %c40 = arith.constant 40 : index
    %c0_41 = arith.constant 0 : index
    %78 = vector.load %arg8[%c40, %c0_41] : memref<192x128xbf16, #tpu.memory_space<vmem>>, vector<128x128xbf16>
    %c1_i32_42 = arith.constant 1 : i32
    %79 = vector.broadcast %c1_i32_42 : i32 to vector<128x128xi32>
    %80 = arith.addi %9, %79 : vector<128x128xi32>
    %c0_i32_43 = arith.constant 0 : i32
    %81 = vector.broadcast %c0_i32_43 : i32 to vector<128x128xi32>
    %82 = arith.cmpi sge, %80, %81 : vector<128x128xi32>
    %c1_i32_44 = arith.constant 1 : i32
    %83 = vector.broadcast %c1_i32_44 : i32 to vector<128x128xi32>
    %84 = arith.addi %9, %83 : vector<128x128xi32>
    %c8_i32_45 = arith.constant 8 : i32
    %85 = vector.broadcast %c8_i32_45 : i32 to vector<128x128xi32>
    %86 = arith.cmpi slt, %84, %85 : vector<128x128xi32>
    %87 = arith.andi %82, %86 : vector<128x128xi1>
    %88 = arith.extui %87 : vector<128x128xi1> to vector<128x128xi32>
    %89 = arith.sitofp %88 : vector<128x128xi32> to vector<128x128xf32>
    %90 = arith.truncf %89 : vector<128x128xf32> to vector<128x128xbf16>
    %91 = arith.mulf %78, %90 : vector<128x128xbf16>
    %c0_46 = arith.constant 0 : index
    %c256_47 = arith.constant 256 : index
    %92 = vector.load %arg9[%c0_46, %c256_47] : memref<128x384xbf16, #tpu.memory_space<vmem>>, vector<128x128xbf16>
    tpu.vector_store %arg9[%c0_46, %c256_47], %91 {strides = array<i32>} : memref<128x384xbf16, #tpu.memory_space<vmem>>, vector<128x128xbf16>,
    %c0_48 = arith.constant 0 : index
    %c0_49 = arith.constant 0 : index
    %93 = vector.load %arg9[%c0_48, %c0_49] : memref<128x384xbf16, #tpu.memory_space<vmem>>, vector<128x384xbf16>
    %c1_50 = arith.constant 1 : index
    %c0_51 = arith.constant 0 : index
    %c0_52 = arith.constant 0 : index
    %94 = vector.load %arg3[%c1_50, %c0_51, %c0_52] : memref<6x384x128xbf16, #tpu.memory_space<vmem>>, vector<1x384x128xbf16>
    %95 = vector.shape_cast %94 : vector<1x384x128xbf16> to vector<384x128xbf16>
    %cst_53 = arith.constant dense<0.000000e+00> : vector<128x128xf32>
    %96 = tpu.matmul %93, %95, %cst_53 {dimension_numbers = #tpu.dot_dimension_numbers<[1], [0], [0], [1], [0, 0, 1, 1], [], []>} : vector<128x384xbf16>, vector<384x128xbf16>, vector<128x128xf32> -> vector<128x128xf32>
    %c2 = arith.constant 2 : index
    %c0_54 = arith.constant 0 : index
    %97 = vector.load %arg5[%c2, %c0_54] : memref<7x128xf32, #tpu.memory_space<vmem>>, vector<1x128xf32>
    %98 = vector.broadcast %97 : vector<1x128xf32> to vector<128x128xf32>
    %99 = arith.addf %96, %98 : vector<128x128xf32>
    %cst_55 = arith.constant 0.000000e+00 : f32
    %100 = vector.broadcast %cst_55 : f32 to vector<128x128xf32>
    %101 = arith.maximumf %99, %100 : vector<128x128xf32>
    %102 = arith.truncf %101 : vector<128x128xf32> to vector<128x128xbf16>
    %c0_56 = arith.constant 0 : index
    %c0_57 = arith.constant 0 : index
    %103 = vector.load %arg10[%c0_56, %c0_57] : memref<128x640xbf16, #tpu.memory_space<vmem>>, vector<128x128xbf16>
    tpu.vector_store %arg10[%c0_56, %c0_57], %102 {strides = array<i32>} : memref<128x640xbf16, #tpu.memory_space<vmem>>, vector<128x128xbf16>,
    %104 = arith.truncf %101 : vector<128x128xf32> to vector<128x128xbf16>
    %c32_58 = arith.constant 32 : index
    %c0_59 = arith.constant 0 : index
    %105 = vector.load %arg8[%c32_58, %c0_59] : memref<192x128xbf16, #tpu.memory_space<vmem>>, vector<128x128xbf16>
    tpu.vector_store %arg8[%c32_58, %c0_59], %104 {strides = array<i32>} : memref<192x128xbf16, #tpu.memory_space<vmem>>, vector<128x128xbf16>,
    %c0_60 = arith.constant 0 : index
    %c128_61 = arith.constant 128 : index
    %106 = vector.load %arg9[%c0_60, %c128_61] : memref<128x384xbf16, #tpu.memory_space<vmem>>, vector<128x128xbf16>
    tpu.vector_store %arg9[%c0_60, %c128_61], %104 {strides = array<i32>} : memref<128x384xbf16, #tpu.memory_space<vmem>>, vector<128x128xbf16>,
    %c24_62 = arith.constant 24 : index
    %c0_63 = arith.constant 0 : index
    %107 = vector.load %arg8[%c24_62, %c0_63] : memref<192x128xbf16, #tpu.memory_space<vmem>>, vector<128x128xbf16>
    %108 = arith.mulf %107, %75 : vector<128x128xbf16>
    %c0_64 = arith.constant 0 : index
    %c0_65 = arith.constant 0 : index
    %109 = vector.load %arg9[%c0_64, %c0_65] : memref<128x384xbf16, #tpu.memory_space<vmem>>, vector<128x128xbf16>
    tpu.vector_store %arg9[%c0_64, %c0_65], %108 {strides = array<i32>} : memref<128x384xbf16, #tpu.memory_space<vmem>>, vector<128x128xbf16>,
    %c40_66 = arith.constant 40 : index
    %c0_67 = arith.constant 0 : index
    %110 = vector.load %arg8[%c40_66, %c0_67] : memref<192x128xbf16, #tpu.memory_space<vmem>>, vector<128x128xbf16>
    %111 = arith.mulf %110, %90 : vector<128x128xbf16>
    %c0_68 = arith.constant 0 : index
    %c256_69 = arith.constant 256 : index
    %112 = vector.load %arg9[%c0_68, %c256_69] : memref<128x384xbf16, #tpu.memory_space<vmem>>, vector<128x128xbf16>
    tpu.vector_store %arg9[%c0_68, %c256_69], %111 {strides = array<i32>} : memref<128x384xbf16, #tpu.memory_space<vmem>>, vector<128x128xbf16>,
    %c0_70 = arith.constant 0 : index
    %c0_71 = arith.constant 0 : index
    %113 = vector.load %arg9[%c0_70, %c0_71] : memref<128x384xbf16, #tpu.memory_space<vmem>>, vector<128x384xbf16>
    %c2_72 = arith.constant 2 : index
    %c0_73 = arith.constant 0 : index
    %c0_74 = arith.constant 0 : index
    %114 = vector.load %arg3[%c2_72, %c0_73, %c0_74] : memref<6x384x128xbf16, #tpu.memory_space<vmem>>, vector<1x384x128xbf16>
    %115 = vector.shape_cast %114 : vector<1x384x128xbf16> to vector<384x128xbf16>
    %cst_75 = arith.constant dense<0.000000e+00> : vector<128x128xf32>
    %116 = tpu.matmul %113, %115, %cst_75 {dimension_numbers = #tpu.dot_dimension_numbers<[1], [0], [0], [1], [0, 0, 1, 1], [], []>} : vector<128x384xbf16>, vector<384x128xbf16>, vector<128x128xf32> -> vector<128x128xf32>
    %c3 = arith.constant 3 : index
    %c0_76 = arith.constant 0 : index
    %117 = vector.load %arg5[%c3, %c0_76] : memref<7x128xf32, #tpu.memory_space<vmem>>, vector<1x128xf32>
    %118 = vector.broadcast %117 : vector<1x128xf32> to vector<128x128xf32>
    %119 = arith.addf %116, %118 : vector<128x128xf32>
    %cst_77 = arith.constant 0.000000e+00 : f32
    %120 = vector.broadcast %cst_77 : f32 to vector<128x128xf32>
    %121 = arith.maximumf %119, %120 : vector<128x128xf32>
    %122 = arith.truncf %121 : vector<128x128xf32> to vector<128x128xbf16>
    %c0_78 = arith.constant 0 : index
    %c128_79 = arith.constant 128 : index
    %123 = vector.load %arg10[%c0_78, %c128_79] : memref<128x640xbf16, #tpu.memory_space<vmem>>, vector<128x128xbf16>
    tpu.vector_store %arg10[%c0_78, %c128_79], %122 {strides = array<i32>} : memref<128x640xbf16, #tpu.memory_space<vmem>>, vector<128x128xbf16>,
    %124 = arith.addf %17, %121 : vector<128x128xf32>
    %125 = arith.truncf %124 : vector<128x128xf32> to vector<128x128xbf16>
    %c32_80 = arith.constant 32 : index
    %c0_81 = arith.constant 0 : index
    %126 = vector.load %arg8[%c32_80, %c0_81] : memref<192x128xbf16, #tpu.memory_space<vmem>>, vector<128x128xbf16>
    tpu.vector_store %arg8[%c32_80, %c0_81], %125 {strides = array<i32>} : memref<192x128xbf16, #tpu.memory_space<vmem>>, vector<128x128xbf16>,
    %c0_82 = arith.constant 0 : index
    %c128_83 = arith.constant 128 : index
    %127 = vector.load %arg9[%c0_82, %c128_83] : memref<128x384xbf16, #tpu.memory_space<vmem>>, vector<128x128xbf16>
    tpu.vector_store %arg9[%c0_82, %c128_83], %125 {strides = array<i32>} : memref<128x384xbf16, #tpu.memory_space<vmem>>, vector<128x128xbf16>,
    %c31_84 = arith.constant 31 : index
    %c0_85 = arith.constant 0 : index
    %128 = vector.load %arg8[%c31_84, %c0_85] : memref<192x128xbf16, #tpu.memory_space<vmem>>, vector<128x128xbf16>
    %129 = arith.mulf %128, %33 : vector<128x128xbf16>
    %c0_86 = arith.constant 0 : index
    %c0_87 = arith.constant 0 : index
    %130 = vector.load %arg9[%c0_86, %c0_87] : memref<128x384xbf16, #tpu.memory_space<vmem>>, vector<128x128xbf16>
    tpu.vector_store %arg9[%c0_86, %c0_87], %129 {strides = array<i32>} : memref<128x384xbf16, #tpu.memory_space<vmem>>, vector<128x128xbf16>,
    %c33_88 = arith.constant 33 : index
    %c0_89 = arith.constant 0 : index
    %131 = vector.load %arg8[%c33_88, %c0_89] : memref<192x128xbf16, #tpu.memory_space<vmem>>, vector<128x128xbf16>
    %132 = arith.mulf %131, %48 : vector<128x128xbf16>
    %c0_90 = arith.constant 0 : index
    %c256_91 = arith.constant 256 : index
    %133 = vector.load %arg9[%c0_90, %c256_91] : memref<128x384xbf16, #tpu.memory_space<vmem>>, vector<128x128xbf16>
    tpu.vector_store %arg9[%c0_90, %c256_91], %132 {strides = array<i32>} : memref<128x384xbf16, #tpu.memory_space<vmem>>, vector<128x128xbf16>,
    %c0_92 = arith.constant 0 : index
    %c0_93 = arith.constant 0 : index
    %134 = vector.load %arg9[%c0_92, %c0_93] : memref<128x384xbf16, #tpu.memory_space<vmem>>, vector<128x384xbf16>
    %c3_94 = arith.constant 3 : index
    %c0_95 = arith.constant 0 : index
    %c0_96 = arith.constant 0 : index
    %135 = vector.load %arg3[%c3_94, %c0_95, %c0_96] : memref<6x384x128xbf16, #tpu.memory_space<vmem>>, vector<1x384x128xbf16>
    %136 = vector.shape_cast %135 : vector<1x384x128xbf16> to vector<384x128xbf16>
    %cst_97 = arith.constant dense<0.000000e+00> : vector<128x128xf32>
    %137 = tpu.matmul %134, %136, %cst_97 {dimension_numbers = #tpu.dot_dimension_numbers<[1], [0], [0], [1], [0, 0, 1, 1], [], []>} : vector<128x384xbf16>, vector<384x128xbf16>, vector<128x128xf32> -> vector<128x128xf32>
    %c4 = arith.constant 4 : index
    %c0_98 = arith.constant 0 : index
    %138 = vector.load %arg5[%c4, %c0_98] : memref<7x128xf32, #tpu.memory_space<vmem>>, vector<1x128xf32>
    %139 = vector.broadcast %138 : vector<1x128xf32> to vector<128x128xf32>
    %140 = arith.addf %137, %139 : vector<128x128xf32>
    %cst_99 = arith.constant 0.000000e+00 : f32
    %141 = vector.broadcast %cst_99 : f32 to vector<128x128xf32>
    %142 = arith.maximumf %140, %141 : vector<128x128xf32>
    %143 = arith.truncf %142 : vector<128x128xf32> to vector<128x128xbf16>
    %c0_100 = arith.constant 0 : index
    %c256_101 = arith.constant 256 : index
    %144 = vector.load %arg10[%c0_100, %c256_101] : memref<128x640xbf16, #tpu.memory_space<vmem>>, vector<128x128xbf16>
    tpu.vector_store %arg10[%c0_100, %c256_101], %143 {strides = array<i32>} : memref<128x640xbf16, #tpu.memory_space<vmem>>, vector<128x128xbf16>,
    %145 = arith.addf %17, %142 : vector<128x128xf32>
    %146 = arith.truncf %145 : vector<128x128xf32> to vector<128x128xbf16>
    %c32_102 = arith.constant 32 : index
    %c0_103 = arith.constant 0 : index
    %147 = vector.load %arg8[%c32_102, %c0_103] : memref<192x128xbf16, #tpu.memory_space<vmem>>, vector<128x128xbf16>
    tpu.vector_store %arg8[%c32_102, %c0_103], %146 {strides = array<i32>} : memref<192x128xbf16, #tpu.memory_space<vmem>>, vector<128x128xbf16>,
    %c0_104 = arith.constant 0 : index
    %c128_105 = arith.constant 128 : index
    %148 = vector.load %arg9[%c0_104, %c128_105] : memref<128x384xbf16, #tpu.memory_space<vmem>>, vector<128x128xbf16>
    tpu.vector_store %arg9[%c0_104, %c128_105], %146 {strides = array<i32>} : memref<128x384xbf16, #tpu.memory_space<vmem>>, vector<128x128xbf16>,
    %c25 = arith.constant 25 : index
    %c0_106 = arith.constant 0 : index
    %149 = vector.load %arg8[%c25, %c0_106] : memref<192x128xbf16, #tpu.memory_space<vmem>>, vector<128x128xbf16>
    %c-7_i32 = arith.constant -7 : i32
    %150 = vector.broadcast %c-7_i32 : i32 to vector<128x128xi32>
    %151 = arith.addi %5, %150 : vector<128x128xi32>
    %c0_i32_107 = arith.constant 0 : i32
    %152 = vector.broadcast %c0_i32_107 : i32 to vector<128x128xi32>
    %153 = arith.cmpi sge, %151, %152 : vector<128x128xi32>
    %c-7_i32_108 = arith.constant -7 : i32
    %154 = vector.broadcast %c-7_i32_108 : i32 to vector<128x128xi32>
    %155 = arith.addi %5, %154 : vector<128x128xi32>
    %c8_i32_109 = arith.constant 8 : i32
    %156 = vector.broadcast %c8_i32_109 : i32 to vector<128x128xi32>
    %157 = arith.cmpi slt, %155, %156 : vector<128x128xi32>
    %158 = arith.andi %153, %157 : vector<128x128xi1>
    %159 = arith.extui %158 : vector<128x128xi1> to vector<128x128xi32>
    %160 = arith.sitofp %159 : vector<128x128xi32> to vector<128x128xf32>
    %161 = arith.truncf %160 : vector<128x128xf32> to vector<128x128xbf16>
    %162 = arith.mulf %149, %161 : vector<128x128xbf16>
    %c0_110 = arith.constant 0 : index
    %c0_111 = arith.constant 0 : index
    %163 = vector.load %arg9[%c0_110, %c0_111] : memref<128x384xbf16, #tpu.memory_space<vmem>>, vector<128x128xbf16>
    tpu.vector_store %arg9[%c0_110, %c0_111], %162 {strides = array<i32>} : memref<128x384xbf16, #tpu.memory_space<vmem>>, vector<128x128xbf16>,
    %c39 = arith.constant 39 : index
    %c0_112 = arith.constant 0 : index
    %164 = vector.load %arg8[%c39, %c0_112] : memref<192x128xbf16, #tpu.memory_space<vmem>>, vector<128x128xbf16>
    %c7_i32_113 = arith.constant 7 : i32
    %165 = vector.broadcast %c7_i32_113 : i32 to vector<128x128xi32>
    %166 = arith.addi %5, %165 : vector<128x128xi32>
    %c0_i32_114 = arith.constant 0 : i32
    %167 = vector.broadcast %c0_i32_114 : i32 to vector<128x128xi32>
    %168 = arith.cmpi sge, %166, %167 : vector<128x128xi32>
    %c7_i32_115 = arith.constant 7 : i32
    %169 = vector.broadcast %c7_i32_115 : i32 to vector<128x128xi32>
    %170 = arith.addi %5, %169 : vector<128x128xi32>
    %c8_i32_116 = arith.constant 8 : i32
    %171 = vector.broadcast %c8_i32_116 : i32 to vector<128x128xi32>
    %172 = arith.cmpi slt, %170, %171 : vector<128x128xi32>
    %173 = arith.andi %168, %172 : vector<128x128xi1>
    %174 = arith.extui %173 : vector<128x128xi1> to vector<128x128xi32>
    %175 = arith.sitofp %174 : vector<128x128xi32> to vector<128x128xf32>
    %176 = arith.truncf %175 : vector<128x128xf32> to vector<128x128xbf16>
    %177 = arith.mulf %164, %176 : vector<128x128xbf16>
    %c0_117 = arith.constant 0 : index
    %c256_118 = arith.constant 256 : index
    %178 = vector.load %arg9[%c0_117, %c256_118] : memref<128x384xbf16, #tpu.memory_space<vmem>>, vector<128x128xbf16>
    tpu.vector_store %arg9[%c0_117, %c256_118], %177 {strides = array<i32>} : memref<128x384xbf16, #tpu.memory_space<vmem>>, vector<128x128xbf16>,
    %c0_119 = arith.constant 0 : index
    %c0_120 = arith.constant 0 : index
    %179 = vector.load %arg9[%c0_119, %c0_120] : memref<128x384xbf16, #tpu.memory_space<vmem>>, vector<128x384xbf16>
    %c4_121 = arith.constant 4 : index
    %c0_122 = arith.constant 0 : index
    %c0_123 = arith.constant 0 : index
    %180 = vector.load %arg3[%c4_121, %c0_122, %c0_123] : memref<6x384x128xbf16, #tpu.memory_space<vmem>>, vector<1x384x128xbf16>
    %181 = vector.shape_cast %180 : vector<1x384x128xbf16> to vector<384x128xbf16>
    %cst_124 = arith.constant dense<0.000000e+00> : vector<128x128xf32>
    %182 = tpu.matmul %179, %181, %cst_124 {dimension_numbers = #tpu.dot_dimension_numbers<[1], [0], [0], [1], [0, 0, 1, 1], [], []>} : vector<128x384xbf16>, vector<384x128xbf16>, vector<128x128xf32> -> vector<128x128xf32>
    %c5 = arith.constant 5 : index
    %c0_125 = arith.constant 0 : index
    %183 = vector.load %arg5[%c5, %c0_125] : memref<7x128xf32, #tpu.memory_space<vmem>>, vector<1x128xf32>
    %184 = vector.broadcast %183 : vector<1x128xf32> to vector<128x128xf32>
    %185 = arith.addf %182, %184 : vector<128x128xf32>
    %cst_126 = arith.constant 0.000000e+00 : f32
    %186 = vector.broadcast %cst_126 : f32 to vector<128x128xf32>
    %187 = arith.maximumf %185, %186 : vector<128x128xf32>
    %188 = arith.truncf %187 : vector<128x128xf32> to vector<128x128xbf16>
    %c0_127 = arith.constant 0 : index
    %c384 = arith.constant 384 : index
    %189 = vector.load %arg10[%c0_127, %c384] : memref<128x640xbf16, #tpu.memory_space<vmem>>, vector<128x128xbf16>
    tpu.vector_store %arg10[%c0_127, %c384], %188 {strides = array<i32>} : memref<128x640xbf16, #tpu.memory_space<vmem>>, vector<128x128xbf16>,
    %190 = arith.addf %17, %187 : vector<128x128xf32>
    %191 = arith.truncf %190 : vector<128x128xf32> to vector<128x128xbf16>
    %c32_128 = arith.constant 32 : index
    %c0_129 = arith.constant 0 : index
    %192 = vector.load %arg8[%c32_128, %c0_129] : memref<192x128xbf16, #tpu.memory_space<vmem>>, vector<128x128xbf16>
    tpu.vector_store %arg8[%c32_128, %c0_129], %191 {strides = array<i32>} : memref<192x128xbf16, #tpu.memory_space<vmem>>, vector<128x128xbf16>,
    %c0_130 = arith.constant 0 : index
    %c128_131 = arith.constant 128 : index
    %193 = vector.load %arg9[%c0_130, %c128_131] : memref<128x384xbf16, #tpu.memory_space<vmem>>, vector<128x128xbf16>
    tpu.vector_store %arg9[%c0_130, %c128_131], %191 {strides = array<i32>} : memref<128x384xbf16, #tpu.memory_space<vmem>>, vector<128x128xbf16>,
    %c8 = arith.constant 8 : index
    %c0_132 = arith.constant 0 : index
    %194 = vector.load %arg8[%c8, %c0_132] : memref<192x128xbf16, #tpu.memory_space<vmem>>, vector<128x128xbf16>
    %c-3_i32 = arith.constant -3 : i32
    %195 = vector.broadcast %c-3_i32 : i32 to vector<128x128xi32>
    %196 = arith.addi %9, %195 : vector<128x128xi32>
    %c0_i32_133 = arith.constant 0 : i32
    %197 = vector.broadcast %c0_i32_133 : i32 to vector<128x128xi32>
    %198 = arith.cmpi sge, %196, %197 : vector<128x128xi32>
    %c-3_i32_134 = arith.constant -3 : i32
    %199 = vector.broadcast %c-3_i32_134 : i32 to vector<128x128xi32>
    %200 = arith.addi %9, %199 : vector<128x128xi32>
    %c8_i32_135 = arith.constant 8 : i32
    %201 = vector.broadcast %c8_i32_135 : i32 to vector<128x128xi32>
    %202 = arith.cmpi slt, %200, %201 : vector<128x128xi32>
    %203 = arith.andi %198, %202 : vector<128x128xi1>
    %204 = arith.extui %203 : vector<128x128xi1> to vector<128x128xi32>
    %205 = arith.sitofp %204 : vector<128x128xi32> to vector<128x128xf32>
    %206 = arith.truncf %205 : vector<128x128xf32> to vector<128x128xbf16>
    %207 = arith.mulf %194, %206 : vector<128x128xbf16>
    %c0_136 = arith.constant 0 : index
    %c0_137 = arith.constant 0 : index
    %208 = vector.load %arg9[%c0_136, %c0_137] : memref<128x384xbf16, #tpu.memory_space<vmem>>, vector<128x128xbf16>
    tpu.vector_store %arg9[%c0_136, %c0_137], %207 {strides = array<i32>} : memref<128x384xbf16, #tpu.memory_space<vmem>>, vector<128x128xbf16>,
    %c56 = arith.constant 56 : index
    %c0_138 = arith.constant 0 : index
    %209 = vector.load %arg8[%c56, %c0_138] : memref<192x128xbf16, #tpu.memory_space<vmem>>, vector<128x128xbf16>
    %c3_i32_139 = arith.constant 3 : i32
    %210 = vector.broadcast %c3_i32_139 : i32 to vector<128x128xi32>
    %211 = arith.addi %9, %210 : vector<128x128xi32>
    %c0_i32_140 = arith.constant 0 : i32
    %212 = vector.broadcast %c0_i32_140 : i32 to vector<128x128xi32>
    %213 = arith.cmpi sge, %211, %212 : vector<128x128xi32>
    %c3_i32_141 = arith.constant 3 : i32
    %214 = vector.broadcast %c3_i32_141 : i32 to vector<128x128xi32>
    %215 = arith.addi %9, %214 : vector<128x128xi32>
    %c8_i32_142 = arith.constant 8 : i32
    %216 = vector.broadcast %c8_i32_142 : i32 to vector<128x128xi32>
    %217 = arith.cmpi slt, %215, %216 : vector<128x128xi32>
    %218 = arith.andi %213, %217 : vector<128x128xi1>
    %219 = arith.extui %218 : vector<128x128xi1> to vector<128x128xi32>
    %220 = arith.sitofp %219 : vector<128x128xi32> to vector<128x128xf32>
    %221 = arith.truncf %220 : vector<128x128xf32> to vector<128x128xbf16>
    %222 = arith.mulf %209, %221 : vector<128x128xbf16>
    %c0_143 = arith.constant 0 : index
    %c256_144 = arith.constant 256 : index
    %223 = vector.load %arg9[%c0_143, %c256_144] : memref<128x384xbf16, #tpu.memory_space<vmem>>, vector<128x128xbf16>
    tpu.vector_store %arg9[%c0_143, %c256_144], %222 {strides = array<i32>} : memref<128x384xbf16, #tpu.memory_space<vmem>>, vector<128x128xbf16>,
    %c0_145 = arith.constant 0 : index
    %c0_146 = arith.constant 0 : index
    %224 = vector.load %arg9[%c0_145, %c0_146] : memref<128x384xbf16, #tpu.memory_space<vmem>>, vector<128x384xbf16>
    %c5_147 = arith.constant 5 : index
    %c0_148 = arith.constant 0 : index
    %c0_149 = arith.constant 0 : index
    %225 = vector.load %arg3[%c5_147, %c0_148, %c0_149] : memref<6x384x128xbf16, #tpu.memory_space<vmem>>, vector<1x384x128xbf16>
    %226 = vector.shape_cast %225 : vector<1x384x128xbf16> to vector<384x128xbf16>
    %cst_150 = arith.constant dense<0.000000e+00> : vector<128x128xf32>
    %227 = tpu.matmul %224, %226, %cst_150 {dimension_numbers = #tpu.dot_dimension_numbers<[1], [0], [0], [1], [0, 0, 1, 1], [], []>} : vector<128x384xbf16>, vector<384x128xbf16>, vector<128x128xf32> -> vector<128x128xf32>
    %c6 = arith.constant 6 : index
    %c0_151 = arith.constant 0 : index
    %228 = vector.load %arg5[%c6, %c0_151] : memref<7x128xf32, #tpu.memory_space<vmem>>, vector<1x128xf32>
    %229 = vector.broadcast %228 : vector<1x128xf32> to vector<128x128xf32>
    %230 = arith.addf %227, %229 : vector<128x128xf32>
    %cst_152 = arith.constant 0.000000e+00 : f32
    %231 = vector.broadcast %cst_152 : f32 to vector<128x128xf32>
    %232 = arith.maximumf %230, %231 : vector<128x128xf32>
    %233 = arith.truncf %232 : vector<128x128xf32> to vector<128x128xbf16>
    %c0_153 = arith.constant 0 : index
    %c512 = arith.constant 512 : index
    %234 = vector.load %arg10[%c0_153, %c512] : memref<128x640xbf16, #tpu.memory_space<vmem>>, vector<128x128xbf16>
    tpu.vector_store %arg10[%c0_153, %c512], %233 {strides = array<i32>} : memref<128x640xbf16, #tpu.memory_space<vmem>>, vector<128x128xbf16>,
    %c0_154 = arith.constant 0 : index
    %c0_155 = arith.constant 0 : index
    %235 = vector.load %arg10[%c0_154, %c0_155] : memref<128x640xbf16, #tpu.memory_space<vmem>>, vector<128x640xbf16>
    %c0_156 = arith.constant 0 : index
    %c0_157 = arith.constant 0 : index
    %236 = vector.load %arg4[%c0_156, %c0_157] : memref<640x512xbf16, #tpu.memory_space<vmem>>, vector<640x512xbf16>
    %cst_158 = arith.constant dense<0.000000e+00> : vector<128x512xf32>
    %237 = tpu.matmul %235, %236, %cst_158 {dimension_numbers = #tpu.dot_dimension_numbers<[1], [0], [0], [1], [0, 0, 1, 1], [], []>} : vector<128x640xbf16>, vector<640x512xbf16>, vector<128x512xf32> -> vector<128x512xf32>
    %c0_159 = arith.constant 0 : index
    %c0_160 = arith.constant 0 : index
    %238 = vector.load %arg6[%c0_159, %c0_160] : memref<1x512xf32, #tpu.memory_space<vmem>>, vector<1x512xf32>
    %239 = vector.broadcast %238 : vector<1x512xf32> to vector<128x512xf32>
    %240 = arith.addf %237, %239 : vector<128x512xf32>
    %cst_161 = arith.constant 0.000000e+00 : f32
    %241 = vector.broadcast %cst_161 : f32 to vector<128x512xf32>
    %242 = arith.maximumf %240, %241 : vector<128x512xf32>
    %243 = arith.extf %10 : vector<128x512xbf16> to vector<128x512xf32>
    %244 = arith.addf %242, %243 : vector<128x512xf32>
    %cst_162 = arith.constant 0.000000e+00 : f32
    %245 = vector.broadcast %cst_162 : f32 to vector<128x512xf32>
    %246 = arith.maximumf %244, %245 : vector<128x512xf32>
    %c0_163 = arith.constant 0 : index
    %c0_164 = arith.constant 0 : index
    %247 = vector.load %arg7[%c0_163, %c0_164] : memref<128x512xf32, #tpu.memory_space<vmem>>, vector<128x512xf32>
    tpu.vector_store %arg7[%c0_163, %c0_164], %246 {strides = array<i32>} : memref<128x512xf32, #tpu.memory_space<vmem>>, vector<128x512xf32>,
    return
  }
  func.func @transform_0(%arg0: i32) -> (i32, i32) {
    %c0_i32 = arith.constant 0 : i32
    %c0_i32_0 = arith.constant 0 : i32
    return %arg0, %c0_i32 : i32, i32
  }
  func.func @transform_1(%arg0: i32) -> (i32, i32) {
    %c0_i32 = arith.constant 0 : i32
    %c0_i32_0 = arith.constant 0 : i32
    %c0_i32_1 = arith.constant 0 : i32
    return %c0_i32, %c0_i32_0 : i32, i32
  }
  func.func @transform_2(%arg0: i32) -> (i32, i32, i32) {
    %c0_i32 = arith.constant 0 : i32
    %c0_i32_0 = arith.constant 0 : i32
    %c0_i32_1 = arith.constant 0 : i32
    %c0_i32_2 = arith.constant 0 : i32
    return %c0_i32, %c0_i32_0, %c0_i32_1 : i32, i32, i32
  }
  func.func @transform_3(%arg0: i32) -> (i32, i32) {
    %c0_i32 = arith.constant 0 : i32
    %c0_i32_0 = arith.constant 0 : i32
    %c0_i32_1 = arith.constant 0 : i32
    return %c0_i32, %c0_i32_0 : i32, i32
  }
  func.func @transform_4(%arg0: i32) -> (i32, i32) {
    %c0_i32 = arith.constant 0 : i32
    %c0_i32_0 = arith.constant 0 : i32
    %c0_i32_1 = arith.constant 0 : i32
    return %c0_i32, %c0_i32_0 : i32, i32
  }
  func.func @transform_5(%arg0: i32) -> (i32, i32) {
    %c0_i32 = arith.constant 0 : i32
    %c0_i32_0 = arith.constant 0 : i32
    %c0_i32_1 = arith.constant 0 : i32
    return %c0_i32, %c0_i32_0 : i32, i32
  }
  func.func @transform_6(%arg0: i32) -> (i32, i32) {
    %c0_i32 = arith.constant 0 : i32
    %c0_i32_0 = arith.constant 0 : i32
    return %arg0, %c0_i32 : i32, i32
  }
}

</mosaic_0001>

<llo_original>
// kernel: fems_forward.1
$region0: #{fems_forward.1}
  #allocation0 [shape = 'u32[]', space=smem, size = 0x4, offset = 0x4, fixed_abs, tag = 'smem constant byte address 0x4 - core index']
  #allocation1 [shape = 'u32[144,128]{1,0:T(1,128)}', space=vmem, size = 0x12000, scoped, tag = 'internal scratch']
  #allocation2 [shape = 'bf16[192,128]{1,0:T(16,128)(2,1)}', space=vmem, size = 0xc000, scoped, tag = 'scratch operand']
  #allocation3 [shape = 'bf16[128,384]{1,0:T(16,128)(2,1)}', space=vmem, size = 0x18000, scoped, tag = 'scratch operand']
  #allocation4 [shape = 'bf16[128,640]{1,0:T(16,128)(2,1)}', space=vmem, size = 0x28000, scoped, tag = 'scratch operand']
  %s0 = inlined_call_operand.vmem [shape: bf16[128,512], index: 0, kind: input, shape index: {}]
  %s1 = inlined_call_operand.vmem [shape: bf16[512,128], index: 1, kind: input, shape index: {}]
  %s2 = inlined_call_operand.vmem [shape: bf16[6,384,128], index: 2, kind: input, shape index: {}]
  %s3 = inlined_call_operand.vmem [shape: bf16[640,512], index: 3, kind: input, shape index: {}]
  %s4 = inlined_call_operand.vmem [shape: f32[7,128], index: 4, kind: input, shape index: {}]
  %s5 = inlined_call_operand.vmem [shape: f32[1,512], index: 5, kind: input, shape index: {}]
  %s6 = inlined_call_operand.hbm [shape: f32[128,512], index: 6, kind: output, shape index: {}]
  %s7 = sld [smem:[#allocation0]]
  $region34: #{fems_forward.1} parent=0
    _
  %s9 = ssub.s32 1, %s7
  %s10 = scalar_select 0, %s9, %s7
  $region1: #{fems_forward.1} parent=0
    #allocation5 [shape = 'u8[262144]{0}', space=vmem, size = 0x40000, scoped, tag = 'output window, operand 0, single buffered']
    #allocation6 [shape = 's32[1]{0}', space=sflag, size = 0x4, scoped, tag = 'scoped memory for fems_forward.1']
    %11 = vsyncpa [#allocation6], 0
    // Predicated region
    $region2: #{fems_forward.1} parent=1 // pred_check
      _
    $region3: #{fems_forward.1} parent=1 // pred_check_branch
      %13 = sbr.rel (0) target = $region5
    $region4: #{fems_forward.1} parent=1 // pred_region
      _
    $region5: #{fems_forward.1} parent=1 // pred_fallthru
      _
    // Predicated region
    $region6: #{fems_forward.1} parent=1 // pred_check
      _
    $region7: #{fems_forward.1} parent=1 // pred_check_branch
      %15 = sbr.rel (0) target = $region9
    $region8: #{fems_forward.1} parent=1 // pred_region
      _
    $region9: #{fems_forward.1} parent=1 // pred_fallthru
      _
    // Predicated region
    $region10: #{fems_forward.1} parent=1 // pred_check
      _
    $region11: #{fems_forward.1} parent=1 // pred_check_branch
      %17 = sbr.rel (0) target = $region13
    $region12: #{fems_forward.1} parent=1 // pred_region
      _
    $region13: #{fems_forward.1} parent=1 // pred_fallthru
      _
    // Predicated region
    $region14: #{fems_forward.1} parent=1 // pred_check
      _
    $region15: #{fems_forward.1} parent=1 // pred_check_branch
      %19 = sbr.rel (0) target = $region17
    $region16: #{fems_forward.1} parent=1 // pred_region
      _
    $region17: #{fems_forward.1} parent=1 // pred_fallthru
      _
    // Predicated region
    $region18: #{fems_forward.1} parent=1 // pred_check
      _
    $region19: #{fems_forward.1} parent=1 // pred_check_branch
      %21 = sbr.rel (0) target = $region21
    $region20: #{fems_forward.1} parent=1 // pred_region
      _
    $region21: #{fems_forward.1} parent=1 // pred_fallthru
      _
    // Predicated region
    $region22: #{fems_forward.1} parent=1 // pred_check
      _
    $region23: #{fems_forward.1} parent=1 // pred_check_branch
      %23 = sbr.rel (0) target = $region25
    $region24: #{fems_forward.1} parent=1 // pred_region
      _
    $region25: #{fems_forward.1} parent=1 // pred_fallthru
      _
    %25 = vst [vmem:[#allocation2] sm:$0xff] 0
    %26 = vst [vmem:[#allocation2 + $0x8] sm:$0xff] 0
    %27 = vst [vmem:[#allocation2 + $0x50] sm:$0xff] 0
    %28 = vst [vmem:[#allocation2 + $0x58] sm:$0xff] 0
    %v29 = vlaneseq
    %v30 = vshrl.u32 %v29, 7
    %v31 = vadd.s32 %v30, 8
    %v32 = vadd.s32 %v30, 16
    %v33 = vadd.s32 %v30, 24
    %v34 = vadd.s32 %v30, 32
    %v35 = vadd.s32 %v30, 40
    %v36 = vadd.s32 %v30, 48
    %v37 = vadd.s32 %v30, 56
    %v38 = vadd.s32 %v30, 64
    %v39 = vadd.s32 %v30, 72
    %v40 = vadd.s32 %v30, 80
    %v41 = vadd.s32 %v30, 88
    %v42 = vadd.s32 %v30, 96
    %v43 = vadd.s32 %v30, 104
    %v44 = vadd.s32 %v30, 112
    %v45 = vadd.s32 %v30, 120
    %v46 = vand.u32 %v30, 7
    %v47 = vand.u32 %v31, 7
    %v48 = vand.u32 %v32, 7
    %v49 = vand.u32 %v33, 7
    %v50 = vand.u32 %v34, 7
    %v51 = vand.u32 %v35, 7
    %v52 = vand.u32 %v36, 7
    %v53 = vand.u32 %v37, 7
    %v54 = vand.u32 %v38, 7
    %v55 = vand.u32 %v39, 7
    %v56 = vand.u32 %v40, 7
    %v57 = vand.u32 %v41, 7
    %v58 = vand.u32 %v42, 7
    %v59 = vand.u32 %v43, 7
    %v60 = vand.u32 %v44, 7
    %v61 = vand.u32 %v45, 7
    %v62 = vshra.s32 %v30, 3
    %v63 = vshra.s32 %v31, 3
    %v64 = vshra.s32 %v32, 3
    %v65 = vshra.s32 %v33, 3
    %v66 = vshra.s32 %v34, 3
    %v67 = vshra.s32 %v35, 3
    %v68 = vshra.s32 %v36, 3
    %v69 = vshra.s32 %v37, 3
    %v70 = vshra.s32 %v38, 3
    %v71 = vshra.s32 %v39, 3
    %v72 = vshra.s32 %v40, 3
    %v73 = vshra.s32 %v41, 3
    %v74 = vshra.s32 %v42, 3
    %v75 = vshra.s32 %v43, 3
    %v76 = vshra.s32 %v44, 3
    %v77 = vshra.s32 %v45, 3
    %v78 = vand.u32 %v62, 7
    %v79 = vand.u32 %v63, 7
    %v80 = vand.u32 %v64, 7
    %v81 = vand.u32 %v65, 7
    %v82 = vand.u32 %v66, 7
    %v83 = vand.u32 %v67, 7
    %v84 = vand.u32 %v68, 7
    %v85 = vand.u32 %v69, 7
    %v86 = vand.u32 %v70, 7
    %v87 = vand.u32 %v71, 7
    %v88 = vand.u32 %v72, 7
    %v89 = vand.u32 %v73, 7
    %v90 = vand.u32 %v74, 7
    %v91 = vand.u32 %v75, 7
    %v92 = vand.u32 %v76, 7
    %v93 = vand.u32 %v77, 7
    %v94 = vld [vmem:[%s0] sm:$0xff]
    %v95 = vld [vmem:[%s0 + $0x8] sm:$0xff]
    %v96 = vld [vmem:[%s0 + $0x10] sm:$0xff]
    %v97 = vld [vmem:[%s0 + $0x18] sm:$0xff]
    %v98 = vld [vmem:[%s0 + $0x20] sm:$0xff]
    %v99 = vld [vmem:[%s0 + $0x28] sm:$0xff]
    %v100 = vld [vmem:[%s0 + $0x30] sm:$0xff]
    %v101 = vld [vmem:[%s0 + $0x38] sm:$0xff]
    %v102 = vld [vmem:[%s0 + $0x40] sm:$0xff]
    %v103 = vld [vmem:[%s0 + $0x48] sm:$0xff]
    %v104 = vld [vmem:[%s0 + $0x50] sm:$0xff]
    %v105 = vld [vmem:[%s0 + $0x58] sm:$0xff]
    %v106 = vld [vmem:[%s0 + $0x60] sm:$0xff]
    %v107 = vld [vmem:[%s0 + $0x68] sm:$0xff]
    %v108 = vld [vmem:[%s0 + $0x70] sm:$0xff]
    %v109 = vld [vmem:[%s0 + $0x78] sm:$0xff]
    %v110 = vld [vmem:[%s0 + $0x80] sm:$0xff]
    %v111 = vld [vmem:[%s0 + $0x88] sm:$0xff]
    %v112 = vld [vmem:[%s0 + $0x90] sm:$0xff]
    %v113 = vld [vmem:[%s0 + $0x98] sm:$0xff]
    %v114 = vld [vmem:[%s0 + $0xa0] sm:$0xff]
    %v115 = vld [vmem:[%s0 + $0xa8] sm:$0xff]
    %v116 = vld [vmem:[%s0 + $0xb0] sm:$0xff]
    %v117 = vld [vmem:[%s0 + $0xb8] sm:$0xff]
    %v118 = vld [vmem:[%s0 + $0xc0] sm:$0xff]
    %v119 = vld [vmem:[%s0 + $0xc8] sm:$0xff]
    %v120 = vld [vmem:[%s0 + $0xd0] sm:$0xff]
    %v121 = vld [vmem:[%s0 + $0xd8] sm:$0xff]
    %v122 = vld [vmem:[%s0 + $0xe0] sm:$0xff]
    %v123 = vld [vmem:[%s0 + $0xe8] sm:$0xff]
    %v124 = vld [vmem:[%s0 + $0xf0] sm:$0xff]
    %v125 = vld [vmem:[%s0 + $0xf8] sm:$0xff]
    %v126 = vld [vmem:[%s1] sm:$0xf]
    %v127 = vld [vmem:[%s1 + $0x4] sm:$0xf]
    %v128 = vld [vmem:[%s1 + $0x8] sm:$0xf]
    %v129 = vld [vmem:[%s1 + $0xc] sm:$0xf]
    %v130 = vld [vmem:[%s1 + $0x10] sm:$0xf]
    %v131 = vld [vmem:[%s1 + $0x14] sm:$0xf]
    %v132 = vld [vmem:[%s1 + $0x18] sm:$0xf]
    %v133 = vld [vmem:[%s1 + $0x1c] sm:$0xf]
    %v134 = vld [vmem:[%s1 + $0x20] sm:$0xf]
    %v135 = vld [vmem:[%s1 + $0x24] sm:$0xf]
    %v136 = vld [vmem:[%s1 + $0x28] sm:$0xf]
    %v137 = vld [vmem:[%s1 + $0x2c] sm:$0xf]
    %v138 = vld [vmem:[%s1 + $0x30] sm:$0xf]
    %v139 = vld [vmem:[%s1 + $0x34] sm:$0xf]
    %v140 = vld [vmem:[%s1 + $0x38] sm:$0xf]
    %v141 = vld [vmem:[%s1 + $0x3c] sm:$0xf]
    %v142 = vld [vmem:[%s1 + $0x40] sm:$0xf]
    %v143 = vld [vmem:[%s1 + $0x44] sm:$0xf]
    %v144 = vld [vmem:[%s1 + $0x48] sm:$0xf]
    %v145 = vld [vmem:[%s1 + $0x4c] sm:$0xf]
    %v146 = vld [vmem:[%s1 + $0x50] sm:$0xf]
    %v147 = vld [vmem:[%s1 + $0x54] sm:$0xf]
    %v148 = vld [vmem:[%s1 + $0x58] sm:$0xf]
    %v149 = vld [vmem:[%s1 + $0x5c] sm:$0xf]
    %v150 = vld [vmem:[%s1 + $0x60] sm:$0xf]
    %v151 = vld [vmem:[%s1 + $0x64] sm:$0xf]
    %v152 = vld [vmem:[%s1 + $0x68] sm:$0xf]
    %v153 = vld [vmem:[%s1 + $0x6c] sm:$0xf]
    %v154 = vld [vmem:[%s1 + $0x70] sm:$0xf]
    %v155 = vld [vmem:[%s1 + $0x74] sm:$0xf]
    %v156 = vld [vmem:[%s1 + $0x78] sm:$0xf]
    %v157 = vld [vmem:[%s1 + $0x7c] sm:$0xf]
    %v158 = vld [vmem:[%s1 + $0x80] sm:$0xf]
    %v159 = vld [vmem:[%s1 + $0x84] sm:$0xf]
    %v160 = vld [vmem:[%s1 + $0x88] sm:$0xf]
    %v161 = vld [vmem:[%s1 + $0x8c] sm:$0xf]
    %v162 = vld [vmem:[%s1 + $0x90] sm:$0xf]
    %v163 = vld [vmem:[%s1 + $0x94] sm:$0xf]
    %v164 = vld [vmem:[%s1 + $0x98] sm:$0xf]
    %v165 = vld [vmem:[%s1 + $0x9c] sm:$0xf]
    %v166 = vld [vmem:[%s1 + $0xa0] sm:$0xf]
    %v167 = vld [vmem:[%s1 + $0xa4] sm:$0xf]
    %v168 = vld [vmem:[%s1 + $0xa8] sm:$0xf]
    %v169 = vld [vmem:[%s1 + $0xac] sm:$0xf]
    %v170 = vld [vmem:[%s1 + $0xb0] sm:$0xf]
    %v171 = vld [vmem:[%s1 + $0xb4] sm:$0xf]
    %v172 = vld [vmem:[%s1 + $0xb8] sm:$0xf]
    %v173 = vld [vmem:[%s1 + $0xbc] sm:$0xf]
    %v174 = vld [vmem:[%s1 + $0xc0] sm:$0xf]
    %v175 = vld [vmem:[%s1 + $0xc4] sm:$0xf]
    %v176 = vld [vmem:[%s1 + $0xc8] sm:$0xf]
    %v177 = vld [vmem:[%s1 + $0xcc] sm:$0xf]
    %v178 = vld [vmem:[%s1 + $0xd0] sm:$0xf]
    %v179 = vld [vmem:[%s1 + $0xd4] sm:$0xf]
    %v180 = vld [vmem:[%s1 + $0xd8] sm:$0xf]
    %v181 = vld [vmem:[%s1 + $0xdc] sm:$0xf]
    %v182 = vld [vmem:[%s1 + $0xe0] sm:$0xf]
    %v183 = vld [vmem:[%s1 + $0xe4] sm:$0xf]
    %v184 = vld [vmem:[%s1 + $0xe8] sm:$0xf]
    %v185 = vld [vmem:[%s1 + $0xec] sm:$0xf]
    %v186 = vld [vmem:[%s1 + $0xf0] sm:$0xf]
    %v187 = vld [vmem:[%s1 + $0xf4] sm:$0xf]
    %v188 = vld [vmem:[%s1 + $0xf8] sm:$0xf]
    %v189 = vld [vmem:[%s1 + $0xfc] sm:$0xf]
    %v190 = vld [vmem:[%s4] sm:$0x1]
    %v191 = vlaneseq
    %v192 = vshrl.u32 %v191, 7
    %v193 = vsub.s32 0, %v192
    %v194 = vrot.slane %v190, %v193
    %v227 = vunpack.c.l.b16 %v94
    %v228 = vunpack.c.h.b16 %v94
    %v229 = vunpack.c.l.b16 %v95
    %v230 = vunpack.c.h.b16 %v95
    %v231 = vunpack.c.l.b16 %v96
    %v232 = vunpack.c.h.b16 %v96
    %v233 = vunpack.c.l.b16 %v97
    %v234 = vunpack.c.h.b16 %v97
    %v235 = vunpack.c.l.b16 %v98
    %v236 = vunpack.c.h.b16 %v98
    %v237 = vunpack.c.l.b16 %v99
    %v238 = vunpack.c.h.b16 %v99
    %v239 = vunpack.c.l.b16 %v100
    %v240 = vunpack.c.h.b16 %v100
    %v241 = vunpack.c.l.b16 %v101
    %v242 = vunpack.c.h.b16 %v101
    %v243 = vunpack.c.l.b16 %v102
    %v244 = vunpack.c.h.b16 %v102
    %v245 = vunpack.c.l.b16 %v103
    %v246 = vunpack.c.h.b16 %v103
    %v247 = vunpack.c.l.b16 %v104
    %v248 = vunpack.c.h.b16 %v104
    %v249 = vunpack.c.l.b16 %v105
    %v250 = vunpack.c.h.b16 %v105
    %v251 = vunpack.c.l.b16 %v106
    %v252 = vunpack.c.h.b16 %v106
    %v253 = vunpack.c.l.b16 %v107
    %v254 = vunpack.c.h.b16 %v107
    %v255 = vunpack.c.l.b16 %v108
    %v256 = vunpack.c.h.b16 %v108
    %v257 = vunpack.c.l.b16 %v109
    %v258 = vunpack.c.h.b16 %v109
    %v259 = vunpack.c.l.b16 %v110
    %v260 = vunpack.c.h.b16 %v110
    %v261 = vunpack.c.l.b16 %v111
    %v262 = vunpack.c.h.b16 %v111
    %v263 = vunpack.c.l.b16 %v112
    %v264 = vunpack.c.h.b16 %v112
    %v265 = vunpack.c.l.b16 %v113
    %v266 = vunpack.c.h.b16 %v113
    %v267 = vunpack.c.l.b16 %v114
    %v268 = vunpack.c.h.b16 %v114
    %v269 = vunpack.c.l.b16 %v115
    %v270 = vunpack.c.h.b16 %v115
    %v271 = vunpack.c.l.b16 %v116
    %v272 = vunpack.c.h.b16 %v116
    %v273 = vunpack.c.l.b16 %v117
    %v274 = vunpack.c.h.b16 %v117
    %v275 = vunpack.c.l.b16 %v118
    %v276 = vunpack.c.h.b16 %v118
    %v277 = vunpack.c.l.b16 %v119
    %v278 = vunpack.c.h.b16 %v119
    %v279 = vunpack.c.l.b16 %v120
    %v280 = vunpack.c.h.b16 %v120
    %v281 = vunpack.c.l.b16 %v121
    %v282 = vunpack.c.h.b16 %v121
    %v283 = vunpack.c.l.b16 %v122
    %v284 = vunpack.c.h.b16 %v122
    %v285 = vunpack.c.l.b16 %v123
    %v286 = vunpack.c.h.b16 %v123
    %v287 = vunpack.c.l.b16 %v124
    %v288 = vunpack.c.h.b16 %v124
    %v289 = vunpack.c.l.b16 %v125
    %v290 = vunpack.c.h.b16 %v125
    %v291 = vpack.c.b16 %v231, %v227
    %v292 = vpack.c.b16 %v232, %v228
    %v293 = vpack.c.b16 %v233, %v229
    %v294 = vpack.c.b16 %v234, %v230
    %v295 = vpack.c.b16 %v239, %v235
    %v296 = vpack.c.b16 %v240, %v236
    %v297 = vpack.c.b16 %v241, %v237
    %v298 = vpack.c.b16 %v242, %v238
    %v299 = vpack.c.b16 %v247, %v243
    %v300 = vpack.c.b16 %v248, %v244
    %v301 = vpack.c.b16 %v249, %v245
    %v302 = vpack.c.b16 %v250, %v246
    %v303 = vpack.c.b16 %v255, %v251
    %v304 = vpack.c.b16 %v256, %v252
    %v305 = vpack.c.b16 %v257, %v253
    %v306 = vpack.c.b16 %v258, %v254
    %v307 = vpack.c.b16 %v263, %v259
    %v308 = vpack.c.b16 %v264, %v260
    %v309 = vpack.c.b16 %v265, %v261
    %v310 = vpack.c.b16 %v266, %v262
    %v311 = vpack.c.b16 %v271, %v267
    %v312 = vpack.c.b16 %v272, %v268
    %v313 = vpack.c.b16 %v273, %v269
    %v314 = vpack.c.b16 %v274, %v270
    %v315 = vpack.c.b16 %v279, %v275
    %v316 = vpack.c.b16 %v280, %v276
    %v317 = vpack.c.b16 %v281, %v277
    %v318 = vpack.c.b16 %v282, %v278
    %v319 = vpack.c.b16 %v287, %v283
    %v320 = vpack.c.b16 %v288, %v284
    %v321 = vpack.c.b16 %v289, %v285
    %v322 = vpack.c.b16 %v290, %v286
    %v419 = vunpack.c.l.b16 %v126
    %v420 = vunpack.c.l.b16 %v127
    %v421 = vunpack.c.l.b16 %v128
    %v422 = vunpack.c.l.b16 %v129
    %v423 = vunpack.c.l.b16 %v130
    %v424 = vunpack.c.l.b16 %v131
    %v425 = vunpack.c.l.b16 %v132
    %v426 = vunpack.c.l.b16 %v133
    %v427 = vunpack.c.l.b16 %v134
    %v428 = vunpack.c.l.b16 %v135
    %v429 = vunpack.c.l.b16 %v136
    %v430 = vunpack.c.l.b16 %v137
    %v431 = vunpack.c.l.b16 %v138
    %v432 = vunpack.c.l.b16 %v139
    %v433 = vunpack.c.l.b16 %v140
    %v434 = vunpack.c.l.b16 %v141
    %v435 = vunpack.c.l.b16 %v142
    %v436 = vunpack.c.l.b16 %v143
    %v437 = vunpack.c.l.b16 %v144
    %v438 = vunpack.c.l.b16 %v145
    %v439 = vunpack.c.l.b16 %v146
    %v440 = vunpack.c.l.b16 %v147
    %v441 = vunpack.c.l.b16 %v148
    %v442 = vunpack.c.l.b16 %v149
    %v443 = vunpack.c.l.b16 %v150
    %v444 = vunpack.c.l.b16 %v151
    %v445 = vunpack.c.l.b16 %v152
    %v446 = vunpack.c.l.b16 %v153
    %v447 = vunpack.c.l.b16 %v154
    %v448 = vunpack.c.l.b16 %v155
    %v449 = vunpack.c.l.b16 %v156
    %v450 = vunpack.c.l.b16 %v157
    %v451 = vunpack.c.l.b16 %v158
    %v452 = vunpack.c.l.b16 %v159
    %v453 = vunpack.c.l.b16 %v160
    %v454 = vunpack.c.l.b16 %v161
    %v455 = vunpack.c.l.b16 %v162
    %v456 = vunpack.c.l.b16 %v163
    %v457 = vunpack.c.l.b16 %v164
    %v458 = vunpack.c.l.b16 %v165
    %v459 = vunpack.c.l.b16 %v166
    %v460 = vunpack.c.l.b16 %v167
    %v461 = vunpack.c.l.b16 %v168
    %v462 = vunpack.c.l.b16 %v169
    %v463 = vunpack.c.l.b16 %v170
    %v464 = vunpack.c.l.b16 %v171
    %v465 = vunpack.c.l.b16 %v172
    %v466 = vunpack.c.l.b16 %v173
    %v467 = vunpack.c.l.b16 %v174
    %v468 = vunpack.c.l.b16 %v175
    %v469 = vunpack.c.l.b16 %v176
    %v470 = vunpack.c.l.b16 %v177
    %v471 = vunpack.c.l.b16 %v178
    %v472 = vunpack.c.l.b16 %v179
    %v473 = vunpack.c.l.b16 %v180
    %v474 = vunpack.c.l.b16 %v181
    %v475 = vunpack.c.l.b16 %v182
    %v476 = vunpack.c.l.b16 %v183
    %v477 = vunpack.c.l.b16 %v184
    %v478 = vunpack.c.l.b16 %v185
    %v479 = vunpack.c.l.b16 %v186
    %v480 = vunpack.c.l.b16 %v187
    %v481 = vunpack.c.l.b16 %v188
    %v482 = vunpack.c.l.b16 %v189
    %v483 = vpack.c.b16 %v420, %v419
    %v484 = vpack.c.b16 %v422, %v421
    %v485 = vpack.c.b16 %v424, %v423
    %v486 = vpack.c.b16 %v426, %v425
    %v487 = vpack.c.b16 %v428, %v427
    %v488 = vpack.c.b16 %v430, %v429
    %v489 = vpack.c.b16 %v432, %v431
    %v490 = vpack.c.b16 %v434, %v433
    %v491 = vpack.c.b16 %v436, %v435
    %v492 = vpack.c.b16 %v438, %v437
    %v493 = vpack.c.b16 %v440, %v439
    %v494 = vpack.c.b16 %v442, %v441
    %v495 = vpack.c.b16 %v444, %v443
    %v496 = vpack.c.b16 %v446, %v445
    %v497 = vpack.c.b16 %v448, %v447
    %v498 = vpack.c.b16 %v450, %v449
    %v499 = vpack.c.b16 %v452, %v451
    %v500 = vpack.c.b16 %v454, %v453
    %v501 = vpack.c.b16 %v456, %v455
    %v502 = vpack.c.b16 %v458, %v457
    %v503 = vpack.c.b16 %v460, %v459
    %v504 = vpack.c.b16 %v462, %v461
    %v505 = vpack.c.b16 %v464, %v463
    %v506 = vpack.c.b16 %v466, %v465
    %v507 = vpack.c.b16 %v468, %v467
    %v508 = vpack.c.b16 %v470, %v469
    %v509 = vpack.c.b16 %v472, %v471
    %v510 = vpack.c.b16 %v474, %v473
    %v511 = vpack.c.b16 %v476, %v475
    %v512 = vpack.c.b16 %v478, %v477
    %v513 = vpack.c.b16 %v480, %v479
    %v514 = vpack.c.b16 %v482, %v481
    %547 = vmatprep.subr.bf16.mxu0 0
    %548 = vmatpush1.bf16.msra.mxu0 %v483
    %549 = vmatprep.subr.bf16.mxu0 0
    %550 = vmatpush1.bf16.msra.mxu0 %v484
    %551 = vmatprep.subr.bf16.mxu0 0
    %552 = vmatpush1.bf16.msra.mxu0 %v485
    %553 = vmatprep.subr.bf16.mxu0 0
    %554 = vmatpush1.bf16.msra.mxu0 %v486
    %555 = vmatprep.subr.bf16.mxu0 0
    %556 = vmatpush1.bf16.msra.mxu0 %v487
    %557 = vmatprep.subr.bf16.mxu0 0
    %558 = vmatpush1.bf16.msra.mxu0 %v488
    %559 = vmatprep.subr.bf16.mxu0 0
    %560 = vmatpush1.bf16.msra.mxu0 %v489
    %561 = vmatprep.subr.bf16.mxu0 0
    %562 = vmatpush1.bf16.msra.mxu0 %v490
    %563 = vmatprep.subr.bf16.mxu0 0
    %564 = vmatpush1.bf16.msra.mxu0 %v491
    %565 = vmatprep.subr.bf16.mxu0 0
    %566 = vmatpush1.bf16.msra.mxu0 %v492
    %567 = vmatprep.subr.bf16.mxu0 0
    %568 = vmatpush1.bf16.msra.mxu0 %v493
    %569 = vmatprep.subr.bf16.mxu0 0
    %570 = vmatpush1.bf16.msra.mxu0 %v494
    %571 = vmatprep.subr.bf16.mxu0 0
    %572 = vmatpush1.bf16.msra.mxu0 %v495
    %573 = vmatprep.subr.bf16.mxu0 0
    %574 = vmatpush1.bf16.msra.mxu0 %v496
    %575 = vmatprep.subr.bf16.mxu0 0
    %576 = vmatpush1.bf16.msra.mxu0 %v497
    %577 = vmatprep.subr.bf16.mxu0 0
    %578 = vmatpush1.bf16.msra.mxu0 %v498
    %579 = vmatprep.mubr.bf16.mxu0 %v292
    %580 = vmatmul.mubr.bf16.gmra.mrb[0].mxu0 %v291
    %v581 = vpop.f32.mrb[0].mxu0
    %v582 = vadd.f32 %v194, %v581
    %v583 = vpop.f32.mrb[0].mxu0
    %v584 = vpop.f32.mrb[0].mxu0
    %v585 = vadd.f32 %v194, %v584
    %v586 = vpop.f32.mrb[0].mxu0
    %587 = vmatprep.mubr.bf16.mxu0 %v296
    %588 = vmatmul.mubr.bf16.gmra.mrb[0].mxu0 %v295
    %v589 = vpop.f32.mrb[0].mxu0
    %v590 = vadd.f32 %v194, %v589
    %v591 = vpop.f32.mrb[0].mxu0
    %v592 = vpop.f32.mrb[0].mxu0
    %v593 = vadd.f32 %v194, %v592
    %v594 = vpop.f32.mrb[0].mxu0
    %595 = vmatprep.mubr.bf16.mxu0 %v300
    %596 = vmatmul.mubr.bf16.gmra.mrb[0].mxu0 %v299
    %v597 = vpop.f32.mrb[0].mxu0
    %v598 = vadd.f32 %v194, %v597
    %v599 = vpop.f32.mrb[0].mxu0
    %v600 = vpop.f32.mrb[0].mxu0
    %v601 = vadd.f32 %v194, %v600
    %v602 = vpop.f32.mrb[0].mxu0
    %603 = vmatprep.mubr.bf16.mxu0 %v304
    %604 = vmatmul.mubr.bf16.gmra.mrb[0].mxu0 %v303
    %v605 = vpop.f32.mrb[0].mxu0
    %v606 = vadd.f32 %v194, %v605
    %v607 = vpop.f32.mrb[0].mxu0
    %v608 = vpop.f32.mrb[0].mxu0
    %v609 = vadd.f32 %v194, %v608
    %v610 = vpop.f32.mrb[0].mxu0
    %611 = vmatprep.mubr.bf16.mxu0 %v308
    %612 = vmatmul.mubr.bf16.gmra.mrb[0].mxu0 %v307
    %v613 = vpop.f32.mrb[0].mxu0
    %v614 = vadd.f32 %v194, %v613
    %v615 = vpop.f32.mrb[0].mxu0
    %v616 = vpop.f32.mrb[0].mxu0
    %v617 = vadd.f32 %v194, %v616
    %v618 = vpop.f32.mrb[0].mxu0
    %619 = vmatprep.mubr.bf16.mxu0 %v312
    %620 = vmatmul.mubr.bf16.gmra.mrb[0].mxu0 %v311
    %v621 = vpop.f32.mrb[0].mxu0
    %v622 = vadd.f32 %v194, %v621
    %v623 = vpop.f32.mrb[0].mxu0
    %v624 = vpop.f32.mrb[0].mxu0
    %v625 = vadd.f32 %v194, %v624
    %v626 = vpop.f32.mrb[0].mxu0
    %627 = vmatprep.mubr.bf16.mxu0 %v316
    %628 = vmatmul.mubr.bf16.gmra.mrb[0].mxu0 %v315
    %v629 = vpop.f32.mrb[0].mxu0
    %v630 = vadd.f32 %v194, %v629
    %v631 = vpop.f32.mrb[0].mxu0
    %v632 = vpop.f32.mrb[0].mxu0
    %v633 = vadd.f32 %v194, %v632
    %v634 = vpop.f32.mrb[0].mxu0
    %635 = vmatprep.mubr.bf16.mxu0 %v320
    %636 = vmatmul.mubr.bf16.gmra.mrb[0].mxu0 %v319
    %v637 = vpop.f32.mrb[0].mxu0
    %v638 = vadd.f32 %v194, %v637
    %v639 = vpop.f32.mrb[0].mxu0
    %v640 = vpop.f32.mrb[0].mxu0
    %v641 = vadd.f32 %v194, %v640
    %v642 = vpop.f32.mrb[0].mxu0
    %643 = vdwg.mxu0
    %644 = vmatprep.subr.bf16.mxu0 0
    %645 = vmatpush1.bf16.msra.mxu0 %v499
    %646 = vmatprep.subr.bf16.mxu0 0
    %647 = vmatpush1.bf16.msra.mxu0 %v500
    %648 = vmatprep.subr.bf16.mxu0 0
    %649 = vmatpush1.bf16.msra.mxu0 %v501
    %650 = vmatprep.subr.bf16.mxu0 0
    %651 = vmatpush1.bf16.msra.mxu0 %v502
    %652 = vmatprep.subr.bf16.mxu0 0
    %653 = vmatpush1.bf16.msra.mxu0 %v503
    %654 = vmatprep.subr.bf16.mxu0 0
    %655 = vmatpush1.bf16.msra.mxu0 %v504
    %656 = vmatprep.subr.bf16.mxu0 0
    %657 = vmatpush1.bf16.msra.mxu0 %v505
    %658 = vmatprep.subr.bf16.mxu0 0
    %659 = vmatpush1.bf16.msra.mxu0 %v506
    %660 = vmatprep.subr.bf16.mxu0 0
    %661 = vmatpush1.bf16.msra.mxu0 %v507
    %662 = vmatprep.subr.bf16.mxu0 0
    %663 = vmatpush1.bf16.msra.mxu0 %v508
    %664 = vmatprep.subr.bf16.mxu0 0
    %665 = vmatpush1.bf16.msra.mxu0 %v509
    %666 = vmatprep.subr.bf16.mxu0 0
    %667 = vmatpush1.bf16.msra.mxu0 %v510
    %668 = vmatprep.subr.bf16.mxu0 0
    %669 = vmatpush1.bf16.msra.mxu0 %v511
    %670 = vmatprep.subr.bf16.mxu0 0
    %671 = vmatpush1.bf16.msra.mxu0 %v512
    %672 = vmatprep.subr.bf16.mxu0 0
    %673 = vmatpush1.bf16.msra.mxu0 %v513
    %674 = vmatprep.subr.bf16.mxu0 0
    %675 = vmatpush1.bf16.msra.mxu0 %v514
    %676 = vmatprep.mubr.bf16.mxu0 %v294
    %677 = vmatmul.mubr.bf16.gmra.mrb[0].mxu0 %v293
    %v678 = vpop.f32.mrb[0].mxu0
    %v679 = vadd.f32 %v582, %v678
    %v680 = vpop.f32.mrb[0].mxu0
    %v681 = vpop.f32.mrb[0].mxu0
    %v682 = vadd.f32 %v585, %v681
    %v683 = vpop.f32.mrb[0].mxu0
    %684 = vmatprep.mubr.bf16.mxu0 %v298
    %685 = vmatmul.mubr.bf16.gmra.mrb[0].mxu0 %v297
    %v686 = vpop.f32.mrb[0].mxu0
    %v687 = vadd.f32 %v590, %v686
    %v688 = vpop.f32.mrb[0].mxu0
    %v689 = vpop.f32.mrb[0].mxu0
    %v690 = vadd.f32 %v593, %v689
    %v691 = vpop.f32.mrb[0].mxu0
    %692 = vmatprep.mubr.bf16.mxu0 %v302
    %693 = vmatmul.mubr.bf16.gmra.mrb[0].mxu0 %v301
    %v694 = vpop.f32.mrb[0].mxu0
    %v695 = vadd.f32 %v598, %v694
    %v696 = vpop.f32.mrb[0].mxu0
    %v697 = vpop.f32.mrb[0].mxu0
    %v698 = vadd.f32 %v601, %v697
    %v699 = vpop.f32.mrb[0].mxu0
    %700 = vmatprep.mubr.bf16.mxu0 %v306
    %701 = vmatmul.mubr.bf16.gmra.mrb[0].mxu0 %v305
    %v702 = vpop.f32.mrb[0].mxu0
    %v703 = vadd.f32 %v606, %v702
    %v704 = vpop.f32.mrb[0].mxu0
    %v705 = vpop.f32.mrb[0].mxu0
    %v706 = vadd.f32 %v609, %v705
    %v707 = vpop.f32.mrb[0].mxu0
    %708 = vmatprep.mubr.bf16.mxu0 %v310
    %709 = vmatmul.mubr.bf16.gmra.mrb[0].mxu0 %v309
    %v710 = vpop.f32.mrb[0].mxu0
    %v711 = vadd.f32 %v614, %v710
    %v712 = vpop.f32.mrb[0].mxu0
    %v713 = vpop.f32.mrb[0].mxu0
    %v714 = vadd.f32 %v617, %v713
    %v715 = vpop.f32.mrb[0].mxu0
    %716 = vmatprep.mubr.bf16.mxu0 %v314
    %717 = vmatmul.mubr.bf16.gmra.mrb[0].mxu0 %v313
    %v718 = vpop.f32.mrb[0].mxu0
    %v719 = vadd.f32 %v622, %v718
    %v720 = vpop.f32.mrb[0].mxu0
    %v721 = vpop.f32.mrb[0].mxu0
    %v722 = vadd.f32 %v625, %v721
    %v723 = vpop.f32.mrb[0].mxu0
    %724 = vmatprep.mubr.bf16.mxu0 %v318
    %725 = vmatmul.mubr.bf16.gmra.mrb[0].mxu0 %v317
    %v726 = vpop.f32.mrb[0].mxu0
    %v727 = vadd.f32 %v630, %v726
    %v728 = vpop.f32.mrb[0].mxu0
    %v729 = vpop.f32.mrb[0].mxu0
    %v730 = vadd.f32 %v633, %v729
    %v731 = vpop.f32.mrb[0].mxu0
    %732 = vmatprep.mubr.bf16.mxu0 %v322
    %733 = vmatmul.mubr.bf16.gmra.mrb[0].mxu0 %v321
    %v734 = vpop.f32.mrb[0].mxu0
    %v735 = vadd.f32 %v638, %v734
    %v736 = vpop.f32.mrb[0].mxu0
    %v737 = vpop.f32.mrb[0].mxu0
    %v738 = vadd.f32 %v641, %v737
    %v739 = vpop.f32.mrb[0].mxu0
    %740 = vdwg.mxu0
    %v741 = vmax.f32 %v679, 0.0
    %v742 = vmax.f32 %v682, 0.0
    %v743 = vmax.f32 %v687, 0.0
    %v744 = vmax.f32 %v690, 0.0
    %v745 = vmax.f32 %v695, 0.0
    %v746 = vmax.f32 %v698, 0.0
    %v747 = vmax.f32 %v703, 0.0
    %v748 = vmax.f32 %v706, 0.0
    %v749 = vmax.f32 %v711, 0.0
    %v750 = vmax.f32 %v714, 0.0
    %v751 = vmax.f32 %v719, 0.0
    %v752 = vmax.f32 %v722, 0.0
    %v753 = vmax.f32 %v727, 0.0
    %v754 = vmax.f32 %v730, 0.0
    %v755 = vmax.f32 %v735, 0.0
    %v756 = vmax.f32 %v738, 0.0
    %v757 = vpack.c.bf16 %v742, %v741
    %v758 = vpack.c.bf16 %v744, %v743
    %v759 = vpack.c.bf16 %v746, %v745
    %v760 = vpack.c.bf16 %v748, %v747
    %v761 = vpack.c.bf16 %v750, %v749
    %v762 = vpack.c.bf16 %v752, %v751
    %v763 = vpack.c.bf16 %v754, %v753
    %v764 = vpack.c.bf16 %v756, %v755
    %765 = vst [vmem:[#allocation2 + $0x10] sm:$0xff] %v757
    %766 = vst [vmem:[#allocation2 + $0x18] sm:$0xff] %v758
    %767 = vst [vmem:[#allocation2 + $0x20] sm:$0xff] %v759
    %768 = vst [vmem:[#allocation2 + $0x28] sm:$0xff] %v760
    %769 = vst [vmem:[#allocation2 + $0x30] sm:$0xff] %v761
    %770 = vst [vmem:[#allocation2 + $0x38] sm:$0xff] %v762
    %771 = vst [vmem:[#allocation2 + $0x40] sm:$0xff] %v763
    %772 = vst [vmem:[#allocation2 + $0x48] sm:$0xff] %v764
    %773 = vst [vmem:[#allocation3 + $0x8] sm:$0xff] %v757
    %774 = vst [vmem:[#allocation3 + $0x20] sm:$0xff] %v758
    %775 = vst [vmem:[#allocation3 + $0x38] sm:$0xff] %v759
    %776 = vst [vmem:[#allocation3 + $0x50] sm:$0xff] %v760
    %777 = vst [vmem:[#allocation3 + $0x68] sm:$0xff] %v761
    %778 = vst [vmem:[#allocation3 + $0x80] sm:$0xff] %v762
    %779 = vst [vmem:[#allocation3 + $0x98] sm:$0xff] %v763
    %780 = vst [vmem:[#allocation3 + $0xb0] sm:$0xff] %v764
    %v781 = vld [vmem:[#allocation2 + $0x8] sm:$0x80]
    %v782 = vld [vmem:[#allocation2 + $0x10] sm:$0xff]
    %v783 = vld [vmem:[#allocation2 + $0x18] sm:$0xff]
    %v784 = vld [vmem:[#allocation2 + $0x20] sm:$0xff]
    %v785 = vld [vmem:[#allocation2 + $0x28] sm:$0xff]
    %v786 = vld [vmem:[#allocation2 + $0x30] sm:$0xff]
    %v787 = vld [vmem:[#allocation2 + $0x38] sm:$0xff]
    %v788 = vld [vmem:[#allocation2 + $0x40] sm:$0xff]
    %v789 = vld [vmem:[#allocation2 + $0x48] sm:$0xff]
    %v790 = vadd.s32 %v46, 4294967295
    %v791 = vadd.s32 %v47, 4294967295
    %v792 = vadd.s32 %v48, 4294967295
    %v793 = vadd.s32 %v49, 4294967295
    %v794 = vadd.s32 %v50, 4294967295
    %v795 = vadd.s32 %v51, 4294967295
    %v796 = vadd.s32 %v52, 4294967295
    %v797 = vadd.s32 %v53, 4294967295
    %v798 = vadd.s32 %v54, 4294967295
    %v799 = vadd.s32 %v55, 4294967295
    %v800 = vadd.s32 %v56, 4294967295
    %v801 = vadd.s32 %v57, 4294967295
    %v802 = vadd.s32 %v58, 4294967295
    %v803 = vadd.s32 %v59, 4294967295
    %v804 = vadd.s32 %v60, 4294967295
    %v805 = vadd.s32 %v61, 4294967295
    %vm806 = vcmp.ge.s32.totalorder %v790, 0
    %vm807 = vcmp.ge.s32.totalorder %v791, 0
    %vm808 = vcmp.ge.s32.totalorder %v792, 0
    %vm809 = vcmp.ge.s32.totalorder %v793, 0
    %vm810 = vcmp.ge.s32.totalorder %v794, 0
    %vm811 = vcmp.ge.s32.totalorder %v795, 0
    %vm812 = vcmp.ge.s32.totalorder %v796, 0
    %vm813 = vcmp.ge.s32.totalorder %v797, 0
    %vm814 = vcmp.ge.s32.totalorder %v798, 0
    %vm815 = vcmp.ge.s32.totalorder %v799, 0
    %vm816 = vcmp.ge.s32.totalorder %v800, 0
    %vm817 = vcmp.ge.s32.totalorder %v801, 0
    %vm818 = vcmp.ge.s32.totalorder %v802, 0
    %vm819 = vcmp.ge.s32.totalorder %v803, 0
    %vm820 = vcmp.ge.s32.totalorder %v804, 0
    %vm821 = vcmp.ge.s32.totalorder %v805, 0
    %vm822 = vcmp.lt.s32.totalorder %v790, 8
    %vm823 = vcmp.lt.s32.totalorder %v791, 8
    %vm824 = vcmp.lt.s32.totalorder %v792, 8
    %vm825 = vcmp.lt.s32.totalorder %v793, 8
    %vm826 = vcmp.lt.s32.totalorder %v794, 8
    %vm827 = vcmp.lt.s32.totalorder %v795, 8
    %vm828 = vcmp.lt.s32.totalorder %v796, 8
    %vm829 = vcmp.lt.s32.totalorder %v797, 8
    %vm830 = vcmp.lt.s32.totalorder %v798, 8
    %vm831 = vcmp.lt.s32.totalorder %v799, 8
    %vm832 = vcmp.lt.s32.totalorder %v800, 8
    %vm833 = vcmp.lt.s32.totalorder %v801, 8
    %vm834 = vcmp.lt.s32.totalorder %v802, 8
    %vm835 = vcmp.lt.s32.totalorder %v803, 8
    %vm836 = vcmp.lt.s32.totalorder %v804, 8
    %vm837 = vcmp.lt.s32.totalorder %v805, 8
    %vm838 = vmand %vm806, %vm822
    %vm839 = vmand %vm807, %vm823
    %vm840 = vmand %vm808, %vm824
    %vm841 = vmand %vm809, %vm825
    %vm842 = vmand %vm810, %vm826
    %vm843 = vmand %vm811, %vm827
    %vm844 = vmand %vm812, %vm828
    %vm845 = vmand %vm813, %vm829
    %vm846 = vmand %vm814, %vm830
    %vm847 = vmand %vm815, %vm831
    %vm848 = vmand %vm816, %vm832
    %vm849 = vmand %vm817, %vm833
    %vm850 = vmand %vm818, %vm834
    %vm851 = vmand %vm819, %vm835
    %vm852 = vmand %vm820, %vm836
    %vm853 = vmand %vm821, %vm837
    %v854 = vsel %vm838, 1, 0
    %v855 = vsel %vm839, 1, 0
    %v856 = vsel %vm840, 1, 0
    %v857 = vsel %vm841, 1, 0
    %v858 = vsel %vm842, 1, 0
    %v859 = vsel %vm843, 1, 0
    %v860 = vsel %vm844, 1, 0
    %v861 = vsel %vm845, 1, 0
    %v862 = vsel %vm846, 1, 0
    %v863 = vsel %vm847, 1, 0
    %v864 = vsel %vm848, 1, 0
    %v865 = vsel %vm849, 1, 0
    %v866 = vsel %vm850, 1, 0
    %v867 = vsel %vm851, 1, 0
    %v868 = vsel %vm852, 1, 0
    %v869 = vsel %vm853, 1, 0
    %v870 = vcvt.s32.f32 %v854
    %v871 = vcvt.s32.f32 %v855
    %v872 = vcvt.s32.f32 %v856
    %v873 = vcvt.s32.f32 %v857
    %v874 = vcvt.s32.f32 %v858
    %v875 = vcvt.s32.f32 %v859
    %v876 = vcvt.s32.f32 %v860
    %v877 = vcvt.s32.f32 %v861
    %v878 = vcvt.s32.f32 %v862
    %v879 = vcvt.s32.f32 %v863
    %v880 = vcvt.s32.f32 %v864
    %v881 = vcvt.s32.f32 %v865
    %v882 = vcvt.s32.f32 %v866
    %v883 = vcvt.s32.f32 %v867
    %v884 = vcvt.s32.f32 %v868
    %v885 = vcvt.s32.f32 %v869
    %v886 = vpack.c.bf16 %v871, %v870
    %v887 = vpack.c.bf16 %v873, %v872
    %v888 = vpack.c.bf16 %v875, %v874
    %v889 = vpack.c.bf16 %v877, %v876
    %v890 = vpack.c.bf16 %v879, %v878
    %v891 = vpack.c.bf16 %v881, %v880
    %v892 = vpack.c.bf16 %v883, %v882
    %v893 = vpack.c.bf16 %v885, %v884
    %vm894 = vsmask.f32 7424
    %v896 = vshll.u32 %v886, 16
    %v898 = vrot.slane %v896, 1
    %v899 = vshrl.u32 %v886, 16
    %v901 = vor.u32 %v899, %v898
    %v903 = vshll.u32 %v887, 16
    %v905 = vrot.slane %v903, 1
    %v906 = vsel %vm894, %v901, %v905
    %v907 = vshrl.u32 %v887, 16
    %v909 = vor.u32 %v907, %v905
    %v911 = vshll.u32 %v888, 16
    %v913 = vrot.slane %v911, 1
    %v914 = vsel %vm894, %v909, %v913
    %v915 = vshrl.u32 %v888, 16
    %v917 = vor.u32 %v915, %v913
    %v919 = vshll.u32 %v889, 16
    %v921 = vrot.slane %v919, 1
    %v922 = vsel %vm894, %v917, %v921
    %v923 = vshrl.u32 %v889, 16
    %v925 = vor.u32 %v923, %v921
    %v927 = vshll.u32 %v890, 16
    %v929 = vrot.slane %v927, 1
    %v930 = vsel %vm894, %v925, %v929
    %v931 = vshrl.u32 %v890, 16
    %v933 = vor.u32 %v931, %v929
    %v935 = vshll.u32 %v891, 16
    %v937 = vrot.slane %v935, 1
    %v938 = vsel %vm894, %v933, %v937
    %v939 = vshrl.u32 %v891, 16
    %v941 = vor.u32 %v939, %v937
    %v943 = vshll.u32 %v892, 16
    %v945 = vrot.slane %v943, 1
    %v946 = vsel %vm894, %v941, %v945
    %v947 = vshrl.u32 %v892, 16
    %v949 = vor.u32 %v947, %v945
    %v951 = vshll.u32 %v893, 16
    %v953 = vrot.slane %v951, 1
    %v954 = vsel %vm894, %v949, %v953
    %v955 = vshrl.u32 %v893, 16
    %v957 = vor.u32 %v955, %v953
    %v967 = vmul.bf16 %v781, %v898
    %v968 = vmul.bf16 %v782, %v906
    %v969 = vmul.bf16 %v783, %v914
    %v970 = vmul.bf16 %v784, %v922
    %v971 = vmul.bf16 %v785, %v930
    %v972 = vmul.bf16 %v786, %v938
    %v973 = vmul.bf16 %v787, %v946
    %v974 = vmul.bf16 %v788, %v954
    %v975 = vmul.bf16 %v789, %v957
    %vm976 = vsmask.f32 256
    %v978 = vshrl.u32 %v967, 16
    %v980 = vrot.slane %v978, 7
    %v982 = vshrl.u32 %v968, 16
    %v984 = vrot.slane %v982, 7
    %v985 = vshll.u32 %v968, 16
    %v987 = vor.u32 %v984, %v985
    %v988 = vsel %vm976, %v980, %v987
    %v990 = vshrl.u32 %v969, 16
    %v992 = vrot.slane %v990, 7
    %v993 = vshll.u32 %v969, 16
    %v995 = vor.u32 %v992, %v993
    %v996 = vsel %vm976, %v984, %v995
    %v998 = vshrl.u32 %v970, 16
    %v1000 = vrot.slane %v998, 7
    %v1001 = vshll.u32 %v970, 16
    %v1003 = vor.u32 %v1000, %v1001
    %v1004 = vsel %vm976, %v992, %v1003
    %v1006 = vshrl.u32 %v971, 16
    %v1008 = vrot.slane %v1006, 7
    %v1009 = vshll.u32 %v971, 16
    %v1011 = vor.u32 %v1008, %v1009
    %v1012 = vsel %vm976, %v1000, %v1011
    %v1014 = vshrl.u32 %v972, 16
    %v1016 = vrot.slane %v1014, 7
    %v1017 = vshll.u32 %v972, 16
    %v1019 = vor.u32 %v1016, %v1017
    %v1020 = vsel %vm976, %v1008, %v1019
    %v1022 = vshrl.u32 %v973, 16
    %v1024 = vrot.slane %v1022, 7
    %v1025 = vshll.u32 %v973, 16
    %v1027 = vor.u32 %v1024, %v1025
    %v1028 = vsel %vm976, %v1016, %v1027
    %v1030 = vshrl.u32 %v974, 16
    %v1032 = vrot.slane %v1030, 7
    %v1033 = vshll.u32 %v974, 16
    %v1035 = vor.u32 %v1032, %v1033
    %v1036 = vsel %vm976, %v1024, %v1035
    %v1038 = vshrl.u32 %v975, 16
    %v1040 = vrot.slane %v1038, 7
    %v1041 = vshll.u32 %v975, 16
    %v1043 = vor.u32 %v1040, %v1041
    %v1044 = vsel %vm976, %v1032, %v1043
    %1053 = vst [vmem:[#allocation3] sm:$0xff] %v988
    %1054 = vst [vmem:[#allocation3 + $0x18] sm:$0xff] %v996
    %1055 = vst [vmem:[#allocation3 + $0x30] sm:$0xff] %v1004
    %1056 = vst [vmem:[#allocation3 + $0x48] sm:$0xff] %v1012
    %1057 = vst [vmem:[#allocation3 + $0x60] sm:$0xff] %v1020
    %1058 = vst [vmem:[#allocation3 + $0x78] sm:$0xff] %v1028
    %1059 = vst [vmem:[#allocation3 + $0x90] sm:$0xff] %v1036
    %1060 = vst [vmem:[#allocation3 + $0xa8] sm:$0xff] %v1044
    %v1061 = vld [vmem:[#allocation2 + $0x10] sm:$0xff]
    %v1062 = vld [vmem:[#allocation2 + $0x18] sm:$0xff]
    %v1063 = vld [vmem:[#allocation2 + $0x20] sm:$0xff]
    %v1064 = vld [vmem:[#allocation2 + $0x28] sm:$0xff]
    %v1065 = vld [vmem:[#allocation2 + $0x30] sm:$0xff]
    %v1066 = vld [vmem:[#allocation2 + $0x38] sm:$0xff]
    %v1067 = vld [vmem:[#allocation2 + $0x40] sm:$0xff]
    %v1068 = vld [vmem:[#allocation2 + $0x48] sm:$0xff]
    %v1069 = vld [vmem:[#allocation2 + $0x50] sm:$0x1]
    %v1070 = vadd.s32 %v46, 1
    %v1071 = vadd.s32 %v47, 1
    %v1072 = vadd.s32 %v48, 1
    %v1073 = vadd.s32 %v49, 1
    %v1074 = vadd.s32 %v50, 1
    %v1075 = vadd.s32 %v51, 1
    %v1076 = vadd.s32 %v52, 1
    %v1077 = vadd.s32 %v53, 1
    %v1078 = vadd.s32 %v54, 1
    %v1079 = vadd.s32 %v55, 1
    %v1080 = vadd.s32 %v56, 1
    %v1081 = vadd.s32 %v57, 1
    %v1082 = vadd.s32 %v58, 1
    %v1083 = vadd.s32 %v59, 1
    %v1084 = vadd.s32 %v60, 1
    %v1085 = vadd.s32 %v61, 1
    %vm1086 = vcmp.ge.s32.totalorder %v1070, 0
    %vm1087 = vcmp.ge.s32.totalorder %v1071, 0
    %vm1088 = vcmp.ge.s32.totalorder %v1072, 0
    %vm1089 = vcmp.ge.s32.totalorder %v1073, 0
    %vm1090 = vcmp.ge.s32.totalorder %v1074, 0
    %vm1091 = vcmp.ge.s32.totalorder %v1075, 0
    %vm1092 = vcmp.ge.s32.totalorder %v1076, 0
    %vm1093 = vcmp.ge.s32.totalorder %v1077, 0
    %vm1094 = vcmp.ge.s32.totalorder %v1078, 0
    %vm1095 = vcmp.ge.s32.totalorder %v1079, 0
    %vm1096 = vcmp.ge.s32.totalorder %v1080, 0
    %vm1097 = vcmp.ge.s32.totalorder %v1081, 0
    %vm1098 = vcmp.ge.s32.totalorder %v1082, 0
    %vm1099 = vcmp.ge.s32.totalorder %v1083, 0
    %vm1100 = vcmp.ge.s32.totalorder %v1084, 0
    %vm1101 = vcmp.ge.s32.totalorder %v1085, 0
    %vm1102 = vcmp.lt.s32.totalorder %v1070, 8
    %vm1103 = vcmp.lt.s32.totalorder %v1071, 8
    %vm1104 = vcmp.lt.s32.totalorder %v1072, 8
    %vm1105 = vcmp.lt.s32.totalorder %v1073, 8
    %vm1106 = vcmp.lt.s32.totalorder %v1074, 8
    %vm1107 = vcmp.lt.s32.totalorder %v1075, 8
    %vm1108 = vcmp.lt.s32.totalorder %v1076, 8
    %vm1109 = vcmp.lt.s32.totalorder %v1077, 8
    %vm1110 = vcmp.lt.s32.totalorder %v1078, 8
    %vm1111 = vcmp.lt.s32.totalorder %v1079, 8
    %vm1112 = vcmp.lt.s32.totalorder %v1080, 8
    %vm1113 = vcmp.lt.s32.totalorder %v1081, 8
    %vm1114 = vcmp.lt.s32.totalorder %v1082, 8
    %vm1115 = vcmp.lt.s32.totalorder %v1083, 8
    %vm1116 = vcmp.lt.s32.totalorder %v1084, 8
    %vm1117 = vcmp.lt.s32.totalorder %v1085, 8
    %vm1118 = vmand %vm1086, %vm1102
    %vm1119 = vmand %vm1087, %vm1103
    %vm1120 = vmand %vm1088, %vm1104
    %vm1121 = vmand %vm1089, %vm1105
    %vm1122 = vmand %vm1090, %vm1106
    %vm1123 = vmand %vm1091, %vm1107
    %vm1124 = vmand %vm1092, %vm1108
    %vm1125 = vmand %vm1093, %vm1109
    %vm1126 = vmand %vm1094, %vm1110
    %vm1127 = vmand %vm1095, %vm1111
    %vm1128 = vmand %vm1096, %vm1112
    %vm1129 = vmand %vm1097, %vm1113
    %vm1130 = vmand %vm1098, %vm1114
    %vm1131 = vmand %vm1099, %vm1115
    %vm1132 = vmand %vm1100, %vm1116
    %vm1133 = vmand %vm1101, %vm1117
    %v1134 = vsel %vm1118, 1, 0
    %v1135 = vsel %vm1119, 1, 0
    %v1136 = vsel %vm1120, 1, 0
    %v1137 = vsel %vm1121, 1, 0
    %v1138 = vsel %vm1122, 1, 0
    %v1139 = vsel %vm1123, 1, 0
    %v1140 = vsel %vm1124, 1, 0
    %v1141 = vsel %vm1125, 1, 0
    %v1142 = vsel %vm1126, 1, 0
    %v1143 = vsel %vm1127, 1, 0
    %v1144 = vsel %vm1128, 1, 0
    %v1145 = vsel %vm1129, 1, 0
    %v1146 = vsel %vm1130, 1, 0
    %v1147 = vsel %vm1131, 1, 0
    %v1148 = vsel %vm1132, 1, 0
    %v1149 = vsel %vm1133, 1, 0
    %v1150 = vcvt.s32.f32 %v1134
    %v1151 = vcvt.s32.f32 %v1135
    %v1152 = vcvt.s32.f32 %v1136
    %v1153 = vcvt.s32.f32 %v1137
    %v1154 = vcvt.s32.f32 %v1138
    %v1155 = vcvt.s32.f32 %v1139
    %v1156 = vcvt.s32.f32 %v1140
    %v1157 = vcvt.s32.f32 %v1141
    %v1158 = vcvt.s32.f32 %v1142
    %v1159 = vcvt.s32.f32 %v1143
    %v1160 = vcvt.s32.f32 %v1144
    %v1161 = vcvt.s32.f32 %v1145
    %v1162 = vcvt.s32.f32 %v1146
    %v1163 = vcvt.s32.f32 %v1147
    %v1164 = vcvt.s32.f32 %v1148
    %v1165 = vcvt.s32.f32 %v1149
    %v1166 = vpack.c.bf16 %v1151, %v1150
    %v1167 = vpack.c.bf16 %v1153, %v1152
    %v1168 = vpack.c.bf16 %v1155, %v1154
    %v1169 = vpack.c.bf16 %v1157, %v1156
    %v1170 = vpack.c.bf16 %v1159, %v1158
    %v1171 = vpack.c.bf16 %v1161, %v1160
    %v1172 = vpack.c.bf16 %v1163, %v1162
    %v1173 = vpack.c.bf16 %v1165, %v1164
    %v1175 = vshrl.u32 %v1166, 16
    %v1177 = vrot.slane %v1175, 7
    %v1178 = vshll.u32 %v1166, 16
    %v1180 = vor.u32 %v1177, %v1178
    %v1182 = vshrl.u32 %v1167, 16
    %v1184 = vrot.slane %v1182, 7
    %v1185 = vshll.u32 %v1167, 16
    %v1187 = vor.u32 %v1184, %v1185
    %v1188 = vsel %vm976, %v1177, %v1187
    %v1190 = vshrl.u32 %v1168, 16
    %v1192 = vrot.slane %v1190, 7
    %v1193 = vshll.u32 %v1168, 16
    %v1195 = vor.u32 %v1192, %v1193
    %v1196 = vsel %vm976, %v1184, %v1195
    %v1198 = vshrl.u32 %v1169, 16
    %v1200 = vrot.slane %v1198, 7
    %v1201 = vshll.u32 %v1169, 16
    %v1203 = vor.u32 %v1200, %v1201
    %v1204 = vsel %vm976, %v1192, %v1203
    %v1206 = vshrl.u32 %v1170, 16
    %v1208 = vrot.slane %v1206, 7
    %v1209 = vshll.u32 %v1170, 16
    %v1211 = vor.u32 %v1208, %v1209
    %v1212 = vsel %vm976, %v1200, %v1211
    %v1214 = vshrl.u32 %v1171, 16
    %v1216 = vrot.slane %v1214, 7
    %v1217 = vshll.u32 %v1171, 16
    %v1219 = vor.u32 %v1216, %v1217
    %v1220 = vsel %vm976, %v1208, %v1219
    %v1222 = vshrl.u32 %v1172, 16
    %v1224 = vrot.slane %v1222, 7
    %v1225 = vshll.u32 %v1172, 16
    %v1227 = vor.u32 %v1224, %v1225
    %v1228 = vsel %vm976, %v1216, %v1227
    %v1230 = vshrl.u32 %v1173, 16
    %v1232 = vrot.slane %v1230, 7
    %v1233 = vshll.u32 %v1173, 16
    %v1235 = vor.u32 %v1232, %v1233
    %v1236 = vsel %vm976, %v1224, %v1235
    %v1246 = vmul.bf16 %v1061, %v1180
    %v1247 = vmul.bf16 %v1062, %v1188
    %v1248 = vmul.bf16 %v1063, %v1196
    %v1249 = vmul.bf16 %v1064, %v1204
    %v1250 = vmul.bf16 %v1065, %v1212
    %v1251 = vmul.bf16 %v1066, %v1220
    %v1252 = vmul.bf16 %v1067, %v1228
    %v1253 = vmul.bf16 %v1068, %v1236
    %v1254 = vmul.bf16 %v1069, %v1232
    %v1256 = vshrl.u32 %v1246, 16
    %v1258 = vshll.u32 %v1246, 16
    %v1260 = vrot.slane %v1258, 1
    %v1261 = vor.u32 %v1256, %v1260
    %v1263 = vshll.u32 %v1247, 16
    %v1265 = vrot.slane %v1263, 1
    %v1266 = vsel %vm894, %v1261, %v1265
    %v1267 = vshrl.u32 %v1247, 16
    %v1269 = vor.u32 %v1267, %v1265
    %v1271 = vshll.u32 %v1248, 16
    %v1273 = vrot.slane %v1271, 1
    %v1274 = vsel %vm894, %v1269, %v1273
    %v1275 = vshrl.u32 %v1248, 16
    %v1277 = vor.u32 %v1275, %v1273
    %v1279 = vshll.u32 %v1249, 16
    %v1281 = vrot.slane %v1279, 1
    %v1282 = vsel %vm894, %v1277, %v1281
    %v1283 = vshrl.u32 %v1249, 16
    %v1285 = vor.u32 %v1283, %v1281
    %v1287 = vshll.u32 %v1250, 16
    %v1289 = vrot.slane %v1287, 1
    %v1290 = vsel %vm894, %v1285, %v1289
    %v1291 = vshrl.u32 %v1250, 16
    %v1293 = vor.u32 %v1291, %v1289
    %v1295 = vshll.u32 %v1251, 16
    %v1297 = vrot.slane %v1295, 1
    %v1298 = vsel %vm894, %v1293, %v1297
    %v1299 = vshrl.u32 %v1251, 16
    %v1301 = vor.u32 %v1299, %v1297
    %v1303 = vshll.u32 %v1252, 16
    %v1305 = vrot.slane %v1303, 1
    %v1306 = vsel %vm894, %v1301, %v1305
    %v1307 = vshrl.u32 %v1252, 16
    %v1309 = vor.u32 %v1307, %v1305
    %v1311 = vshll.u32 %v1253, 16
    %v1313 = vrot.slane %v1311, 1
    %v1314 = vsel %vm894, %v1309, %v1313
    %v1315 = vshrl.u32 %v1253, 16
    %v1317 = vor.u32 %v1315, %v1313
    %v1319 = vshll.u32 %v1254, 16
    %v1321 = vrot.slane %v1319, 1
    %v1322 = vsel %vm894, %v1317, %v1321
    %1331 = vst [vmem:[#allocation3 + $0x10] sm:$0xff] %v1266
    %1332 = vst [vmem:[#allocation3 + $0x28] sm:$0xff] %v1274
    %1333 = vst [vmem:[#allocation3 + $0x40] sm:$0xff] %v1282
    %1334 = vst [vmem:[#allocation3 + $0x58] sm:$0xff] %v1290
    %1335 = vst [vmem:[#allocation3 + $0x70] sm:$0xff] %v1298
    %1336 = vst [vmem:[#allocation3 + $0x88] sm:$0xff] %v1306
    %1337 = vst [vmem:[#allocation3 + $0xa0] sm:$0xff] %v1314
    %1338 = vst [vmem:[#allocation3 + $0xb8] sm:$0xff] %v1322
    %v1339 = vld [vmem:[#allocation3] sm:$0xff]
    %v1340 = vld [vmem:[#allocation3 + $0x8] sm:$0xff]
    %v1341 = vld [vmem:[#allocation3 + $0x10] sm:$0xff]
    %v1342 = vld [vmem:[#allocation3 + $0x18] sm:$0xff]
    %v1343 = vld [vmem:[#allocation3 + $0x20] sm:$0xff]
    %v1344 = vld [vmem:[#allocation3 + $0x28] sm:$0xff]
    %v1345 = vld [vmem:[#allocation3 + $0x30] sm:$0xff]
    %v1346 = vld [vmem:[#allocation3 + $0x38] sm:$0xff]
    %v1347 = vld [vmem:[#allocation3 + $0x40] sm:$0xff]
    %v1348 = vld [vmem:[#allocation3 + $0x48] sm:$0xff]
    %v1349 = vld [vmem:[#allocation3 + $0x50] sm:$0xff]
    %v1350 = vld [vmem:[#allocation3 + $0x58] sm:$0xff]
    %v1351 = vld [vmem:[#allocation3 + $0x60] sm:$0xff]
    %v1352 = vld [vmem:[#allocation3 + $0x68] sm:$0xff]
    %v1353 = vld [vmem:[#allocation3 + $0x70] sm:$0xff]
    %v1354 = vld [vmem:[#allocation3 + $0x78] sm:$0xff]
    %v1355 = vld [vmem:[#allocation3 + $0x80] sm:$0xff]
    %v1356 = vld [vmem:[#allocation3 + $0x88] sm:$0xff]
    %v1357 = vld [vmem:[#allocation3 + $0x90] sm:$0xff]
    %v1358 = vld [vmem:[#allocation3 + $0x98] sm:$0xff]
    %v1359 = vld [vmem:[#allocation3 + $0xa0] sm:$0xff]
    %v1360 = vld [vmem:[#allocation3 + $0xa8] sm:$0xff]
    %v1361 = vld [vmem:[#allocation3 + $0xb0] sm:$0xff]
    %v1362 = vld [vmem:[#allocation3 + $0xb8] sm:$0xff]
    %v1363 = vld [vmem:[%s2] sm:$0xf]
    %v1364 = vld [vmem:[%s2 + $0x4] sm:$0xf]
    %v1365 = vld [vmem:[%s2 + $0x8] sm:$0xf]
    %v1366 = vld [vmem:[%s2 + $0xc] sm:$0xf]
    %v1367 = vld [vmem:[%s2 + $0x10] sm:$0xf]
    %v1368 = vld [vmem:[%s2 + $0x14] sm:$0xf]
    %v1369 = vld [vmem:[%s2 + $0x18] sm:$0xf]
    %v1370 = vld [vmem:[%s2 + $0x1c] sm:$0xf]
    %v1371 = vld [vmem:[%s2 + $0x20] sm:$0xf]
    %v1372 = vld [vmem:[%s2 + $0x24] sm:$0xf]
    %v1373 = vld [vmem:[%s2 + $0x28] sm:$0xf]
    %v1374 = vld [vmem:[%s2 + $0x2c] sm:$0xf]
    %v1375 = vld [vmem:[%s2 + $0x30] sm:$0xf]
    %v1376 = vld [vmem:[%s2 + $0x34] sm:$0xf]
    %v1377 = vld [vmem:[%s2 + $0x38] sm:$0xf]
    %v1378 = vld [vmem:[%s2 + $0x3c] sm:$0xf]
    %v1379 = vld [vmem:[%s2 + $0x40] sm:$0xf]
    %v1380 = vld [vmem:[%s2 + $0x44] sm:$0xf]
    %v1381 = vld [vmem:[%s2 + $0x48] sm:$0xf]
    %v1382 = vld [vmem:[%s2 + $0x4c] sm:$0xf]
    %v1383 = vld [vmem:[%s2 + $0x50] sm:$0xf]
    %v1384 = vld [vmem:[%s2 + $0x54] sm:$0xf]
    %v1385 = vld [vmem:[%s2 + $0x58] sm:$0xf]
    %v1386 = vld [vmem:[%s2 + $0x5c] sm:$0xf]
    %v1387 = vld [vmem:[%s2 + $0x60] sm:$0xf]
    %v1388 = vld [vmem:[%s2 + $0x64] sm:$0xf]
    %v1389 = vld [vmem:[%s2 + $0x68] sm:$0xf]
    %v1390 = vld [vmem:[%s2 + $0x6c] sm:$0xf]
    %v1391 = vld [vmem:[%s2 + $0x70] sm:$0xf]
    %v1392 = vld [vmem:[%s2 + $0x74] sm:$0xf]
    %v1393 = vld [vmem:[%s2 + $0x78] sm:$0xf]
    %v1394 = vld [vmem:[%s2 + $0x7c] sm:$0xf]
    %v1395 = vld [vmem:[%s2 + $0x80] sm:$0xf]
    %v1396 = vld [vmem:[%s2 + $0x84] sm:$0xf]
    %v1397 = vld [vmem:[%s2 + $0x88] sm:$0xf]
    %v1398 = vld [vmem:[%s2 + $0x8c] sm:$0xf]
    %v1399 = vld [vmem:[%s2 + $0x90] sm:$0xf]
    %v1400 = vld [vmem:[%s2 + $0x94] sm:$0xf]
    %v1401 = vld [vmem:[%s2 + $0x98] sm:$0xf]
    %v1402 = vld [vmem:[%s2 + $0x9c] sm:$0xf]
    %v1403 = vld [vmem:[%s2 + $0xa0] sm:$0xf]
    %v1404 = vld [vmem:[%s2 + $0xa4] sm:$0xf]
    %v1405 = vld [vmem:[%s2 + $0xa8] sm:$0xf]
    %v1406 = vld [vmem:[%s2 + $0xac] sm:$0xf]
    %v1407 = vld [vmem:[%s2 + $0xb0] sm:$0xf]
    %v1408 = vld [vmem:[%s2 + $0xb4] sm:$0xf]
    %v1409 = vld [vmem:[%s2 + $0xb8] sm:$0xf]
    %v1410 = vld [vmem:[%s2 + $0xbc] sm:$0xf]
    %v1411 = vld [vmem:[%s4 + $0x1] sm:$0x1]
    %v1412 = vlaneseq
    %v1413 = vshrl.u32 %v1412, 7
    %v1414 = vsub.s32 0, %v1413
    %v1415 = vrot.slane %v1411, %v1414
    %v1464 = vunpack.c.l.b16 %v1363
    %v1465 = vunpack.c.l.b16 %v1364
    %v1466 = vunpack.c.l.b16 %v1365
    %v1467 = vunpack.c.l.b16 %v1366
    %v1468 = vunpack.c.l.b16 %v1367
    %v1469 = vunpack.c.l.b16 %v1368
    %v1470 = vunpack.c.l.b16 %v1369
    %v1471 = vunpack.c.l.b16 %v1370
    %v1472 = vunpack.c.l.b16 %v1371
    %v1473 = vunpack.c.l.b16 %v1372
    %v1474 = vunpack.c.l.b16 %v1373
    %v1475 = vunpack.c.l.b16 %v1374
    %v1476 = vunpack.c.l.b16 %v1375
    %v1477 = vunpack.c.l.b16 %v1376
    %v1478 = vunpack.c.l.b16 %v1377
    %v1479 = vunpack.c.l.b16 %v1378
    %v1480 = vunpack.c.l.b16 %v1379
    %v1481 = vunpack.c.l.b16 %v1380
    %v1482 = vunpack.c.l.b16 %v1381
    %v1483 = vunpack.c.l.b16 %v1382
    %v1484 = vunpack.c.l.b16 %v1383
    %v1485 = vunpack.c.l.b16 %v1384
    %v1486 = vunpack.c.l.b16 %v1385
    %v1487 = vunpack.c.l.b16 %v1386
    %v1488 = vunpack.c.l.b16 %v1387
    %v1489 = vunpack.c.l.b16 %v1388
    %v1490 = vunpack.c.l.b16 %v1389
    %v1491 = vunpack.c.l.b16 %v1390
    %v1492 = vunpack.c.l.b16 %v1391
    %v1493 = vunpack.c.l.b16 %v1392
    %v1494 = vunpack.c.l.b16 %v1393
    %v1495 = vunpack.c.l.b16 %v1394
    %v1496 = vunpack.c.l.b16 %v1395
    %v1497 = vunpack.c.l.b16 %v1396
    %v1498 = vunpack.c.l.b16 %v1397
    %v1499 = vunpack.c.l.b16 %v1398
    %v1500 = vunpack.c.l.b16 %v1399
    %v1501 = vunpack.c.l.b16 %v1400
    %v1502 = vunpack.c.l.b16 %v1401
    %v1503 = vunpack.c.l.b16 %v1402
    %v1504 = vunpack.c.l.b16 %v1403
    %v1505 = vunpack.c.l.b16 %v1404
    %v1506 = vunpack.c.l.b16 %v1405
    %v1507 = vunpack.c.l.b16 %v1406
    %v1508 = vunpack.c.l.b16 %v1407
    %v1509 = vunpack.c.l.b16 %v1408
    %v1510 = vunpack.c.l.b16 %v1409
    %v1511 = vunpack.c.l.b16 %v1410
    %v1512 = vpack.c.b16 %v1465, %v1464
    %v1513 = vpack.c.b16 %v1467, %v1466
    %v1514 = vpack.c.b16 %v1469, %v1468
    %v1515 = vpack.c.b16 %v1471, %v1470
    %v1516 = vpack.c.b16 %v1473, %v1472
    %v1517 = vpack.c.b16 %v1475, %v1474
    %v1518 = vpack.c.b16 %v1477, %v1476
    %v1519 = vpack.c.b16 %v1479, %v1478
    %v1520 = vpack.c.b16 %v1481, %v1480
    %v1521 = vpack.c.b16 %v1483, %v1482
    %v1522 = vpack.c.b16 %v1485, %v1484
    %v1523 = vpack.c.b16 %v1487, %v1486
    %v1524 = vpack.c.b16 %v1489, %v1488
    %v1525 = vpack.c.b16 %v1491, %v1490
    %v1526 = vpack.c.b16 %v1493, %v1492
    %v1527 = vpack.c.b16 %v1495, %v1494
    %v1528 = vpack.c.b16 %v1497, %v1496
    %v1529 = vpack.c.b16 %v1499, %v1498
    %v1530 = vpack.c.b16 %v1501, %v1500
    %v1531 = vpack.c.b16 %v1503, %v1502
    %v1532 = vpack.c.b16 %v1505, %v1504
    %v1533 = vpack.c.b16 %v1507, %v1506
    %v1534 = vpack.c.b16 %v1509, %v1508
    %v1535 = vpack.c.b16 %v1511, %v1510
    %1560 = vmatprep.subr.bf16.mxu0 0
    %1561 = vmatpush1.bf16.msra.mxu0 %v1512
    %1562 = vmatprep.subr.bf16.mxu0 0
    %1563 = vmatpush1.bf16.msra.mxu0 %v1513
    %1564 = vmatprep.subr.bf16.mxu0 0
    %1565 = vmatpush1.bf16.msra.mxu0 %v1514
    %1566 = vmatprep.subr.bf16.mxu0 0
    %1567 = vmatpush1.bf16.msra.mxu0 %v1515
    %1568 = vmatprep.subr.bf16.mxu0 0
    %1569 = vmatpush1.bf16.msra.mxu0 %v1516
    %1570 = vmatprep.subr.bf16.mxu0 0
    %1571 = vmatpush1.bf16.msra.mxu0 %v1517
    %1572 = vmatprep.subr.bf16.mxu0 0
    %1573 = vmatpush1.bf16.msra.mxu0 %v1518
    %1574 = vmatprep.subr.bf16.mxu0 0
    %1575 = vmatpush1.bf16.msra.mxu0 %v1519
    %1576 = vmatprep.subr.bf16.mxu0 0
    %1577 = vmatpush1.bf16.msra.mxu0 %v1520
    %1578 = vmatprep.subr.bf16.mxu0 0
    %1579 = vmatpush1.bf16.msra.mxu0 %v1521
    %1580 = vmatprep.subr.bf16.mxu0 0
    %1581 = vmatpush1.bf16.msra.mxu0 %v1522
    %1582 = vmatprep.subr.bf16.mxu0 0
    %1583 = vmatpush1.bf16.msra.mxu0 %v1523
    %1584 = vmatprep.subr.bf16.mxu0 0
    %1585 = vmatpush1.bf16.msra.mxu0 %v1524
    %1586 = vmatprep.subr.bf16.mxu0 0
    %1587 = vmatpush1.bf16.msra.mxu0 %v1525
    %1588 = vmatprep.subr.bf16.mxu0 0
    %1589 = vmatpush1.bf16.msra.mxu0 %v1526
    %1590 = vmatprep.subr.bf16.mxu0 0
    %1591 = vmatpush1.bf16.msra.mxu0 %v1527
    %1592 = vmatprep.mubr.bf16.mxu0 %v1340
    %1593 = vmatmul.mubr.bf16.gmra.mrb[0].mxu0 %v1339
    %v1594 = vpop.f32.mrb[0].mxu0
    %v1595 = vadd.f32 %v1415, %v1594
    %v1596 = vpop.f32.mrb[0].mxu0
    %v1597 = vpop.f32.mrb[0].mxu0
    %v1598 = vadd.f32 %v1415, %v1597
    %v1599 = vpop.f32.mrb[0].mxu0
    %1600 = vmatprep.mubr.bf16.mxu0 %v1343
    %1601 = vmatmul.mubr.bf16.gmra.mrb[0].mxu0 %v1342
    %v1602 = vpop.f32.mrb[0].mxu0
    %v1603 = vadd.f32 %v1415, %v1602
    %v1604 = vpop.f32.mrb[0].mxu0
    %v1605 = vpop.f32.mrb[0].mxu0
    %v1606 = vadd.f32 %v1415, %v1605
    %v1607 = vpop.f32.mrb[0].mxu0
    %1608 = vmatprep.mubr.bf16.mxu0 %v1346
    %1609 = vmatmul.mubr.bf16.gmra.mrb[0].mxu0 %v1345
    %v1610 = vpop.f32.mrb[0].mxu0
    %v1611 = vadd.f32 %v1415, %v1610
    %v1612 = vpop.f32.mrb[0].mxu0
    %v1613 = vpop.f32.mrb[0].mxu0
    %v1614 = vadd.f32 %v1415, %v1613
    %v1615 = vpop.f32.mrb[0].mxu0
    %1616 = vmatprep.mubr.bf16.mxu0 %v1349
    %1617 = vmatmul.mubr.bf16.gmra.mrb[0].mxu0 %v1348
    %v1618 = vpop.f32.mrb[0].mxu0
    %v1619 = vadd.f32 %v1415, %v1618
    %v1620 = vpop.f32.mrb[0].mxu0
    %v1621 = vpop.f32.mrb[0].mxu0
    %v1622 = vadd.f32 %v1415, %v1621
    %v1623 = vpop.f32.mrb[0].mxu0
    %1624 = vmatprep.mubr.bf16.mxu0 %v1352
    %1625 = vmatmul.mubr.bf16.gmra.mrb[0].mxu0 %v1351
    %v1626 = vpop.f32.mrb[0].mxu0
    %v1627 = vadd.f32 %v1415, %v1626
    %v1628 = vpop.f32.mrb[0].mxu0
    %v1629 = vpop.f32.mrb[0].mxu0
    %v1630 = vadd.f32 %v1415, %v1629
    %v1631 = vpop.f32.mrb[0].mxu0
    %1632 = vmatprep.mubr.bf16.mxu0 %v1355
    %1633 = vmatmul.mubr.bf16.gmra.mrb[0].mxu0 %v1354
    %v1634 = vpop.f32.mrb[0].mxu0
    %v1635 = vadd.f32 %v1415, %v1634
    %v1636 = vpop.f32.mrb[0].mxu0
    %v1637 = vpop.f32.mrb[0].mxu0
    %v1638 = vadd.f32 %v1415, %v1637
    %v1639 = vpop.f32.mrb[0].mxu0
    %1640 = vmatprep.mubr.bf16.mxu0 %v1358
    %1641 = vmatmul.mubr.bf16.gmra.mrb[0].mxu0 %v1357
    %v1642 = vpop.f32.mrb[0].mxu0
    %v1643 = vadd.f32 %v1415, %v1642
    %v1644 = vpop.f32.mrb[0].mxu0
    %v1645 = vpop.f32.mrb[0].mxu0
    %v1646 = vadd.f32 %v1415, %v1645
    %v1647 = vpop.f32.mrb[0].mxu0
    %1648 = vmatprep.mubr.bf16.mxu0 %v1361
    %1649 = vmatmul.mubr.bf16.gmra.mrb[0].mxu0 %v1360
    %v1650 = vpop.f32.mrb[0].mxu0
    %v1651 = vadd.f32 %v1415, %v1650
    %v1652 = vpop.f32.mrb[0].mxu0
    %v1653 = vpop.f32.mrb[0].mxu0
    %v1654 = vadd.f32 %v1415, %v1653
    %v1655 = vpop.f32.mrb[0].mxu0
    %1656 = vdwg.mxu0
    %1657 = vmatprep.subr.bf16.mxu0 0
    %1658 = vmatpush1.bf16.msra.mxu0 %v1528
    %1659 = vmatprep.subr.bf16.mxu0 0
    %1660 = vmatpush1.bf16.msra.mxu0 %v1529
    %1661 = vmatprep.subr.bf16.mxu0 0
    %1662 = vmatpush1.bf16.msra.mxu0 %v1530
    %1663 = vmatprep.subr.bf16.mxu0 0
    %1664 = vmatpush1.bf16.msra.mxu0 %v1531
    %1665 = vmatprep.subr.bf16.mxu0 0
    %1666 = vmatpush1.bf16.msra.mxu0 %v1532
    %1667 = vmatprep.subr.bf16.mxu0 0
    %1668 = vmatpush1.bf16.msra.mxu0 %v1533
    %1669 = vmatprep.subr.bf16.mxu0 0
    %1670 = vmatpush1.bf16.msra.mxu0 %v1534
    %1671 = vmatprep.subr.bf16.mxu0 0
    %1672 = vmatpush1.bf16.msra.mxu0 %v1535
    %1673 = vmatprep.subr.bf16.mxu0 0
    %1674 = vmatpush1.bf16.msra.mxu0 0
    %1675 = vmatprep.subr.bf16.mxu0 0
    %1676 = vmatpush1.bf16.msra.mxu0 0
    %1677 = vmatprep.subr.bf16.mxu0 0
    %1678 = vmatpush1.bf16.msra.mxu0 0
    %1679 = vmatprep.subr.bf16.mxu0 0
    %1680 = vmatpush1.bf16.msra.mxu0 0
    %1681 = vmatprep.subr.bf16.mxu0 0
    %1682 = vmatpush1.bf16.msra.mxu0 0
    %1683 = vmatprep.subr.bf16.mxu0 0
    %1684 = vmatpush1.bf16.msra.mxu0 0
    %1685 = vmatprep.subr.bf16.mxu0 0
    %1686 = vmatpush1.bf16.msra.mxu0 0
    %1687 = vmatprep.subr.bf16.mxu0 0
    %1688 = vmatpush1.bf16.msra.mxu0 0
    %1689 = vmatprep.mubr.bf16.mxu0 0
    %1690 = vmatmul.mubr.bf16.gmra.mrb[0].mxu0 %v1341
    %v1691 = vpop.f32.mrb[0].mxu0
    %v1692 = vadd.f32 %v1595, %v1691
    %v1693 = vpop.f32.mrb[0].mxu0
    %v1694 = vpop.f32.mrb[0].mxu0
    %v1695 = vadd.f32 %v1598, %v1694
    %v1696 = vpop.f32.mrb[0].mxu0
    %1697 = vmatprep.mubr.bf16.mxu0 0
    %1698 = vmatmul.mubr.bf16.gmra.mrb[0].mxu0 %v1344
    %v1699 = vpop.f32.mrb[0].mxu0
    %v1700 = vadd.f32 %v1603, %v1699
    %v1701 = vpop.f32.mrb[0].mxu0
    %v1702 = vpop.f32.mrb[0].mxu0
    %v1703 = vadd.f32 %v1606, %v1702
    %v1704 = vpop.f32.mrb[0].mxu0
    %1705 = vmatprep.mubr.bf16.mxu0 0
    %1706 = vmatmul.mubr.bf16.gmra.mrb[0].mxu0 %v1347
    %v1707 = vpop.f32.mrb[0].mxu0
    %v1708 = vadd.f32 %v1611, %v1707
    %v1709 = vpop.f32.mrb[0].mxu0
    %v1710 = vpop.f32.mrb[0].mxu0
    %v1711 = vadd.f32 %v1614, %v1710
    %v1712 = vpop.f32.mrb[0].mxu0
    %1713 = vmatprep.mubr.bf16.mxu0 0
    %1714 = vmatmul.mubr.bf16.gmra.mrb[0].mxu0 %v1350
    %v1715 = vpop.f32.mrb[0].mxu0
    %v1716 = vadd.f32 %v1619, %v1715
    %v1717 = vpop.f32.mrb[0].mxu0
    %v1718 = vpop.f32.mrb[0].mxu0
    %v1719 = vadd.f32 %v1622, %v1718
    %v1720 = vpop.f32.mrb[0].mxu0
    %1721 = vmatprep.mubr.bf16.mxu0 0
    %1722 = vmatmul.mubr.bf16.gmra.mrb[0].mxu0 %v1353
    %v1723 = vpop.f32.mrb[0].mxu0
    %v1724 = vadd.f32 %v1627, %v1723
    %v1725 = vpop.f32.mrb[0].mxu0
    %v1726 = vpop.f32.mrb[0].mxu0
    %v1727 = vadd.f32 %v1630, %v1726
    %v1728 = vpop.f32.mrb[0].mxu0
    %1729 = vmatprep.mubr.bf16.mxu0 0
    %1730 = vmatmul.mubr.bf16.gmra.mrb[0].mxu0 %v1356
    %v1731 = vpop.f32.mrb[0].mxu0
    %v1732 = vadd.f32 %v1635, %v1731
    %v1733 = vpop.f32.mrb[0].mxu0
    %v1734 = vpop.f32.mrb[0].mxu0
    %v1735 = vadd.f32 %v1638, %v1734
    %v1736 = vpop.f32.mrb[0].mxu0
    %1737 = vmatprep.mubr.bf16.mxu0 0
    %1738 = vmatmul.mubr.bf16.gmra.mrb[0].mxu0 %v1359
    %v1739 = vpop.f32.mrb[0].mxu0
    %v1740 = vadd.f32 %v1643, %v1739
    %v1741 = vpop.f32.mrb[0].mxu0
    %v1742 = vpop.f32.mrb[0].mxu0
    %v1743 = vadd.f32 %v1646, %v1742
    %v1744 = vpop.f32.mrb[0].mxu0
    %1745 = vmatprep.mubr.bf16.mxu0 0
    %1746 = vmatmul.mubr.bf16.gmra.mrb[0].mxu0 %v1362
    %v1747 = vpop.f32.mrb[0].mxu0
    %v1748 = vadd.f32 %v1651, %v1747
    %v1749 = vpop.f32.mrb[0].mxu0
    %v1750 = vpop.f32.mrb[0].mxu0
    %v1751 = vadd.f32 %v1654, %v1750
    %v1752 = vpop.f32.mrb[0].mxu0
    %1753 = vdwg.mxu0
    %v1754 = vmax.f32 %v1692, 0.0
    %v1755 = vmax.f32 %v1695, 0.0
    %v1756 = vmax.f32 %v1700, 0.0
    %v1757 = vmax.f32 %v1703, 0.0
    %v1758 = vmax.f32 %v1708, 0.0
    %v1759 = vmax.f32 %v1711, 0.0
    %v1760 = vmax.f32 %v1716, 0.0
    %v1761 = vmax.f32 %v1719, 0.0
    %v1762 = vmax.f32 %v1724, 0.0
    %v1763 = vmax.f32 %v1727, 0.0
    %v1764 = vmax.f32 %v1732, 0.0
    %v1765 = vmax.f32 %v1735, 0.0
    %v1766 = vmax.f32 %v1740, 0.0
    %v1767 = vmax.f32 %v1743, 0.0
    %v1768 = vmax.f32 %v1748, 0.0
    %v1769 = vmax.f32 %v1751, 0.0
    %v1770 = vpack.c.bf16 %v1755, %v1754
    %v1771 = vpack.c.bf16 %v1757, %v1756
    %v1772 = vpack.c.bf16 %v1759, %v1758
    %v1773 = vpack.c.bf16 %v1761, %v1760
    %v1774 = vpack.c.bf16 %v1763, %v1762
    %v1775 = vpack.c.bf16 %v1765, %v1764
    %v1776 = vpack.c.bf16 %v1767, %v1766
    %v1777 = vpack.c.bf16 %v1769, %v1768
    %1778 = vst [vmem:[#allocation2 + $0x10] sm:$0xff] %v1770
    %1779 = vst [vmem:[#allocation2 + $0x18] sm:$0xff] %v1771
    %1780 = vst [vmem:[#allocation2 + $0x20] sm:$0xff] %v1772
    %1781 = vst [vmem:[#allocation2 + $0x28] sm:$0xff] %v1773
    %1782 = vst [vmem:[#allocation2 + $0x30] sm:$0xff] %v1774
    %1783 = vst [vmem:[#allocation2 + $0x38] sm:$0xff] %v1775
    %1784 = vst [vmem:[#allocation2 + $0x40] sm:$0xff] %v1776
    %1785 = vst [vmem:[#allocation2 + $0x48] sm:$0xff] %v1777
    %1786 = vst [vmem:[#allocation3 + $0x8] sm:$0xff] %v1770
    %1787 = vst [vmem:[#allocation3 + $0x20] sm:$0xff] %v1771
    %1788 = vst [vmem:[#allocation3 + $0x38] sm:$0xff] %v1772
    %1789 = vst [vmem:[#allocation3 + $0x50] sm:$0xff] %v1773
    %1790 = vst [vmem:[#allocation3 + $0x68] sm:$0xff] %v1774
    %1791 = vst [vmem:[#allocation3 + $0x80] sm:$0xff] %v1775
    %1792 = vst [vmem:[#allocation3 + $0x98] sm:$0xff] %v1776
    %1793 = vst [vmem:[#allocation3 + $0xb0] sm:$0xff] %v1777
    %v1794 = vld [vmem:[#allocation2 + $0x8] sm:$0xf0]
    %v1795 = vld [vmem:[#allocation2 + $0x10] sm:$0xff]
    %v1796 = vld [vmem:[#allocation2 + $0x18] sm:$0xff]
    %v1797 = vld [vmem:[#allocation2 + $0x20] sm:$0xff]
    %v1798 = vld [vmem:[#allocation2 + $0x28] sm:$0xff]
    %v1799 = vld [vmem:[#allocation2 + $0x30] sm:$0xff]
    %v1800 = vld [vmem:[#allocation2 + $0x38] sm:$0xff]
    %v1801 = vld [vmem:[#allocation2 + $0x40] sm:$0xff]
    %v1802 = vld [vmem:[#allocation2 + $0x48] sm:$0xf]
    %v1803 = vadd.s32 %v78, 4294967295
    %v1804 = vadd.s32 %v79, 4294967295
    %v1805 = vadd.s32 %v80, 4294967295
    %v1806 = vadd.s32 %v81, 4294967295
    %v1807 = vadd.s32 %v82, 4294967295
    %v1808 = vadd.s32 %v83, 4294967295
    %v1809 = vadd.s32 %v84, 4294967295
    %v1810 = vadd.s32 %v85, 4294967295
    %v1811 = vadd.s32 %v86, 4294967295
    %v1812 = vadd.s32 %v87, 4294967295
    %v1813 = vadd.s32 %v88, 4294967295
    %v1814 = vadd.s32 %v89, 4294967295
    %v1815 = vadd.s32 %v90, 4294967295
    %v1816 = vadd.s32 %v91, 4294967295
    %v1817 = vadd.s32 %v92, 4294967295
    %v1818 = vadd.s32 %v93, 4294967295
    %vm1819 = vcmp.ge.s32.totalorder %v1803, 0
    %vm1820 = vcmp.ge.s32.totalorder %v1804, 0
    %vm1821 = vcmp.ge.s32.totalorder %v1805, 0
    %vm1822 = vcmp.ge.s32.totalorder %v1806, 0
    %vm1823 = vcmp.ge.s32.totalorder %v1807, 0
    %vm1824 = vcmp.ge.s32.totalorder %v1808, 0
    %vm1825 = vcmp.ge.s32.totalorder %v1809, 0
    %vm1826 = vcmp.ge.s32.totalorder %v1810, 0
    %vm1827 = vcmp.ge.s32.totalorder %v1811, 0
    %vm1828 = vcmp.ge.s32.totalorder %v1812, 0
    %vm1829 = vcmp.ge.s32.totalorder %v1813, 0
    %vm1830 = vcmp.ge.s32.totalorder %v1814, 0
    %vm1831 = vcmp.ge.s32.totalorder %v1815, 0
    %vm1832 = vcmp.ge.s32.totalorder %v1816, 0
    %vm1833 = vcmp.ge.s32.totalorder %v1817, 0
    %vm1834 = vcmp.ge.s32.totalorder %v1818, 0
    %vm1835 = vcmp.lt.s32.totalorder %v1803, 8
    %vm1836 = vcmp.lt.s32.totalorder %v1804, 8
    %vm1837 = vcmp.lt.s32.totalorder %v1805, 8
    %vm1838 = vcmp.lt.s32.totalorder %v1806, 8
    %vm1839 = vcmp.lt.s32.totalorder %v1807, 8
    %vm1840 = vcmp.lt.s32.totalorder %v1808, 8
    %vm1841 = vcmp.lt.s32.totalorder %v1809, 8
    %vm1842 = vcmp.lt.s32.totalorder %v1810, 8
    %vm1843 = vcmp.lt.s32.totalorder %v1811, 8
    %vm1844 = vcmp.lt.s32.totalorder %v1812, 8
    %vm1845 = vcmp.lt.s32.totalorder %v1813, 8
    %vm1846 = vcmp.lt.s32.totalorder %v1814, 8
    %vm1847 = vcmp.lt.s32.totalorder %v1815, 8
    %vm1848 = vcmp.lt.s32.totalorder %v1816, 8
    %vm1849 = vcmp.lt.s32.totalorder %v1817, 8
    %vm1850 = vcmp.lt.s32.totalorder %v1818, 8
    %vm1851 = vmand %vm1819, %vm1835
    %vm1852 = vmand %vm1820, %vm1836
    %vm1853 = vmand %vm1821, %vm1837
    %vm1854 = vmand %vm1822, %vm1838
    %vm1855 = vmand %vm1823, %vm1839
    %vm1856 = vmand %vm1824, %vm1840
    %vm1857 = vmand %vm1825, %vm1841
    %vm1858 = vmand %vm1826, %vm1842
    %vm1859 = vmand %vm1827, %vm1843
    %vm1860 = vmand %vm1828, %vm1844
    %vm1861 = vmand %vm1829, %vm1845
    %vm1862 = vmand %vm1830, %vm1846
    %vm1863 = vmand %vm1831, %vm1847
    %vm1864 = vmand %vm1832, %vm1848
    %vm1865 = vmand %vm1833, %vm1849
    %vm1866 = vmand %vm1834, %vm1850
    %v1867 = vsel %vm1851, 1, 0
    %v1868 = vsel %vm1852, 1, 0
    %v1869 = vsel %vm1853, 1, 0
    %v1870 = vsel %vm1854, 1, 0
    %v1871 = vsel %vm1855, 1, 0
    %v1872 = vsel %vm1856, 1, 0
    %v1873 = vsel %vm1857, 1, 0
    %v1874 = vsel %vm1858, 1, 0
    %v1875 = vsel %vm1859, 1, 0
    %v1876 = vsel %vm1860, 1, 0
    %v1877 = vsel %vm1861, 1, 0
    %v1878 = vsel %vm1862, 1, 0
    %v1879 = vsel %vm1863, 1, 0
    %v1880 = vsel %vm1864, 1, 0
    %v1881 = vsel %vm1865, 1, 0
    %v1882 = vsel %vm1866, 1, 0
    %v1883 = vcvt.s32.f32 %v1867
    %v1884 = vcvt.s32.f32 %v1868
    %v1885 = vcvt.s32.f32 %v1869
    %v1886 = vcvt.s32.f32 %v1870
    %v1887 = vcvt.s32.f32 %v1871
    %v1888 = vcvt.s32.f32 %v1872
    %v1889 = vcvt.s32.f32 %v1873
    %v1890 = vcvt.s32.f32 %v1874
    %v1891 = vcvt.s32.f32 %v1875
    %v1892 = vcvt.s32.f32 %v1876
    %v1893 = vcvt.s32.f32 %v1877
    %v1894 = vcvt.s32.f32 %v1878
    %v1895 = vcvt.s32.f32 %v1879
    %v1896 = vcvt.s32.f32 %v1880
    %v1897 = vcvt.s32.f32 %v1881
    %v1898 = vcvt.s32.f32 %v1882
    %v1899 = vpack.c.bf16 %v1884, %v1883
    %v1900 = vpack.c.bf16 %v1886, %v1885
    %v1901 = vpack.c.bf16 %v1888, %v1887
    %v1902 = vpack.c.bf16 %v1890, %v1889
    %v1903 = vpack.c.bf16 %v1892, %v1891
    %v1904 = vpack.c.bf16 %v1894, %v1893
    %v1905 = vpack.c.bf16 %v1896, %v1895
    %v1906 = vpack.c.bf16 %v1898, %v1897
    %vm1915 = vcmask 1043456
    %v1916 = vrot.slane %v1899, 4
    %v1917 = vrot.slane %v1900, 4
    %v1918 = vsel %vm1915, %v1916, %v1917
    %v1919 = vrot.slane %v1901, 4
    %v1920 = vsel %vm1915, %v1917, %v1919
    %v1921 = vrot.slane %v1902, 4
    %v1922 = vsel %vm1915, %v1919, %v1921
    %v1923 = vrot.slane %v1903, 4
    %v1924 = vsel %vm1915, %v1921, %v1923
    %v1925 = vrot.slane %v1904, 4
    %v1926 = vsel %vm1915, %v1923, %v1925
    %v1927 = vrot.slane %v1905, 4
    %v1928 = vsel %vm1915, %v1925, %v1927
    %v1929 = vrot.slane %v1906, 4
    %v1930 = vsel %vm1915, %v1927, %v1929
    %v1940 = vmul.bf16 %v1794, %v1916
    %v1941 = vmul.bf16 %v1795, %v1918
    %v1942 = vmul.bf16 %v1796, %v1920
    %v1943 = vmul.bf16 %v1797, %v1922
    %v1944 = vmul.bf16 %v1798, %v1924
    %v1945 = vmul.bf16 %v1799, %v1926
    %v1946 = vmul.bf16 %v1800, %v1928
    %v1947 = vmul.bf16 %v1801, %v1930
    %v1948 = vmul.bf16 %v1802, %v1929
    %v1958 = vrot.slane %v1940, 4
    %v1959 = vrot.slane %v1941, 4
    %v1960 = vsel %vm1915, %v1958, %v1959
    %v1961 = vrot.slane %v1942, 4
    %v1962 = vsel %vm1915, %v1959, %v1961
    %v1963 = vrot.slane %v1943, 4
    %v1964 = vsel %vm1915, %v1961, %v1963
    %v1965 = vrot.slane %v1944, 4
    %v1966 = vsel %vm1915, %v1963, %v1965
    %v1967 = vrot.slane %v1945, 4
    %v1968 = vsel %vm1915, %v1965, %v1967
    %v1969 = vrot.slane %v1946, 4
    %v1970 = vsel %vm1915, %v1967, %v1969
    %v1971 = vrot.slane %v1947, 4
    %v1972 = vsel %vm1915, %v1969, %v1971
    %v1973 = vrot.slane %v1948, 4
    %v1974 = vsel %vm1915, %v1971, %v1973
    %1983 = vst [vmem:[#allocation3] sm:$0xff] %v1960
    %1984 = vst [vmem:[#allocation3 + $0x18] sm:$0xff] %v1962
    %1985 = vst [vmem:[#allocation3 + $0x30] sm:$0xff] %v1964
    %1986 = vst [vmem:[#allocation3 + $0x48] sm:$0xff] %v1966
    %1987 = vst [vmem:[#allocation3 + $0x60] sm:$0xff] %v1968
    %1988 = vst [vmem:[#allocation3 + $0x78] sm:$0xff] %v1970
    %1989 = vst [vmem:[#allocation3 + $0x90] sm:$0xff] %v1972
    %1990 = vst [vmem:[#allocation3 + $0xa8] sm:$0xff] %v1974
    %v1991 = vld [vmem:[#allocation2 + $0x10] sm:$0xf0]
    %v1992 = vld [vmem:[#allocation2 + $0x18] sm:$0xff]
    %v1993 = vld [vmem:[#allocation2 + $0x20] sm:$0xff]
    %v1994 = vld [vmem:[#allocation2 + $0x28] sm:$0xff]
    %v1995 = vld [vmem:[#allocation2 + $0x30] sm:$0xff]
    %v1996 = vld [vmem:[#allocation2 + $0x38] sm:$0xff]
    %v1997 = vld [vmem:[#allocation2 + $0x40] sm:$0xff]
    %v1998 = vld [vmem:[#allocation2 + $0x48] sm:$0xff]
    %v1999 = vld [vmem:[#allocation2 + $0x50] sm:$0xf]
    %v2000 = vadd.s32 %v78, 1
    %v2001 = vadd.s32 %v79, 1
    %v2002 = vadd.s32 %v80, 1
    %v2003 = vadd.s32 %v81, 1
    %v2004 = vadd.s32 %v82, 1
    %v2005 = vadd.s32 %v83, 1
    %v2006 = vadd.s32 %v84, 1
    %v2007 = vadd.s32 %v85, 1
    %v2008 = vadd.s32 %v86, 1
    %v2009 = vadd.s32 %v87, 1
    %v2010 = vadd.s32 %v88, 1
    %v2011 = vadd.s32 %v89, 1
    %v2012 = vadd.s32 %v90, 1
    %v2013 = vadd.s32 %v91, 1
    %v2014 = vadd.s32 %v92, 1
    %v2015 = vadd.s32 %v93, 1
    %vm2016 = vcmp.ge.s32.totalorder %v2000, 0
    %vm2017 = vcmp.ge.s32.totalorder %v2001, 0
    %vm2018 = vcmp.ge.s32.totalorder %v2002, 0
    %vm2019 = vcmp.ge.s32.totalorder %v2003, 0
    %vm2020 = vcmp.ge.s32.totalorder %v2004, 0
    %vm2021 = vcmp.ge.s32.totalorder %v2005, 0
    %vm2022 = vcmp.ge.s32.totalorder %v2006, 0
    %vm2023 = vcmp.ge.s32.totalorder %v2007, 0
    %vm2024 = vcmp.ge.s32.totalorder %v2008, 0
    %vm2025 = vcmp.ge.s32.totalorder %v2009, 0
    %vm2026 = vcmp.ge.s32.totalorder %v2010, 0
    %vm2027 = vcmp.ge.s32.totalorder %v2011, 0
    %vm2028 = vcmp.ge.s32.totalorder %v2012, 0
    %vm2029 = vcmp.ge.s32.totalorder %v2013, 0
    %vm2030 = vcmp.ge.s32.totalorder %v2014, 0
    %vm2031 = vcmp.ge.s32.totalorder %v2015, 0
    %vm2032 = vcmp.lt.s32.totalorder %v2000, 8
    %vm2033 = vcmp.lt.s32.totalorder %v2001, 8
    %vm2034 = vcmp.lt.s32.totalorder %v2002, 8
    %vm2035 = vcmp.lt.s32.totalorder %v2003, 8
    %vm2036 = vcmp.lt.s32.totalorder %v2004, 8
    %vm2037 = vcmp.lt.s32.totalorder %v2005, 8
    %vm2038 = vcmp.lt.s32.totalorder %v2006, 8
    %vm2039 = vcmp.lt.s32.totalorder %v2007, 8
    %vm2040 = vcmp.lt.s32.totalorder %v2008, 8
    %vm2041 = vcmp.lt.s32.totalorder %v2009, 8
    %vm2042 = vcmp.lt.s32.totalorder %v2010, 8
    %vm2043 = vcmp.lt.s32.totalorder %v2011, 8
    %vm2044 = vcmp.lt.s32.totalorder %v2012, 8
    %vm2045 = vcmp.lt.s32.totalorder %v2013, 8
    %vm2046 = vcmp.lt.s32.totalorder %v2014, 8
    %vm2047 = vcmp.lt.s32.totalorder %v2015, 8
    %vm2048 = vmand %vm2016, %vm2032
    %vm2049 = vmand %vm2017, %vm2033
    %vm2050 = vmand %vm2018, %vm2034
    %vm2051 = vmand %vm2019, %vm2035
    %vm2052 = vmand %vm2020, %vm2036
    %vm2053 = vmand %vm2021, %vm2037
    %vm2054 = vmand %vm2022, %vm2038
    %vm2055 = vmand %vm2023, %vm2039
    %vm2056 = vmand %vm2024, %vm2040
    %vm2057 = vmand %vm2025, %vm2041
    %vm2058 = vmand %vm2026, %vm2042
    %vm2059 = vmand %vm2027, %vm2043
    %vm2060 = vmand %vm2028, %vm2044
    %vm2061 = vmand %vm2029, %vm2045
    %vm2062 = vmand %vm2030, %vm2046
    %vm2063 = vmand %vm2031, %vm2047
    %v2064 = vsel %vm2048, 1, 0
    %v2065 = vsel %vm2049, 1, 0
    %v2066 = vsel %vm2050, 1, 0
    %v2067 = vsel %vm2051, 1, 0
    %v2068 = vsel %vm2052, 1, 0
    %v2069 = vsel %vm2053, 1, 0
    %v2070 = vsel %vm2054, 1, 0
    %v2071 = vsel %vm2055, 1, 0
    %v2072 = vsel %vm2056, 1, 0
    %v2073 = vsel %vm2057, 1, 0
    %v2074 = vsel %vm2058, 1, 0
    %v2075 = vsel %vm2059, 1, 0
    %v2076 = vsel %vm2060, 1, 0
    %v2077 = vsel %vm2061, 1, 0
    %v2078 = vsel %vm2062, 1, 0
    %v2079 = vsel %vm2063, 1, 0
    %v2080 = vcvt.s32.f32 %v2064
    %v2081 = vcvt.s32.f32 %v2065
    %v2082 = vcvt.s32.f32 %v2066
    %v2083 = vcvt.s32.f32 %v2067
    %v2084 = vcvt.s32.f32 %v2068
    %v2085 = vcvt.s32.f32 %v2069
    %v2086 = vcvt.s32.f32 %v2070
    %v2087 = vcvt.s32.f32 %v2071
    %v2088 = vcvt.s32.f32 %v2072
    %v2089 = vcvt.s32.f32 %v2073
    %v2090 = vcvt.s32.f32 %v2074
    %v2091 = vcvt.s32.f32 %v2075
    %v2092 = vcvt.s32.f32 %v2076
    %v2093 = vcvt.s32.f32 %v2077
    %v2094 = vcvt.s32.f32 %v2078
    %v2095 = vcvt.s32.f32 %v2079
    %v2096 = vpack.c.bf16 %v2081, %v2080
    %v2097 = vpack.c.bf16 %v2083, %v2082
    %v2098 = vpack.c.bf16 %v2085, %v2084
    %v2099 = vpack.c.bf16 %v2087, %v2086
    %v2100 = vpack.c.bf16 %v2089, %v2088
    %v2101 = vpack.c.bf16 %v2091, %v2090
    %v2102 = vpack.c.bf16 %v2093, %v2092
    %v2103 = vpack.c.bf16 %v2095, %v2094
    %v2112 = vrot.slane %v2096, 4
    %v2113 = vrot.slane %v2097, 4
    %v2114 = vsel %vm1915, %v2112, %v2113
    %v2115 = vrot.slane %v2098, 4
    %v2116 = vsel %vm1915, %v2113, %v2115
    %v2117 = vrot.slane %v2099, 4
    %v2118 = vsel %vm1915, %v2115, %v2117
    %v2119 = vrot.slane %v2100, 4
    %v2120 = vsel %vm1915, %v2117, %v2119
    %v2121 = vrot.slane %v2101, 4
    %v2122 = vsel %vm1915, %v2119, %v2121
    %v2123 = vrot.slane %v2102, 4
    %v2124 = vsel %vm1915, %v2121, %v2123
    %v2125 = vrot.slane %v2103, 4
    %v2126 = vsel %vm1915, %v2123, %v2125
    %v2136 = vmul.bf16 %v1991, %v2112
    %v2137 = vmul.bf16 %v1992, %v2114
    %v2138 = vmul.bf16 %v1993, %v2116
    %v2139 = vmul.bf16 %v1994, %v2118
    %v2140 = vmul.bf16 %v1995, %v2120
    %v2141 = vmul.bf16 %v1996, %v2122
    %v2142 = vmul.bf16 %v1997, %v2124
    %v2143 = vmul.bf16 %v1998, %v2126
    %v2144 = vmul.bf16 %v1999, %v2125
    %v2154 = vrot.slane %v2136, 4
    %v2155 = vrot.slane %v2137, 4
    %v2156 = vsel %vm1915, %v2154, %v2155
    %v2157 = vrot.slane %v2138, 4
    %v2158 = vsel %vm1915, %v2155, %v2157
    %v2159 = vrot.slane %v2139, 4
    %v2160 = vsel %vm1915, %v2157, %v2159
    %v2161 = vrot.slane %v2140, 4
    %v2162 = vsel %vm1915, %v2159, %v2161
    %v2163 = vrot.slane %v2141, 4
    %v2164 = vsel %vm1915, %v2161, %v2163
    %v2165 = vrot.slane %v2142, 4
    %v2166 = vsel %vm1915, %v2163, %v2165
    %v2167 = vrot.slane %v2143, 4
    %v2168 = vsel %vm1915, %v2165, %v2167
    %v2169 = vrot.slane %v2144, 4
    %v2170 = vsel %vm1915, %v2167, %v2169
    %2179 = vst [vmem:[#allocation3 + $0x10] sm:$0xff] %v2156
    %2180 = vst [vmem:[#allocation3 + $0x28] sm:$0xff] %v2158
    %2181 = vst [vmem:[#allocation3 + $0x40] sm:$0xff] %v2160
    %2182 = vst [vmem:[#allocation3 + $0x58] sm:$0xff] %v2162
    %2183 = vst [vmem:[#allocation3 + $0x70] sm:$0xff] %v2164
    %2184 = vst [vmem:[#allocation3 + $0x88] sm:$0xff] %v2166
    %2185 = vst [vmem:[#allocation3 + $0xa0] sm:$0xff] %v2168
    %2186 = vst [vmem:[#allocation3 + $0xb8] sm:$0xff] %v2170
    %v2187 = vld [vmem:[#allocation3] sm:$0xff]
    %v2188 = vld [vmem:[#allocation3 + $0x8] sm:$0xff]
    %v2189 = vld [vmem:[#allocation3 + $0x10] sm:$0xff]
    %v2190 = vld [vmem:[#allocation3 + $0x18] sm:$0xff]
    %v2191 = vld [vmem:[#allocation3 + $0x20] sm:$0xff]
    %v2192 = vld [vmem:[#allocation3 + $0x28] sm:$0xff]
    %v2193 = vld [vmem:[#allocation3 + $0x30] sm:$0xff]
    %v2194 = vld [vmem:[#allocation3 + $0x38] sm:$0xff]
    %v2195 = vld [vmem:[#allocation3 + $0x40] sm:$0xff]
    %v2196 = vld [vmem:[#allocation3 + $0x48] sm:$0xff]
    %v2197 = vld [vmem:[#allocation3 + $0x50] sm:$0xff]
    %v2198 = vld [vmem:[#allocation3 + $0x58] sm:$0xff]
    %v2199 = vld [vmem:[#allocation3 + $0x60] sm:$0xff]
    %v2200 = vld [vmem:[#allocation3 + $0x68] sm:$0xff]
    %v2201 = vld [vmem:[#allocation3 + $0x70] sm:$0xff]
    %v2202 = vld [vmem:[#allocation3 + $0x78] sm:$0xff]
    %v2203 = vld [vmem:[#allocation3 + $0x80] sm:$0xff]
    %v2204 = vld [vmem:[#allocation3 + $0x88] sm:$0xff]
    %v2205 = vld [vmem:[#allocation3 + $0x90] sm:$0xff]
    %v2206 = vld [vmem:[#allocation3 + $0x98] sm:$0xff]
    %v2207 = vld [vmem:[#allocation3 + $0xa0] sm:$0xff]
    %v2208 = vld [vmem:[#allocation3 + $0xa8] sm:$0xff]
    %v2209 = vld [vmem:[#allocation3 + $0xb0] sm:$0xff]
    %v2210 = vld [vmem:[#allocation3 + $0xb8] sm:$0xff]
    %s2211 = scalar_lea.vmem %s2, 192
    %v2212 = vld [vmem:[%s2211] sm:$0xf]
    %v2213 = vld [vmem:[%s2211 + $0x4] sm:$0xf]
    %v2214 = vld [vmem:[%s2211 + $0x8] sm:$0xf]
    %v2215 = vld [vmem:[%s2211 + $0xc] sm:$0xf]
    %v2216 = vld [vmem:[%s2211 + $0x10] sm:$0xf]
    %v2217 = vld [vmem:[%s2211 + $0x14] sm:$0xf]
    %v2218 = vld [vmem:[%s2211 + $0x18] sm:$0xf]
    %v2219 = vld [vmem:[%s2211 + $0x1c] sm:$0xf]
    %v2220 = vld [vmem:[%s2211 + $0x20] sm:$0xf]
    %v2221 = vld [vmem:[%s2211 + $0x24] sm:$0xf]
    %v2222 = vld [vmem:[%s2211 + $0x28] sm:$0xf]
    %v2223 = vld [vmem:[%s2211 + $0x2c] sm:$0xf]
    %v2224 = vld [vmem:[%s2211 + $0x30] sm:$0xf]
    %v2225 = vld [vmem:[%s2211 + $0x34] sm:$0xf]
    %v2226 = vld [vmem:[%s2211 + $0x38] sm:$0xf]
    %v2227 = vld [vmem:[%s2211 + $0x3c] sm:$0xf]
    %v2228 = vld [vmem:[%s2211 + $0x40] sm:$0xf]
    %v2229 = vld [vmem:[%s2211 + $0x44] sm:$0xf]
    %v2230 = vld [vmem:[%s2211 + $0x48] sm:$0xf]
    %v2231 = vld [vmem:[%s2211 + $0x4c] sm:$0xf]
    %v2232 = vld [vmem:[%s2211 + $0x50] sm:$0xf]
    %v2233 = vld [vmem:[%s2211 + $0x54] sm:$0xf]
    %v2234 = vld [vmem:[%s2211 + $0x58] sm:$0xf]
    %v2235 = vld [vmem:[%s2211 + $0x5c] sm:$0xf]
    %v2236 = vld [vmem:[%s2211 + $0x60] sm:$0xf]
    %v2237 = vld [vmem:[%s2211 + $0x64] sm:$0xf]
    %v2238 = vld [vmem:[%s2211 + $0x68] sm:$0xf]
    %v2239 = vld [vmem:[%s2211 + $0x6c] sm:$0xf]
    %v2240 = vld [vmem:[%s2211 + $0x70] sm:$0xf]
    %v2241 = vld [vmem:[%s2211 + $0x74] sm:$0xf]
    %v2242 = vld [vmem:[%s2211 + $0x78] sm:$0xf]
    %v2243 = vld [vmem:[%s2211 + $0x7c] sm:$0xf]
    %v2244 = vld [vmem:[%s2211 + $0x80] sm:$0xf]
    %v2245 = vld [vmem:[%s2211 + $0x84] sm:$0xf]
    %v2246 = vld [vmem:[%s2211 + $0x88] sm:$0xf]
    %v2247 = vld [vmem:[%s2211 + $0x8c] sm:$0xf]
    %v2248 = vld [vmem:[%s2211 + $0x90] sm:$0xf]
    %v2249 = vld [vmem:[%s2211 + $0x94] sm:$0xf]
    %v2250 = vld [vmem:[%s2211 + $0x98] sm:$0xf]
    %v2251 = vld [vmem:[%s2211 + $0x9c] sm:$0xf]
    %v2252 = vld [vmem:[%s2211 + $0xa0] sm:$0xf]
    %v2253 = vld [vmem:[%s2211 + $0xa4] sm:$0xf]
    %v2254 = vld [vmem:[%s2211 + $0xa8] sm:$0xf]
    %v2255 = vld [vmem:[%s2211 + $0xac] sm:$0xf]
    %v2256 = vld [vmem:[%s2211 + $0xb0] sm:$0xf]
    %v2257 = vld [vmem:[%s2211 + $0xb4] sm:$0xf]
    %v2258 = vld [vmem:[%s2211 + $0xb8] sm:$0xf]
    %v2259 = vld [vmem:[%s2211 + $0xbc] sm:$0xf]
    %v2260 = vld [vmem:[%s4 + $0x2] sm:$0x1]
    %v2261 = vlaneseq
    %v2262 = vshrl.u32 %v2261, 7
    %v2263 = vsub.s32 0, %v2262
    %v2264 = vrot.slane %v2260, %v2263
    %v2313 = vunpack.c.l.b16 %v2212
    %v2314 = vunpack.c.l.b16 %v2213
    %v2315 = vunpack.c.l.b16 %v2214
    %v2316 = vunpack.c.l.b16 %v2215
    %v2317 = vunpack.c.l.b16 %v2216
    %v2318 = vunpack.c.l.b16 %v2217
    %v2319 = vunpack.c.l.b16 %v2218
    %v2320 = vunpack.c.l.b16 %v2219
    %v2321 = vunpack.c.l.b16 %v2220
    %v2322 = vunpack.c.l.b16 %v2221
    %v2323 = vunpack.c.l.b16 %v2222
    %v2324 = vunpack.c.l.b16 %v2223
    %v2325 = vunpack.c.l.b16 %v2224
    %v2326 = vunpack.c.l.b16 %v2225
    %v2327 = vunpack.c.l.b16 %v2226
    %v2328 = vunpack.c.l.b16 %v2227
    %v2329 = vunpack.c.l.b16 %v2228
    %v2330 = vunpack.c.l.b16 %v2229
    %v2331 = vunpack.c.l.b16 %v2230
    %v2332 = vunpack.c.l.b16 %v2231
    %v2333 = vunpack.c.l.b16 %v2232
    %v2334 = vunpack.c.l.b16 %v2233
    %v2335 = vunpack.c.l.b16 %v2234
    %v2336 = vunpack.c.l.b16 %v2235
    %v2337 = vunpack.c.l.b16 %v2236
    %v2338 = vunpack.c.l.b16 %v2237
    %v2339 = vunpack.c.l.b16 %v2238
    %v2340 = vunpack.c.l.b16 %v2239
    %v2341 = vunpack.c.l.b16 %v2240
    %v2342 = vunpack.c.l.b16 %v2241
    %v2343 = vunpack.c.l.b16 %v2242
    %v2344 = vunpack.c.l.b16 %v2243
    %v2345 = vunpack.c.l.b16 %v2244
    %v2346 = vunpack.c.l.b16 %v2245
    %v2347 = vunpack.c.l.b16 %v2246
    %v2348 = vunpack.c.l.b16 %v2247
    %v2349 = vunpack.c.l.b16 %v2248
    %v2350 = vunpack.c.l.b16 %v2249
    %v2351 = vunpack.c.l.b16 %v2250
    %v2352 = vunpack.c.l.b16 %v2251
    %v2353 = vunpack.c.l.b16 %v2252
    %v2354 = vunpack.c.l.b16 %v2253
    %v2355 = vunpack.c.l.b16 %v2254
    %v2356 = vunpack.c.l.b16 %v2255
    %v2357 = vunpack.c.l.b16 %v2256
    %v2358 = vunpack.c.l.b16 %v2257
    %v2359 = vunpack.c.l.b16 %v2258
    %v2360 = vunpack.c.l.b16 %v2259
    %v2361 = vpack.c.b16 %v2314, %v2313
    %v2362 = vpack.c.b16 %v2316, %v2315
    %v2363 = vpack.c.b16 %v2318, %v2317
    %v2364 = vpack.c.b16 %v2320, %v2319
    %v2365 = vpack.c.b16 %v2322, %v2321
    %v2366 = vpack.c.b16 %v2324, %v2323
    %v2367 = vpack.c.b16 %v2326, %v2325
    %v2368 = vpack.c.b16 %v2328, %v2327
    %v2369 = vpack.c.b16 %v2330, %v2329
    %v2370 = vpack.c.b16 %v2332, %v2331
    %v2371 = vpack.c.b16 %v2334, %v2333
    %v2372 = vpack.c.b16 %v2336, %v2335
    %v2373 = vpack.c.b16 %v2338, %v2337
    %v2374 = vpack.c.b16 %v2340, %v2339
    %v2375 = vpack.c.b16 %v2342, %v2341
    %v2376 = vpack.c.b16 %v2344, %v2343
    %v2377 = vpack.c.b16 %v2346, %v2345
    %v2378 = vpack.c.b16 %v2348, %v2347
    %v2379 = vpack.c.b16 %v2350, %v2349
    %v2380 = vpack.c.b16 %v2352, %v2351
    %v2381 = vpack.c.b16 %v2354, %v2353
    %v2382 = vpack.c.b16 %v2356, %v2355
    %v2383 = vpack.c.b16 %v2358, %v2357
    %v2384 = vpack.c.b16 %v2360, %v2359
    %2409 = vmatprep.subr.bf16.mxu0 0
    %2410 = vmatpush1.bf16.msra.mxu0 %v2361
    %2411 = vmatprep.subr.bf16.mxu0 0
    %2412 = vmatpush1.bf16.msra.mxu0 %v2362
    %2413 = vmatprep.subr.bf16.mxu0 0
    %2414 = vmatpush1.bf16.msra.mxu0 %v2363
    %2415 = vmatprep.subr.bf16.mxu0 0
    %2416 = vmatpush1.bf16.msra.mxu0 %v2364
    %2417 = vmatprep.subr.bf16.mxu0 0
    %2418 = vmatpush1.bf16.msra.mxu0 %v2365
    %2419 = vmatprep.subr.bf16.mxu0 0
    %2420 = vmatpush1.bf16.msra.mxu0 %v2366
    %2421 = vmatprep.subr.bf16.mxu0 0
    %2422 = vmatpush1.bf16.msra.mxu0 %v2367
    %2423 = vmatprep.subr.bf16.mxu0 0
    %2424 = vmatpush1.bf16.msra.mxu0 %v2368
    %2425 = vmatprep.subr.bf16.mxu0 0
    %2426 = vmatpush1.bf16.msra.mxu0 %v2369
    %2427 = vmatprep.subr.bf16.mxu0 0
    %2428 = vmatpush1.bf16.msra.mxu0 %v2370
    %2429 = vmatprep.subr.bf16.mxu0 0
    %2430 = vmatpush1.bf16.msra.mxu0 %v2371
    %2431 = vmatprep.subr.bf16.mxu0 0
    %2432 = vmatpush1.bf16.msra.mxu0 %v2372
    %2433 = vmatprep.subr.bf16.mxu0 0
    %2434 = vmatpush1.bf16.msra.mxu0 %v2373
    %2435 = vmatprep.subr.bf16.mxu0 0
    %2436 = vmatpush1.bf16.msra.mxu0 %v2374
    %2437 = vmatprep.subr.bf16.mxu0 0
    %2438 = vmatpush1.bf16.msra.mxu0 %v2375
    %2439 = vmatprep.subr.bf16.mxu0 0
    %2440 = vmatpush1.bf16.msra.mxu0 %v2376
    %2441 = vmatprep.mubr.bf16.mxu0 %v2188
    %2442 = vmatmul.mubr.bf16.gmra.mrb[0].mxu0 %v2187
    %v2443 = vpop.f32.mrb[0].mxu0
    %v2444 = vadd.f32 %v2264, %v2443
    %v2445 = vpop.f32.mrb[0].mxu0
    %v2446 = vpop.f32.mrb[0].mxu0
    %v2447 = vadd.f32 %v2264, %v2446
    %v2448 = vpop.f32.mrb[0].mxu0
    %2449 = vmatprep.mubr.bf16.mxu0 %v2191
    %2450 = vmatmul.mubr.bf16.gmra.mrb[0].mxu0 %v2190
    %v2451 = vpop.f32.mrb[0].mxu0
    %v2452 = vadd.f32 %v2264, %v2451
    %v2453 = vpop.f32.mrb[0].mxu0
    %v2454 = vpop.f32.mrb[0].mxu0
    %v2455 = vadd.f32 %v2264, %v2454
    %v2456 = vpop.f32.mrb[0].mxu0
    %2457 = vmatprep.mubr.bf16.mxu0 %v2194
    %2458 = vmatmul.mubr.bf16.gmra.mrb[0].mxu0 %v2193
    %v2459 = vpop.f32.mrb[0].mxu0
    %v2460 = vadd.f32 %v2264, %v2459
    %v2461 = vpop.f32.mrb[0].mxu0
    %v2462 = vpop.f32.mrb[0].mxu0
    %v2463 = vadd.f32 %v2264, %v2462
    %v2464 = vpop.f32.mrb[0].mxu0
    %2465 = vmatprep.mubr.bf16.mxu0 %v2197
    %2466 = vmatmul.mubr.bf16.gmra.mrb[0].mxu0 %v2196
    %v2467 = vpop.f32.mrb[0].mxu0
    %v2468 = vadd.f32 %v2264, %v2467
    %v2469 = vpop.f32.mrb[0].mxu0
    %v2470 = vpop.f32.mrb[0].mxu0
    %v2471 = vadd.f32 %v2264, %v2470
    %v2472 = vpop.f32.mrb[0].mxu0
    %2473 = vmatprep.mubr.bf16.mxu0 %v2200
    %2474 = vmatmul.mubr.bf16.gmra.mrb[0].mxu0 %v2199
    %v2475 = vpop.f32.mrb[0].mxu0
    %v2476 = vadd.f32 %v2264, %v2475
    %v2477 = vpop.f32.mrb[0].mxu0
    %v2478 = vpop.f32.mrb[0].mxu0
    %v2479 = vadd.f32 %v2264, %v2478
    %v2480 = vpop.f32.mrb[0].mxu0
    %2481 = vmatprep.mubr.bf16.mxu0 %v2203
    %2482 = vmatmul.mubr.bf16.gmra.mrb[0].mxu0 %v2202
    %v2483 = vpop.f32.mrb[0].mxu0
    %v2484 = vadd.f32 %v2264, %v2483
    %v2485 = vpop.f32.mrb[0].mxu0
    %v2486 = vpop.f32.mrb[0].mxu0
    %v2487 = vadd.f32 %v2264, %v2486
    %v2488 = vpop.f32.mrb[0].mxu0
    %2489 = vmatprep.mubr.bf16.mxu0 %v2206
    %2490 = vmatmul.mubr.bf16.gmra.mrb[0].mxu0 %v2205
    %v2491 = vpop.f32.mrb[0].mxu0
    %v2492 = vadd.f32 %v2264, %v2491
    %v2493 = vpop.f32.mrb[0].mxu0
    %v2494 = vpop.f32.mrb[0].mxu0
    %v2495 = vadd.f32 %v2264, %v2494
    %v2496 = vpop.f32.mrb[0].mxu0
    %2497 = vmatprep.mubr.bf16.mxu0 %v2209
    %2498 = vmatmul.mubr.bf16.gmra.mrb[0].mxu0 %v2208
    %v2499 = vpop.f32.mrb[0].mxu0
    %v2500 = vadd.f32 %v2264, %v2499
    %v2501 = vpop.f32.mrb[0].mxu0
    %v2502 = vpop.f32.mrb[0].mxu0
    %v2503 = vadd.f32 %v2264, %v2502
    %v2504 = vpop.f32.mrb[0].mxu0
    %2505 = vdwg.mxu0
    %2506 = vmatprep.subr.bf16.mxu0 0
    %2507 = vmatpush1.bf16.msra.mxu0 %v2377
    %2508 = vmatprep.subr.bf16.mxu0 0
    %2509 = vmatpush1.bf16.msra.mxu0 %v2378
    %2510 = vmatprep.subr.bf16.mxu0 0
    %2511 = vmatpush1.bf16.msra.mxu0 %v2379
    %2512 = vmatprep.subr.bf16.mxu0 0
    %2513 = vmatpush1.bf16.msra.mxu0 %v2380
    %2514 = vmatprep.subr.bf16.mxu0 0
    %2515 = vmatpush1.bf16.msra.mxu0 %v2381
    %2516 = vmatprep.subr.bf16.mxu0 0
    %2517 = vmatpush1.bf16.msra.mxu0 %v2382
    %2518 = vmatprep.subr.bf16.mxu0 0
    %2519 = vmatpush1.bf16.msra.mxu0 %v2383
    %2520 = vmatprep.subr.bf16.mxu0 0
    %2521 = vmatpush1.bf16.msra.mxu0 %v2384
    %2522 = vmatprep.subr.bf16.mxu0 0
    %2523 = vmatpush1.bf16.msra.mxu0 0
    %2524 = vmatprep.subr.bf16.mxu0 0
    %2525 = vmatpush1.bf16.msra.mxu0 0
    %2526 = vmatprep.subr.bf16.mxu0 0
    %2527 = vmatpush1.bf16.msra.mxu0 0
    %2528 = vmatprep.subr.bf16.mxu0 0
    %2529 = vmatpush1.bf16.msra.mxu0 0
    %2530 = vmatprep.subr.bf16.mxu0 0
    %2531 = vmatpush1.bf16.msra.mxu0 0
    %2532 = vmatprep.subr.bf16.mxu0 0
    %2533 = vmatpush1.bf16.msra.mxu0 0
    %2534 = vmatprep.subr.bf16.mxu0 0
    %2535 = vmatpush1.bf16.msra.mxu0 0
    %2536 = vmatprep.subr.bf16.mxu0 0
    %2537 = vmatpush1.bf16.msra.mxu0 0
    %2538 = vmatprep.mubr.bf16.mxu0 0
    %2539 = vmatmul.mubr.bf16.gmra.mrb[0].mxu0 %v2189
    %v2540 = vpop.f32.mrb[0].mxu0
    %v2541 = vadd.f32 %v2444, %v2540
    %v2542 = vpop.f32.mrb[0].mxu0
    %v2543 = vpop.f32.mrb[0].mxu0
    %v2544 = vadd.f32 %v2447, %v2543
    %v2545 = vpop.f32.mrb[0].mxu0
    %2546 = vmatprep.mubr.bf16.mxu0 0
    %2547 = vmatmul.mubr.bf16.gmra.mrb[0].mxu0 %v2192
    %v2548 = vpop.f32.mrb[0].mxu0
    %v2549 = vadd.f32 %v2452, %v2548
    %v2550 = vpop.f32.mrb[0].mxu0
    %v2551 = vpop.f32.mrb[0].mxu0
    %v2552 = vadd.f32 %v2455, %v2551
    %v2553 = vpop.f32.mrb[0].mxu0
    %2554 = vmatprep.mubr.bf16.mxu0 0
    %2555 = vmatmul.mubr.bf16.gmra.mrb[0].mxu0 %v2195
    %v2556 = vpop.f32.mrb[0].mxu0
    %v2557 = vadd.f32 %v2460, %v2556
    %v2558 = vpop.f32.mrb[0].mxu0
    %v2559 = vpop.f32.mrb[0].mxu0
    %v2560 = vadd.f32 %v2463, %v2559
    %v2561 = vpop.f32.mrb[0].mxu0
    %2562 = vmatprep.mubr.bf16.mxu0 0
    %2563 = vmatmul.mubr.bf16.gmra.mrb[0].mxu0 %v2198
    %v2564 = vpop.f32.mrb[0].mxu0
    %v2565 = vadd.f32 %v2468, %v2564
    %v2566 = vpop.f32.mrb[0].mxu0
    %v2567 = vpop.f32.mrb[0].mxu0
    %v2568 = vadd.f32 %v2471, %v2567
    %v2569 = vpop.f32.mrb[0].mxu0
    %2570 = vmatprep.mubr.bf16.mxu0 0
    %2571 = vmatmul.mubr.bf16.gmra.mrb[0].mxu0 %v2201
    %v2572 = vpop.f32.mrb[0].mxu0
    %v2573 = vadd.f32 %v2476, %v2572
    %v2574 = vpop.f32.mrb[0].mxu0
    %v2575 = vpop.f32.mrb[0].mxu0
    %v2576 = vadd.f32 %v2479, %v2575
    %v2577 = vpop.f32.mrb[0].mxu0
    %2578 = vmatprep.mubr.bf16.mxu0 0
    %2579 = vmatmul.mubr.bf16.gmra.mrb[0].mxu0 %v2204
    %v2580 = vpop.f32.mrb[0].mxu0
    %v2581 = vadd.f32 %v2484, %v2580
    %v2582 = vpop.f32.mrb[0].mxu0
    %v2583 = vpop.f32.mrb[0].mxu0
    %v2584 = vadd.f32 %v2487, %v2583
    %v2585 = vpop.f32.mrb[0].mxu0
    %2586 = vmatprep.mubr.bf16.mxu0 0
    %2587 = vmatmul.mubr.bf16.gmra.mrb[0].mxu0 %v2207
    %v2588 = vpop.f32.mrb[0].mxu0
    %v2589 = vadd.f32 %v2492, %v2588
    %v2590 = vpop.f32.mrb[0].mxu0
    %v2591 = vpop.f32.mrb[0].mxu0
    %v2592 = vadd.f32 %v2495, %v2591
    %v2593 = vpop.f32.mrb[0].mxu0
    %2594 = vmatprep.mubr.bf16.mxu0 0
    %2595 = vmatmul.mubr.bf16.gmra.mrb[0].mxu0 %v2210
    %v2596 = vpop.f32.mrb[0].mxu0
    %v2597 = vadd.f32 %v2500, %v2596
    %v2598 = vpop.f32.mrb[0].mxu0
    %v2599 = vpop.f32.mrb[0].mxu0
    %v2600 = vadd.f32 %v2503, %v2599
    %v2601 = vpop.f32.mrb[0].mxu0
    %2602 = vdwg.mxu0
    %v2603 = vmax.f32 %v2541, 0.0
    %v2604 = vmax.f32 %v2544, 0.0
    %v2605 = vmax.f32 %v2549, 0.0
    %v2606 = vmax.f32 %v2552, 0.0
    %v2607 = vmax.f32 %v2557, 0.0
    %v2608 = vmax.f32 %v2560, 0.0
    %v2609 = vmax.f32 %v2565, 0.0
    %v2610 = vmax.f32 %v2568, 0.0
    %v2611 = vmax.f32 %v2573, 0.0
    %v2612 = vmax.f32 %v2576, 0.0
    %v2613 = vmax.f32 %v2581, 0.0
    %v2614 = vmax.f32 %v2584, 0.0
    %v2615 = vmax.f32 %v2589, 0.0
    %v2616 = vmax.f32 %v2592, 0.0
    %v2617 = vmax.f32 %v2597, 0.0
    %v2618 = vmax.f32 %v2600, 0.0
    %v2619 = vpack.c.bf16 %v2604, %v2603
    %v2620 = vpack.c.bf16 %v2606, %v2605
    %v2621 = vpack.c.bf16 %v2608, %v2607
    %v2622 = vpack.c.bf16 %v2610, %v2609
    %v2623 = vpack.c.bf16 %v2612, %v2611
    %v2624 = vpack.c.bf16 %v2614, %v2613
    %v2625 = vpack.c.bf16 %v2616, %v2615
    %v2626 = vpack.c.bf16 %v2618, %v2617
    %2627 = vst [vmem:[#allocation4] sm:$0xff] %v2619
    %2628 = vst [vmem:[#allocation4 + $0x28] sm:$0xff] %v2620
    %2629 = vst [vmem:[#allocation4 + $0x50] sm:$0xff] %v2621
    %2630 = vst [vmem:[#allocation4 + $0x78] sm:$0xff] %v2622
    %2631 = vst [vmem:[#allocation4 + $0xa0] sm:$0xff] %v2623
    %2632 = vst [vmem:[#allocation4 + $0xc8] sm:$0xff] %v2624
    %2633 = vst [vmem:[#allocation4 + $0xf0] sm:$0xff] %v2625
    %2634 = vst [vmem:[#allocation4 + $0x118] sm:$0xff] %v2626
    %2635 = vst [vmem:[#allocation2 + $0x10] sm:$0xff] %v2619
    %2636 = vst [vmem:[#allocation2 + $0x18] sm:$0xff] %v2620
    %2637 = vst [vmem:[#allocation2 + $0x20] sm:$0xff] %v2621
    %2638 = vst [vmem:[#allocation2 + $0x28] sm:$0xff] %v2622
    %2639 = vst [vmem:[#allocation2 + $0x30] sm:$0xff] %v2623
    %2640 = vst [vmem:[#allocation2 + $0x38] sm:$0xff] %v2624
    %2641 = vst [vmem:[#allocation2 + $0x40] sm:$0xff] %v2625
    %2642 = vst [vmem:[#allocation2 + $0x48] sm:$0xff] %v2626
    %2643 = vst [vmem:[#allocation3 + $0x8] sm:$0xff] %v2619
    %2644 = vst [vmem:[#allocation3 + $0x20] sm:$0xff] %v2620
    %2645 = vst [vmem:[#allocation3 + $0x38] sm:$0xff] %v2621
    %2646 = vst [vmem:[#allocation3 + $0x50] sm:$0xff] %v2622
    %2647 = vst [vmem:[#allocation3 + $0x68] sm:$0xff] %v2623
    %2648 = vst [vmem:[#allocation3 + $0x80] sm:$0xff] %v2624
    %2649 = vst [vmem:[#allocation3 + $0x98] sm:$0xff] %v2625
    %2650 = vst [vmem:[#allocation3 + $0xb0] sm:$0xff] %v2626
    %v2651 = vld [vmem:[#allocation2 + $0x8] sm:$0xf0]
    %v2652 = vld [vmem:[#allocation2 + $0x10] sm:$0xff]
    %v2653 = vld [vmem:[#allocation2 + $0x18] sm:$0xff]
    %v2654 = vld [vmem:[#allocation2 + $0x20] sm:$0xff]
    %v2655 = vld [vmem:[#allocation2 + $0x28] sm:$0xff]
    %v2656 = vld [vmem:[#allocation2 + $0x30] sm:$0xff]
    %v2657 = vld [vmem:[#allocation2 + $0x38] sm:$0xff]
    %v2658 = vld [vmem:[#allocation2 + $0x40] sm:$0xff]
    %v2659 = vld [vmem:[#allocation2 + $0x48] sm:$0xf]
    %v2660 = vmul.bf16 %v2651, %v1916
    %v2661 = vmul.bf16 %v2652, %v1918
    %v2662 = vmul.bf16 %v2653, %v1920
    %v2663 = vmul.bf16 %v2654, %v1922
    %v2664 = vmul.bf16 %v2655, %v1924
    %v2665 = vmul.bf16 %v2656, %v1926
    %v2666 = vmul.bf16 %v2657, %v1928
    %v2667 = vmul.bf16 %v2658, %v1930
    %v2668 = vmul.bf16 %v2659, %v1929
    %v2678 = vrot.slane %v2660, 4
    %v2679 = vrot.slane %v2661, 4
    %v2680 = vsel %vm1915, %v2678, %v2679
    %v2681 = vrot.slane %v2662, 4
    %v2682 = vsel %vm1915, %v2679, %v2681
    %v2683 = vrot.slane %v2663, 4
    %v2684 = vsel %vm1915, %v2681, %v2683
    %v2685 = vrot.slane %v2664, 4
    %v2686 = vsel %vm1915, %v2683, %v2685
    %v2687 = vrot.slane %v2665, 4
    %v2688 = vsel %vm1915, %v2685, %v2687
    %v2689 = vrot.slane %v2666, 4
    %v2690 = vsel %vm1915, %v2687, %v2689
    %v2691 = vrot.slane %v2667, 4
    %v2692 = vsel %vm1915, %v2689, %v2691
    %v2693 = vrot.slane %v2668, 4
    %v2694 = vsel %vm1915, %v2691, %v2693
    %2703 = vst [vmem:[#allocation3] sm:$0xff] %v2680
    %2704 = vst [vmem:[#allocation3 + $0x18] sm:$0xff] %v2682
    %2705 = vst [vmem:[#allocation3 + $0x30] sm:$0xff] %v2684
    %2706 = vst [vmem:[#allocation3 + $0x48] sm:$0xff] %v2686
    %2707 = vst [vmem:[#allocation3 + $0x60] sm:$0xff] %v2688
    %2708 = vst [vmem:[#allocation3 + $0x78] sm:$0xff] %v2690
    %2709 = vst [vmem:[#allocation3 + $0x90] sm:$0xff] %v2692
    %2710 = vst [vmem:[#allocation3 + $0xa8] sm:$0xff] %v2694
    %v2711 = vld [vmem:[#allocation2 + $0x10] sm:$0xf0]
    %v2712 = vld [vmem:[#allocation2 + $0x18] sm:$0xff]
    %v2713 = vld [vmem:[#allocation2 + $0x20] sm:$0xff]
    %v2714 = vld [vmem:[#allocation2 + $0x28] sm:$0xff]
    %v2715 = vld [vmem:[#allocation2 + $0x30] sm:$0xff]
    %v2716 = vld [vmem:[#allocation2 + $0x38] sm:$0xff]
    %v2717 = vld [vmem:[#allocation2 + $0x40] sm:$0xff]
    %v2718 = vld [vmem:[#allocation2 + $0x48] sm:$0xff]
    %v2719 = vld [vmem:[#allocation2 + $0x50] sm:$0xf]
    %v2720 = vmul.bf16 %v2711, %v2112
    %v2721 = vmul.bf16 %v2712, %v2114
    %v2722 = vmul.bf16 %v2713, %v2116
    %v2723 = vmul.bf16 %v2714, %v2118
    %v2724 = vmul.bf16 %v2715, %v2120
    %v2725 = vmul.bf16 %v2716, %v2122
    %v2726 = vmul.bf16 %v2717, %v2124
    %v2727 = vmul.bf16 %v2718, %v2126
    %v2728 = vmul.bf16 %v2719, %v2125
    %v2738 = vrot.slane %v2720, 4
    %v2739 = vrot.slane %v2721, 4
    %v2740 = vsel %vm1915, %v2738, %v2739
    %v2741 = vrot.slane %v2722, 4
    %v2742 = vsel %vm1915, %v2739, %v2741
    %v2743 = vrot.slane %v2723, 4
    %v2744 = vsel %vm1915, %v2741, %v2743
    %v2745 = vrot.slane %v2724, 4
    %v2746 = vsel %vm1915, %v2743, %v2745
    %v2747 = vrot.slane %v2725, 4
    %v2748 = vsel %vm1915, %v2745, %v2747
    %v2749 = vrot.slane %v2726, 4
    %v2750 = vsel %vm1915, %v2747, %v2749
    %v2751 = vrot.slane %v2727, 4
    %v2752 = vsel %vm1915, %v2749, %v2751
    %v2753 = vrot.slane %v2728, 4
    %v2754 = vsel %vm1915, %v2751, %v2753
    %2763 = vst [vmem:[#allocation3 + $0x10] sm:$0xff] %v2740
    %2764 = vst [vmem:[#allocation3 + $0x28] sm:$0xff] %v2742
    %2765 = vst [vmem:[#allocation3 + $0x40] sm:$0xff] %v2744
    %2766 = vst [vmem:[#allocation3 + $0x58] sm:$0xff] %v2746
    %2767 = vst [vmem:[#allocation3 + $0x70] sm:$0xff] %v2748
    %2768 = vst [vmem:[#allocation3 + $0x88] sm:$0xff] %v2750
    %2769 = vst [vmem:[#allocation3 + $0xa0] sm:$0xff] %v2752
    %2770 = vst [vmem:[#allocation3 + $0xb8] sm:$0xff] %v2754
    %v2771 = vld [vmem:[#allocation3] sm:$0xff]
    %v2772 = vld [vmem:[#allocation3 + $0x8] sm:$0xff]
    %v2773 = vld [vmem:[#allocation3 + $0x10] sm:$0xff]
    %v2774 = vld [vmem:[#allocation3 + $0x18] sm:$0xff]
    %v2775 = vld [vmem:[#allocation3 + $0x20] sm:$0xff]
    %v2776 = vld [vmem:[#allocation3 + $0x28] sm:$0xff]
    %v2777 = vld [vmem:[#allocation3 + $0x30] sm:$0xff]
    %v2778 = vld [vmem:[#allocation3 + $0x38] sm:$0xff]
    %v2779 = vld [vmem:[#allocation3 + $0x40] sm:$0xff]
    %v2780 = vld [vmem:[#allocation3 + $0x48] sm:$0xff]
    %v2781 = vld [vmem:[#allocation3 + $0x50] sm:$0xff]
    %v2782 = vld [vmem:[#allocation3 + $0x58] sm:$0xff]
    %v2783 = vld [vmem:[#allocation3 + $0x60] sm:$0xff]
    %v2784 = vld [vmem:[#allocation3 + $0x68] sm:$0xff]
    %v2785 = vld [vmem:[#allocation3 + $0x70] sm:$0xff]
    %v2786 = vld [vmem:[#allocation3 + $0x78] sm:$0xff]
    %v2787 = vld [vmem:[#allocation3 + $0x80] sm:$0xff]
    %v2788 = vld [vmem:[#allocation3 + $0x88] sm:$0xff]
    %v2789 = vld [vmem:[#allocation3 + $0x90] sm:$0xff]
    %v2790 = vld [vmem:[#allocation3 + $0x98] sm:$0xff]
    %v2791 = vld [vmem:[#allocation3 + $0xa0] sm:$0xff]
    %v2792 = vld [vmem:[#allocation3 + $0xa8] sm:$0xff]
    %v2793 = vld [vmem:[#allocation3 + $0xb0] sm:$0xff]
    %v2794 = vld [vmem:[#allocation3 + $0xb8] sm:$0xff]
    %s2795 = scalar_lea.vmem %s2, 384
    %v2796 = vld [vmem:[%s2795] sm:$0xf]
    %v2797 = vld [vmem:[%s2795 + $0x4] sm:$0xf]
    %v2798 = vld [vmem:[%s2795 + $0x8] sm:$0xf]
    %v2799 = vld [vmem:[%s2795 + $0xc] sm:$0xf]
    %v2800 = vld [vmem:[%s2795 + $0x10] sm:$0xf]
    %v2801 = vld [vmem:[%s2795 + $0x14] sm:$0xf]
    %v2802 = vld [vmem:[%s2795 + $0x18] sm:$0xf]
    %v2803 = vld [vmem:[%s2795 + $0x1c] sm:$0xf]
    %v2804 = vld [vmem:[%s2795 + $0x20] sm:$0xf]
    %v2805 = vld [vmem:[%s2795 + $0x24] sm:$0xf]
    %v2806 = vld [vmem:[%s2795 + $0x28] sm:$0xf]
    %v2807 = vld [vmem:[%s2795 + $0x2c] sm:$0xf]
    %v2808 = vld [vmem:[%s2795 + $0x30] sm:$0xf]
    %v2809 = vld [vmem:[%s2795 + $0x34] sm:$0xf]
    %v2810 = vld [vmem:[%s2795 + $0x38] sm:$0xf]
    %v2811 = vld [vmem:[%s2795 + $0x3c] sm:$0xf]
    %v2812 = vld [vmem:[%s2795 + $0x40] sm:$0xf]
    %v2813 = vld [vmem:[%s2795 + $0x44] sm:$0xf]
    %v2814 = vld [vmem:[%s2795 + $0x48] sm:$0xf]
    %v2815 = vld [vmem:[%s2795 + $0x4c] sm:$0xf]
    %v2816 = vld [vmem:[%s2795 + $0x50] sm:$0xf]
    %v2817 = vld [vmem:[%s2795 + $0x54] sm:$0xf]
    %v2818 = vld [vmem:[%s2795 + $0x58] sm:$0xf]
    %v2819 = vld [vmem:[%s2795 + $0x5c] sm:$0xf]
    %v2820 = vld [vmem:[%s2795 + $0x60] sm:$0xf]
    %v2821 = vld [vmem:[%s2795 + $0x64] sm:$0xf]
    %v2822 = vld [vmem:[%s2795 + $0x68] sm:$0xf]
    %v2823 = vld [vmem:[%s2795 + $0x6c] sm:$0xf]
    %v2824 = vld [vmem:[%s2795 + $0x70] sm:$0xf]
    %v2825 = vld [vmem:[%s2795 + $0x74] sm:$0xf]
    %v2826 = vld [vmem:[%s2795 + $0x78] sm:$0xf]
    %v2827 = vld [vmem:[%s2795 + $0x7c] sm:$0xf]
    %v2828 = vld [vmem:[%s2795 + $0x80] sm:$0xf]
    %v2829 = vld [vmem:[%s2795 + $0x84] sm:$0xf]
    %v2830 = vld [vmem:[%s2795 + $0x88] sm:$0xf]
    %v2831 = vld [vmem:[%s2795 + $0x8c] sm:$0xf]
    %v2832 = vld [vmem:[%s2795 + $0x90] sm:$0xf]
    %v2833 = vld [vmem:[%s2795 + $0x94] sm:$0xf]
    %v2834 = vld [vmem:[%s2795 + $0x98] sm:$0xf]
    %v2835 = vld [vmem:[%s2795 + $0x9c] sm:$0xf]
    %v2836 = vld [vmem:[%s2795 + $0xa0] sm:$0xf]
    %v2837 = vld [vmem:[%s2795 + $0xa4] sm:$0xf]
    %v2838 = vld [vmem:[%s2795 + $0xa8] sm:$0xf]
    %v2839 = vld [vmem:[%s2795 + $0xac] sm:$0xf]
    %v2840 = vld [vmem:[%s2795 + $0xb0] sm:$0xf]
    %v2841 = vld [vmem:[%s2795 + $0xb4] sm:$0xf]
    %v2842 = vld [vmem:[%s2795 + $0xb8] sm:$0xf]
    %v2843 = vld [vmem:[%s2795 + $0xbc] sm:$0xf]
    %v2844 = vld [vmem:[%s4 + $0x3] sm:$0x1]
    %v2845 = vlaneseq
    %v2846 = vshrl.u32 %v2845, 7
    %v2847 = vsub.s32 0, %v2846
    %v2848 = vrot.slane %v2844, %v2847
    %v2897 = vunpack.c.l.b16 %v2796
    %v2898 = vunpack.c.l.b16 %v2797
    %v2899 = vunpack.c.l.b16 %v2798
    %v2900 = vunpack.c.l.b16 %v2799
    %v2901 = vunpack.c.l.b16 %v2800
    %v2902 = vunpack.c.l.b16 %v2801
    %v2903 = vunpack.c.l.b16 %v2802
    %v2904 = vunpack.c.l.b16 %v2803
    %v2905 = vunpack.c.l.b16 %v2804
    %v2906 = vunpack.c.l.b16 %v2805
    %v2907 = vunpack.c.l.b16 %v2806
    %v2908 = vunpack.c.l.b16 %v2807
    %v2909 = vunpack.c.l.b16 %v2808
    %v2910 = vunpack.c.l.b16 %v2809
    %v2911 = vunpack.c.l.b16 %v2810
    %v2912 = vunpack.c.l.b16 %v2811
    %v2913 = vunpack.c.l.b16 %v2812
    %v2914 = vunpack.c.l.b16 %v2813
    %v2915 = vunpack.c.l.b16 %v2814
    %v2916 = vunpack.c.l.b16 %v2815
    %v2917 = vunpack.c.l.b16 %v2816
    %v2918 = vunpack.c.l.b16 %v2817
    %v2919 = vunpack.c.l.b16 %v2818
    %v2920 = vunpack.c.l.b16 %v2819
    %v2921 = vunpack.c.l.b16 %v2820
    %v2922 = vunpack.c.l.b16 %v2821
    %v2923 = vunpack.c.l.b16 %v2822
    %v2924 = vunpack.c.l.b16 %v2823
    %v2925 = vunpack.c.l.b16 %v2824
    %v2926 = vunpack.c.l.b16 %v2825
    %v2927 = vunpack.c.l.b16 %v2826
    %v2928 = vunpack.c.l.b16 %v2827
    %v2929 = vunpack.c.l.b16 %v2828
    %v2930 = vunpack.c.l.b16 %v2829
    %v2931 = vunpack.c.l.b16 %v2830
    %v2932 = vunpack.c.l.b16 %v2831
    %v2933 = vunpack.c.l.b16 %v2832
    %v2934 = vunpack.c.l.b16 %v2833
    %v2935 = vunpack.c.l.b16 %v2834
    %v2936 = vunpack.c.l.b16 %v2835
    %v2937 = vunpack.c.l.b16 %v2836
    %v2938 = vunpack.c.l.b16 %v2837
    %v2939 = vunpack.c.l.b16 %v2838
    %v2940 = vunpack.c.l.b16 %v2839
    %v2941 = vunpack.c.l.b16 %v2840
    %v2942 = vunpack.c.l.b16 %v2841
    %v2943 = vunpack.c.l.b16 %v2842
    %v2944 = vunpack.c.l.b16 %v2843
    %v2945 = vpack.c.b16 %v2898, %v2897
    %v2946 = vpack.c.b16 %v2900, %v2899
    %v2947 = vpack.c.b16 %v2902, %v2901
    %v2948 = vpack.c.b16 %v2904, %v2903
    %v2949 = vpack.c.b16 %v2906, %v2905
    %v2950 = vpack.c.b16 %v2908, %v2907
    %v2951 = vpack.c.b16 %v2910, %v2909
    %v2952 = vpack.c.b16 %v2912, %v2911
    %v2953 = vpack.c.b16 %v2914, %v2913
    %v2954 = vpack.c.b16 %v2916, %v2915
    %v2955 = vpack.c.b16 %v2918, %v2917
    %v2956 = vpack.c.b16 %v2920, %v2919
    %v2957 = vpack.c.b16 %v2922, %v2921
    %v2958 = vpack.c.b16 %v2924, %v2923
    %v2959 = vpack.c.b16 %v2926, %v2925
    %v2960 = vpack.c.b16 %v2928, %v2927
    %v2961 = vpack.c.b16 %v2930, %v2929
    %v2962 = vpack.c.b16 %v2932, %v2931
    %v2963 = vpack.c.b16 %v2934, %v2933
    %v2964 = vpack.c.b16 %v2936, %v2935
    %v2965 = vpack.c.b16 %v2938, %v2937
    %v2966 = vpack.c.b16 %v2940, %v2939
    %v2967 = vpack.c.b16 %v2942, %v2941
    %v2968 = vpack.c.b16 %v2944, %v2943
    %2993 = vmatprep.subr.bf16.mxu0 0
    %2994 = vmatpush1.bf16.msra.mxu0 %v2945
    %2995 = vmatprep.subr.bf16.mxu0 0
    %2996 = vmatpush1.bf16.msra.mxu0 %v2946
    %2997 = vmatprep.subr.bf16.mxu0 0
    %2998 = vmatpush1.bf16.msra.mxu0 %v2947
    %2999 = vmatprep.subr.bf16.mxu0 0
    %3000 = vmatpush1.bf16.msra.mxu0 %v2948
    %3001 = vmatprep.subr.bf16.mxu0 0
    %3002 = vmatpush1.bf16.msra.mxu0 %v2949
    %3003 = vmatprep.subr.bf16.mxu0 0
    %3004 = vmatpush1.bf16.msra.mxu0 %v2950
    %3005 = vmatprep.subr.bf16.mxu0 0
    %3006 = vmatpush1.bf16.msra.mxu0 %v2951
    %3007 = vmatprep.subr.bf16.mxu0 0
    %3008 = vmatpush1.bf16.msra.mxu0 %v2952
    %3009 = vmatprep.subr.bf16.mxu0 0
    %3010 = vmatpush1.bf16.msra.mxu0 %v2953
    %3011 = vmatprep.subr.bf16.mxu0 0
    %3012 = vmatpush1.bf16.msra.mxu0 %v2954
    %3013 = vmatprep.subr.bf16.mxu0 0
    %3014 = vmatpush1.bf16.msra.mxu0 %v2955
    %3015 = vmatprep.subr.bf16.mxu0 0
    %3016 = vmatpush1.bf16.msra.mxu0 %v2956
    %3017 = vmatprep.subr.bf16.mxu0 0
    %3018 = vmatpush1.bf16.msra.mxu0 %v2957
    %3019 = vmatprep.subr.bf16.mxu0 0
    %3020 = vmatpush1.bf16.msra.mxu0 %v2958
    %3021 = vmatprep.subr.bf16.mxu0 0
    %3022 = vmatpush1.bf16.msra.mxu0 %v2959
    %3023 = vmatprep.subr.bf16.mxu0 0
    %3024 = vmatpush1.bf16.msra.mxu0 %v2960
    %3025 = vmatprep.mubr.bf16.mxu0 %v2772
    %3026 = vmatmul.mubr.bf16.gmra.mrb[0].mxu0 %v2771
    %v3027 = vpop.f32.mrb[0].mxu0
    %v3028 = vadd.f32 %v2848, %v3027
    %v3029 = vpop.f32.mrb[0].mxu0
    %v3030 = vpop.f32.mrb[0].mxu0
    %v3031 = vadd.f32 %v2848, %v3030
    %v3032 = vpop.f32.mrb[0].mxu0
    %3033 = vmatprep.mubr.bf16.mxu0 %v2775
    %3034 = vmatmul.mubr.bf16.gmra.mrb[0].mxu0 %v2774
    %v3035 = vpop.f32.mrb[0].mxu0
    %v3036 = vadd.f32 %v2848, %v3035
    %v3037 = vpop.f32.mrb[0].mxu0
    %v3038 = vpop.f32.mrb[0].mxu0
    %v3039 = vadd.f32 %v2848, %v3038
    %v3040 = vpop.f32.mrb[0].mxu0
    %3041 = vmatprep.mubr.bf16.mxu0 %v2778
    %3042 = vmatmul.mubr.bf16.gmra.mrb[0].mxu0 %v2777
    %v3043 = vpop.f32.mrb[0].mxu0
    %v3044 = vadd.f32 %v2848, %v3043
    %v3045 = vpop.f32.mrb[0].mxu0
    %v3046 = vpop.f32.mrb[0].mxu0
    %v3047 = vadd.f32 %v2848, %v3046
    %v3048 = vpop.f32.mrb[0].mxu0
    %3049 = vmatprep.mubr.bf16.mxu0 %v2781
    %3050 = vmatmul.mubr.bf16.gmra.mrb[0].mxu0 %v2780
    %v3051 = vpop.f32.mrb[0].mxu0
    %v3052 = vadd.f32 %v2848, %v3051
    %v3053 = vpop.f32.mrb[0].mxu0
    %v3054 = vpop.f32.mrb[0].mxu0
    %v3055 = vadd.f32 %v2848, %v3054
    %v3056 = vpop.f32.mrb[0].mxu0
    %3057 = vmatprep.mubr.bf16.mxu0 %v2784
    %3058 = vmatmul.mubr.bf16.gmra.mrb[0].mxu0 %v2783
    %v3059 = vpop.f32.mrb[0].mxu0
    %v3060 = vadd.f32 %v2848, %v3059
    %v3061 = vpop.f32.mrb[0].mxu0
    %v3062 = vpop.f32.mrb[0].mxu0
    %v3063 = vadd.f32 %v2848, %v3062
    %v3064 = vpop.f32.mrb[0].mxu0
    %3065 = vmatprep.mubr.bf16.mxu0 %v2787
    %3066 = vmatmul.mubr.bf16.gmra.mrb[0].mxu0 %v2786
    %v3067 = vpop.f32.mrb[0].mxu0
    %v3068 = vadd.f32 %v2848, %v3067
    %v3069 = vpop.f32.mrb[0].mxu0
    %v3070 = vpop.f32.mrb[0].mxu0
    %v3071 = vadd.f32 %v2848, %v3070
    %v3072 = vpop.f32.mrb[0].mxu0
    %3073 = vmatprep.mubr.bf16.mxu0 %v2790
    %3074 = vmatmul.mubr.bf16.gmra.mrb[0].mxu0 %v2789
    %v3075 = vpop.f32.mrb[0].mxu0
    %v3076 = vadd.f32 %v2848, %v3075
    %v3077 = vpop.f32.mrb[0].mxu0
    %v3078 = vpop.f32.mrb[0].mxu0
    %v3079 = vadd.f32 %v2848, %v3078
    %v3080 = vpop.f32.mrb[0].mxu0
    %3081 = vmatprep.mubr.bf16.mxu0 %v2793
    %3082 = vmatmul.mubr.bf16.gmra.mrb[0].mxu0 %v2792
    %v3083 = vpop.f32.mrb[0].mxu0
    %v3084 = vadd.f32 %v2848, %v3083
    %v3085 = vpop.f32.mrb[0].mxu0
    %v3086 = vpop.f32.mrb[0].mxu0
    %v3087 = vadd.f32 %v2848, %v3086
    %v3088 = vpop.f32.mrb[0].mxu0
    %3089 = vdwg.mxu0
    %3090 = vmatprep.subr.bf16.mxu0 0
    %3091 = vmatpush1.bf16.msra.mxu0 %v2961
    %3092 = vmatprep.subr.bf16.mxu0 0
    %3093 = vmatpush1.bf16.msra.mxu0 %v2962
    %3094 = vmatprep.subr.bf16.mxu0 0
    %3095 = vmatpush1.bf16.msra.mxu0 %v2963
    %3096 = vmatprep.subr.bf16.mxu0 0
    %3097 = vmatpush1.bf16.msra.mxu0 %v2964
    %3098 = vmatprep.subr.bf16.mxu0 0
    %3099 = vmatpush1.bf16.msra.mxu0 %v2965
    %3100 = vmatprep.subr.bf16.mxu0 0
    %3101 = vmatpush1.bf16.msra.mxu0 %v2966
    %3102 = vmatprep.subr.bf16.mxu0 0
    %3103 = vmatpush1.bf16.msra.mxu0 %v2967
    %3104 = vmatprep.subr.bf16.mxu0 0
    %3105 = vmatpush1.bf16.msra.mxu0 %v2968
    %3106 = vmatprep.subr.bf16.mxu0 0
    %3107 = vmatpush1.bf16.msra.mxu0 0
    %3108 = vmatprep.subr.bf16.mxu0 0
    %3109 = vmatpush1.bf16.msra.mxu0 0
    %3110 = vmatprep.subr.bf16.mxu0 0
    %3111 = vmatpush1.bf16.msra.mxu0 0
    %3112 = vmatprep.subr.bf16.mxu0 0
    %3113 = vmatpush1.bf16.msra.mxu0 0
    %3114 = vmatprep.subr.bf16.mxu0 0
    %3115 = vmatpush1.bf16.msra.mxu0 0
    %3116 = vmatprep.subr.bf16.mxu0 0
    %3117 = vmatpush1.bf16.msra.mxu0 0
    %3118 = vmatprep.subr.bf16.mxu0 0
    %3119 = vmatpush1.bf16.msra.mxu0 0
    %3120 = vmatprep.subr.bf16.mxu0 0
    %3121 = vmatpush1.bf16.msra.mxu0 0
    %3122 = vmatprep.mubr.bf16.mxu0 0
    %3123 = vmatmul.mubr.bf16.gmra.mrb[0].mxu0 %v2773
    %v3124 = vpop.f32.mrb[0].mxu0
    %v3125 = vadd.f32 %v3028, %v3124
    %v3126 = vpop.f32.mrb[0].mxu0
    %v3127 = vpop.f32.mrb[0].mxu0
    %v3128 = vadd.f32 %v3031, %v3127
    %v3129 = vpop.f32.mrb[0].mxu0
    %3130 = vmatprep.mubr.bf16.mxu0 0
    %3131 = vmatmul.mubr.bf16.gmra.mrb[0].mxu0 %v2776
    %v3132 = vpop.f32.mrb[0].mxu0
    %v3133 = vadd.f32 %v3036, %v3132
    %v3134 = vpop.f32.mrb[0].mxu0
    %v3135 = vpop.f32.mrb[0].mxu0
    %v3136 = vadd.f32 %v3039, %v3135
    %v3137 = vpop.f32.mrb[0].mxu0
    %3138 = vmatprep.mubr.bf16.mxu0 0
    %3139 = vmatmul.mubr.bf16.gmra.mrb[0].mxu0 %v2779
    %v3140 = vpop.f32.mrb[0].mxu0
    %v3141 = vadd.f32 %v3044, %v3140
    %v3142 = vpop.f32.mrb[0].mxu0
    %v3143 = vpop.f32.mrb[0].mxu0
    %v3144 = vadd.f32 %v3047, %v3143
    %v3145 = vpop.f32.mrb[0].mxu0
    %3146 = vmatprep.mubr.bf16.mxu0 0
    %3147 = vmatmul.mubr.bf16.gmra.mrb[0].mxu0 %v2782
    %v3148 = vpop.f32.mrb[0].mxu0
    %v3149 = vadd.f32 %v3052, %v3148
    %v3150 = vpop.f32.mrb[0].mxu0
    %v3151 = vpop.f32.mrb[0].mxu0
    %v3152 = vadd.f32 %v3055, %v3151
    %v3153 = vpop.f32.mrb[0].mxu0
    %3154 = vmatprep.mubr.bf16.mxu0 0
    %3155 = vmatmul.mubr.bf16.gmra.mrb[0].mxu0 %v2785
    %v3156 = vpop.f32.mrb[0].mxu0
    %v3157 = vadd.f32 %v3060, %v3156
    %v3158 = vpop.f32.mrb[0].mxu0
    %v3159 = vpop.f32.mrb[0].mxu0
    %v3160 = vadd.f32 %v3063, %v3159
    %v3161 = vpop.f32.mrb[0].mxu0
    %3162 = vmatprep.mubr.bf16.mxu0 0
    %3163 = vmatmul.mubr.bf16.gmra.mrb[0].mxu0 %v2788
    %v3164 = vpop.f32.mrb[0].mxu0
    %v3165 = vadd.f32 %v3068, %v3164
    %v3166 = vpop.f32.mrb[0].mxu0
    %v3167 = vpop.f32.mrb[0].mxu0
    %v3168 = vadd.f32 %v3071, %v3167
    %v3169 = vpop.f32.mrb[0].mxu0
    %3170 = vmatprep.mubr.bf16.mxu0 0
    %3171 = vmatmul.mubr.bf16.gmra.mrb[0].mxu0 %v2791
    %v3172 = vpop.f32.mrb[0].mxu0
    %v3173 = vadd.f32 %v3076, %v3172
    %v3174 = vpop.f32.mrb[0].mxu0
    %v3175 = vpop.f32.mrb[0].mxu0
    %v3176 = vadd.f32 %v3079, %v3175
    %v3177 = vpop.f32.mrb[0].mxu0
    %3178 = vmatprep.mubr.bf16.mxu0 0
    %3179 = vmatmul.mubr.bf16.gmra.mrb[0].mxu0 %v2794
    %v3180 = vpop.f32.mrb[0].mxu0
    %v3181 = vadd.f32 %v3084, %v3180
    %v3182 = vpop.f32.mrb[0].mxu0
    %v3183 = vpop.f32.mrb[0].mxu0
    %v3184 = vadd.f32 %v3087, %v3183
    %v3185 = vpop.f32.mrb[0].mxu0
    %3186 = vdwg.mxu0
    %v3187 = vmax.f32 %v3125, 0.0
    %v3188 = vmax.f32 %v3128, 0.0
    %v3189 = vmax.f32 %v3133, 0.0
    %v3190 = vmax.f32 %v3136, 0.0
    %v3191 = vmax.f32 %v3141, 0.0
    %v3192 = vmax.f32 %v3144, 0.0
    %v3193 = vmax.f32 %v3149, 0.0
    %v3194 = vmax.f32 %v3152, 0.0
    %v3195 = vmax.f32 %v3157, 0.0
    %v3196 = vmax.f32 %v3160, 0.0
    %v3197 = vmax.f32 %v3165, 0.0
    %v3198 = vmax.f32 %v3168, 0.0
    %v3199 = vmax.f32 %v3173, 0.0
    %v3200 = vmax.f32 %v3176, 0.0
    %v3201 = vmax.f32 %v3181, 0.0
    %v3202 = vmax.f32 %v3184, 0.0
    %v3203 = vpack.c.bf16 %v3188, %v3187
    %v3204 = vpack.c.bf16 %v3190, %v3189
    %v3205 = vpack.c.bf16 %v3192, %v3191
    %v3206 = vpack.c.bf16 %v3194, %v3193
    %v3207 = vpack.c.bf16 %v3196, %v3195
    %v3208 = vpack.c.bf16 %v3198, %v3197
    %v3209 = vpack.c.bf16 %v3200, %v3199
    %v3210 = vpack.c.bf16 %v3202, %v3201
    %3211 = vst [vmem:[#allocation4 + $0x8] sm:$0xff] %v3203
    %3212 = vst [vmem:[#allocation4 + $0x30] sm:$0xff] %v3204
    %3213 = vst [vmem:[#allocation4 + $0x58] sm:$0xff] %v3205
    %3214 = vst [vmem:[#allocation4 + $0x80] sm:$0xff] %v3206
    %3215 = vst [vmem:[#allocation4 + $0xa8] sm:$0xff] %v3207
    %3216 = vst [vmem:[#allocation4 + $0xd0] sm:$0xff] %v3208
    %3217 = vst [vmem:[#allocation4 + $0xf8] sm:$0xff] %v3209
    %3218 = vst [vmem:[#allocation4 + $0x120] sm:$0xff] %v3210
    %v3219 = vadd.f32 %v741, %v3187
    %v3220 = vadd.f32 %v742, %v3188
    %v3221 = vadd.f32 %v743, %v3189
    %v3222 = vadd.f32 %v744, %v3190
    %v3223 = vadd.f32 %v745, %v3191
    %v3224 = vadd.f32 %v746, %v3192
    %v3225 = vadd.f32 %v747, %v3193
    %v3226 = vadd.f32 %v748, %v3194
    %v3227 = vadd.f32 %v749, %v3195
    %v3228 = vadd.f32 %v750, %v3196
    %v3229 = vadd.f32 %v751, %v3197
    %v3230 = vadd.f32 %v752, %v3198
    %v3231 = vadd.f32 %v753, %v3199
    %v3232 = vadd.f32 %v754, %v3200
    %v3233 = vadd.f32 %v755, %v3201
    %v3234 = vadd.f32 %v756, %v3202
    %v3235 = vpack.c.bf16 %v3220, %v3219
    %v3236 = vpack.c.bf16 %v3222, %v3221
    %v3237 = vpack.c.bf16 %v3224, %v3223
    %v3238 = vpack.c.bf16 %v3226, %v3225
    %v3239 = vpack.c.bf16 %v3228, %v3227
    %v3240 = vpack.c.bf16 %v3230, %v3229
    %v3241 = vpack.c.bf16 %v3232, %v3231
    %v3242 = vpack.c.bf16 %v3234, %v3233
    %3243 = vst [vmem:[#allocation2 + $0x10] sm:$0xff] %v3235
    %3244 = vst [vmem:[#allocation2 + $0x18] sm:$0xff] %v3236
    %3245 = vst [vmem:[#allocation2 + $0x20] sm:$0xff] %v3237
    %3246 = vst [vmem:[#allocation2 + $0x28] sm:$0xff] %v3238
    %3247 = vst [vmem:[#allocation2 + $0x30] sm:$0xff] %v3239
    %3248 = vst [vmem:[#allocation2 + $0x38] sm:$0xff] %v3240
    %3249 = vst [vmem:[#allocation2 + $0x40] sm:$0xff] %v3241
    %3250 = vst [vmem:[#allocation2 + $0x48] sm:$0xff] %v3242
    %3251 = vst [vmem:[#allocation3 + $0x8] sm:$0xff] %v3235
    %3252 = vst [vmem:[#allocation3 + $0x20] sm:$0xff] %v3236
    %3253 = vst [vmem:[#allocation3 + $0x38] sm:$0xff] %v3237
    %3254 = vst [vmem:[#allocation3 + $0x50] sm:$0xff] %v3238
    %3255 = vst [vmem:[#allocation3 + $0x68] sm:$0xff] %v3239
    %3256 = vst [vmem:[#allocation3 + $0x80] sm:$0xff] %v3240
    %3257 = vst [vmem:[#allocation3 + $0x98] sm:$0xff] %v3241
    %3258 = vst [vmem:[#allocation3 + $0xb0] sm:$0xff] %v3242
    %v3259 = vld [vmem:[#allocation2 + $0x8] sm:$0x80]
    %v3260 = vld [vmem:[#allocation2 + $0x10] sm:$0xff]
    %v3261 = vld [vmem:[#allocation2 + $0x18] sm:$0xff]
    %v3262 = vld [vmem:[#allocation2 + $0x20] sm:$0xff]
    %v3263 = vld [vmem:[#allocation2 + $0x28] sm:$0xff]
    %v3264 = vld [vmem:[#allocation2 + $0x30] sm:$0xff]
    %v3265 = vld [vmem:[#allocation2 + $0x38] sm:$0xff]
    %v3266 = vld [vmem:[#allocation2 + $0x40] sm:$0xff]
    %v3267 = vld [vmem:[#allocation2 + $0x48] sm:$0xff]
    %v3268 = vmul.bf16 %v3259, %v898
    %v3269 = vmul.bf16 %v3260, %v906
    %v3270 = vmul.bf16 %v3261, %v914
    %v3271 = vmul.bf16 %v3262, %v922
    %v3272 = vmul.bf16 %v3263, %v930
    %v3273 = vmul.bf16 %v3264, %v938
    %v3274 = vmul.bf16 %v3265, %v946
    %v3275 = vmul.bf16 %v3266, %v954
    %v3276 = vmul.bf16 %v3267, %v957
    %v3278 = vshrl.u32 %v3268, 16
    %v3280 = vrot.slane %v3278, 7
    %v3282 = vshrl.u32 %v3269, 16
    %v3284 = vrot.slane %v3282, 7
    %v3285 = vshll.u32 %v3269, 16
    %v3287 = vor.u32 %v3284, %v3285
    %v3288 = vsel %vm976, %v3280, %v3287
    %v3290 = vshrl.u32 %v3270, 16
    %v3292 = vrot.slane %v3290, 7
    %v3293 = vshll.u32 %v3270, 16
    %v3295 = vor.u32 %v3292, %v3293
    %v3296 = vsel %vm976, %v3284, %v3295
    %v3298 = vshrl.u32 %v3271, 16
    %v3300 = vrot.slane %v3298, 7
    %v3301 = vshll.u32 %v3271, 16
    %v3303 = vor.u32 %v3300, %v3301
    %v3304 = vsel %vm976, %v3292, %v3303
    %v3306 = vshrl.u32 %v3272, 16
    %v3308 = vrot.slane %v3306, 7
    %v3309 = vshll.u32 %v3272, 16
    %v3311 = vor.u32 %v3308, %v3309
    %v3312 = vsel %vm976, %v3300, %v3311
    %v3314 = vshrl.u32 %v3273, 16
    %v3316 = vrot.slane %v3314, 7
    %v3317 = vshll.u32 %v3273, 16
    %v3319 = vor.u32 %v3316, %v3317
    %v3320 = vsel %vm976, %v3308, %v3319
    %v3322 = vshrl.u32 %v3274, 16
    %v3324 = vrot.slane %v3322, 7
    %v3325 = vshll.u32 %v3274, 16
    %v3327 = vor.u32 %v3324, %v3325
    %v3328 = vsel %vm976, %v3316, %v3327
    %v3330 = vshrl.u32 %v3275, 16
    %v3332 = vrot.slane %v3330, 7
    %v3333 = vshll.u32 %v3275, 16
    %v3335 = vor.u32 %v3332, %v3333
    %v3336 = vsel %vm976, %v3324, %v3335
    %v3338 = vshrl.u32 %v3276, 16
    %v3340 = vrot.slane %v3338, 7
    %v3341 = vshll.u32 %v3276, 16
    %v3343 = vor.u32 %v3340, %v3341
    %v3344 = vsel %vm976, %v3332, %v3343
    %3353 = vst [vmem:[#allocation3] sm:$0xff] %v3288
    %3354 = vst [vmem:[#allocation3 + $0x18] sm:$0xff] %v3296
    %3355 = vst [vmem:[#allocation3 + $0x30] sm:$0xff] %v3304
    %3356 = vst [vmem:[#allocation3 + $0x48] sm:$0xff] %v3312
    %3357 = vst [vmem:[#allocation3 + $0x60] sm:$0xff] %v3320
    %3358 = vst [vmem:[#allocation3 + $0x78] sm:$0xff] %v3328
    %3359 = vst [vmem:[#allocation3 + $0x90] sm:$0xff] %v3336
    %3360 = vst [vmem:[#allocation3 + $0xa8] sm:$0xff] %v3344
    %v3361 = vld [vmem:[#allocation2 + $0x10] sm:$0xff]
    %v3362 = vld [vmem:[#allocation2 + $0x18] sm:$0xff]
    %v3363 = vld [vmem:[#allocation2 + $0x20] sm:$0xff]
    %v3364 = vld [vmem:[#allocation2 + $0x28] sm:$0xff]
    %v3365 = vld [vmem:[#allocation2 + $0x30] sm:$0xff]
    %v3366 = vld [vmem:[#allocation2 + $0x38] sm:$0xff]
    %v3367 = vld [vmem:[#allocation2 + $0x40] sm:$0xff]
    %v3368 = vld [vmem:[#allocation2 + $0x48] sm:$0xff]
    %v3369 = vld [vmem:[#allocation2 + $0x50] sm:$0x1]
    %v3370 = vmul.bf16 %v3361, %v1180
    %v3371 = vmul.bf16 %v3362, %v1188
    %v3372 = vmul.bf16 %v3363, %v1196
    %v3373 = vmul.bf16 %v3364, %v1204
    %v3374 = vmul.bf16 %v3365, %v1212
    %v3375 = vmul.bf16 %v3366, %v1220
    %v3376 = vmul.bf16 %v3367, %v1228
    %v3377 = vmul.bf16 %v3368, %v1236
    %v3378 = vmul.bf16 %v3369, %v1232
    %v3380 = vshrl.u32 %v3370, 16
    %v3382 = vshll.u32 %v3370, 16
    %v3384 = vrot.slane %v3382, 1
    %v3385 = vor.u32 %v3380, %v3384
    %v3387 = vshll.u32 %v3371, 16
    %v3389 = vrot.slane %v3387, 1
    %v3390 = vsel %vm894, %v3385, %v3389
    %v3391 = vshrl.u32 %v3371, 16
    %v3393 = vor.u32 %v3391, %v3389
    %v3395 = vshll.u32 %v3372, 16
    %v3397 = vrot.slane %v3395, 1
    %v3398 = vsel %vm894, %v3393, %v3397
    %v3399 = vshrl.u32 %v3372, 16
    %v3401 = vor.u32 %v3399, %v3397
    %v3403 = vshll.u32 %v3373, 16
    %v3405 = vrot.slane %v3403, 1
    %v3406 = vsel %vm894, %v3401, %v3405
    %v3407 = vshrl.u32 %v3373, 16
    %v3409 = vor.u32 %v3407, %v3405
    %v3411 = vshll.u32 %v3374, 16
    %v3413 = vrot.slane %v3411, 1
    %v3414 = vsel %vm894, %v3409, %v3413
    %v3415 = vshrl.u32 %v3374, 16
    %v3417 = vor.u32 %v3415, %v3413
    %v3419 = vshll.u32 %v3375, 16
    %v3421 = vrot.slane %v3419, 1
    %v3422 = vsel %vm894, %v3417, %v3421
    %v3423 = vshrl.u32 %v3375, 16
    %v3425 = vor.u32 %v3423, %v3421
    %v3427 = vshll.u32 %v3376, 16
    %v3429 = vrot.slane %v3427, 1
    %v3430 = vsel %vm894, %v3425, %v3429
    %v3431 = vshrl.u32 %v3376, 16
    %v3433 = vor.u32 %v3431, %v3429
    %v3435 = vshll.u32 %v3377, 16
    %v3437 = vrot.slane %v3435, 1
    %v3438 = vsel %vm894, %v3433, %v3437
    %v3439 = vshrl.u32 %v3377, 16
    %v3441 = vor.u32 %v3439, %v3437
    %v3443 = vshll.u32 %v3378, 16
    %v3445 = vrot.slane %v3443, 1
    %v3446 = vsel %vm894, %v3441, %v3445
    %3455 = vst [vmem:[#allocation3 + $0x10] sm:$0xff] %v3390
    %3456 = vst [vmem:[#allocation3 + $0x28] sm:$0xff] %v3398
    %3457 = vst [vmem:[#allocation3 + $0x40] sm:$0xff] %v3406
    %3458 = vst [vmem:[#allocation3 + $0x58] sm:$0xff] %v3414
    %3459 = vst [vmem:[#allocation3 + $0x70] sm:$0xff] %v3422
    %3460 = vst [vmem:[#allocation3 + $0x88] sm:$0xff] %v3430
    %3461 = vst [vmem:[#allocation3 + $0xa0] sm:$0xff] %v3438
    %3462 = vst [vmem:[#allocation3 + $0xb8] sm:$0xff] %v3446
    %v3463 = vld [vmem:[#allocation3] sm:$0xff]
    %v3464 = vld [vmem:[#allocation3 + $0x8] sm:$0xff]
    %v3465 = vld [vmem:[#allocation3 + $0x10] sm:$0xff]
    %v3466 = vld [vmem:[#allocation3 + $0x18] sm:$0xff]
    %v3467 = vld [vmem:[#allocation3 + $0x20] sm:$0xff]
    %v3468 = vld [vmem:[#allocation3 + $0x28] sm:$0xff]
    %v3469 = vld [vmem:[#allocation3 + $0x30] sm:$0xff]
    %v3470 = vld [vmem:[#allocation3 + $0x38] sm:$0xff]
    %v3471 = vld [vmem:[#allocation3 + $0x40] sm:$0xff]
    %v3472 = vld [vmem:[#allocation3 + $0x48] sm:$0xff]
    %v3473 = vld [vmem:[#allocation3 + $0x50] sm:$0xff]
    %v3474 = vld [vmem:[#allocation3 + $0x58] sm:$0xff]
    %v3475 = vld [vmem:[#allocation3 + $0x60] sm:$0xff]
    %v3476 = vld [vmem:[#allocation3 + $0x68] sm:$0xff]
    %v3477 = vld [vmem:[#allocation3 + $0x70] sm:$0xff]
    %v3478 = vld [vmem:[#allocation3 + $0x78] sm:$0xff]
    %v3479 = vld [vmem:[#allocation3 + $0x80] sm:$0xff]
    %v3480 = vld [vmem:[#allocation3 + $0x88] sm:$0xff]
    %v3481 = vld [vmem:[#allocation3 + $0x90] sm:$0xff]
    %v3482 = vld [vmem:[#allocation3 + $0x98] sm:$0xff]
    %v3483 = vld [vmem:[#allocation3 + $0xa0] sm:$0xff]
    %v3484 = vld [vmem:[#allocation3 + $0xa8] sm:$0xff]
    %v3485 = vld [vmem:[#allocation3 + $0xb0] sm:$0xff]
    %v3486 = vld [vmem:[#allocation3 + $0xb8] sm:$0xff]
    %s3487 = scalar_lea.vmem %s2, 576
    %v3488 = vld [vmem:[%s3487] sm:$0xf]
    %v3489 = vld [vmem:[%s3487 + $0x4] sm:$0xf]
    %v3490 = vld [vmem:[%s3487 + $0x8] sm:$0xf]
    %v3491 = vld [vmem:[%s3487 + $0xc] sm:$0xf]
    %v3492 = vld [vmem:[%s3487 + $0x10] sm:$0xf]
    %v3493 = vld [vmem:[%s3487 + $0x14] sm:$0xf]
    %v3494 = vld [vmem:[%s3487 + $0x18] sm:$0xf]
    %v3495 = vld [vmem:[%s3487 + $0x1c] sm:$0xf]
    %v3496 = vld [vmem:[%s3487 + $0x20] sm:$0xf]
    %v3497 = vld [vmem:[%s3487 + $0x24] sm:$0xf]
    %v3498 = vld [vmem:[%s3487 + $0x28] sm:$0xf]
    %v3499 = vld [vmem:[%s3487 + $0x2c] sm:$0xf]
    %v3500 = vld [vmem:[%s3487 + $0x30] sm:$0xf]
    %v3501 = vld [vmem:[%s3487 + $0x34] sm:$0xf]
    %v3502 = vld [vmem:[%s3487 + $0x38] sm:$0xf]
    %v3503 = vld [vmem:[%s3487 + $0x3c] sm:$0xf]
    %v3504 = vld [vmem:[%s3487 + $0x40] sm:$0xf]
    %v3505 = vld [vmem:[%s3487 + $0x44] sm:$0xf]
    %v3506 = vld [vmem:[%s3487 + $0x48] sm:$0xf]
    %v3507 = vld [vmem:[%s3487 + $0x4c] sm:$0xf]
    %v3508 = vld [vmem:[%s3487 + $0x50] sm:$0xf]
    %v3509 = vld [vmem:[%s3487 + $0x54] sm:$0xf]
    %v3510 = vld [vmem:[%s3487 + $0x58] sm:$0xf]
    %v3511 = vld [vmem:[%s3487 + $0x5c] sm:$0xf]
    %v3512 = vld [vmem:[%s3487 + $0x60] sm:$0xf]
    %v3513 = vld [vmem:[%s3487 + $0x64] sm:$0xf]
    %v3514 = vld [vmem:[%s3487 + $0x68] sm:$0xf]
    %v3515 = vld [vmem:[%s3487 + $0x6c] sm:$0xf]
    %v3516 = vld [vmem:[%s3487 + $0x70] sm:$0xf]
    %v3517 = vld [vmem:[%s3487 + $0x74] sm:$0xf]
    %v3518 = vld [vmem:[%s3487 + $0x78] sm:$0xf]
    %v3519 = vld [vmem:[%s3487 + $0x7c] sm:$0xf]
    %v3520 = vld [vmem:[%s3487 + $0x80] sm:$0xf]
    %v3521 = vld [vmem:[%s3487 + $0x84] sm:$0xf]
    %v3522 = vld [vmem:[%s3487 + $0x88] sm:$0xf]
    %v3523 = vld [vmem:[%s3487 + $0x8c] sm:$0xf]
    %v3524 = vld [vmem:[%s3487 + $0x90] sm:$0xf]
    %v3525 = vld [vmem:[%s3487 + $0x94] sm:$0xf]
    %v3526 = vld [vmem:[%s3487 + $0x98] sm:$0xf]
    %v3527 = vld [vmem:[%s3487 + $0x9c] sm:$0xf]
    %v3528 = vld [vmem:[%s3487 + $0xa0] sm:$0xf]
    %v3529 = vld [vmem:[%s3487 + $0xa4] sm:$0xf]
    %v3530 = vld [vmem:[%s3487 + $0xa8] sm:$0xf]
    %v3531 = vld [vmem:[%s3487 + $0xac] sm:$0xf]
    %v3532 = vld [vmem:[%s3487 + $0xb0] sm:$0xf]
    %v3533 = vld [vmem:[%s3487 + $0xb4] sm:$0xf]
    %v3534 = vld [vmem:[%s3487 + $0xb8] sm:$0xf]
    %v3535 = vld [vmem:[%s3487 + $0xbc] sm:$0xf]
    %v3536 = vld [vmem:[%s4 + $0x4] sm:$0x1]
    %v3537 = vlaneseq
    %v3538 = vshrl.u32 %v3537, 7
    %v3539 = vsub.s32 0, %v3538
    %v3540 = vrot.slane %v3536, %v3539
    %v3589 = vunpack.c.l.b16 %v3488
    %v3590 = vunpack.c.l.b16 %v3489
    %v3591 = vunpack.c.l.b16 %v3490
    %v3592 = vunpack.c.l.b16 %v3491
    %v3593 = vunpack.c.l.b16 %v3492
    %v3594 = vunpack.c.l.b16 %v3493
    %v3595 = vunpack.c.l.b16 %v3494
    %v3596 = vunpack.c.l.b16 %v3495
    %v3597 = vunpack.c.l.b16 %v3496
    %v3598 = vunpack.c.l.b16 %v3497
    %v3599 = vunpack.c.l.b16 %v3498
    %v3600 = vunpack.c.l.b16 %v3499
    %v3601 = vunpack.c.l.b16 %v3500
    %v3602 = vunpack.c.l.b16 %v3501
    %v3603 = vunpack.c.l.b16 %v3502
    %v3604 = vunpack.c.l.b16 %v3503
    %v3605 = vunpack.c.l.b16 %v3504
    %v3606 = vunpack.c.l.b16 %v3505
    %v3607 = vunpack.c.l.b16 %v3506
    %v3608 = vunpack.c.l.b16 %v3507
    %v3609 = vunpack.c.l.b16 %v3508
    %v3610 = vunpack.c.l.b16 %v3509
    %v3611 = vunpack.c.l.b16 %v3510
    %v3612 = vunpack.c.l.b16 %v3511
    %v3613 = vunpack.c.l.b16 %v3512
    %v3614 = vunpack.c.l.b16 %v3513
    %v3615 = vunpack.c.l.b16 %v3514
    %v3616 = vunpack.c.l.b16 %v3515
    %v3617 = vunpack.c.l.b16 %v3516
    %v3618 = vunpack.c.l.b16 %v3517
    %v3619 = vunpack.c.l.b16 %v3518
    %v3620 = vunpack.c.l.b16 %v3519
    %v3621 = vunpack.c.l.b16 %v3520
    %v3622 = vunpack.c.l.b16 %v3521
    %v3623 = vunpack.c.l.b16 %v3522
    %v3624 = vunpack.c.l.b16 %v3523
    %v3625 = vunpack.c.l.b16 %v3524
    %v3626 = vunpack.c.l.b16 %v3525
    %v3627 = vunpack.c.l.b16 %v3526
    %v3628 = vunpack.c.l.b16 %v3527
    %v3629 = vunpack.c.l.b16 %v3528
    %v3630 = vunpack.c.l.b16 %v3529
    %v3631 = vunpack.c.l.b16 %v3530
    %v3632 = vunpack.c.l.b16 %v3531
    %v3633 = vunpack.c.l.b16 %v3532
    %v3634 = vunpack.c.l.b16 %v3533
    %v3635 = vunpack.c.l.b16 %v3534
    %v3636 = vunpack.c.l.b16 %v3535
    %v3637 = vpack.c.b16 %v3590, %v3589
    %v3638 = vpack.c.b16 %v3592, %v3591
    %v3639 = vpack.c.b16 %v3594, %v3593
    %v3640 = vpack.c.b16 %v3596, %v3595
    %v3641 = vpack.c.b16 %v3598, %v3597
    %v3642 = vpack.c.b16 %v3600, %v3599
    %v3643 = vpack.c.b16 %v3602, %v3601
    %v3644 = vpack.c.b16 %v3604, %v3603
    %v3645 = vpack.c.b16 %v3606, %v3605
    %v3646 = vpack.c.b16 %v3608, %v3607
    %v3647 = vpack.c.b16 %v3610, %v3609
    %v3648 = vpack.c.b16 %v3612, %v3611
    %v3649 = vpack.c.b16 %v3614, %v3613
    %v3650 = vpack.c.b16 %v3616, %v3615
    %v3651 = vpack.c.b16 %v3618, %v3617
    %v3652 = vpack.c.b16 %v3620, %v3619
    %v3653 = vpack.c.b16 %v3622, %v3621
    %v3654 = vpack.c.b16 %v3624, %v3623
    %v3655 = vpack.c.b16 %v3626, %v3625
    %v3656 = vpack.c.b16 %v3628, %v3627
    %v3657 = vpack.c.b16 %v3630, %v3629
    %v3658 = vpack.c.b16 %v3632, %v3631
    %v3659 = vpack.c.b16 %v3634, %v3633
    %v3660 = vpack.c.b16 %v3636, %v3635
    %3685 = vmatprep.subr.bf16.mxu0 0
    %3686 = vmatpush1.bf16.msra.mxu0 %v3637
    %3687 = vmatprep.subr.bf16.mxu0 0
    %3688 = vmatpush1.bf16.msra.mxu0 %v3638
    %3689 = vmatprep.subr.bf16.mxu0 0
    %3690 = vmatpush1.bf16.msra.mxu0 %v3639
    %3691 = vmatprep.subr.bf16.mxu0 0
    %3692 = vmatpush1.bf16.msra.mxu0 %v3640
    %3693 = vmatprep.subr.bf16.mxu0 0
    %3694 = vmatpush1.bf16.msra.mxu0 %v3641
    %3695 = vmatprep.subr.bf16.mxu0 0
    %3696 = vmatpush1.bf16.msra.mxu0 %v3642
    %3697 = vmatprep.subr.bf16.mxu0 0
    %3698 = vmatpush1.bf16.msra.mxu0 %v3643
    %3699 = vmatprep.subr.bf16.mxu0 0
    %3700 = vmatpush1.bf16.msra.mxu0 %v3644
    %3701 = vmatprep.subr.bf16.mxu0 0
    %3702 = vmatpush1.bf16.msra.mxu0 %v3645
    %3703 = vmatprep.subr.bf16.mxu0 0
    %3704 = vmatpush1.bf16.msra.mxu0 %v3646
    %3705 = vmatprep.subr.bf16.mxu0 0
    %3706 = vmatpush1.bf16.msra.mxu0 %v3647
    %3707 = vmatprep.subr.bf16.mxu0 0
    %3708 = vmatpush1.bf16.msra.mxu0 %v3648
    %3709 = vmatprep.subr.bf16.mxu0 0
    %3710 = vmatpush1.bf16.msra.mxu0 %v3649
    %3711 = vmatprep.subr.bf16.mxu0 0
    %3712 = vmatpush1.bf16.msra.mxu0 %v3650
    %3713 = vmatprep.subr.bf16.mxu0 0
    %3714 = vmatpush1.bf16.msra.mxu0 %v3651
    %3715 = vmatprep.subr.bf16.mxu0 0
    %3716 = vmatpush1.bf16.msra.mxu0 %v3652
    %3717 = vmatprep.mubr.bf16.mxu0 %v3464
    %3718 = vmatmul.mubr.bf16.gmra.mrb[0].mxu0 %v3463
    %v3719 = vpop.f32.mrb[0].mxu0
    %v3720 = vadd.f32 %v3540, %v3719
    %v3721 = vpop.f32.mrb[0].mxu0
    %v3722 = vpop.f32.mrb[0].mxu0
    %v3723 = vadd.f32 %v3540, %v3722
    %v3724 = vpop.f32.mrb[0].mxu0
    %3725 = vmatprep.mubr.bf16.mxu0 %v3467
    %3726 = vmatmul.mubr.bf16.gmra.mrb[0].mxu0 %v3466
    %v3727 = vpop.f32.mrb[0].mxu0
    %v3728 = vadd.f32 %v3540, %v3727
    %v3729 = vpop.f32.mrb[0].mxu0
    %v3730 = vpop.f32.mrb[0].mxu0
    %v3731 = vadd.f32 %v3540, %v3730
    %v3732 = vpop.f32.mrb[0].mxu0
    %3733 = vmatprep.mubr.bf16.mxu0 %v3470
    %3734 = vmatmul.mubr.bf16.gmra.mrb[0].mxu0 %v3469
    %v3735 = vpop.f32.mrb[0].mxu0
    %v3736 = vadd.f32 %v3540, %v3735
    %v3737 = vpop.f32.mrb[0].mxu0
    %v3738 = vpop.f32.mrb[0].mxu0
    %v3739 = vadd.f32 %v3540, %v3738
    %v3740 = vpop.f32.mrb[0].mxu0
    %3741 = vmatprep.mubr.bf16.mxu0 %v3473
    %3742 = vmatmul.mubr.bf16.gmra.mrb[0].mxu0 %v3472
    %v3743 = vpop.f32.mrb[0].mxu0
    %v3744 = vadd.f32 %v3540, %v3743
    %v3745 = vpop.f32.mrb[0].mxu0
    %v3746 = vpop.f32.mrb[0].mxu0
    %v3747 = vadd.f32 %v3540, %v3746
    %v3748 = vpop.f32.mrb[0].mxu0
    %3749 = vmatprep.mubr.bf16.mxu0 %v3476
    %3750 = vmatmul.mubr.bf16.gmra.mrb[0].mxu0 %v3475
    %v3751 = vpop.f32.mrb[0].mxu0
    %v3752 = vadd.f32 %v3540, %v3751
    %v3753 = vpop.f32.mrb[0].mxu0
    %v3754 = vpop.f32.mrb[0].mxu0
    %v3755 = vadd.f32 %v3540, %v3754
    %v3756 = vpop.f32.mrb[0].mxu0
    %3757 = vmatprep.mubr.bf16.mxu0 %v3479
    %3758 = vmatmul.mubr.bf16.gmra.mrb[0].mxu0 %v3478
    %v3759 = vpop.f32.mrb[0].mxu0
    %v3760 = vadd.f32 %v3540, %v3759
    %v3761 = vpop.f32.mrb[0].mxu0
    %v3762 = vpop.f32.mrb[0].mxu0
    %v3763 = vadd.f32 %v3540, %v3762
    %v3764 = vpop.f32.mrb[0].mxu0
    %3765 = vmatprep.mubr.bf16.mxu0 %v3482
    %3766 = vmatmul.mubr.bf16.gmra.mrb[0].mxu0 %v3481
    %v3767 = vpop.f32.mrb[0].mxu0
    %v3768 = vadd.f32 %v3540, %v3767
    %v3769 = vpop.f32.mrb[0].mxu0
    %v3770 = vpop.f32.mrb[0].mxu0
    %v3771 = vadd.f32 %v3540, %v3770
    %v3772 = vpop.f32.mrb[0].mxu0
    %3773 = vmatprep.mubr.bf16.mxu0 %v3485
    %3774 = vmatmul.mubr.bf16.gmra.mrb[0].mxu0 %v3484
    %v3775 = vpop.f32.mrb[0].mxu0
    %v3776 = vadd.f32 %v3540, %v3775
    %v3777 = vpop.f32.mrb[0].mxu0
    %v3778 = vpop.f32.mrb[0].mxu0
    %v3779 = vadd.f32 %v3540, %v3778
    %v3780 = vpop.f32.mrb[0].mxu0
    %3781 = vdwg.mxu0
    %3782 = vmatprep.subr.bf16.mxu0 0
    %3783 = vmatpush1.bf16.msra.mxu0 %v3653
    %3784 = vmatprep.subr.bf16.mxu0 0
    %3785 = vmatpush1.bf16.msra.mxu0 %v3654
    %3786 = vmatprep.subr.bf16.mxu0 0
    %3787 = vmatpush1.bf16.msra.mxu0 %v3655
    %3788 = vmatprep.subr.bf16.mxu0 0
    %3789 = vmatpush1.bf16.msra.mxu0 %v3656
    %3790 = vmatprep.subr.bf16.mxu0 0
    %3791 = vmatpush1.bf16.msra.mxu0 %v3657
    %3792 = vmatprep.subr.bf16.mxu0 0
    %3793 = vmatpush1.bf16.msra.mxu0 %v3658
    %3794 = vmatprep.subr.bf16.mxu0 0
    %3795 = vmatpush1.bf16.msra.mxu0 %v3659
    %3796 = vmatprep.subr.bf16.mxu0 0
    %3797 = vmatpush1.bf16.msra.mxu0 %v3660
    %3798 = vmatprep.subr.bf16.mxu0 0
    %3799 = vmatpush1.bf16.msra.mxu0 0
    %3800 = vmatprep.subr.bf16.mxu0 0
    %3801 = vmatpush1.bf16.msra.mxu0 0
    %3802 = vmatprep.subr.bf16.mxu0 0
    %3803 = vmatpush1.bf16.msra.mxu0 0
    %3804 = vmatprep.subr.bf16.mxu0 0
    %3805 = vmatpush1.bf16.msra.mxu0 0
    %3806 = vmatprep.subr.bf16.mxu0 0
    %3807 = vmatpush1.bf16.msra.mxu0 0
    %3808 = vmatprep.subr.bf16.mxu0 0
    %3809 = vmatpush1.bf16.msra.mxu0 0
    %3810 = vmatprep.subr.bf16.mxu0 0
    %3811 = vmatpush1.bf16.msra.mxu0 0
    %3812 = vmatprep.subr.bf16.mxu0 0
    %3813 = vmatpush1.bf16.msra.mxu0 0
    %3814 = vmatprep.mubr.bf16.mxu0 0
    %3815 = vmatmul.mubr.bf16.gmra.mrb[0].mxu0 %v3465
    %v3816 = vpop.f32.mrb[0].mxu0
    %v3817 = vadd.f32 %v3720, %v3816
    %v3818 = vpop.f32.mrb[0].mxu0
    %v3819 = vpop.f32.mrb[0].mxu0
    %v3820 = vadd.f32 %v3723, %v3819
    %v3821 = vpop.f32.mrb[0].mxu0
    %3822 = vmatprep.mubr.bf16.mxu0 0
    %3823 = vmatmul.mubr.bf16.gmra.mrb[0].mxu0 %v3468
    %v3824 = vpop.f32.mrb[0].mxu0
    %v3825 = vadd.f32 %v3728, %v3824
    %v3826 = vpop.f32.mrb[0].mxu0
    %v3827 = vpop.f32.mrb[0].mxu0
    %v3828 = vadd.f32 %v3731, %v3827
    %v3829 = vpop.f32.mrb[0].mxu0
    %3830 = vmatprep.mubr.bf16.mxu0 0
    %3831 = vmatmul.mubr.bf16.gmra.mrb[0].mxu0 %v3471
    %v3832 = vpop.f32.mrb[0].mxu0
    %v3833 = vadd.f32 %v3736, %v3832
    %v3834 = vpop.f32.mrb[0].mxu0
    %v3835 = vpop.f32.mrb[0].mxu0
    %v3836 = vadd.f32 %v3739, %v3835
    %v3837 = vpop.f32.mrb[0].mxu0
    %3838 = vmatprep.mubr.bf16.mxu0 0
    %3839 = vmatmul.mubr.bf16.gmra.mrb[0].mxu0 %v3474
    %v3840 = vpop.f32.mrb[0].mxu0
    %v3841 = vadd.f32 %v3744, %v3840
    %v3842 = vpop.f32.mrb[0].mxu0
    %v3843 = vpop.f32.mrb[0].mxu0
    %v3844 = vadd.f32 %v3747, %v3843
    %v3845 = vpop.f32.mrb[0].mxu0
    %3846 = vmatprep.mubr.bf16.mxu0 0
    %3847 = vmatmul.mubr.bf16.gmra.mrb[0].mxu0 %v3477
    %v3848 = vpop.f32.mrb[0].mxu0
    %v3849 = vadd.f32 %v3752, %v3848
    %v3850 = vpop.f32.mrb[0].mxu0
    %v3851 = vpop.f32.mrb[0].mxu0
    %v3852 = vadd.f32 %v3755, %v3851
    %v3853 = vpop.f32.mrb[0].mxu0
    %3854 = vmatprep.mubr.bf16.mxu0 0
    %3855 = vmatmul.mubr.bf16.gmra.mrb[0].mxu0 %v3480
    %v3856 = vpop.f32.mrb[0].mxu0
    %v3857 = vadd.f32 %v3760, %v3856
    %v3858 = vpop.f32.mrb[0].mxu0
    %v3859 = vpop.f32.mrb[0].mxu0
    %v3860 = vadd.f32 %v3763, %v3859
    %v3861 = vpop.f32.mrb[0].mxu0
    %3862 = vmatprep.mubr.bf16.mxu0 0
    %3863 = vmatmul.mubr.bf16.gmra.mrb[0].mxu0 %v3483
    %v3864 = vpop.f32.mrb[0].mxu0
    %v3865 = vadd.f32 %v3768, %v3864
    %v3866 = vpop.f32.mrb[0].mxu0
    %v3867 = vpop.f32.mrb[0].mxu0
    %v3868 = vadd.f32 %v3771, %v3867
    %v3869 = vpop.f32.mrb[0].mxu0
    %3870 = vmatprep.mubr.bf16.mxu0 0
    %3871 = vmatmul.mubr.bf16.gmra.mrb[0].mxu0 %v3486
    %v3872 = vpop.f32.mrb[0].mxu0
    %v3873 = vadd.f32 %v3776, %v3872
    %v3874 = vpop.f32.mrb[0].mxu0
    %v3875 = vpop.f32.mrb[0].mxu0
    %v3876 = vadd.f32 %v3779, %v3875
    %v3877 = vpop.f32.mrb[0].mxu0
    %3878 = vdwg.mxu0
    %v3879 = vmax.f32 %v3817, 0.0
    %v3880 = vmax.f32 %v3820, 0.0
    %v3881 = vmax.f32 %v3825, 0.0
    %v3882 = vmax.f32 %v3828, 0.0
    %v3883 = vmax.f32 %v3833, 0.0
    %v3884 = vmax.f32 %v3836, 0.0
    %v3885 = vmax.f32 %v3841, 0.0
    %v3886 = vmax.f32 %v3844, 0.0
    %v3887 = vmax.f32 %v3849, 0.0
    %v3888 = vmax.f32 %v3852, 0.0
    %v3889 = vmax.f32 %v3857, 0.0
    %v3890 = vmax.f32 %v3860, 0.0
    %v3891 = vmax.f32 %v3865, 0.0
    %v3892 = vmax.f32 %v3868, 0.0
    %v3893 = vmax.f32 %v3873, 0.0
    %v3894 = vmax.f32 %v3876, 0.0
    %v3895 = vpack.c.bf16 %v3880, %v3879
    %v3896 = vpack.c.bf16 %v3882, %v3881
    %v3897 = vpack.c.bf16 %v3884, %v3883
    %v3898 = vpack.c.bf16 %v3886, %v3885
    %v3899 = vpack.c.bf16 %v3888, %v3887
    %v3900 = vpack.c.bf16 %v3890, %v3889
    %v3901 = vpack.c.bf16 %v3892, %v3891
    %v3902 = vpack.c.bf16 %v3894, %v3893
    %3903 = vst [vmem:[#allocation4 + $0x10] sm:$0xff] %v3895
    %3904 = vst [vmem:[#allocation4 + $0x38] sm:$0xff] %v3896
    %3905 = vst [vmem:[#allocation4 + $0x60] sm:$0xff] %v3897
    %3906 = vst [vmem:[#allocation4 + $0x88] sm:$0xff] %v3898
    %3907 = vst [vmem:[#allocation4 + $0xb0] sm:$0xff] %v3899
    %3908 = vst [vmem:[#allocation4 + $0xd8] sm:$0xff] %v3900
    %3909 = vst [vmem:[#allocation4 + $0x100] sm:$0xff] %v3901
    %3910 = vst [vmem:[#allocation4 + $0x128] sm:$0xff] %v3902
    %v3911 = vadd.f32 %v741, %v3879
    %v3912 = vadd.f32 %v742, %v3880
    %v3913 = vadd.f32 %v743, %v3881
    %v3914 = vadd.f32 %v744, %v3882
    %v3915 = vadd.f32 %v745, %v3883
    %v3916 = vadd.f32 %v746, %v3884
    %v3917 = vadd.f32 %v747, %v3885
    %v3918 = vadd.f32 %v748, %v3886
    %v3919 = vadd.f32 %v749, %v3887
    %v3920 = vadd.f32 %v750, %v3888
    %v3921 = vadd.f32 %v751, %v3889
    %v3922 = vadd.f32 %v752, %v3890
    %v3923 = vadd.f32 %v753, %v3891
    %v3924 = vadd.f32 %v754, %v3892
    %v3925 = vadd.f32 %v755, %v3893
    %v3926 = vadd.f32 %v756, %v3894
    %v3927 = vpack.c.bf16 %v3912, %v3911
    %v3928 = vpack.c.bf16 %v3914, %v3913
    %v3929 = vpack.c.bf16 %v3916, %v3915
    %v3930 = vpack.c.bf16 %v3918, %v3917
    %v3931 = vpack.c.bf16 %v3920, %v3919
    %v3932 = vpack.c.bf16 %v3922, %v3921
    %v3933 = vpack.c.bf16 %v3924, %v3923
    %v3934 = vpack.c.bf16 %v3926, %v3925
    %3935 = vst [vmem:[#allocation2 + $0x10] sm:$0xff] %v3927
    %3936 = vst [vmem:[#allocation2 + $0x18] sm:$0xff] %v3928
    %3937 = vst [vmem:[#allocation2 + $0x20] sm:$0xff] %v3929
    %3938 = vst [vmem:[#allocation2 + $0x28] sm:$0xff] %v3930
    %3939 = vst [vmem:[#allocation2 + $0x30] sm:$0xff] %v3931
    %3940 = vst [vmem:[#allocation2 + $0x38] sm:$0xff] %v3932
    %3941 = vst [vmem:[#allocation2 + $0x40] sm:$0xff] %v3933
    %3942 = vst [vmem:[#allocation2 + $0x48] sm:$0xff] %v3934
    %3943 = vst [vmem:[#allocation3 + $0x8] sm:$0xff] %v3927
    %3944 = vst [vmem:[#allocation3 + $0x20] sm:$0xff] %v3928
    %3945 = vst [vmem:[#allocation3 + $0x38] sm:$0xff] %v3929
    %3946 = vst [vmem:[#allocation3 + $0x50] sm:$0xff] %v3930
    %3947 = vst [vmem:[#allocation3 + $0x68] sm:$0xff] %v3931
    %3948 = vst [vmem:[#allocation3 + $0x80] sm:$0xff] %v3932
    %3949 = vst [vmem:[#allocation3 + $0x98] sm:$0xff] %v3933
    %3950 = vst [vmem:[#allocation3 + $0xb0] sm:$0xff] %v3934
    %v3951 = vld [vmem:[#allocation2 + $0x8] sm:$0xf0]
    %v3952 = vld [vmem:[#allocation2 + $0x10] sm:$0xff]
    %v3953 = vld [vmem:[#allocation2 + $0x18] sm:$0xff]
    %v3954 = vld [vmem:[#allocation2 + $0x20] sm:$0xff]
    %v3955 = vld [vmem:[#allocation2 + $0x28] sm:$0xff]
    %v3956 = vld [vmem:[#allocation2 + $0x30] sm:$0xff]
    %v3957 = vld [vmem:[#allocation2 + $0x38] sm:$0xff]
    %v3958 = vld [vmem:[#allocation2 + $0x40] sm:$0xff]
    %v3959 = vld [vmem:[#allocation2 + $0x48] sm:$0x1f]
    %v3960 = vadd.s32 %v46, 4294967289
    %v3961 = vadd.s32 %v47, 4294967289
    %v3962 = vadd.s32 %v48, 4294967289
    %v3963 = vadd.s32 %v49, 4294967289
    %v3964 = vadd.s32 %v50, 4294967289
    %v3965 = vadd.s32 %v51, 4294967289
    %v3966 = vadd.s32 %v52, 4294967289
    %v3967 = vadd.s32 %v53, 4294967289
    %v3968 = vadd.s32 %v54, 4294967289
    %v3969 = vadd.s32 %v55, 4294967289
    %v3970 = vadd.s32 %v56, 4294967289
    %v3971 = vadd.s32 %v57, 4294967289
    %v3972 = vadd.s32 %v58, 4294967289
    %v3973 = vadd.s32 %v59, 4294967289
    %v3974 = vadd.s32 %v60, 4294967289
    %v3975 = vadd.s32 %v61, 4294967289
    %vm3976 = vcmp.ge.s32.totalorder %v3960, 0
    %vm3977 = vcmp.ge.s32.totalorder %v3961, 0
    %vm3978 = vcmp.ge.s32.totalorder %v3962, 0
    %vm3979 = vcmp.ge.s32.totalorder %v3963, 0
    %vm3980 = vcmp.ge.s32.totalorder %v3964, 0
    %vm3981 = vcmp.ge.s32.totalorder %v3965, 0
    %vm3982 = vcmp.ge.s32.totalorder %v3966, 0
    %vm3983 = vcmp.ge.s32.totalorder %v3967, 0
    %vm3984 = vcmp.ge.s32.totalorder %v3968, 0
    %vm3985 = vcmp.ge.s32.totalorder %v3969, 0
    %vm3986 = vcmp.ge.s32.totalorder %v3970, 0
    %vm3987 = vcmp.ge.s32.totalorder %v3971, 0
    %vm3988 = vcmp.ge.s32.totalorder %v3972, 0
    %vm3989 = vcmp.ge.s32.totalorder %v3973, 0
    %vm3990 = vcmp.ge.s32.totalorder %v3974, 0
    %vm3991 = vcmp.ge.s32.totalorder %v3975, 0
    %vm3992 = vcmp.lt.s32.totalorder %v3960, 8
    %vm3993 = vcmp.lt.s32.totalorder %v3961, 8
    %vm3994 = vcmp.lt.s32.totalorder %v3962, 8
    %vm3995 = vcmp.lt.s32.totalorder %v3963, 8
    %vm3996 = vcmp.lt.s32.totalorder %v3964, 8
    %vm3997 = vcmp.lt.s32.totalorder %v3965, 8
    %vm3998 = vcmp.lt.s32.totalorder %v3966, 8
    %vm3999 = vcmp.lt.s32.totalorder %v3967, 8
    %vm4000 = vcmp.lt.s32.totalorder %v3968, 8
    %vm4001 = vcmp.lt.s32.totalorder %v3969, 8
    %vm4002 = vcmp.lt.s32.totalorder %v3970, 8
    %vm4003 = vcmp.lt.s32.totalorder %v3971, 8
    %vm4004 = vcmp.lt.s32.totalorder %v3972, 8
    %vm4005 = vcmp.lt.s32.totalorder %v3973, 8
    %vm4006 = vcmp.lt.s32.totalorder %v3974, 8
    %vm4007 = vcmp.lt.s32.totalorder %v3975, 8
    %vm4008 = vmand %vm3976, %vm3992
    %vm4009 = vmand %vm3977, %vm3993
    %vm4010 = vmand %vm3978, %vm3994
    %vm4011 = vmand %vm3979, %vm3995
    %vm4012 = vmand %vm3980, %vm3996
    %vm4013 = vmand %vm3981, %vm3997
    %vm4014 = vmand %vm3982, %vm3998
    %vm4015 = vmand %vm3983, %vm3999
    %vm4016 = vmand %vm3984, %vm4000
    %vm4017 = vmand %vm3985, %vm4001
    %vm4018 = vmand %vm3986, %vm4002
    %vm4019 = vmand %vm3987, %vm4003
    %vm4020 = vmand %vm3988, %vm4004
    %vm4021 = vmand %vm3989, %vm4005
    %vm4022 = vmand %vm3990, %vm4006
    %vm4023 = vmand %vm3991, %vm4007
    %v4024 = vsel %vm4008, 1, 0
    %v4025 = vsel %vm4009, 1, 0
    %v4026 = vsel %vm4010, 1, 0
    %v4027 = vsel %vm4011, 1, 0
    %v4028 = vsel %vm4012, 1, 0
    %v4029 = vsel %vm4013, 1, 0
    %v4030 = vsel %vm4014, 1, 0
    %v4031 = vsel %vm4015, 1, 0
    %v4032 = vsel %vm4016, 1, 0
    %v4033 = vsel %vm4017, 1, 0
    %v4034 = vsel %vm4018, 1, 0
    %v4035 = vsel %vm4019, 1, 0
    %v4036 = vsel %vm4020, 1, 0
    %v4037 = vsel %vm4021, 1, 0
    %v4038 = vsel %vm4022, 1, 0
    %v4039 = vsel %vm4023, 1, 0
    %v4040 = vcvt.s32.f32 %v4024
    %v4041 = vcvt.s32.f32 %v4025
    %v4042 = vcvt.s32.f32 %v4026
    %v4043 = vcvt.s32.f32 %v4027
    %v4044 = vcvt.s32.f32 %v4028
    %v4045 = vcvt.s32.f32 %v4029
    %v4046 = vcvt.s32.f32 %v4030
    %v4047 = vcvt.s32.f32 %v4031
    %v4048 = vcvt.s32.f32 %v4032
    %v4049 = vcvt.s32.f32 %v4033
    %v4050 = vcvt.s32.f32 %v4034
    %v4051 = vcvt.s32.f32 %v4035
    %v4052 = vcvt.s32.f32 %v4036
    %v4053 = vcvt.s32.f32 %v4037
    %v4054 = vcvt.s32.f32 %v4038
    %v4055 = vcvt.s32.f32 %v4039
    %v4056 = vpack.c.bf16 %v4041, %v4040
    %v4057 = vpack.c.bf16 %v4043, %v4042
    %v4058 = vpack.c.bf16 %v4045, %v4044
    %v4059 = vpack.c.bf16 %v4047, %v4046
    %v4060 = vpack.c.bf16 %v4049, %v4048
    %v4061 = vpack.c.bf16 %v4051, %v4050
    %v4062 = vpack.c.bf16 %v4053, %v4052
    %v4063 = vpack.c.bf16 %v4055, %v4054
    %vm4064 = vsmask.f32 4352
    %v4066 = vshrl.u32 %v4056, 16
    %v4068 = vrot.slane %v4066, 3
    %v4069 = vshll.u32 %v4056, 16
    %v4071 = vrot.slane %v4069, 4
    %v4072 = vor.u32 %v4068, %v4071
    %v4074 = vshrl.u32 %v4057, 16
    %v4076 = vrot.slane %v4074, 3
    %v4077 = vshll.u32 %v4057, 16
    %v4079 = vrot.slane %v4077, 4
    %v4080 = vor.u32 %v4076, %v4079
    %v4081 = vsel %vm4064, %v4072, %v4080
    %v4083 = vshrl.u32 %v4058, 16
    %v4085 = vrot.slane %v4083, 3
    %v4086 = vshll.u32 %v4058, 16
    %v4088 = vrot.slane %v4086, 4
    %v4089 = vor.u32 %v4085, %v4088
    %v4090 = vsel %vm4064, %v4080, %v4089
    %v4092 = vshrl.u32 %v4059, 16
    %v4094 = vrot.slane %v4092, 3
    %v4095 = vshll.u32 %v4059, 16
    %v4097 = vrot.slane %v4095, 4
    %v4098 = vor.u32 %v4094, %v4097
    %v4099 = vsel %vm4064, %v4089, %v4098
    %v4101 = vshrl.u32 %v4060, 16
    %v4103 = vrot.slane %v4101, 3
    %v4104 = vshll.u32 %v4060, 16
    %v4106 = vrot.slane %v4104, 4
    %v4107 = vor.u32 %v4103, %v4106
    %v4108 = vsel %vm4064, %v4098, %v4107
    %v4110 = vshrl.u32 %v4061, 16
    %v4112 = vrot.slane %v4110, 3
    %v4113 = vshll.u32 %v4061, 16
    %v4115 = vrot.slane %v4113, 4
    %v4116 = vor.u32 %v4112, %v4115
    %v4117 = vsel %vm4064, %v4107, %v4116
    %v4119 = vshrl.u32 %v4062, 16
    %v4121 = vrot.slane %v4119, 3
    %v4122 = vshll.u32 %v4062, 16
    %v4124 = vrot.slane %v4122, 4
    %v4125 = vor.u32 %v4121, %v4124
    %v4126 = vsel %vm4064, %v4116, %v4125
    %v4128 = vshrl.u32 %v4063, 16
    %v4130 = vrot.slane %v4128, 3
    %v4131 = vshll.u32 %v4063, 16
    %v4133 = vrot.slane %v4131, 4
    %v4134 = vor.u32 %v4130, %v4133
    %v4135 = vsel %vm4064, %v4125, %v4134
    %v4145 = vmul.bf16 %v3951, %v4072
    %v4146 = vmul.bf16 %v3952, %v4081
    %v4147 = vmul.bf16 %v3953, %v4090
    %v4148 = vmul.bf16 %v3954, %v4099
    %v4149 = vmul.bf16 %v3955, %v4108
    %v4150 = vmul.bf16 %v3956, %v4117
    %v4151 = vmul.bf16 %v3957, %v4126
    %v4152 = vmul.bf16 %v3958, %v4135
    %v4153 = vmul.bf16 %v3959, %v4134
    %vm4154 = vsmask.f32 3328
    %v4156 = vshrl.u32 %v4145, 16
    %v4158 = vrot.slane %v4156, 4
    %v4159 = vshll.u32 %v4145, 16
    %v4161 = vrot.slane %v4159, 5
    %v4162 = vor.u32 %v4158, %v4161
    %v4164 = vshrl.u32 %v4146, 16
    %v4166 = vrot.slane %v4164, 4
    %v4167 = vshll.u32 %v4146, 16
    %v4169 = vrot.slane %v4167, 5
    %v4170 = vor.u32 %v4166, %v4169
    %v4171 = vsel %vm4154, %v4162, %v4170
    %v4173 = vshrl.u32 %v4147, 16
    %v4175 = vrot.slane %v4173, 4
    %v4176 = vshll.u32 %v4147, 16
    %v4178 = vrot.slane %v4176, 5
    %v4179 = vor.u32 %v4175, %v4178
    %v4180 = vsel %vm4154, %v4170, %v4179
    %v4182 = vshrl.u32 %v4148, 16
    %v4184 = vrot.slane %v4182, 4
    %v4185 = vshll.u32 %v4148, 16
    %v4187 = vrot.slane %v4185, 5
    %v4188 = vor.u32 %v4184, %v4187
    %v4189 = vsel %vm4154, %v4179, %v4188
    %v4191 = vshrl.u32 %v4149, 16
    %v4193 = vrot.slane %v4191, 4
    %v4194 = vshll.u32 %v4149, 16
    %v4196 = vrot.slane %v4194, 5
    %v4197 = vor.u32 %v4193, %v4196
    %v4198 = vsel %vm4154, %v4188, %v4197
    %v4200 = vshrl.u32 %v4150, 16
    %v4202 = vrot.slane %v4200, 4
    %v4203 = vshll.u32 %v4150, 16
    %v4205 = vrot.slane %v4203, 5
    %v4206 = vor.u32 %v4202, %v4205
    %v4207 = vsel %vm4154, %v4197, %v4206
    %v4209 = vshrl.u32 %v4151, 16
    %v4211 = vrot.slane %v4209, 4
    %v4212 = vshll.u32 %v4151, 16
    %v4214 = vrot.slane %v4212, 5
    %v4215 = vor.u32 %v4211, %v4214
    %v4216 = vsel %vm4154, %v4206, %v4215
    %v4218 = vshrl.u32 %v4152, 16
    %v4220 = vrot.slane %v4218, 4
    %v4221 = vshll.u32 %v4152, 16
    %v4223 = vrot.slane %v4221, 5
    %v4224 = vor.u32 %v4220, %v4223
    %v4225 = vsel %vm4154, %v4215, %v4224
    %v4227 = vshrl.u32 %v4153, 16
    %v4229 = vrot.slane %v4227, 4
    %v4230 = vshll.u32 %v4153, 16
    %v4232 = vrot.slane %v4230, 5
    %v4233 = vor.u32 %v4229, %v4232
    %v4234 = vsel %vm4154, %v4224, %v4233
    %4243 = vst [vmem:[#allocation3] sm:$0xff] %v4171
    %4244 = vst [vmem:[#allocation3 + $0x18] sm:$0xff] %v4180
    %4245 = vst [vmem:[#allocation3 + $0x30] sm:$0xff] %v4189
    %4246 = vst [vmem:[#allocation3 + $0x48] sm:$0xff] %v4198
    %4247 = vst [vmem:[#allocation3 + $0x60] sm:$0xff] %v4207
    %4248 = vst [vmem:[#allocation3 + $0x78] sm:$0xff] %v4216
    %4249 = vst [vmem:[#allocation3 + $0x90] sm:$0xff] %v4225
    %4250 = vst [vmem:[#allocation3 + $0xa8] sm:$0xff] %v4234
    %v4251 = vld [vmem:[#allocation2 + $0x10] sm:$0xf8]
    %v4252 = vld [vmem:[#allocation2 + $0x18] sm:$0xff]
    %v4253 = vld [vmem:[#allocation2 + $0x20] sm:$0xff]
    %v4254 = vld [vmem:[#allocation2 + $0x28] sm:$0xff]
    %v4255 = vld [vmem:[#allocation2 + $0x30] sm:$0xff]
    %v4256 = vld [vmem:[#allocation2 + $0x38] sm:$0xff]
    %v4257 = vld [vmem:[#allocation2 + $0x40] sm:$0xff]
    %v4258 = vld [vmem:[#allocation2 + $0x48] sm:$0xff]
    %v4259 = vld [vmem:[#allocation2 + $0x50] sm:$0xf]
    %v4260 = vadd.s32 %v46, 7
    %v4261 = vadd.s32 %v47, 7
    %v4262 = vadd.s32 %v48, 7
    %v4263 = vadd.s32 %v49, 7
    %v4264 = vadd.s32 %v50, 7
    %v4265 = vadd.s32 %v51, 7
    %v4266 = vadd.s32 %v52, 7
    %v4267 = vadd.s32 %v53, 7
    %v4268 = vadd.s32 %v54, 7
    %v4269 = vadd.s32 %v55, 7
    %v4270 = vadd.s32 %v56, 7
    %v4271 = vadd.s32 %v57, 7
    %v4272 = vadd.s32 %v58, 7
    %v4273 = vadd.s32 %v59, 7
    %v4274 = vadd.s32 %v60, 7
    %v4275 = vadd.s32 %v61, 7
    %vm4276 = vcmp.ge.s32.totalorder %v4260, 0
    %vm4277 = vcmp.ge.s32.totalorder %v4261, 0
    %vm4278 = vcmp.ge.s32.totalorder %v4262, 0
    %vm4279 = vcmp.ge.s32.totalorder %v4263, 0
    %vm4280 = vcmp.ge.s32.totalorder %v4264, 0
    %vm4281 = vcmp.ge.s32.totalorder %v4265, 0
    %vm4282 = vcmp.ge.s32.totalorder %v4266, 0
    %vm4283 = vcmp.ge.s32.totalorder %v4267, 0
    %vm4284 = vcmp.ge.s32.totalorder %v4268, 0
    %vm4285 = vcmp.ge.s32.totalorder %v4269, 0
    %vm4286 = vcmp.ge.s32.totalorder %v4270, 0
    %vm4287 = vcmp.ge.s32.totalorder %v4271, 0
    %vm4288 = vcmp.ge.s32.totalorder %v4272, 0
    %vm4289 = vcmp.ge.s32.totalorder %v4273, 0
    %vm4290 = vcmp.ge.s32.totalorder %v4274, 0
    %vm4291 = vcmp.ge.s32.totalorder %v4275, 0
    %vm4292 = vcmp.lt.s32.totalorder %v4260, 8
    %vm4293 = vcmp.lt.s32.totalorder %v4261, 8
    %vm4294 = vcmp.lt.s32.totalorder %v4262, 8
    %vm4295 = vcmp.lt.s32.totalorder %v4263, 8
    %vm4296 = vcmp.lt.s32.totalorder %v4264, 8
    %vm4297 = vcmp.lt.s32.totalorder %v4265, 8
    %vm4298 = vcmp.lt.s32.totalorder %v4266, 8
    %vm4299 = vcmp.lt.s32.totalorder %v4267, 8
    %vm4300 = vcmp.lt.s32.totalorder %v4268, 8
    %vm4301 = vcmp.lt.s32.totalorder %v4269, 8
    %vm4302 = vcmp.lt.s32.totalorder %v4270, 8
    %vm4303 = vcmp.lt.s32.totalorder %v4271, 8
    %vm4304 = vcmp.lt.s32.totalorder %v4272, 8
    %vm4305 = vcmp.lt.s32.totalorder %v4273, 8
    %vm4306 = vcmp.lt.s32.totalorder %v4274, 8
    %vm4307 = vcmp.lt.s32.totalorder %v4275, 8
    %vm4308 = vmand %vm4276, %vm4292
    %vm4309 = vmand %vm4277, %vm4293
    %vm4310 = vmand %vm4278, %vm4294
    %vm4311 = vmand %vm4279, %vm4295
    %vm4312 = vmand %vm4280, %vm4296
    %vm4313 = vmand %vm4281, %vm4297
    %vm4314 = vmand %vm4282, %vm4298
    %vm4315 = vmand %vm4283, %vm4299
    %vm4316 = vmand %vm4284, %vm4300
    %vm4317 = vmand %vm4285, %vm4301
    %vm4318 = vmand %vm4286, %vm4302
    %vm4319 = vmand %vm4287, %vm4303
    %vm4320 = vmand %vm4288, %vm4304
    %vm4321 = vmand %vm4289, %vm4305
    %vm4322 = vmand %vm4290, %vm4306
    %vm4323 = vmand %vm4291, %vm4307
    %v4324 = vsel %vm4308, 1, 0
    %v4325 = vsel %vm4309, 1, 0
    %v4326 = vsel %vm4310, 1, 0
    %v4327 = vsel %vm4311, 1, 0
    %v4328 = vsel %vm4312, 1, 0
    %v4329 = vsel %vm4313, 1, 0
    %v4330 = vsel %vm4314, 1, 0
    %v4331 = vsel %vm4315, 1, 0
    %v4332 = vsel %vm4316, 1, 0
    %v4333 = vsel %vm4317, 1, 0
    %v4334 = vsel %vm4318, 1, 0
    %v4335 = vsel %vm4319, 1, 0
    %v4336 = vsel %vm4320, 1, 0
    %v4337 = vsel %vm4321, 1, 0
    %v4338 = vsel %vm4322, 1, 0
    %v4339 = vsel %vm4323, 1, 0
    %v4340 = vcvt.s32.f32 %v4324
    %v4341 = vcvt.s32.f32 %v4325
    %v4342 = vcvt.s32.f32 %v4326
    %v4343 = vcvt.s32.f32 %v4327
    %v4344 = vcvt.s32.f32 %v4328
    %v4345 = vcvt.s32.f32 %v4329
    %v4346 = vcvt.s32.f32 %v4330
    %v4347 = vcvt.s32.f32 %v4331
    %v4348 = vcvt.s32.f32 %v4332
    %v4349 = vcvt.s32.f32 %v4333
    %v4350 = vcvt.s32.f32 %v4334
    %v4351 = vcvt.s32.f32 %v4335
    %v4352 = vcvt.s32.f32 %v4336
    %v4353 = vcvt.s32.f32 %v4337
    %v4354 = vcvt.s32.f32 %v4338
    %v4355 = vcvt.s32.f32 %v4339
    %v4356 = vpack.c.bf16 %v4341, %v4340
    %v4357 = vpack.c.bf16 %v4343, %v4342
    %v4358 = vpack.c.bf16 %v4345, %v4344
    %v4359 = vpack.c.bf16 %v4347, %v4346
    %v4360 = vpack.c.bf16 %v4349, %v4348
    %v4361 = vpack.c.bf16 %v4351, %v4350
    %v4362 = vpack.c.bf16 %v4353, %v4352
    %v4363 = vpack.c.bf16 %v4355, %v4354
    %v4365 = vshrl.u32 %v4356, 16
    %v4367 = vrot.slane %v4365, 4
    %v4368 = vshll.u32 %v4356, 16
    %v4370 = vrot.slane %v4368, 5
    %v4371 = vor.u32 %v4367, %v4370
    %v4373 = vshrl.u32 %v4357, 16
    %v4375 = vrot.slane %v4373, 4
    %v4376 = vshll.u32 %v4357, 16
    %v4378 = vrot.slane %v4376, 5
    %v4379 = vor.u32 %v4375, %v4378
    %v4380 = vsel %vm4154, %v4371, %v4379
    %v4382 = vshrl.u32 %v4358, 16
    %v4384 = vrot.slane %v4382, 4
    %v4385 = vshll.u32 %v4358, 16
    %v4387 = vrot.slane %v4385, 5
    %v4388 = vor.u32 %v4384, %v4387
    %v4389 = vsel %vm4154, %v4379, %v4388
    %v4391 = vshrl.u32 %v4359, 16
    %v4393 = vrot.slane %v4391, 4
    %v4394 = vshll.u32 %v4359, 16
    %v4396 = vrot.slane %v4394, 5
    %v4397 = vor.u32 %v4393, %v4396
    %v4398 = vsel %vm4154, %v4388, %v4397
    %v4400 = vshrl.u32 %v4360, 16
    %v4402 = vrot.slane %v4400, 4
    %v4403 = vshll.u32 %v4360, 16
    %v4405 = vrot.slane %v4403, 5
    %v4406 = vor.u32 %v4402, %v4405
    %v4407 = vsel %vm4154, %v4397, %v4406
    %v4409 = vshrl.u32 %v4361, 16
    %v4411 = vrot.slane %v4409, 4
    %v4412 = vshll.u32 %v4361, 16
    %v4414 = vrot.slane %v4412, 5
    %v4415 = vor.u32 %v4411, %v4414
    %v4416 = vsel %vm4154, %v4406, %v4415
    %v4418 = vshrl.u32 %v4362, 16
    %v4420 = vrot.slane %v4418, 4
    %v4421 = vshll.u32 %v4362, 16
    %v4423 = vrot.slane %v4421, 5
    %v4424 = vor.u32 %v4420, %v4423
    %v4425 = vsel %vm4154, %v4415, %v4424
    %v4427 = vshrl.u32 %v4363, 16
    %v4429 = vrot.slane %v4427, 4
    %v4430 = vshll.u32 %v4363, 16
    %v4432 = vrot.slane %v4430, 5
    %v4433 = vor.u32 %v4429, %v4432
    %v4434 = vsel %vm4154, %v4424, %v4433
    %v4444 = vmul.bf16 %v4251, %v4371
    %v4445 = vmul.bf16 %v4252, %v4380
    %v4446 = vmul.bf16 %v4253, %v4389
    %v4447 = vmul.bf16 %v4254, %v4398
    %v4448 = vmul.bf16 %v4255, %v4407
    %v4449 = vmul.bf16 %v4256, %v4416
    %v4450 = vmul.bf16 %v4257, %v4425
    %v4451 = vmul.bf16 %v4258, %v4434
    %v4452 = vmul.bf16 %v4259, %v4433
    %v4454 = vshrl.u32 %v4444, 16
    %v4456 = vrot.slane %v4454, 3
    %v4457 = vshll.u32 %v4444, 16
    %v4459 = vrot.slane %v4457, 4
    %v4460 = vor.u32 %v4456, %v4459
    %v4462 = vshrl.u32 %v4445, 16
    %v4464 = vrot.slane %v4462, 3
    %v4465 = vshll.u32 %v4445, 16
    %v4467 = vrot.slane %v4465, 4
    %v4468 = vor.u32 %v4464, %v4467
    %v4469 = vsel %vm4064, %v4460, %v4468
    %v4471 = vshrl.u32 %v4446, 16
    %v4473 = vrot.slane %v4471, 3
    %v4474 = vshll.u32 %v4446, 16
    %v4476 = vrot.slane %v4474, 4
    %v4477 = vor.u32 %v4473, %v4476
    %v4478 = vsel %vm4064, %v4468, %v4477
    %v4480 = vshrl.u32 %v4447, 16
    %v4482 = vrot.slane %v4480, 3
    %v4483 = vshll.u32 %v4447, 16
    %v4485 = vrot.slane %v4483, 4
    %v4486 = vor.u32 %v4482, %v4485
    %v4487 = vsel %vm4064, %v4477, %v4486
    %v4489 = vshrl.u32 %v4448, 16
    %v4491 = vrot.slane %v4489, 3
    %v4492 = vshll.u32 %v4448, 16
    %v4494 = vrot.slane %v4492, 4
    %v4495 = vor.u32 %v4491, %v4494
    %v4496 = vsel %vm4064, %v4486, %v4495
    %v4498 = vshrl.u32 %v4449, 16
    %v4500 = vrot.slane %v4498, 3
    %v4501 = vshll.u32 %v4449, 16
    %v4503 = vrot.slane %v4501, 4
    %v4504 = vor.u32 %v4500, %v4503
    %v4505 = vsel %vm4064, %v4495, %v4504
    %v4507 = vshrl.u32 %v4450, 16
    %v4509 = vrot.slane %v4507, 3
    %v4510 = vshll.u32 %v4450, 16
    %v4512 = vrot.slane %v4510, 4
    %v4513 = vor.u32 %v4509, %v4512
    %v4514 = vsel %vm4064, %v4504, %v4513
    %v4516 = vshrl.u32 %v4451, 16
    %v4518 = vrot.slane %v4516, 3
    %v4519 = vshll.u32 %v4451, 16
    %v4521 = vrot.slane %v4519, 4
    %v4522 = vor.u32 %v4518, %v4521
    %v4523 = vsel %vm4064, %v4513, %v4522
    %v4525 = vshrl.u32 %v4452, 16
    %v4527 = vrot.slane %v4525, 3
    %v4528 = vshll.u32 %v4452, 16
    %v4530 = vrot.slane %v4528, 4
    %v4531 = vor.u32 %v4527, %v4530
    %v4532 = vsel %vm4064, %v4522, %v4531
    %4541 = vst [vmem:[#allocation3 + $0x10] sm:$0xff] %v4469
    %4542 = vst [vmem:[#allocation3 + $0x28] sm:$0xff] %v4478
    %4543 = vst [vmem:[#allocation3 + $0x40] sm:$0xff] %v4487
    %4544 = vst [vmem:[#allocation3 + $0x58] sm:$0xff] %v4496
    %4545 = vst [vmem:[#allocation3 + $0x70] sm:$0xff] %v4505
    %4546 = vst [vmem:[#allocation3 + $0x88] sm:$0xff] %v4514
    %4547 = vst [vmem:[#allocation3 + $0xa0] sm:$0xff] %v4523
    %4548 = vst [vmem:[#allocation3 + $0xb8] sm:$0xff] %v4532
    %v4549 = vld [vmem:[#allocation3] sm:$0xff]
    %v4550 = vld [vmem:[#allocation3 + $0x8] sm:$0xff]
    %v4551 = vld [vmem:[#allocation3 + $0x10] sm:$0xff]
    %v4552 = vld [vmem:[#allocation3 + $0x18] sm:$0xff]
    %v4553 = vld [vmem:[#allocation3 + $0x20] sm:$0xff]
    %v4554 = vld [vmem:[#allocation3 + $0x28] sm:$0xff]
    %v4555 = vld [vmem:[#allocation3 + $0x30] sm:$0xff]
    %v4556 = vld [vmem:[#allocation3 + $0x38] sm:$0xff]
    %v4557 = vld [vmem:[#allocation3 + $0x40] sm:$0xff]
    %v4558 = vld [vmem:[#allocation3 + $0x48] sm:$0xff]
    %v4559 = vld [vmem:[#allocation3 + $0x50] sm:$0xff]
    %v4560 = vld [vmem:[#allocation3 + $0x58] sm:$0xff]
    %v4561 = vld [vmem:[#allocation3 + $0x60] sm:$0xff]
    %v4562 = vld [vmem:[#allocation3 + $0x68] sm:$0xff]
    %v4563 = vld [vmem:[#allocation3 + $0x70] sm:$0xff]
    %v4564 = vld [vmem:[#allocation3 + $0x78] sm:$0xff]
    %v4565 = vld [vmem:[#allocation3 + $0x80] sm:$0xff]
    %v4566 = vld [vmem:[#allocation3 + $0x88] sm:$0xff]
    %v4567 = vld [vmem:[#allocation3 + $0x90] sm:$0xff]
    %v4568 = vld [vmem:[#allocation3 + $0x98] sm:$0xff]
    %v4569 = vld [vmem:[#allocation3 + $0xa0] sm:$0xff]
    %v4570 = vld [vmem:[#allocation3 + $0xa8] sm:$0xff]
    %v4571 = vld [vmem:[#allocation3 + $0xb0] sm:$0xff]
    %v4572 = vld [vmem:[#allocation3 + $0xb8] sm:$0xff]
    %s4573 = scalar_lea.vmem %s2, 768
    %v4574 = vld [vmem:[%s4573] sm:$0xf]
    %v4575 = vld [vmem:[%s4573 + $0x4] sm:$0xf]
    %v4576 = vld [vmem:[%s4573 + $0x8] sm:$0xf]
    %v4577 = vld [vmem:[%s4573 + $0xc] sm:$0xf]
    %v4578 = vld [vmem:[%s4573 + $0x10] sm:$0xf]
    %v4579 = vld [vmem:[%s4573 + $0x14] sm:$0xf]
    %v4580 = vld [vmem:[%s4573 + $0x18] sm:$0xf]
    %v4581 = vld [vmem:[%s4573 + $0x1c] sm:$0xf]
    %v4582 = vld [vmem:[%s4573 + $0x20] sm:$0xf]
    %v4583 = vld [vmem:[%s4573 + $0x24] sm:$0xf]
    %v4584 = vld [vmem:[%s4573 + $0x28] sm:$0xf]
    %v4585 = vld [vmem:[%s4573 + $0x2c] sm:$0xf]
    %v4586 = vld [vmem:[%s4573 + $0x30] sm:$0xf]
    %v4587 = vld [vmem:[%s4573 + $0x34] sm:$0xf]
    %v4588 = vld [vmem:[%s4573 + $0x38] sm:$0xf]
    %v4589 = vld [vmem:[%s4573 + $0x3c] sm:$0xf]
    %v4590 = vld [vmem:[%s4573 + $0x40] sm:$0xf]
    %v4591 = vld [vmem:[%s4573 + $0x44] sm:$0xf]
    %v4592 = vld [vmem:[%s4573 + $0x48] sm:$0xf]
    %v4593 = vld [vmem:[%s4573 + $0x4c] sm:$0xf]
    %v4594 = vld [vmem:[%s4573 + $0x50] sm:$0xf]
    %v4595 = vld [vmem:[%s4573 + $0x54] sm:$0xf]
    %v4596 = vld [vmem:[%s4573 + $0x58] sm:$0xf]
    %v4597 = vld [vmem:[%s4573 + $0x5c] sm:$0xf]
    %v4598 = vld [vmem:[%s4573 + $0x60] sm:$0xf]
    %v4599 = vld [vmem:[%s4573 + $0x64] sm:$0xf]
    %v4600 = vld [vmem:[%s4573 + $0x68] sm:$0xf]
    %v4601 = vld [vmem:[%s4573 + $0x6c] sm:$0xf]
    %v4602 = vld [vmem:[%s4573 + $0x70] sm:$0xf]
    %v4603 = vld [vmem:[%s4573 + $0x74] sm:$0xf]
    %v4604 = vld [vmem:[%s4573 + $0x78] sm:$0xf]
    %v4605 = vld [vmem:[%s4573 + $0x7c] sm:$0xf]
    %v4606 = vld [vmem:[%s4573 + $0x80] sm:$0xf]
    %v4607 = vld [vmem:[%s4573 + $0x84] sm:$0xf]
    %v4608 = vld [vmem:[%s4573 + $0x88] sm:$0xf]
    %v4609 = vld [vmem:[%s4573 + $0x8c] sm:$0xf]
    %v4610 = vld [vmem:[%s4573 + $0x90] sm:$0xf]
    %v4611 = vld [vmem:[%s4573 + $0x94] sm:$0xf]
    %v4612 = vld [vmem:[%s4573 + $0x98] sm:$0xf]
    %v4613 = vld [vmem:[%s4573 + $0x9c] sm:$0xf]
    %v4614 = vld [vmem:[%s4573 + $0xa0] sm:$0xf]
    %v4615 = vld [vmem:[%s4573 + $0xa4] sm:$0xf]
    %v4616 = vld [vmem:[%s4573 + $0xa8] sm:$0xf]
    %v4617 = vld [vmem:[%s4573 + $0xac] sm:$0xf]
    %v4618 = vld [vmem:[%s4573 + $0xb0] sm:$0xf]
    %v4619 = vld [vmem:[%s4573 + $0xb4] sm:$0xf]
    %v4620 = vld [vmem:[%s4573 + $0xb8] sm:$0xf]
    %v4621 = vld [vmem:[%s4573 + $0xbc] sm:$0xf]
    %v4622 = vld [vmem:[%s4 + $0x5] sm:$0x1]
    %v4623 = vlaneseq
    %v4624 = vshrl.u32 %v4623, 7
    %v4625 = vsub.s32 0, %v4624
    %v4626 = vrot.slane %v4622, %v4625
    %v4675 = vunpack.c.l.b16 %v4574
    %v4676 = vunpack.c.l.b16 %v4575
    %v4677 = vunpack.c.l.b16 %v4576
    %v4678 = vunpack.c.l.b16 %v4577
    %v4679 = vunpack.c.l.b16 %v4578
    %v4680 = vunpack.c.l.b16 %v4579
    %v4681 = vunpack.c.l.b16 %v4580
    %v4682 = vunpack.c.l.b16 %v4581
    %v4683 = vunpack.c.l.b16 %v4582
    %v4684 = vunpack.c.l.b16 %v4583
    %v4685 = vunpack.c.l.b16 %v4584
    %v4686 = vunpack.c.l.b16 %v4585
    %v4687 = vunpack.c.l.b16 %v4586
    %v4688 = vunpack.c.l.b16 %v4587
    %v4689 = vunpack.c.l.b16 %v4588
    %v4690 = vunpack.c.l.b16 %v4589
    %v4691 = vunpack.c.l.b16 %v4590
    %v4692 = vunpack.c.l.b16 %v4591
    %v4693 = vunpack.c.l.b16 %v4592
    %v4694 = vunpack.c.l.b16 %v4593
    %v4695 = vunpack.c.l.b16 %v4594
    %v4696 = vunpack.c.l.b16 %v4595
    %v4697 = vunpack.c.l.b16 %v4596
    %v4698 = vunpack.c.l.b16 %v4597
    %v4699 = vunpack.c.l.b16 %v4598
    %v4700 = vunpack.c.l.b16 %v4599
    %v4701 = vunpack.c.l.b16 %v4600
    %v4702 = vunpack.c.l.b16 %v4601
    %v4703 = vunpack.c.l.b16 %v4602
    %v4704 = vunpack.c.l.b16 %v4603
    %v4705 = vunpack.c.l.b16 %v4604
    %v4706 = vunpack.c.l.b16 %v4605
    %v4707 = vunpack.c.l.b16 %v4606
    %v4708 = vunpack.c.l.b16 %v4607
    %v4709 = vunpack.c.l.b16 %v4608
    %v4710 = vunpack.c.l.b16 %v4609
    %v4711 = vunpack.c.l.b16 %v4610
    %v4712 = vunpack.c.l.b16 %v4611
    %v4713 = vunpack.c.l.b16 %v4612
    %v4714 = vunpack.c.l.b16 %v4613
    %v4715 = vunpack.c.l.b16 %v4614
    %v4716 = vunpack.c.l.b16 %v4615
    %v4717 = vunpack.c.l.b16 %v4616
    %v4718 = vunpack.c.l.b16 %v4617
    %v4719 = vunpack.c.l.b16 %v4618
    %v4720 = vunpack.c.l.b16 %v4619
    %v4721 = vunpack.c.l.b16 %v4620
    %v4722 = vunpack.c.l.b16 %v4621
    %v4723 = vpack.c.b16 %v4676, %v4675
    %v4724 = vpack.c.b16 %v4678, %v4677
    %v4725 = vpack.c.b16 %v4680, %v4679
    %v4726 = vpack.c.b16 %v4682, %v4681
    %v4727 = vpack.c.b16 %v4684, %v4683
    %v4728 = vpack.c.b16 %v4686, %v4685
    %v4729 = vpack.c.b16 %v4688, %v4687
    %v4730 = vpack.c.b16 %v4690, %v4689
    %v4731 = vpack.c.b16 %v4692, %v4691
    %v4732 = vpack.c.b16 %v4694, %v4693
    %v4733 = vpack.c.b16 %v4696, %v4695
    %v4734 = vpack.c.b16 %v4698, %v4697
    %v4735 = vpack.c.b16 %v4700, %v4699
    %v4736 = vpack.c.b16 %v4702, %v4701
    %v4737 = vpack.c.b16 %v4704, %v4703
    %v4738 = vpack.c.b16 %v4706, %v4705
    %v4739 = vpack.c.b16 %v4708, %v4707
    %v4740 = vpack.c.b16 %v4710, %v4709
    %v4741 = vpack.c.b16 %v4712, %v4711
    %v4742 = vpack.c.b16 %v4714, %v4713
    %v4743 = vpack.c.b16 %v4716, %v4715
    %v4744 = vpack.c.b16 %v4718, %v4717
    %v4745 = vpack.c.b16 %v4720, %v4719
    %v4746 = vpack.c.b16 %v4722, %v4721
    %4771 = vmatprep.subr.bf16.mxu0 0
    %4772 = vmatpush1.bf16.msra.mxu0 %v4723
    %4773 = vmatprep.subr.bf16.mxu0 0
    %4774 = vmatpush1.bf16.msra.mxu0 %v4724
    %4775 = vmatprep.subr.bf16.mxu0 0
    %4776 = vmatpush1.bf16.msra.mxu0 %v4725
    %4777 = vmatprep.subr.bf16.mxu0 0
    %4778 = vmatpush1.bf16.msra.mxu0 %v4726
    %4779 = vmatprep.subr.bf16.mxu0 0
    %4780 = vmatpush1.bf16.msra.mxu0 %v4727
    %4781 = vmatprep.subr.bf16.mxu0 0
    %4782 = vmatpush1.bf16.msra.mxu0 %v4728
    %4783 = vmatprep.subr.bf16.mxu0 0
    %4784 = vmatpush1.bf16.msra.mxu0 %v4729
    %4785 = vmatprep.subr.bf16.mxu0 0
    %4786 = vmatpush1.bf16.msra.mxu0 %v4730
    %4787 = vmatprep.subr.bf16.mxu0 0
    %4788 = vmatpush1.bf16.msra.mxu0 %v4731
    %4789 = vmatprep.subr.bf16.mxu0 0
    %4790 = vmatpush1.bf16.msra.mxu0 %v4732
    %4791 = vmatprep.subr.bf16.mxu0 0
    %4792 = vmatpush1.bf16.msra.mxu0 %v4733
    %4793 = vmatprep.subr.bf16.mxu0 0
    %4794 = vmatpush1.bf16.msra.mxu0 %v4734
    %4795 = vmatprep.subr.bf16.mxu0 0
    %4796 = vmatpush1.bf16.msra.mxu0 %v4735
    %4797 = vmatprep.subr.bf16.mxu0 0
    %4798 = vmatpush1.bf16.msra.mxu0 %v4736
    %4799 = vmatprep.subr.bf16.mxu0 0
    %4800 = vmatpush1.bf16.msra.mxu0 %v4737
    %4801 = vmatprep.subr.bf16.mxu0 0
    %4802 = vmatpush1.bf16.msra.mxu0 %v4738
    %4803 = vmatprep.mubr.bf16.mxu0 %v4550
    %4804 = vmatmul.mubr.bf16.gmra.mrb[0].mxu0 %v4549
    %v4805 = vpop.f32.mrb[0].mxu0
    %v4806 = vadd.f32 %v4626, %v4805
    %v4807 = vpop.f32.mrb[0].mxu0
    %v4808 = vpop.f32.mrb[0].mxu0
    %v4809 = vadd.f32 %v4626, %v4808
    %v4810 = vpop.f32.mrb[0].mxu0
    %4811 = vmatprep.mubr.bf16.mxu0 %v4553
    %4812 = vmatmul.mubr.bf16.gmra.mrb[0].mxu0 %v4552
    %v4813 = vpop.f32.mrb[0].mxu0
    %v4814 = vadd.f32 %v4626, %v4813
    %v4815 = vpop.f32.mrb[0].mxu0
    %v4816 = vpop.f32.mrb[0].mxu0
    %v4817 = vadd.f32 %v4626, %v4816
    %v4818 = vpop.f32.mrb[0].mxu0
    %4819 = vmatprep.mubr.bf16.mxu0 %v4556
    %4820 = vmatmul.mubr.bf16.gmra.mrb[0].mxu0 %v4555
    %v4821 = vpop.f32.mrb[0].mxu0
    %v4822 = vadd.f32 %v4626, %v4821
    %v4823 = vpop.f32.mrb[0].mxu0
    %v4824 = vpop.f32.mrb[0].mxu0
    %v4825 = vadd.f32 %v4626, %v4824
    %v4826 = vpop.f32.mrb[0].mxu0
    %4827 = vmatprep.mubr.bf16.mxu0 %v4559
    %4828 = vmatmul.mubr.bf16.gmra.mrb[0].mxu0 %v4558
    %v4829 = vpop.f32.mrb[0].mxu0
    %v4830 = vadd.f32 %v4626, %v4829
    %v4831 = vpop.f32.mrb[0].mxu0
    %v4832 = vpop.f32.mrb[0].mxu0
    %v4833 = vadd.f32 %v4626, %v4832
    %v4834 = vpop.f32.mrb[0].mxu0
    %4835 = vmatprep.mubr.bf16.mxu0 %v4562
    %4836 = vmatmul.mubr.bf16.gmra.mrb[0].mxu0 %v4561
    %v4837 = vpop.f32.mrb[0].mxu0
    %v4838 = vadd.f32 %v4626, %v4837
    %v4839 = vpop.f32.mrb[0].mxu0
    %v4840 = vpop.f32.mrb[0].mxu0
    %v4841 = vadd.f32 %v4626, %v4840
    %v4842 = vpop.f32.mrb[0].mxu0
    %4843 = vmatprep.mubr.bf16.mxu0 %v4565
    %4844 = vmatmul.mubr.bf16.gmra.mrb[0].mxu0 %v4564
    %v4845 = vpop.f32.mrb[0].mxu0
    %v4846 = vadd.f32 %v4626, %v4845
    %v4847 = vpop.f32.mrb[0].mxu0
    %v4848 = vpop.f32.mrb[0].mxu0
    %v4849 = vadd.f32 %v4626, %v4848
    %v4850 = vpop.f32.mrb[0].mxu0
    %4851 = vmatprep.mubr.bf16.mxu0 %v4568
    %4852 = vmatmul.mubr.bf16.gmra.mrb[0].mxu0 %v4567
    %v4853 = vpop.f32.mrb[0].mxu0
    %v4854 = vadd.f32 %v4626, %v4853
    %v4855 = vpop.f32.mrb[0].mxu0
    %v4856 = vpop.f32.mrb[0].mxu0
    %v4857 = vadd.f32 %v4626, %v4856
    %v4858 = vpop.f32.mrb[0].mxu0
    %4859 = vmatprep.mubr.bf16.mxu0 %v4571
    %4860 = vmatmul.mubr.bf16.gmra.mrb[0].mxu0 %v4570
    %v4861 = vpop.f32.mrb[0].mxu0
    %v4862 = vadd.f32 %v4626, %v4861
    %v4863 = vpop.f32.mrb[0].mxu0
    %v4864 = vpop.f32.mrb[0].mxu0
    %v4865 = vadd.f32 %v4626, %v4864
    %v4866 = vpop.f32.mrb[0].mxu0
    %4867 = vdwg.mxu0
    %4868 = vmatprep.subr.bf16.mxu0 0
    %4869 = vmatpush1.bf16.msra.mxu0 %v4739
    %4870 = vmatprep.subr.bf16.mxu0 0
    %4871 = vmatpush1.bf16.msra.mxu0 %v4740
    %4872 = vmatprep.subr.bf16.mxu0 0
    %4873 = vmatpush1.bf16.msra.mxu0 %v4741
    %4874 = vmatprep.subr.bf16.mxu0 0
    %4875 = vmatpush1.bf16.msra.mxu0 %v4742
    %4876 = vmatprep.subr.bf16.mxu0 0
    %4877 = vmatpush1.bf16.msra.mxu0 %v4743
    %4878 = vmatprep.subr.bf16.mxu0 0
    %4879 = vmatpush1.bf16.msra.mxu0 %v4744
    %4880 = vmatprep.subr.bf16.mxu0 0
    %4881 = vmatpush1.bf16.msra.mxu0 %v4745
    %4882 = vmatprep.subr.bf16.mxu0 0
    %4883 = vmatpush1.bf16.msra.mxu0 %v4746
    %4884 = vmatprep.subr.bf16.mxu0 0
    %4885 = vmatpush1.bf16.msra.mxu0 0
    %4886 = vmatprep.subr.bf16.mxu0 0
    %4887 = vmatpush1.bf16.msra.mxu0 0
    %4888 = vmatprep.subr.bf16.mxu0 0
    %4889 = vmatpush1.bf16.msra.mxu0 0
    %4890 = vmatprep.subr.bf16.mxu0 0
    %4891 = vmatpush1.bf16.msra.mxu0 0
    %4892 = vmatprep.subr.bf16.mxu0 0
    %4893 = vmatpush1.bf16.msra.mxu0 0
    %4894 = vmatprep.subr.bf16.mxu0 0
    %4895 = vmatpush1.bf16.msra.mxu0 0
    %4896 = vmatprep.subr.bf16.mxu0 0
    %4897 = vmatpush1.bf16.msra.mxu0 0
    %4898 = vmatprep.subr.bf16.mxu0 0
    %4899 = vmatpush1.bf16.msra.mxu0 0
    %4900 = vmatprep.mubr.bf16.mxu0 0
    %4901 = vmatmul.mubr.bf16.gmra.mrb[0].mxu0 %v4551
    %v4902 = vpop.f32.mrb[0].mxu0
    %v4903 = vadd.f32 %v4806, %v4902
    %v4904 = vpop.f32.mrb[0].mxu0
    %v4905 = vpop.f32.mrb[0].mxu0
    %v4906 = vadd.f32 %v4809, %v4905
    %v4907 = vpop.f32.mrb[0].mxu0
    %4908 = vmatprep.mubr.bf16.mxu0 0
    %4909 = vmatmul.mubr.bf16.gmra.mrb[0].mxu0 %v4554
    %v4910 = vpop.f32.mrb[0].mxu0
    %v4911 = vadd.f32 %v4814, %v4910
    %v4912 = vpop.f32.mrb[0].mxu0
    %v4913 = vpop.f32.mrb[0].mxu0
    %v4914 = vadd.f32 %v4817, %v4913
    %v4915 = vpop.f32.mrb[0].mxu0
    %4916 = vmatprep.mubr.bf16.mxu0 0
    %4917 = vmatmul.mubr.bf16.gmra.mrb[0].mxu0 %v4557
    %v4918 = vpop.f32.mrb[0].mxu0
    %v4919 = vadd.f32 %v4822, %v4918
    %v4920 = vpop.f32.mrb[0].mxu0
    %v4921 = vpop.f32.mrb[0].mxu0
    %v4922 = vadd.f32 %v4825, %v4921
    %v4923 = vpop.f32.mrb[0].mxu0
    %4924 = vmatprep.mubr.bf16.mxu0 0
    %4925 = vmatmul.mubr.bf16.gmra.mrb[0].mxu0 %v4560
    %v4926 = vpop.f32.mrb[0].mxu0
    %v4927 = vadd.f32 %v4830, %v4926
    %v4928 = vpop.f32.mrb[0].mxu0
    %v4929 = vpop.f32.mrb[0].mxu0
    %v4930 = vadd.f32 %v4833, %v4929
    %v4931 = vpop.f32.mrb[0].mxu0
    %4932 = vmatprep.mubr.bf16.mxu0 0
    %4933 = vmatmul.mubr.bf16.gmra.mrb[0].mxu0 %v4563
    %v4934 = vpop.f32.mrb[0].mxu0
    %v4935 = vadd.f32 %v4838, %v4934
    %v4936 = vpop.f32.mrb[0].mxu0
    %v4937 = vpop.f32.mrb[0].mxu0
    %v4938 = vadd.f32 %v4841, %v4937
    %v4939 = vpop.f32.mrb[0].mxu0
    %4940 = vmatprep.mubr.bf16.mxu0 0
    %4941 = vmatmul.mubr.bf16.gmra.mrb[0].mxu0 %v4566
    %v4942 = vpop.f32.mrb[0].mxu0
    %v4943 = vadd.f32 %v4846, %v4942
    %v4944 = vpop.f32.mrb[0].mxu0
    %v4945 = vpop.f32.mrb[0].mxu0
    %v4946 = vadd.f32 %v4849, %v4945
    %v4947 = vpop.f32.mrb[0].mxu0
    %4948 = vmatprep.mubr.bf16.mxu0 0
    %4949 = vmatmul.mubr.bf16.gmra.mrb[0].mxu0 %v4569
    %v4950 = vpop.f32.mrb[0].mxu0
    %v4951 = vadd.f32 %v4854, %v4950
    %v4952 = vpop.f32.mrb[0].mxu0
    %v4953 = vpop.f32.mrb[0].mxu0
    %v4954 = vadd.f32 %v4857, %v4953
    %v4955 = vpop.f32.mrb[0].mxu0
    %4956 = vmatprep.mubr.bf16.mxu0 0
    %4957 = vmatmul.mubr.bf16.gmra.mrb[0].mxu0 %v4572
    %v4958 = vpop.f32.mrb[0].mxu0
    %v4959 = vadd.f32 %v4862, %v4958
    %v4960 = vpop.f32.mrb[0].mxu0
    %v4961 = vpop.f32.mrb[0].mxu0
    %v4962 = vadd.f32 %v4865, %v4961
    %v4963 = vpop.f32.mrb[0].mxu0
    %4964 = vdwg.mxu0
    %v4965 = vmax.f32 %v4903, 0.0
    %v4966 = vmax.f32 %v4906, 0.0
    %v4967 = vmax.f32 %v4911, 0.0
    %v4968 = vmax.f32 %v4914, 0.0
    %v4969 = vmax.f32 %v4919, 0.0
    %v4970 = vmax.f32 %v4922, 0.0
    %v4971 = vmax.f32 %v4927, 0.0
    %v4972 = vmax.f32 %v4930, 0.0
    %v4973 = vmax.f32 %v4935, 0.0
    %v4974 = vmax.f32 %v4938, 0.0
    %v4975 = vmax.f32 %v4943, 0.0
    %v4976 = vmax.f32 %v4946, 0.0
    %v4977 = vmax.f32 %v4951, 0.0
    %v4978 = vmax.f32 %v4954, 0.0
    %v4979 = vmax.f32 %v4959, 0.0
    %v4980 = vmax.f32 %v4962, 0.0
    %v4981 = vpack.c.bf16 %v4966, %v4965
    %v4982 = vpack.c.bf16 %v4968, %v4967
    %v4983 = vpack.c.bf16 %v4970, %v4969
    %v4984 = vpack.c.bf16 %v4972, %v4971
    %v4985 = vpack.c.bf16 %v4974, %v4973
    %v4986 = vpack.c.bf16 %v4976, %v4975
    %v4987 = vpack.c.bf16 %v4978, %v4977
    %v4988 = vpack.c.bf16 %v4980, %v4979
    %4989 = vst [vmem:[#allocation4 + $0x18] sm:$0xff] %v4981
    %4990 = vst [vmem:[#allocation4 + $0x40] sm:$0xff] %v4982
    %4991 = vst [vmem:[#allocation4 + $0x68] sm:$0xff] %v4983
    %4992 = vst [vmem:[#allocation4 + $0x90] sm:$0xff] %v4984
    %4993 = vst [vmem:[#allocation4 + $0xb8] sm:$0xff] %v4985
    %4994 = vst [vmem:[#allocation4 + $0xe0] sm:$0xff] %v4986
    %4995 = vst [vmem:[#allocation4 + $0x108] sm:$0xff] %v4987
    %4996 = vst [vmem:[#allocation4 + $0x130] sm:$0xff] %v4988
    %v4997 = vadd.f32 %v741, %v4965
    %v4998 = vadd.f32 %v742, %v4966
    %v4999 = vadd.f32 %v743, %v4967
    %v5000 = vadd.f32 %v744, %v4968
    %v5001 = vadd.f32 %v745, %v4969
    %v5002 = vadd.f32 %v746, %v4970
    %v5003 = vadd.f32 %v747, %v4971
    %v5004 = vadd.f32 %v748, %v4972
    %v5005 = vadd.f32 %v749, %v4973
    %v5006 = vadd.f32 %v750, %v4974
    %v5007 = vadd.f32 %v751, %v4975
    %v5008 = vadd.f32 %v752, %v4976
    %v5009 = vadd.f32 %v753, %v4977
    %v5010 = vadd.f32 %v754, %v4978
    %v5011 = vadd.f32 %v755, %v4979
    %v5012 = vadd.f32 %v756, %v4980
    %v5013 = vpack.c.bf16 %v4998, %v4997
    %v5014 = vpack.c.bf16 %v5000, %v4999
    %v5015 = vpack.c.bf16 %v5002, %v5001
    %v5016 = vpack.c.bf16 %v5004, %v5003
    %v5017 = vpack.c.bf16 %v5006, %v5005
    %v5018 = vpack.c.bf16 %v5008, %v5007
    %v5019 = vpack.c.bf16 %v5010, %v5009
    %v5020 = vpack.c.bf16 %v5012, %v5011
    %5021 = vst [vmem:[#allocation2 + $0x10] sm:$0xff] %v5013
    %5022 = vst [vmem:[#allocation2 + $0x18] sm:$0xff] %v5014
    %5023 = vst [vmem:[#allocation2 + $0x20] sm:$0xff] %v5015
    %5024 = vst [vmem:[#allocation2 + $0x28] sm:$0xff] %v5016
    %5025 = vst [vmem:[#allocation2 + $0x30] sm:$0xff] %v5017
    %5026 = vst [vmem:[#allocation2 + $0x38] sm:$0xff] %v5018
    %5027 = vst [vmem:[#allocation2 + $0x40] sm:$0xff] %v5019
    %5028 = vst [vmem:[#allocation2 + $0x48] sm:$0xff] %v5020
    %5029 = vst [vmem:[#allocation3 + $0x8] sm:$0xff] %v5013
    %5030 = vst [vmem:[#allocation3 + $0x20] sm:$0xff] %v5014
    %5031 = vst [vmem:[#allocation3 + $0x38] sm:$0xff] %v5015
    %5032 = vst [vmem:[#allocation3 + $0x50] sm:$0xff] %v5016
    %5033 = vst [vmem:[#allocation3 + $0x68] sm:$0xff] %v5017
    %5034 = vst [vmem:[#allocation3 + $0x80] sm:$0xff] %v5018
    %5035 = vst [vmem:[#allocation3 + $0x98] sm:$0xff] %v5019
    %5036 = vst [vmem:[#allocation3 + $0xb0] sm:$0xff] %v5020
    %v5037 = vld [vmem:[#allocation2] sm:$0xf0]
    %v5038 = vld [vmem:[#allocation2 + $0x8] sm:$0xff]
    %v5039 = vld [vmem:[#allocation2 + $0x10] sm:$0xff]
    %v5040 = vld [vmem:[#allocation2 + $0x18] sm:$0xff]
    %v5041 = vld [vmem:[#allocation2 + $0x20] sm:$0xff]
    %v5042 = vld [vmem:[#allocation2 + $0x28] sm:$0xff]
    %v5043 = vld [vmem:[#allocation2 + $0x30] sm:$0xff]
    %v5044 = vld [vmem:[#allocation2 + $0x38] sm:$0xff]
    %v5045 = vld [vmem:[#allocation2 + $0x40] sm:$0xf]
    %v5046 = vadd.s32 %v78, 4294967293
    %v5047 = vadd.s32 %v79, 4294967293
    %v5048 = vadd.s32 %v80, 4294967293
    %v5049 = vadd.s32 %v81, 4294967293
    %v5050 = vadd.s32 %v82, 4294967293
    %v5051 = vadd.s32 %v83, 4294967293
    %v5052 = vadd.s32 %v84, 4294967293
    %v5053 = vadd.s32 %v85, 4294967293
    %v5054 = vadd.s32 %v86, 4294967293
    %v5055 = vadd.s32 %v87, 4294967293
    %v5056 = vadd.s32 %v88, 4294967293
    %v5057 = vadd.s32 %v89, 4294967293
    %v5058 = vadd.s32 %v90, 4294967293
    %v5059 = vadd.s32 %v91, 4294967293
    %v5060 = vadd.s32 %v92, 4294967293
    %v5061 = vadd.s32 %v93, 4294967293
    %vm5062 = vcmp.ge.s32.totalorder %v5046, 0
    %vm5063 = vcmp.ge.s32.totalorder %v5047, 0
    %vm5064 = vcmp.ge.s32.totalorder %v5048, 0
    %vm5065 = vcmp.ge.s32.totalorder %v5049, 0
    %vm5066 = vcmp.ge.s32.totalorder %v5050, 0
    %vm5067 = vcmp.ge.s32.totalorder %v5051, 0
    %vm5068 = vcmp.ge.s32.totalorder %v5052, 0
    %vm5069 = vcmp.ge.s32.totalorder %v5053, 0
    %vm5070 = vcmp.ge.s32.totalorder %v5054, 0
    %vm5071 = vcmp.ge.s32.totalorder %v5055, 0
    %vm5072 = vcmp.ge.s32.totalorder %v5056, 0
    %vm5073 = vcmp.ge.s32.totalorder %v5057, 0
    %vm5074 = vcmp.ge.s32.totalorder %v5058, 0
    %vm5075 = vcmp.ge.s32.totalorder %v5059, 0
    %vm5076 = vcmp.ge.s32.totalorder %v5060, 0
    %vm5077 = vcmp.ge.s32.totalorder %v5061, 0
    %vm5078 = vcmp.lt.s32.totalorder %v5046, 8
    %vm5079 = vcmp.lt.s32.totalorder %v5047, 8
    %vm5080 = vcmp.lt.s32.totalorder %v5048, 8
    %vm5081 = vcmp.lt.s32.totalorder %v5049, 8
    %vm5082 = vcmp.lt.s32.totalorder %v5050, 8
    %vm5083 = vcmp.lt.s32.totalorder %v5051, 8
    %vm5084 = vcmp.lt.s32.totalorder %v5052, 8
    %vm5085 = vcmp.lt.s32.totalorder %v5053, 8
    %vm5086 = vcmp.lt.s32.totalorder %v5054, 8
    %vm5087 = vcmp.lt.s32.totalorder %v5055, 8
    %vm5088 = vcmp.lt.s32.totalorder %v5056, 8
    %vm5089 = vcmp.lt.s32.totalorder %v5057, 8
    %vm5090 = vcmp.lt.s32.totalorder %v5058, 8
    %vm5091 = vcmp.lt.s32.totalorder %v5059, 8
    %vm5092 = vcmp.lt.s32.totalorder %v5060, 8
    %vm5093 = vcmp.lt.s32.totalorder %v5061, 8
    %vm5094 = vmand %vm5062, %vm5078
    %vm5095 = vmand %vm5063, %vm5079
    %vm5096 = vmand %vm5064, %vm5080
    %vm5097 = vmand %vm5065, %vm5081
    %vm5098 = vmand %vm5066, %vm5082
    %vm5099 = vmand %vm5067, %vm5083
    %vm5100 = vmand %vm5068, %vm5084
    %vm5101 = vmand %vm5069, %vm5085
    %vm5102 = vmand %vm5070, %vm5086
    %vm5103 = vmand %vm5071, %vm5087
    %vm5104 = vmand %vm5072, %vm5088
    %vm5105 = vmand %vm5073, %vm5089
    %vm5106 = vmand %vm5074, %vm5090
    %vm5107 = vmand %vm5075, %vm5091
    %vm5108 = vmand %vm5076, %vm5092
    %vm5109 = vmand %vm5077, %vm5093
    %v5110 = vsel %vm5094, 1, 0
    %v5111 = vsel %vm5095, 1, 0
    %v5112 = vsel %vm5096, 1, 0
    %v5113 = vsel %vm5097, 1, 0
    %v5114 = vsel %vm5098, 1, 0
    %v5115 = vsel %vm5099, 1, 0
    %v5116 = vsel %vm5100, 1, 0
    %v5117 = vsel %vm5101, 1, 0
    %v5118 = vsel %vm5102, 1, 0
    %v5119 = vsel %vm5103, 1, 0
    %v5120 = vsel %vm5104, 1, 0
    %v5121 = vsel %vm5105, 1, 0
    %v5122 = vsel %vm5106, 1, 0
    %v5123 = vsel %vm5107, 1, 0
    %v5124 = vsel %vm5108, 1, 0
    %v5125 = vsel %vm5109, 1, 0
    %v5126 = vcvt.s32.f32 %v5110
    %v5127 = vcvt.s32.f32 %v5111
    %v5128 = vcvt.s32.f32 %v5112
    %v5129 = vcvt.s32.f32 %v5113
    %v5130 = vcvt.s32.f32 %v5114
    %v5131 = vcvt.s32.f32 %v5115
    %v5132 = vcvt.s32.f32 %v5116
    %v5133 = vcvt.s32.f32 %v5117
    %v5134 = vcvt.s32.f32 %v5118
    %v5135 = vcvt.s32.f32 %v5119
    %v5136 = vcvt.s32.f32 %v5120
    %v5137 = vcvt.s32.f32 %v5121
    %v5138 = vcvt.s32.f32 %v5122
    %v5139 = vcvt.s32.f32 %v5123
    %v5140 = vcvt.s32.f32 %v5124
    %v5141 = vcvt.s32.f32 %v5125
    %v5142 = vpack.c.bf16 %v5127, %v5126
    %v5143 = vpack.c.bf16 %v5129, %v5128
    %v5144 = vpack.c.bf16 %v5131, %v5130
    %v5145 = vpack.c.bf16 %v5133, %v5132
    %v5146 = vpack.c.bf16 %v5135, %v5134
    %v5147 = vpack.c.bf16 %v5137, %v5136
    %v5148 = vpack.c.bf16 %v5139, %v5138
    %v5149 = vpack.c.bf16 %v5141, %v5140
    %v5158 = vrot.slane %v5142, 4
    %v5159 = vrot.slane %v5143, 4
    %v5160 = vsel %vm1915, %v5158, %v5159
    %v5161 = vrot.slane %v5144, 4
    %v5162 = vsel %vm1915, %v5159, %v5161
    %v5163 = vrot.slane %v5145, 4
    %v5164 = vsel %vm1915, %v5161, %v5163
    %v5165 = vrot.slane %v5146, 4
    %v5166 = vsel %vm1915, %v5163, %v5165
    %v5167 = vrot.slane %v5147, 4
    %v5168 = vsel %vm1915, %v5165, %v5167
    %v5169 = vrot.slane %v5148, 4
    %v5170 = vsel %vm1915, %v5167, %v5169
    %v5171 = vrot.slane %v5149, 4
    %v5172 = vsel %vm1915, %v5169, %v5171
    %v5182 = vmul.bf16 %v5037, %v5158
    %v5183 = vmul.bf16 %v5038, %v5160
    %v5184 = vmul.bf16 %v5039, %v5162
    %v5185 = vmul.bf16 %v5040, %v5164
    %v5186 = vmul.bf16 %v5041, %v5166
    %v5187 = vmul.bf16 %v5042, %v5168
    %v5188 = vmul.bf16 %v5043, %v5170
    %v5189 = vmul.bf16 %v5044, %v5172
    %v5190 = vmul.bf16 %v5045, %v5171
    %v5200 = vrot.slane %v5182, 4
    %v5201 = vrot.slane %v5183, 4
    %v5202 = vsel %vm1915, %v5200, %v5201
    %v5203 = vrot.slane %v5184, 4
    %v5204 = vsel %vm1915, %v5201, %v5203
    %v5205 = vrot.slane %v5185, 4
    %v5206 = vsel %vm1915, %v5203, %v5205
    %v5207 = vrot.slane %v5186, 4
    %v5208 = vsel %vm1915, %v5205, %v5207
    %v5209 = vrot.slane %v5187, 4
    %v5210 = vsel %vm1915, %v5207, %v5209
    %v5211 = vrot.slane %v5188, 4
    %v5212 = vsel %vm1915, %v5209, %v5211
    %v5213 = vrot.slane %v5189, 4
    %v5214 = vsel %vm1915, %v5211, %v5213
    %v5215 = vrot.slane %v5190, 4
    %v5216 = vsel %vm1915, %v5213, %v5215
    %5225 = vst [vmem:[#allocation3] sm:$0xff] %v5202
    %5226 = vst [vmem:[#allocation3 + $0x18] sm:$0xff] %v5204
    %5227 = vst [vmem:[#allocation3 + $0x30] sm:$0xff] %v5206
    %5228 = vst [vmem:[#allocation3 + $0x48] sm:$0xff] %v5208
    %5229 = vst [vmem:[#allocation3 + $0x60] sm:$0xff] %v5210
    %5230 = vst [vmem:[#allocation3 + $0x78] sm:$0xff] %v5212
    %5231 = vst [vmem:[#allocation3 + $0x90] sm:$0xff] %v5214
    %5232 = vst [vmem:[#allocation3 + $0xa8] sm:$0xff] %v5216
    %v5233 = vld [vmem:[#allocation2 + $0x18] sm:$0xf0]
    %v5234 = vld [vmem:[#allocation2 + $0x20] sm:$0xff]
    %v5235 = vld [vmem:[#allocation2 + $0x28] sm:$0xff]
    %v5236 = vld [vmem:[#allocation2 + $0x30] sm:$0xff]
    %v5237 = vld [vmem:[#allocation2 + $0x38] sm:$0xff]
    %v5238 = vld [vmem:[#allocation2 + $0x40] sm:$0xff]
    %v5239 = vld [vmem:[#allocation2 + $0x48] sm:$0xff]
    %v5240 = vld [vmem:[#allocation2 + $0x50] sm:$0xff]
    %v5241 = vld [vmem:[#allocation2 + $0x58] sm:$0xf]
    %v5242 = vadd.s32 %v78, 3
    %v5243 = vadd.s32 %v79, 3
    %v5244 = vadd.s32 %v80, 3
    %v5245 = vadd.s32 %v81, 3
    %v5246 = vadd.s32 %v82, 3
    %v5247 = vadd.s32 %v83, 3
    %v5248 = vadd.s32 %v84, 3
    %v5249 = vadd.s32 %v85, 3
    %v5250 = vadd.s32 %v86, 3
    %v5251 = vadd.s32 %v87, 3
    %v5252 = vadd.s32 %v88, 3
    %v5253 = vadd.s32 %v89, 3
    %v5254 = vadd.s32 %v90, 3
    %v5255 = vadd.s32 %v91, 3
    %v5256 = vadd.s32 %v92, 3
    %v5257 = vadd.s32 %v93, 3
    %vm5258 = vcmp.ge.s32.totalorder %v5242, 0
    %vm5259 = vcmp.ge.s32.totalorder %v5243, 0
    %vm5260 = vcmp.ge.s32.totalorder %v5244, 0
    %vm5261 = vcmp.ge.s32.totalorder %v5245, 0
    %vm5262 = vcmp.ge.s32.totalorder %v5246, 0
    %vm5263 = vcmp.ge.s32.totalorder %v5247, 0
    %vm5264 = vcmp.ge.s32.totalorder %v5248, 0
    %vm5265 = vcmp.ge.s32.totalorder %v5249, 0
    %vm5266 = vcmp.ge.s32.totalorder %v5250, 0
    %vm5267 = vcmp.ge.s32.totalorder %v5251, 0
    %vm5268 = vcmp.ge.s32.totalorder %v5252, 0
    %vm5269 = vcmp.ge.s32.totalorder %v5253, 0
    %vm5270 = vcmp.ge.s32.totalorder %v5254, 0
    %vm5271 = vcmp.ge.s32.totalorder %v5255, 0
    %vm5272 = vcmp.ge.s32.totalorder %v5256, 0
    %vm5273 = vcmp.ge.s32.totalorder %v5257, 0
    %vm5274 = vcmp.lt.s32.totalorder %v5242, 8
    %vm5275 = vcmp.lt.s32.totalorder %v5243, 8
    %vm5276 = vcmp.lt.s32.totalorder %v5244, 8
    %vm5277 = vcmp.lt.s32.totalorder %v5245, 8
    %vm5278 = vcmp.lt.s32.totalorder %v5246, 8
    %vm5279 = vcmp.lt.s32.totalorder %v5247, 8
    %vm5280 = vcmp.lt.s32.totalorder %v5248, 8
    %vm5281 = vcmp.lt.s32.totalorder %v5249, 8
    %vm5282 = vcmp.lt.s32.totalorder %v5250, 8
    %vm5283 = vcmp.lt.s32.totalorder %v5251, 8
    %vm5284 = vcmp.lt.s32.totalorder %v5252, 8
    %vm5285 = vcmp.lt.s32.totalorder %v5253, 8
    %vm5286 = vcmp.lt.s32.totalorder %v5254, 8
    %vm5287 = vcmp.lt.s32.totalorder %v5255, 8
    %vm5288 = vcmp.lt.s32.totalorder %v5256, 8
    %vm5289 = vcmp.lt.s32.totalorder %v5257, 8
    %vm5290 = vmand %vm5258, %vm5274
    %vm5291 = vmand %vm5259, %vm5275
    %vm5292 = vmand %vm5260, %vm5276
    %vm5293 = vmand %vm5261, %vm5277
    %vm5294 = vmand %vm5262, %vm5278
    %vm5295 = vmand %vm5263, %vm5279
    %vm5296 = vmand %vm5264, %vm5280
    %vm5297 = vmand %vm5265, %vm5281
    %vm5298 = vmand %vm5266, %vm5282
    %vm5299 = vmand %vm5267, %vm5283
    %vm5300 = vmand %vm5268, %vm5284
    %vm5301 = vmand %vm5269, %vm5285
    %vm5302 = vmand %vm5270, %vm5286
    %vm5303 = vmand %vm5271, %vm5287
    %vm5304 = vmand %vm5272, %vm5288
    %vm5305 = vmand %vm5273, %vm5289
    %v5306 = vsel %vm5290, 1, 0
    %v5307 = vsel %vm5291, 1, 0
    %v5308 = vsel %vm5292, 1, 0
    %v5309 = vsel %vm5293, 1, 0
    %v5310 = vsel %vm5294, 1, 0
    %v5311 = vsel %vm5295, 1, 0
    %v5312 = vsel %vm5296, 1, 0
    %v5313 = vsel %vm5297, 1, 0
    %v5314 = vsel %vm5298, 1, 0
    %v5315 = vsel %vm5299, 1, 0
    %v5316 = vsel %vm5300, 1, 0
    %v5317 = vsel %vm5301, 1, 0
    %v5318 = vsel %vm5302, 1, 0
    %v5319 = vsel %vm5303, 1, 0
    %v5320 = vsel %vm5304, 1, 0
    %v5321 = vsel %vm5305, 1, 0
    %v5322 = vcvt.s32.f32 %v5306
    %v5323 = vcvt.s32.f32 %v5307
    %v5324 = vcvt.s32.f32 %v5308
    %v5325 = vcvt.s32.f32 %v5309
    %v5326 = vcvt.s32.f32 %v5310
    %v5327 = vcvt.s32.f32 %v5311
    %v5328 = vcvt.s32.f32 %v5312
    %v5329 = vcvt.s32.f32 %v5313
    %v5330 = vcvt.s32.f32 %v5314
    %v5331 = vcvt.s32.f32 %v5315
    %v5332 = vcvt.s32.f32 %v5316
    %v5333 = vcvt.s32.f32 %v5317
    %v5334 = vcvt.s32.f32 %v5318
    %v5335 = vcvt.s32.f32 %v5319
    %v5336 = vcvt.s32.f32 %v5320
    %v5337 = vcvt.s32.f32 %v5321
    %v5338 = vpack.c.bf16 %v5323, %v5322
    %v5339 = vpack.c.bf16 %v5325, %v5324
    %v5340 = vpack.c.bf16 %v5327, %v5326
    %v5341 = vpack.c.bf16 %v5329, %v5328
    %v5342 = vpack.c.bf16 %v5331, %v5330
    %v5343 = vpack.c.bf16 %v5333, %v5332
    %v5344 = vpack.c.bf16 %v5335, %v5334
    %v5345 = vpack.c.bf16 %v5337, %v5336
    %v5354 = vrot.slane %v5338, 4
    %v5355 = vrot.slane %v5339, 4
    %v5356 = vsel %vm1915, %v5354, %v5355
    %v5357 = vrot.slane %v5340, 4
    %v5358 = vsel %vm1915, %v5355, %v5357
    %v5359 = vrot.slane %v5341, 4
    %v5360 = vsel %vm1915, %v5357, %v5359
    %v5361 = vrot.slane %v5342, 4
    %v5362 = vsel %vm1915, %v5359, %v5361
    %v5363 = vrot.slane %v5343, 4
    %v5364 = vsel %vm1915, %v5361, %v5363
    %v5365 = vrot.slane %v5344, 4
    %v5366 = vsel %vm1915, %v5363, %v5365
    %v5367 = vrot.slane %v5345, 4
    %v5368 = vsel %vm1915, %v5365, %v5367
    %v5378 = vmul.bf16 %v5233, %v5354
    %v5379 = vmul.bf16 %v5234, %v5356
    %v5380 = vmul.bf16 %v5235, %v5358
    %v5381 = vmul.bf16 %v5236, %v5360
    %v5382 = vmul.bf16 %v5237, %v5362
    %v5383 = vmul.bf16 %v5238, %v5364
    %v5384 = vmul.bf16 %v5239, %v5366
    %v5385 = vmul.bf16 %v5240, %v5368
    %v5386 = vmul.bf16 %v5241, %v5367
    %v5396 = vrot.slane %v5378, 4
    %v5397 = vrot.slane %v5379, 4
    %v5398 = vsel %vm1915, %v5396, %v5397
    %v5399 = vrot.slane %v5380, 4
    %v5400 = vsel %vm1915, %v5397, %v5399
    %v5401 = vrot.slane %v5381, 4
    %v5402 = vsel %vm1915, %v5399, %v5401
    %v5403 = vrot.slane %v5382, 4
    %v5404 = vsel %vm1915, %v5401, %v5403
    %v5405 = vrot.slane %v5383, 4
    %v5406 = vsel %vm1915, %v5403, %v5405
    %v5407 = vrot.slane %v5384, 4
    %v5408 = vsel %vm1915, %v5405, %v5407
    %v5409 = vrot.slane %v5385, 4
    %v5410 = vsel %vm1915, %v5407, %v5409
    %v5411 = vrot.slane %v5386, 4
    %v5412 = vsel %vm1915, %v5409, %v5411
    %5421 = vst [vmem:[#allocation3 + $0x10] sm:$0xff] %v5398
    %5422 = vst [vmem:[#allocation3 + $0x28] sm:$0xff] %v5400
    %5423 = vst [vmem:[#allocation3 + $0x40] sm:$0xff] %v5402
    %5424 = vst [vmem:[#allocation3 + $0x58] sm:$0xff] %v5404
    %5425 = vst [vmem:[#allocation3 + $0x70] sm:$0xff] %v5406
    %5426 = vst [vmem:[#allocation3 + $0x88] sm:$0xff] %v5408
    %5427 = vst [vmem:[#allocation3 + $0xa0] sm:$0xff] %v5410
    %5428 = vst [vmem:[#allocation3 + $0xb8] sm:$0xff] %v5412
    %v5429 = vld [vmem:[#allocation3] sm:$0xff]
    %v5430 = vld [vmem:[#allocation3 + $0x8] sm:$0xff]
    %v5431 = vld [vmem:[#allocation3 + $0x10] sm:$0xff]
    %v5432 = vld [vmem:[#allocation3 + $0x18] sm:$0xff]
    %v5433 = vld [vmem:[#allocation3 + $0x20] sm:$0xff]
    %v5434 = vld [vmem:[#allocation3 + $0x28] sm:$0xff]
    %v5435 = vld [vmem:[#allocation3 + $0x30] sm:$0xff]
    %v5436 = vld [vmem:[#allocation3 + $0x38] sm:$0xff]
    %v5437 = vld [vmem:[#allocation3 + $0x40] sm:$0xff]
    %v5438 = vld [vmem:[#allocation3 + $0x48] sm:$0xff]
    %v5439 = vld [vmem:[#allocation3 + $0x50] sm:$0xff]
    %v5440 = vld [vmem:[#allocation3 + $0x58] sm:$0xff]
    %v5441 = vld [vmem:[#allocation3 + $0x60] sm:$0xff]
    %v5442 = vld [vmem:[#allocation3 + $0x68] sm:$0xff]
    %v5443 = vld [vmem:[#allocation3 + $0x70] sm:$0xff]
    %v5444 = vld [vmem:[#allocation3 + $0x78] sm:$0xff]
    %v5445 = vld [vmem:[#allocation3 + $0x80] sm:$0xff]
    %v5446 = vld [vmem:[#allocation3 + $0x88] sm:$0xff]
    %v5447 = vld [vmem:[#allocation3 + $0x90] sm:$0xff]
    %v5448 = vld [vmem:[#allocation3 + $0x98] sm:$0xff]
    %v5449 = vld [vmem:[#allocation3 + $0xa0] sm:$0xff]
    %v5450 = vld [vmem:[#allocation3 + $0xa8] sm:$0xff]
    %v5451 = vld [vmem:[#allocation3 + $0xb0] sm:$0xff]
    %v5452 = vld [vmem:[#allocation3 + $0xb8] sm:$0xff]
    %s5453 = scalar_lea.vmem %s2, 960
    %v5454 = vld [vmem:[%s5453] sm:$0xf]
    %v5455 = vld [vmem:[%s5453 + $0x4] sm:$0xf]
    %v5456 = vld [vmem:[%s5453 + $0x8] sm:$0xf]
    %v5457 = vld [vmem:[%s5453 + $0xc] sm:$0xf]
    %v5458 = vld [vmem:[%s5453 + $0x10] sm:$0xf]
    %v5459 = vld [vmem:[%s5453 + $0x14] sm:$0xf]
    %v5460 = vld [vmem:[%s5453 + $0x18] sm:$0xf]
    %v5461 = vld [vmem:[%s5453 + $0x1c] sm:$0xf]
    %v5462 = vld [vmem:[%s5453 + $0x20] sm:$0xf]
    %v5463 = vld [vmem:[%s5453 + $0x24] sm:$0xf]
    %v5464 = vld [vmem:[%s5453 + $0x28] sm:$0xf]
    %v5465 = vld [vmem:[%s5453 + $0x2c] sm:$0xf]
    %v5466 = vld [vmem:[%s5453 + $0x30] sm:$0xf]
    %v5467 = vld [vmem:[%s5453 + $0x34] sm:$0xf]
    %v5468 = vld [vmem:[%s5453 + $0x38] sm:$0xf]
    %v5469 = vld [vmem:[%s5453 + $0x3c] sm:$0xf]
    %v5470 = vld [vmem:[%s5453 + $0x40] sm:$0xf]
    %v5471 = vld [vmem:[%s5453 + $0x44] sm:$0xf]
    %v5472 = vld [vmem:[%s5453 + $0x48] sm:$0xf]
    %v5473 = vld [vmem:[%s5453 + $0x4c] sm:$0xf]
    %v5474 = vld [vmem:[%s5453 + $0x50] sm:$0xf]
    %v5475 = vld [vmem:[%s5453 + $0x54] sm:$0xf]
    %v5476 = vld [vmem:[%s5453 + $0x58] sm:$0xf]
    %v5477 = vld [vmem:[%s5453 + $0x5c] sm:$0xf]
    %v5478 = vld [vmem:[%s5453 + $0x60] sm:$0xf]
    %v5479 = vld [vmem:[%s5453 + $0x64] sm:$0xf]
    %v5480 = vld [vmem:[%s5453 + $0x68] sm:$0xf]
    %v5481 = vld [vmem:[%s5453 + $0x6c] sm:$0xf]
    %v5482 = vld [vmem:[%s5453 + $0x70] sm:$0xf]
    %v5483 = vld [vmem:[%s5453 + $0x74] sm:$0xf]
    %v5484 = vld [vmem:[%s5453 + $0x78] sm:$0xf]
    %v5485 = vld [vmem:[%s5453 + $0x7c] sm:$0xf]
    %v5486 = vld [vmem:[%s5453 + $0x80] sm:$0xf]
    %v5487 = vld [vmem:[%s5453 + $0x84] sm:$0xf]
    %v5488 = vld [vmem:[%s5453 + $0x88] sm:$0xf]
    %v5489 = vld [vmem:[%s5453 + $0x8c] sm:$0xf]
    %v5490 = vld [vmem:[%s5453 + $0x90] sm:$0xf]
    %v5491 = vld [vmem:[%s5453 + $0x94] sm:$0xf]
    %v5492 = vld [vmem:[%s5453 + $0x98] sm:$0xf]
    %v5493 = vld [vmem:[%s5453 + $0x9c] sm:$0xf]
    %v5494 = vld [vmem:[%s5453 + $0xa0] sm:$0xf]
    %v5495 = vld [vmem:[%s5453 + $0xa4] sm:$0xf]
    %v5496 = vld [vmem:[%s5453 + $0xa8] sm:$0xf]
    %v5497 = vld [vmem:[%s5453 + $0xac] sm:$0xf]
    %v5498 = vld [vmem:[%s5453 + $0xb0] sm:$0xf]
    %v5499 = vld [vmem:[%s5453 + $0xb4] sm:$0xf]
    %v5500 = vld [vmem:[%s5453 + $0xb8] sm:$0xf]
    %v5501 = vld [vmem:[%s5453 + $0xbc] sm:$0xf]
    %v5502 = vld [vmem:[%s4 + $0x6] sm:$0x1]
    %v5503 = vlaneseq
    %v5504 = vshrl.u32 %v5503, 7
    %v5505 = vsub.s32 0, %v5504
    %v5506 = vrot.slane %v5502, %v5505
    %v5555 = vunpack.c.l.b16 %v5454
    %v5556 = vunpack.c.l.b16 %v5455
    %v5557 = vunpack.c.l.b16 %v5456
    %v5558 = vunpack.c.l.b16 %v5457
    %v5559 = vunpack.c.l.b16 %v5458
    %v5560 = vunpack.c.l.b16 %v5459
    %v5561 = vunpack.c.l.b16 %v5460
    %v5562 = vunpack.c.l.b16 %v5461
    %v5563 = vunpack.c.l.b16 %v5462
    %v5564 = vunpack.c.l.b16 %v5463
    %v5565 = vunpack.c.l.b16 %v5464
    %v5566 = vunpack.c.l.b16 %v5465
    %v5567 = vunpack.c.l.b16 %v5466
    %v5568 = vunpack.c.l.b16 %v5467
    %v5569 = vunpack.c.l.b16 %v5468
    %v5570 = vunpack.c.l.b16 %v5469
    %v5571 = vunpack.c.l.b16 %v5470
    %v5572 = vunpack.c.l.b16 %v5471
    %v5573 = vunpack.c.l.b16 %v5472
    %v5574 = vunpack.c.l.b16 %v5473
    %v5575 = vunpack.c.l.b16 %v5474
    %v5576 = vunpack.c.l.b16 %v5475
    %v5577 = vunpack.c.l.b16 %v5476
    %v5578 = vunpack.c.l.b16 %v5477
    %v5579 = vunpack.c.l.b16 %v5478
    %v5580 = vunpack.c.l.b16 %v5479
    %v5581 = vunpack.c.l.b16 %v5480
    %v5582 = vunpack.c.l.b16 %v5481
    %v5583 = vunpack.c.l.b16 %v5482
    %v5584 = vunpack.c.l.b16 %v5483
    %v5585 = vunpack.c.l.b16 %v5484
    %v5586 = vunpack.c.l.b16 %v5485
    %v5587 = vunpack.c.l.b16 %v5486
    %v5588 = vunpack.c.l.b16 %v5487
    %v5589 = vunpack.c.l.b16 %v5488
    %v5590 = vunpack.c.l.b16 %v5489
    %v5591 = vunpack.c.l.b16 %v5490
    %v5592 = vunpack.c.l.b16 %v5491
    %v5593 = vunpack.c.l.b16 %v5492
    %v5594 = vunpack.c.l.b16 %v5493
    %v5595 = vunpack.c.l.b16 %v5494
    %v5596 = vunpack.c.l.b16 %v5495
    %v5597 = vunpack.c.l.b16 %v5496
    %v5598 = vunpack.c.l.b16 %v5497
    %v5599 = vunpack.c.l.b16 %v5498
    %v5600 = vunpack.c.l.b16 %v5499
    %v5601 = vunpack.c.l.b16 %v5500
    %v5602 = vunpack.c.l.b16 %v5501
    %v5603 = vpack.c.b16 %v5556, %v5555
    %v5604 = vpack.c.b16 %v5558, %v5557
    %v5605 = vpack.c.b16 %v5560, %v5559
    %v5606 = vpack.c.b16 %v5562, %v5561
    %v5607 = vpack.c.b16 %v5564, %v5563
    %v5608 = vpack.c.b16 %v5566, %v5565
    %v5609 = vpack.c.b16 %v5568, %v5567
    %v5610 = vpack.c.b16 %v5570, %v5569
    %v5611 = vpack.c.b16 %v5572, %v5571
    %v5612 = vpack.c.b16 %v5574, %v5573
    %v5613 = vpack.c.b16 %v5576, %v5575
    %v5614 = vpack.c.b16 %v5578, %v5577
    %v5615 = vpack.c.b16 %v5580, %v5579
    %v5616 = vpack.c.b16 %v5582, %v5581
    %v5617 = vpack.c.b16 %v5584, %v5583
    %v5618 = vpack.c.b16 %v5586, %v5585
    %v5619 = vpack.c.b16 %v5588, %v5587
    %v5620 = vpack.c.b16 %v5590, %v5589
    %v5621 = vpack.c.b16 %v5592, %v5591
    %v5622 = vpack.c.b16 %v5594, %v5593
    %v5623 = vpack.c.b16 %v5596, %v5595
    %v5624 = vpack.c.b16 %v5598, %v5597
    %v5625 = vpack.c.b16 %v5600, %v5599
    %v5626 = vpack.c.b16 %v5602, %v5601
    %5651 = vmatprep.subr.bf16.mxu0 0
    %5652 = vmatpush1.bf16.msra.mxu0 %v5603
    %5653 = vmatprep.subr.bf16.mxu0 0
    %5654 = vmatpush1.bf16.msra.mxu0 %v5604
    %5655 = vmatprep.subr.bf16.mxu0 0
    %5656 = vmatpush1.bf16.msra.mxu0 %v5605
    %5657 = vmatprep.subr.bf16.mxu0 0
    %5658 = vmatpush1.bf16.msra.mxu0 %v5606
    %5659 = vmatprep.subr.bf16.mxu0 0
    %5660 = vmatpush1.bf16.msra.mxu0 %v5607
    %5661 = vmatprep.subr.bf16.mxu0 0
    %5662 = vmatpush1.bf16.msra.mxu0 %v5608
    %5663 = vmatprep.subr.bf16.mxu0 0
    %5664 = vmatpush1.bf16.msra.mxu0 %v5609
    %5665 = vmatprep.subr.bf16.mxu0 0
    %5666 = vmatpush1.bf16.msra.mxu0 %v5610
    %5667 = vmatprep.subr.bf16.mxu0 0
    %5668 = vmatpush1.bf16.msra.mxu0 %v5611
    %5669 = vmatprep.subr.bf16.mxu0 0
    %5670 = vmatpush1.bf16.msra.mxu0 %v5612
    %5671 = vmatprep.subr.bf16.mxu0 0
    %5672 = vmatpush1.bf16.msra.mxu0 %v5613
    %5673 = vmatprep.subr.bf16.mxu0 0
    %5674 = vmatpush1.bf16.msra.mxu0 %v5614
    %5675 = vmatprep.subr.bf16.mxu0 0
    %5676 = vmatpush1.bf16.msra.mxu0 %v5615
    %5677 = vmatprep.subr.bf16.mxu0 0
    %5678 = vmatpush1.bf16.msra.mxu0 %v5616
    %5679 = vmatprep.subr.bf16.mxu0 0
    %5680 = vmatpush1.bf16.msra.mxu0 %v5617
    %5681 = vmatprep.subr.bf16.mxu0 0
    %5682 = vmatpush1.bf16.msra.mxu0 %v5618
    %5683 = vmatprep.mubr.bf16.mxu0 %v5430
    %5684 = vmatmul.mubr.bf16.gmra.mrb[0].mxu0 %v5429
    %v5685 = vpop.f32.mrb[0].mxu0
    %v5686 = vadd.f32 %v5506, %v5685
    %v5687 = vpop.f32.mrb[0].mxu0
    %v5688 = vpop.f32.mrb[0].mxu0
    %v5689 = vadd.f32 %v5506, %v5688
    %v5690 = vpop.f32.mrb[0].mxu0
    %5691 = vmatprep.mubr.bf16.mxu0 %v5433
    %5692 = vmatmul.mubr.bf16.gmra.mrb[0].mxu0 %v5432
    %v5693 = vpop.f32.mrb[0].mxu0
    %v5694 = vadd.f32 %v5506, %v5693
    %v5695 = vpop.f32.mrb[0].mxu0
    %v5696 = vpop.f32.mrb[0].mxu0
    %v5697 = vadd.f32 %v5506, %v5696
    %v5698 = vpop.f32.mrb[0].mxu0
    %5699 = vmatprep.mubr.bf16.mxu0 %v5436
    %5700 = vmatmul.mubr.bf16.gmra.mrb[0].mxu0 %v5435
    %v5701 = vpop.f32.mrb[0].mxu0
    %v5702 = vadd.f32 %v5506, %v5701
    %v5703 = vpop.f32.mrb[0].mxu0
    %v5704 = vpop.f32.mrb[0].mxu0
    %v5705 = vadd.f32 %v5506, %v5704
    %v5706 = vpop.f32.mrb[0].mxu0
    %5707 = vmatprep.mubr.bf16.mxu0 %v5439
    %5708 = vmatmul.mubr.bf16.gmra.mrb[0].mxu0 %v5438
    %v5709 = vpop.f32.mrb[0].mxu0
    %v5710 = vadd.f32 %v5506, %v5709
    %v5711 = vpop.f32.mrb[0].mxu0
    %v5712 = vpop.f32.mrb[0].mxu0
    %v5713 = vadd.f32 %v5506, %v5712
    %v5714 = vpop.f32.mrb[0].mxu0
    %5715 = vmatprep.mubr.bf16.mxu0 %v5442
    %5716 = vmatmul.mubr.bf16.gmra.mrb[0].mxu0 %v5441
    %v5717 = vpop.f32.mrb[0].mxu0
    %v5718 = vadd.f32 %v5506, %v5717
    %v5719 = vpop.f32.mrb[0].mxu0
    %v5720 = vpop.f32.mrb[0].mxu0
    %v5721 = vadd.f32 %v5506, %v5720
    %v5722 = vpop.f32.mrb[0].mxu0
    %5723 = vmatprep.mubr.bf16.mxu0 %v5445
    %5724 = vmatmul.mubr.bf16.gmra.mrb[0].mxu0 %v5444
    %v5725 = vpop.f32.mrb[0].mxu0
    %v5726 = vadd.f32 %v5506, %v5725
    %v5727 = vpop.f32.mrb[0].mxu0
    %v5728 = vpop.f32.mrb[0].mxu0
    %v5729 = vadd.f32 %v5506, %v5728
    %v5730 = vpop.f32.mrb[0].mxu0
    %5731 = vmatprep.mubr.bf16.mxu0 %v5448
    %5732 = vmatmul.mubr.bf16.gmra.mrb[0].mxu0 %v5447
    %v5733 = vpop.f32.mrb[0].mxu0
    %v5734 = vadd.f32 %v5506, %v5733
    %v5735 = vpop.f32.mrb[0].mxu0
    %v5736 = vpop.f32.mrb[0].mxu0
    %v5737 = vadd.f32 %v5506, %v5736
    %v5738 = vpop.f32.mrb[0].mxu0
    %5739 = vmatprep.mubr.bf16.mxu0 %v5451
    %5740 = vmatmul.mubr.bf16.gmra.mrb[0].mxu0 %v5450
    %v5741 = vpop.f32.mrb[0].mxu0
    %v5742 = vadd.f32 %v5506, %v5741
    %v5743 = vpop.f32.mrb[0].mxu0
    %v5744 = vpop.f32.mrb[0].mxu0
    %v5745 = vadd.f32 %v5506, %v5744
    %v5746 = vpop.f32.mrb[0].mxu0
    %5747 = vdwg.mxu0
    %5748 = vmatprep.subr.bf16.mxu0 0
    %5749 = vmatpush1.bf16.msra.mxu0 %v5619
    %5750 = vmatprep.subr.bf16.mxu0 0
    %5751 = vmatpush1.bf16.msra.mxu0 %v5620
    %5752 = vmatprep.subr.bf16.mxu0 0
    %5753 = vmatpush1.bf16.msra.mxu0 %v5621
    %5754 = vmatprep.subr.bf16.mxu0 0
    %5755 = vmatpush1.bf16.msra.mxu0 %v5622
    %5756 = vmatprep.subr.bf16.mxu0 0
    %5757 = vmatpush1.bf16.msra.mxu0 %v5623
    %5758 = vmatprep.subr.bf16.mxu0 0
    %5759 = vmatpush1.bf16.msra.mxu0 %v5624
    %5760 = vmatprep.subr.bf16.mxu0 0
    %5761 = vmatpush1.bf16.msra.mxu0 %v5625
    %5762 = vmatprep.subr.bf16.mxu0 0
    %5763 = vmatpush1.bf16.msra.mxu0 %v5626
    %5764 = vmatprep.subr.bf16.mxu0 0
    %5765 = vmatpush1.bf16.msra.mxu0 0
    %5766 = vmatprep.subr.bf16.mxu0 0
    %5767 = vmatpush1.bf16.msra.mxu0 0
    %5768 = vmatprep.subr.bf16.mxu0 0
    %5769 = vmatpush1.bf16.msra.mxu0 0
    %5770 = vmatprep.subr.bf16.mxu0 0
    %5771 = vmatpush1.bf16.msra.mxu0 0
    %5772 = vmatprep.subr.bf16.mxu0 0
    %5773 = vmatpush1.bf16.msra.mxu0 0
    %5774 = vmatprep.subr.bf16.mxu0 0
    %5775 = vmatpush1.bf16.msra.mxu0 0
    %5776 = vmatprep.subr.bf16.mxu0 0
    %5777 = vmatpush1.bf16.msra.mxu0 0
    %5778 = vmatprep.subr.bf16.mxu0 0
    %5779 = vmatpush1.bf16.msra.mxu0 0
    %5780 = vmatprep.mubr.bf16.mxu0 0
    %5781 = vmatmul.mubr.bf16.gmra.mrb[0].mxu0 %v5431
    %v5782 = vpop.f32.mrb[0].mxu0
    %v5783 = vadd.f32 %v5686, %v5782
    %v5784 = vpop.f32.mrb[0].mxu0
    %v5785 = vpop.f32.mrb[0].mxu0
    %v5786 = vadd.f32 %v5689, %v5785
    %v5787 = vpop.f32.mrb[0].mxu0
    %5788 = vmatprep.mubr.bf16.mxu0 0
    %5789 = vmatmul.mubr.bf16.gmra.mrb[0].mxu0 %v5434
    %v5790 = vpop.f32.mrb[0].mxu0
    %v5791 = vadd.f32 %v5694, %v5790
    %v5792 = vpop.f32.mrb[0].mxu0
    %v5793 = vpop.f32.mrb[0].mxu0
    %v5794 = vadd.f32 %v5697, %v5793
    %v5795 = vpop.f32.mrb[0].mxu0
    %5796 = vmatprep.mubr.bf16.mxu0 0
    %5797 = vmatmul.mubr.bf16.gmra.mrb[0].mxu0 %v5437
    %v5798 = vpop.f32.mrb[0].mxu0
    %v5799 = vadd.f32 %v5702, %v5798
    %v5800 = vpop.f32.mrb[0].mxu0
    %v5801 = vpop.f32.mrb[0].mxu0
    %v5802 = vadd.f32 %v5705, %v5801
    %v5803 = vpop.f32.mrb[0].mxu0
    %5804 = vmatprep.mubr.bf16.mxu0 0
    %5805 = vmatmul.mubr.bf16.gmra.mrb[0].mxu0 %v5440
    %v5806 = vpop.f32.mrb[0].mxu0
    %v5807 = vadd.f32 %v5710, %v5806
    %v5808 = vpop.f32.mrb[0].mxu0
    %v5809 = vpop.f32.mrb[0].mxu0
    %v5810 = vadd.f32 %v5713, %v5809
    %v5811 = vpop.f32.mrb[0].mxu0
    %5812 = vmatprep.mubr.bf16.mxu0 0
    %5813 = vmatmul.mubr.bf16.gmra.mrb[0].mxu0 %v5443
    %v5814 = vpop.f32.mrb[0].mxu0
    %v5815 = vadd.f32 %v5718, %v5814
    %v5816 = vpop.f32.mrb[0].mxu0
    %v5817 = vpop.f32.mrb[0].mxu0
    %v5818 = vadd.f32 %v5721, %v5817
    %v5819 = vpop.f32.mrb[0].mxu0
    %5820 = vmatprep.mubr.bf16.mxu0 0
    %5821 = vmatmul.mubr.bf16.gmra.mrb[0].mxu0 %v5446
    %v5822 = vpop.f32.mrb[0].mxu0
    %v5823 = vadd.f32 %v5726, %v5822
    %v5824 = vpop.f32.mrb[0].mxu0
    %v5825 = vpop.f32.mrb[0].mxu0
    %v5826 = vadd.f32 %v5729, %v5825
    %v5827 = vpop.f32.mrb[0].mxu0
    %5828 = vmatprep.mubr.bf16.mxu0 0
    %5829 = vmatmul.mubr.bf16.gmra.mrb[0].mxu0 %v5449
    %v5830 = vpop.f32.mrb[0].mxu0
    %v5831 = vadd.f32 %v5734, %v5830
    %v5832 = vpop.f32.mrb[0].mxu0
    %v5833 = vpop.f32.mrb[0].mxu0
    %v5834 = vadd.f32 %v5737, %v5833
    %v5835 = vpop.f32.mrb[0].mxu0
    %5836 = vmatprep.mubr.bf16.mxu0 0
    %5837 = vmatmul.mubr.bf16.gmra.mrb[0].mxu0 %v5452
    %v5838 = vpop.f32.mrb[0].mxu0
    %v5839 = vadd.f32 %v5742, %v5838
    %v5840 = vpop.f32.mrb[0].mxu0
    %v5841 = vpop.f32.mrb[0].mxu0
    %v5842 = vadd.f32 %v5745, %v5841
    %v5843 = vpop.f32.mrb[0].mxu0
    %5844 = vdwg.mxu0
    %v5845 = vmax.f32 %v5783, 0.0
    %v5846 = vmax.f32 %v5786, 0.0
    %v5847 = vmax.f32 %v5791, 0.0
    %v5848 = vmax.f32 %v5794, 0.0
    %v5849 = vmax.f32 %v5799, 0.0
    %v5850 = vmax.f32 %v5802, 0.0
    %v5851 = vmax.f32 %v5807, 0.0
    %v5852 = vmax.f32 %v5810, 0.0
    %v5853 = vmax.f32 %v5815, 0.0
    %v5854 = vmax.f32 %v5818, 0.0
    %v5855 = vmax.f32 %v5823, 0.0
    %v5856 = vmax.f32 %v5826, 0.0
    %v5857 = vmax.f32 %v5831, 0.0
    %v5858 = vmax.f32 %v5834, 0.0
    %v5859 = vmax.f32 %v5839, 0.0
    %v5860 = vmax.f32 %v5842, 0.0
    %v5861 = vpack.c.bf16 %v5846, %v5845
    %v5862 = vpack.c.bf16 %v5848, %v5847
    %v5863 = vpack.c.bf16 %v5850, %v5849
    %v5864 = vpack.c.bf16 %v5852, %v5851
    %v5865 = vpack.c.bf16 %v5854, %v5853
    %v5866 = vpack.c.bf16 %v5856, %v5855
    %v5867 = vpack.c.bf16 %v5858, %v5857
    %v5868 = vpack.c.bf16 %v5860, %v5859
    %5869 = vst [vmem:[#allocation4 + $0x20] sm:$0xff] %v5861
    %5870 = vst [vmem:[#allocation4 + $0x48] sm:$0xff] %v5862
    %5871 = vst [vmem:[#allocation4 + $0x70] sm:$0xff] %v5863
    %5872 = vst [vmem:[#allocation4 + $0x98] sm:$0xff] %v5864
    %5873 = vst [vmem:[#allocation4 + $0xc0] sm:$0xff] %v5865
    %5874 = vst [vmem:[#allocation4 + $0xe8] sm:$0xff] %v5866
    %5875 = vst [vmem:[#allocation4 + $0x110] sm:$0xff] %v5867
    %5876 = vst [vmem:[#allocation4 + $0x138] sm:$0xff] %v5868
    %v5877 = vld [vmem:[#allocation4] sm:$0xff]
    %v5878 = vld [vmem:[#allocation4 + $0x8] sm:$0xff]
    %v5879 = vld [vmem:[#allocation4 + $0x10] sm:$0xff]
    %v5880 = vld [vmem:[#allocation4 + $0x18] sm:$0xff]
    %v5881 = vld [vmem:[#allocation4 + $0x20] sm:$0xff]
    %v5882 = vld [vmem:[#allocation4 + $0x28] sm:$0xff]
    %v5883 = vld [vmem:[#allocation4 + $0x30] sm:$0xff]
    %v5884 = vld [vmem:[#allocation4 + $0x38] sm:$0xff]
    %v5885 = vld [vmem:[#allocation4 + $0x40] sm:$0xff]
    %v5886 = vld [vmem:[#allocation4 + $0x48] sm:$0xff]
    %v5887 = vld [vmem:[#allocation4 + $0x50] sm:$0xff]
    %v5888 = vld [vmem:[#allocation4 + $0x58] sm:$0xff]
    %v5889 = vld [vmem:[#allocation4 + $0x60] sm:$0xff]
    %v5890 = vld [vmem:[#allocation4 + $0x68] sm:$0xff]
    %v5891 = vld [vmem:[#allocation4 + $0x70] sm:$0xff]
    %v5892 = vld [vmem:[#allocation4 + $0x78] sm:$0xff]
    %v5893 = vld [vmem:[#allocation4 + $0x80] sm:$0xff]
    %v5894 = vld [vmem:[#allocation4 + $0x88] sm:$0xff]
    %v5895 = vld [vmem:[#allocation4 + $0x90] sm:$0xff]
    %v5896 = vld [vmem:[#allocation4 + $0x98] sm:$0xff]
    %v5897 = vld [vmem:[#allocation4 + $0xa0] sm:$0xff]
    %v5898 = vld [vmem:[#allocation4 + $0xa8] sm:$0xff]
    %v5899 = vld [vmem:[#allocation4 + $0xb0] sm:$0xff]
    %v5900 = vld [vmem:[#allocation4 + $0xb8] sm:$0xff]
    %v5901 = vld [vmem:[#allocation4 + $0xc0] sm:$0xff]
    %v5902 = vld [vmem:[#allocation4 + $0xc8] sm:$0xff]
    %v5903 = vld [vmem:[#allocation4 + $0xd0] sm:$0xff]
    %v5904 = vld [vmem:[#allocation4 + $0xd8] sm:$0xff]
    %v5905 = vld [vmem:[#allocation4 + $0xe0] sm:$0xff]
    %v5906 = vld [vmem:[#allocation4 + $0xe8] sm:$0xff]
    %v5907 = vld [vmem:[#allocation4 + $0xf0] sm:$0xff]
    %v5908 = vld [vmem:[#allocation4 + $0xf8] sm:$0xff]
    %v5909 = vld [vmem:[#allocation4 + $0x100] sm:$0xff]
    %v5910 = vld [vmem:[#allocation4 + $0x108] sm:$0xff]
    %v5911 = vld [vmem:[#allocation4 + $0x110] sm:$0xff]
    %v5912 = vld [vmem:[#allocation4 + $0x118] sm:$0xff]
    %v5913 = vld [vmem:[#allocation4 + $0x120] sm:$0xff]
    %v5914 = vld [vmem:[#allocation4 + $0x128] sm:$0xff]
    %v5915 = vld [vmem:[#allocation4 + $0x130] sm:$0xff]
    %v5916 = vld [vmem:[#allocation4 + $0x138] sm:$0xff]
    %v5917 = vld [vmem:[%s3] sm:$0xff]
    %v5918 = vld [vmem:[%s3 + $0x8] sm:$0xff]
    %v5919 = vld [vmem:[%s3 + $0x10] sm:$0xff]
    %v5920 = vld [vmem:[%s3 + $0x18] sm:$0xff]
    %v5921 = vld [vmem:[%s3 + $0x20] sm:$0xff]
    %v5922 = vld [vmem:[%s3 + $0x28] sm:$0xff]
    %v5923 = vld [vmem:[%s3 + $0x30] sm:$0xff]
    %v5924 = vld [vmem:[%s3 + $0x38] sm:$0xff]
    %v5925 = vld [vmem:[%s3 + $0x40] sm:$0xff]
    %v5926 = vld [vmem:[%s3 + $0x48] sm:$0xff]
    %v5927 = vld [vmem:[%s3 + $0x50] sm:$0xff]
    %v5928 = vld [vmem:[%s3 + $0x58] sm:$0xff]
    %v5929 = vld [vmem:[%s3 + $0x60] sm:$0xff]
    %v5930 = vld [vmem:[%s3 + $0x68] sm:$0xff]
    %v5931 = vld [vmem:[%s3 + $0x70] sm:$0xff]
    %v5932 = vld [vmem:[%s3 + $0x78] sm:$0xff]
    %v5933 = vld [vmem:[%s3 + $0x80] sm:$0xff]
    %v5934 = vld [vmem:[%s3 + $0x88] sm:$0xff]
    %v5935 = vld [vmem:[%s3 + $0x90] sm:$0xff]
    %v5936 = vld [vmem:[%s3 + $0x98] sm:$0xff]
    %v5937 = vld [vmem:[%s3 + $0xa0] sm:$0xff]
    %v5938 = vld [vmem:[%s3 + $0xa8] sm:$0xff]
    %v5939 = vld [vmem:[%s3 + $0xb0] sm:$0xff]
    %v5940 = vld [vmem:[%s3 + $0xb8] sm:$0xff]
    %v5941 = vld [vmem:[%s3 + $0xc0] sm:$0xff]
    %v5942 = vld [vmem:[%s3 + $0xc8] sm:$0xff]
    %v5943 = vld [vmem:[%s3 + $0xd0] sm:$0xff]
    %v5944 = vld [vmem:[%s3 + $0xd8] sm:$0xff]
    %v5945 = vld [vmem:[%s3 + $0xe0] sm:$0xff]
    %v5946 = vld [vmem:[%s3 + $0xe8] sm:$0xff]
    %v5947 = vld [vmem:[%s3 + $0xf0] sm:$0xff]
    %v5948 = vld [vmem:[%s3 + $0xf8] sm:$0xff]
    %v5949 = vld [vmem:[%s3 + $0x100] sm:$0xff]
    %v5950 = vld [vmem:[%s3 + $0x108] sm:$0xff]
    %v5951 = vld [vmem:[%s3 + $0x110] sm:$0xff]
    %v5952 = vld [vmem:[%s3 + $0x118] sm:$0xff]
    %v5953 = vld [vmem:[%s3 + $0x120] sm:$0xff]
    %v5954 = vld [vmem:[%s3 + $0x128] sm:$0xff]
    %v5955 = vld [vmem:[%s3 + $0x130] sm:$0xff]
    %v5956 = vld [vmem:[%s3 + $0x138] sm:$0xff]
    %v5957 = vld [vmem:[%s3 + $0x140] sm:$0xff]
    %v5958 = vld [vmem:[%s3 + $0x148] sm:$0xff]
    %v5959 = vld [vmem:[%s3 + $0x150] sm:$0xff]
    %v5960 = vld [vmem:[%s3 + $0x158] sm:$0xff]
    %v5961 = vld [vmem:[%s3 + $0x160] sm:$0xff]
    %v5962 = vld [vmem:[%s3 + $0x168] sm:$0xff]
    %v5963 = vld [vmem:[%s3 + $0x170] sm:$0xff]
    %v5964 = vld [vmem:[%s3 + $0x178] sm:$0xff]
    %v5965 = vld [vmem:[%s3 + $0x180] sm:$0xff]
    %v5966 = vld [vmem:[%s3 + $0x188] sm:$0xff]
    %v5967 = vld [vmem:[%s3 + $0x190] sm:$0xff]
    %v5968 = vld [vmem:[%s3 + $0x198] sm:$0xff]
    %v5969 = vld [vmem:[%s3 + $0x1a0] sm:$0xff]
    %v5970 = vld [vmem:[%s3 + $0x1a8] sm:$0xff]
    %v5971 = vld [vmem:[%s3 + $0x1b0] sm:$0xff]
    %v5972 = vld [vmem:[%s3 + $0x1b8] sm:$0xff]
    %v5973 = vld [vmem:[%s3 + $0x1c0] sm:$0xff]
    %v5974 = vld [vmem:[%s3 + $0x1c8] sm:$0xff]
    %v5975 = vld [vmem:[%s3 + $0x1d0] sm:$0xff]
    %v5976 = vld [vmem:[%s3 + $0x1d8] sm:$0xff]
    %v5977 = vld [vmem:[%s3 + $0x1e0] sm:$0xff]
    %v5978 = vld [vmem:[%s3 + $0x1e8] sm:$0xff]
    %v5979 = vld [vmem:[%s3 + $0x1f0] sm:$0xff]
    %v5980 = vld [vmem:[%s3 + $0x1f8] sm:$0xff]
    %v5981 = vld [vmem:[%s3 + $0x200] sm:$0xff]
    %v5982 = vld [vmem:[%s3 + $0x208] sm:$0xff]
    %v5983 = vld [vmem:[%s3 + $0x210] sm:$0xff]
    %v5984 = vld [vmem:[%s3 + $0x218] sm:$0xff]
    %v5985 = vld [vmem:[%s3 + $0x220] sm:$0xff]
    %v5986 = vld [vmem:[%s3 + $0x228] sm:$0xff]
    %v5987 = vld [vmem:[%s3 + $0x230] sm:$0xff]
    %v5988 = vld [vmem:[%s3 + $0x238] sm:$0xff]
    %v5989 = vld [vmem:[%s3 + $0x240] sm:$0xff]
    %v5990 = vld [vmem:[%s3 + $0x248] sm:$0xff]
    %v5991 = vld [vmem:[%s3 + $0x250] sm:$0xff]
    %v5992 = vld [vmem:[%s3 + $0x258] sm:$0xff]
    %v5993 = vld [vmem:[%s3 + $0x260] sm:$0xff]
    %v5994 = vld [vmem:[%s3 + $0x268] sm:$0xff]
    %v5995 = vld [vmem:[%s3 + $0x270] sm:$0xff]
    %v5996 = vld [vmem:[%s3 + $0x278] sm:$0xff]
    %v5997 = vld [vmem:[%s3 + $0x280] sm:$0xff]
    %v5998 = vld [vmem:[%s3 + $0x288] sm:$0xff]
    %v5999 = vld [vmem:[%s3 + $0x290] sm:$0xff]
    %v6000 = vld [vmem:[%s3 + $0x298] sm:$0xff]
    %v6001 = vld [vmem:[%s3 + $0x2a0] sm:$0xff]
    %v6002 = vld [vmem:[%s3 + $0x2a8] sm:$0xff]
    %v6003 = vld [vmem:[%s3 + $0x2b0] sm:$0xff]
    %v6004 = vld [vmem:[%s3 + $0x2b8] sm:$0xff]
    %v6005 = vld [vmem:[%s3 + $0x2c0] sm:$0xff]
    %v6006 = vld [vmem:[%s3 + $0x2c8] sm:$0xff]
    %v6007 = vld [vmem:[%s3 + $0x2d0] sm:$0xff]
    %v6008 = vld [vmem:[%s3 + $0x2d8] sm:$0xff]
    %v6009 = vld [vmem:[%s3 + $0x2e0] sm:$0xff]
    %v6010 = vld [vmem:[%s3 + $0x2e8] sm:$0xff]
    %v6011 = vld [vmem:[%s3 + $0x2f0] sm:$0xff]
    %v6012 = vld [vmem:[%s3 + $0x2f8] sm:$0xff]
    %v6013 = vld [vmem:[%s3 + $0x300] sm:$0xff]
    %v6014 = vld [vmem:[%s3 + $0x308] sm:$0xff]
    %v6015 = vld [vmem:[%s3 + $0x310] sm:$0xff]
    %v6016 = vld [vmem:[%s3 + $0x318] sm:$0xff]
    %v6017 = vld [vmem:[%s3 + $0x320] sm:$0xff]
    %v6018 = vld [vmem:[%s3 + $0x328] sm:$0xff]
    %v6019 = vld [vmem:[%s3 + $0x330] sm:$0xff]
    %v6020 = vld [vmem:[%s3 + $0x338] sm:$0xff]
    %v6021 = vld [vmem:[%s3 + $0x340] sm:$0xff]
    %v6022 = vld [vmem:[%s3 + $0x348] sm:$0xff]
    %v6023 = vld [vmem:[%s3 + $0x350] sm:$0xff]
    %v6024 = vld [vmem:[%s3 + $0x358] sm:$0xff]
    %v6025 = vld [vmem:[%s3 + $0x360] sm:$0xff]
    %v6026 = vld [vmem:[%s3 + $0x368] sm:$0xff]
    %v6027 = vld [vmem:[%s3 + $0x370] sm:$0xff]
    %v6028 = vld [vmem:[%s3 + $0x378] sm:$0xff]
    %v6029 = vld [vmem:[%s3 + $0x380] sm:$0xff]
    %v6030 = vld [vmem:[%s3 + $0x388] sm:$0xff]
    %v6031 = vld [vmem:[%s3 + $0x390] sm:$0xff]
    %v6032 = vld [vmem:[%s3 + $0x398] sm:$0xff]
    %v6033 = vld [vmem:[%s3 + $0x3a0] sm:$0xff]
    %v6034 = vld [vmem:[%s3 + $0x3a8] sm:$0xff]
    %v6035 = vld [vmem:[%s3 + $0x3b0] sm:$0xff]
    %v6036 = vld [vmem:[%s3 + $0x3b8] sm:$0xff]
    %v6037 = vld [vmem:[%s3 + $0x3c0] sm:$0xff]
    %v6038 = vld [vmem:[%s3 + $0x3c8] sm:$0xff]
    %v6039 = vld [vmem:[%s3 + $0x3d0] sm:$0xff]
    %v6040 = vld [vmem:[%s3 + $0x3d8] sm:$0xff]
    %v6041 = vld [vmem:[%s3 + $0x3e0] sm:$0xff]
    %v6042 = vld [vmem:[%s3 + $0x3e8] sm:$0xff]
    %v6043 = vld [vmem:[%s3 + $0x3f0] sm:$0xff]
    %v6044 = vld [vmem:[%s3 + $0x3f8] sm:$0xff]
    %v6045 = vld [vmem:[%s3 + $0x400] sm:$0xff]
    %v6046 = vld [vmem:[%s3 + $0x408] sm:$0xff]
    %v6047 = vld [vmem:[%s3 + $0x410] sm:$0xff]
    %v6048 = vld [vmem:[%s3 + $0x418] sm:$0xff]
    %v6049 = vld [vmem:[%s3 + $0x420] sm:$0xff]
    %v6050 = vld [vmem:[%s3 + $0x428] sm:$0xff]
    %v6051 = vld [vmem:[%s3 + $0x430] sm:$0xff]
    %v6052 = vld [vmem:[%s3 + $0x438] sm:$0xff]
    %v6053 = vld [vmem:[%s3 + $0x440] sm:$0xff]
    %v6054 = vld [vmem:[%s3 + $0x448] sm:$0xff]
    %v6055 = vld [vmem:[%s3 + $0x450] sm:$0xff]
    %v6056 = vld [vmem:[%s3 + $0x458] sm:$0xff]
    %v6057 = vld [vmem:[%s3 + $0x460] sm:$0xff]
    %v6058 = vld [vmem:[%s3 + $0x468] sm:$0xff]
    %v6059 = vld [vmem:[%s3 + $0x470] sm:$0xff]
    %v6060 = vld [vmem:[%s3 + $0x478] sm:$0xff]
    %v6061 = vld [vmem:[%s3 + $0x480] sm:$0xff]
    %v6062 = vld [vmem:[%s3 + $0x488] sm:$0xff]
    %v6063 = vld [vmem:[%s3 + $0x490] sm:$0xff]
    %v6064 = vld [vmem:[%s3 + $0x498] sm:$0xff]
    %v6065 = vld [vmem:[%s3 + $0x4a0] sm:$0xff]
    %v6066 = vld [vmem:[%s3 + $0x4a8] sm:$0xff]
    %v6067 = vld [vmem:[%s3 + $0x4b0] sm:$0xff]
    %v6068 = vld [vmem:[%s3 + $0x4b8] sm:$0xff]
    %v6069 = vld [vmem:[%s3 + $0x4c0] sm:$0xff]
    %v6070 = vld [vmem:[%s3 + $0x4c8] sm:$0xff]
    %v6071 = vld [vmem:[%s3 + $0x4d0] sm:$0xff]
    %v6072 = vld [vmem:[%s3 + $0x4d8] sm:$0xff]
    %v6073 = vld [vmem:[%s3 + $0x4e0] sm:$0xff]
    %v6074 = vld [vmem:[%s3 + $0x4e8] sm:$0xff]
    %v6075 = vld [vmem:[%s3 + $0x4f0] sm:$0xff]
    %v6076 = vld [vmem:[%s3 + $0x4f8] sm:$0xff]
    %v6077 = vld [vmem:[%s5] sm:$0xf]
    %v6079 = vlaneseq
    %v6080 = vshrl.u32 %v6079, 7
    %v6081 = vsub.s32 0, %v6080
    %v6082 = vrot.slane %v6077, %v6081
    %v6083 = vlaneseq
    %v6084 = vshrl.u32 %v6083, 7
    %v6085 = vsub.s32 1, %v6084
    %v6086 = vrot.slane %v6077, %v6085
    %v6087 = vlaneseq
    %v6088 = vshrl.u32 %v6087, 7
    %v6089 = vsub.s32 2, %v6088
    %v6090 = vrot.slane %v6077, %v6089
    %v6091 = vlaneseq
    %v6092 = vshrl.u32 %v6091, 7
    %v6093 = vsub.s32 3, %v6092
    %v6094 = vrot.slane %v6077, %v6093
    %v6259 = vunpack.c.l.b16 %v5917
    %v6260 = vunpack.c.h.b16 %v5917
    %v6261 = vunpack.c.l.b16 %v5918
    %v6262 = vunpack.c.h.b16 %v5918
    %v6263 = vunpack.c.l.b16 %v5919
    %v6264 = vunpack.c.h.b16 %v5919
    %v6265 = vunpack.c.l.b16 %v5920
    %v6266 = vunpack.c.h.b16 %v5920
    %v6267 = vunpack.c.l.b16 %v5921
    %v6268 = vunpack.c.h.b16 %v5921
    %v6269 = vunpack.c.l.b16 %v5922
    %v6270 = vunpack.c.h.b16 %v5922
    %v6271 = vunpack.c.l.b16 %v5923
    %v6272 = vunpack.c.h.b16 %v5923
    %v6273 = vunpack.c.l.b16 %v5924
    %v6274 = vunpack.c.h.b16 %v5924
    %v6275 = vunpack.c.l.b16 %v5925
    %v6276 = vunpack.c.h.b16 %v5925
    %v6277 = vunpack.c.l.b16 %v5926
    %v6278 = vunpack.c.h.b16 %v5926
    %v6279 = vunpack.c.l.b16 %v5927
    %v6280 = vunpack.c.h.b16 %v5927
    %v6281 = vunpack.c.l.b16 %v5928
    %v6282 = vunpack.c.h.b16 %v5928
    %v6283 = vunpack.c.l.b16 %v5929
    %v6284 = vunpack.c.h.b16 %v5929
    %v6285 = vunpack.c.l.b16 %v5930
    %v6286 = vunpack.c.h.b16 %v5930
    %v6287 = vunpack.c.l.b16 %v5931
    %v6288 = vunpack.c.h.b16 %v5931
    %v6289 = vunpack.c.l.b16 %v5932
    %v6290 = vunpack.c.h.b16 %v5932
    %v6291 = vunpack.c.l.b16 %v5933
    %v6292 = vunpack.c.h.b16 %v5933
    %v6293 = vunpack.c.l.b16 %v5934
    %v6294 = vunpack.c.h.b16 %v5934
    %v6295 = vunpack.c.l.b16 %v5935
    %v6296 = vunpack.c.h.b16 %v5935
    %v6297 = vunpack.c.l.b16 %v5936
    %v6298 = vunpack.c.h.b16 %v5936
    %v6299 = vunpack.c.l.b16 %v5937
    %v6300 = vunpack.c.h.b16 %v5937
    %v6301 = vunpack.c.l.b16 %v5938
    %v6302 = vunpack.c.h.b16 %v5938
    %v6303 = vunpack.c.l.b16 %v5939
    %v6304 = vunpack.c.h.b16 %v5939
    %v6305 = vunpack.c.l.b16 %v5940
    %v6306 = vunpack.c.h.b16 %v5940
    %v6307 = vunpack.c.l.b16 %v5941
    %v6308 = vunpack.c.h.b16 %v5941
    %v6309 = vunpack.c.l.b16 %v5942
    %v6310 = vunpack.c.h.b16 %v5942
    %v6311 = vunpack.c.l.b16 %v5943
    %v6312 = vunpack.c.h.b16 %v5943
    %v6313 = vunpack.c.l.b16 %v5944
    %v6314 = vunpack.c.h.b16 %v5944
    %v6315 = vunpack.c.l.b16 %v5945
    %v6316 = vunpack.c.h.b16 %v5945
    %v6317 = vunpack.c.l.b16 %v5946
    %v6318 = vunpack.c.h.b16 %v5946
    %v6319 = vunpack.c.l.b16 %v5947
    %v6320 = vunpack.c.h.b16 %v5947
    %v6321 = vunpack.c.l.b16 %v5948
    %v6322 = vunpack.c.h.b16 %v5948
    %v6323 = vunpack.c.l.b16 %v5949
    %v6324 = vunpack.c.h.b16 %v5949
    %v6325 = vunpack.c.l.b16 %v5950
    %v6326 = vunpack.c.h.b16 %v5950
    %v6327 = vunpack.c.l.b16 %v5951
    %v6328 = vunpack.c.h.b16 %v5951
    %v6329 = vunpack.c.l.b16 %v5952
    %v6330 = vunpack.c.h.b16 %v5952
    %v6331 = vunpack.c.l.b16 %v5953
    %v6332 = vunpack.c.h.b16 %v5953
    %v6333 = vunpack.c.l.b16 %v5954
    %v6334 = vunpack.c.h.b16 %v5954
    %v6335 = vunpack.c.l.b16 %v5955
    %v6336 = vunpack.c.h.b16 %v5955
    %v6337 = vunpack.c.l.b16 %v5956
    %v6338 = vunpack.c.h.b16 %v5956
    %v6339 = vunpack.c.l.b16 %v5957
    %v6340 = vunpack.c.h.b16 %v5957
    %v6341 = vunpack.c.l.b16 %v5958
    %v6342 = vunpack.c.h.b16 %v5958
    %v6343 = vunpack.c.l.b16 %v5959
    %v6344 = vunpack.c.h.b16 %v5959
    %v6345 = vunpack.c.l.b16 %v5960
    %v6346 = vunpack.c.h.b16 %v5960
    %v6347 = vunpack.c.l.b16 %v5961
    %v6348 = vunpack.c.h.b16 %v5961
    %v6349 = vunpack.c.l.b16 %v5962
    %v6350 = vunpack.c.h.b16 %v5962
    %v6351 = vunpack.c.l.b16 %v5963
    %v6352 = vunpack.c.h.b16 %v5963
    %v6353 = vunpack.c.l.b16 %v5964
    %v6354 = vunpack.c.h.b16 %v5964
    %v6355 = vunpack.c.l.b16 %v5965
    %v6356 = vunpack.c.h.b16 %v5965
    %v6357 = vunpack.c.l.b16 %v5966
    %v6358 = vunpack.c.h.b16 %v5966
    %v6359 = vunpack.c.l.b16 %v5967
    %v6360 = vunpack.c.h.b16 %v5967
    %v6361 = vunpack.c.l.b16 %v5968
    %v6362 = vunpack.c.h.b16 %v5968
    %v6363 = vunpack.c.l.b16 %v5969
    %v6364 = vunpack.c.h.b16 %v5969
    %v6365 = vunpack.c.l.b16 %v5970
    %v6366 = vunpack.c.h.b16 %v5970
    %v6367 = vunpack.c.l.b16 %v5971
    %v6368 = vunpack.c.h.b16 %v5971
    %v6369 = vunpack.c.l.b16 %v5972
    %v6370 = vunpack.c.h.b16 %v5972
    %v6371 = vunpack.c.l.b16 %v5973
    %v6372 = vunpack.c.h.b16 %v5973
    %v6373 = vunpack.c.l.b16 %v5974
    %v6374 = vunpack.c.h.b16 %v5974
    %v6375 = vunpack.c.l.b16 %v5975
    %v6376 = vunpack.c.h.b16 %v5975
    %v6377 = vunpack.c.l.b16 %v5976
    %v6378 = vunpack.c.h.b16 %v5976
    %v6379 = vunpack.c.l.b16 %v5977
    %v6380 = vunpack.c.h.b16 %v5977
    %v6381 = vunpack.c.l.b16 %v5978
    %v6382 = vunpack.c.h.b16 %v5978
    %v6383 = vunpack.c.l.b16 %v5979
    %v6384 = vunpack.c.h.b16 %v5979
    %v6385 = vunpack.c.l.b16 %v5980
    %v6386 = vunpack.c.h.b16 %v5980
    %v6387 = vunpack.c.l.b16 %v5981
    %v6388 = vunpack.c.h.b16 %v5981
    %v6389 = vunpack.c.l.b16 %v5982
    %v6390 = vunpack.c.h.b16 %v5982
    %v6391 = vunpack.c.l.b16 %v5983
    %v6392 = vunpack.c.h.b16 %v5983
    %v6393 = vunpack.c.l.b16 %v5984
    %v6394 = vunpack.c.h.b16 %v5984
    %v6395 = vunpack.c.l.b16 %v5985
    %v6396 = vunpack.c.h.b16 %v5985
    %v6397 = vunpack.c.l.b16 %v5986
    %v6398 = vunpack.c.h.b16 %v5986
    %v6399 = vunpack.c.l.b16 %v5987
    %v6400 = vunpack.c.h.b16 %v5987
    %v6401 = vunpack.c.l.b16 %v5988
    %v6402 = vunpack.c.h.b16 %v5988
    %v6403 = vunpack.c.l.b16 %v5989
    %v6404 = vunpack.c.h.b16 %v5989
    %v6405 = vunpack.c.l.b16 %v5990
    %v6406 = vunpack.c.h.b16 %v5990
    %v6407 = vunpack.c.l.b16 %v5991
    %v6408 = vunpack.c.h.b16 %v5991
    %v6409 = vunpack.c.l.b16 %v5992
    %v6410 = vunpack.c.h.b16 %v5992
    %v6411 = vunpack.c.l.b16 %v5993
    %v6412 = vunpack.c.h.b16 %v5993
    %v6413 = vunpack.c.l.b16 %v5994
    %v6414 = vunpack.c.h.b16 %v5994
    %v6415 = vunpack.c.l.b16 %v5995
    %v6416 = vunpack.c.h.b16 %v5995
    %v6417 = vunpack.c.l.b16 %v5996
    %v6418 = vunpack.c.h.b16 %v5996
    %v6419 = vunpack.c.l.b16 %v5997
    %v6420 = vunpack.c.h.b16 %v5997
    %v6421 = vunpack.c.l.b16 %v5998
    %v6422 = vunpack.c.h.b16 %v5998
    %v6423 = vunpack.c.l.b16 %v5999
    %v6424 = vunpack.c.h.b16 %v5999
    %v6425 = vunpack.c.l.b16 %v6000
    %v6426 = vunpack.c.h.b16 %v6000
    %v6427 = vunpack.c.l.b16 %v6001
    %v6428 = vunpack.c.h.b16 %v6001
    %v6429 = vunpack.c.l.b16 %v6002
    %v6430 = vunpack.c.h.b16 %v6002
    %v6431 = vunpack.c.l.b16 %v6003
    %v6432 = vunpack.c.h.b16 %v6003
    %v6433 = vunpack.c.l.b16 %v6004
    %v6434 = vunpack.c.h.b16 %v6004
    %v6435 = vunpack.c.l.b16 %v6005
    %v6436 = vunpack.c.h.b16 %v6005
    %v6437 = vunpack.c.l.b16 %v6006
    %v6438 = vunpack.c.h.b16 %v6006
    %v6439 = vunpack.c.l.b16 %v6007
    %v6440 = vunpack.c.h.b16 %v6007
    %v6441 = vunpack.c.l.b16 %v6008
    %v6442 = vunpack.c.h.b16 %v6008
    %v6443 = vunpack.c.l.b16 %v6009
    %v6444 = vunpack.c.h.b16 %v6009
    %v6445 = vunpack.c.l.b16 %v6010
    %v6446 = vunpack.c.h.b16 %v6010
    %v6447 = vunpack.c.l.b16 %v6011
    %v6448 = vunpack.c.h.b16 %v6011
    %v6449 = vunpack.c.l.b16 %v6012
    %v6450 = vunpack.c.h.b16 %v6012
    %v6451 = vunpack.c.l.b16 %v6013
    %v6452 = vunpack.c.h.b16 %v6013
    %v6453 = vunpack.c.l.b16 %v6014
    %v6454 = vunpack.c.h.b16 %v6014
    %v6455 = vunpack.c.l.b16 %v6015
    %v6456 = vunpack.c.h.b16 %v6015
    %v6457 = vunpack.c.l.b16 %v6016
    %v6458 = vunpack.c.h.b16 %v6016
    %v6459 = vunpack.c.l.b16 %v6017
    %v6460 = vunpack.c.h.b16 %v6017
    %v6461 = vunpack.c.l.b16 %v6018
    %v6462 = vunpack.c.h.b16 %v6018
    %v6463 = vunpack.c.l.b16 %v6019
    %v6464 = vunpack.c.h.b16 %v6019
    %v6465 = vunpack.c.l.b16 %v6020
    %v6466 = vunpack.c.h.b16 %v6020
    %v6467 = vunpack.c.l.b16 %v6021
    %v6468 = vunpack.c.h.b16 %v6021
    %v6469 = vunpack.c.l.b16 %v6022
    %v6470 = vunpack.c.h.b16 %v6022
    %v6471 = vunpack.c.l.b16 %v6023
    %v6472 = vunpack.c.h.b16 %v6023
    %v6473 = vunpack.c.l.b16 %v6024
    %v6474 = vunpack.c.h.b16 %v6024
    %v6475 = vunpack.c.l.b16 %v6025
    %v6476 = vunpack.c.h.b16 %v6025
    %v6477 = vunpack.c.l.b16 %v6026
    %v6478 = vunpack.c.h.b16 %v6026
    %v6479 = vunpack.c.l.b16 %v6027
    %v6480 = vunpack.c.h.b16 %v6027
    %v6481 = vunpack.c.l.b16 %v6028
    %v6482 = vunpack.c.h.b16 %v6028
    %v6483 = vunpack.c.l.b16 %v6029
    %v6484 = vunpack.c.h.b16 %v6029
    %v6485 = vunpack.c.l.b16 %v6030
    %v6486 = vunpack.c.h.b16 %v6030
    %v6487 = vunpack.c.l.b16 %v6031
    %v6488 = vunpack.c.h.b16 %v6031
    %v6489 = vunpack.c.l.b16 %v6032
    %v6490 = vunpack.c.h.b16 %v6032
    %v6491 = vunpack.c.l.b16 %v6033
    %v6492 = vunpack.c.h.b16 %v6033
    %v6493 = vunpack.c.l.b16 %v6034
    %v6494 = vunpack.c.h.b16 %v6034
    %v6495 = vunpack.c.l.b16 %v6035
    %v6496 = vunpack.c.h.b16 %v6035
    %v6497 = vunpack.c.l.b16 %v6036
    %v6498 = vunpack.c.h.b16 %v6036
    %v6499 = vunpack.c.l.b16 %v6037
    %v6500 = vunpack.c.h.b16 %v6037
    %v6501 = vunpack.c.l.b16 %v6038
    %v6502 = vunpack.c.h.b16 %v6038
    %v6503 = vunpack.c.l.b16 %v6039
    %v6504 = vunpack.c.h.b16 %v6039
    %v6505 = vunpack.c.l.b16 %v6040
    %v6506 = vunpack.c.h.b16 %v6040
    %v6507 = vunpack.c.l.b16 %v6041
    %v6508 = vunpack.c.h.b16 %v6041
    %v6509 = vunpack.c.l.b16 %v6042
    %v6510 = vunpack.c.h.b16 %v6042
    %v6511 = vunpack.c.l.b16 %v6043
    %v6512 = vunpack.c.h.b16 %v6043
    %v6513 = vunpack.c.l.b16 %v6044
    %v6514 = vunpack.c.h.b16 %v6044
    %v6515 = vunpack.c.l.b16 %v6045
    %v6516 = vunpack.c.h.b16 %v6045
    %v6517 = vunpack.c.l.b16 %v6046
    %v6518 = vunpack.c.h.b16 %v6046
    %v6519 = vunpack.c.l.b16 %v6047
    %v6520 = vunpack.c.h.b16 %v6047
    %v6521 = vunpack.c.l.b16 %v6048
    %v6522 = vunpack.c.h.b16 %v6048
    %v6523 = vunpack.c.l.b16 %v6049
    %v6524 = vunpack.c.h.b16 %v6049
    %v6525 = vunpack.c.l.b16 %v6050
    %v6526 = vunpack.c.h.b16 %v6050
    %v6527 = vunpack.c.l.b16 %v6051
    %v6528 = vunpack.c.h.b16 %v6051
    %v6529 = vunpack.c.l.b16 %v6052
    %v6530 = vunpack.c.h.b16 %v6052
    %v6531 = vunpack.c.l.b16 %v6053
    %v6532 = vunpack.c.h.b16 %v6053
    %v6533 = vunpack.c.l.b16 %v6054
    %v6534 = vunpack.c.h.b16 %v6054
    %v6535 = vunpack.c.l.b16 %v6055
    %v6536 = vunpack.c.h.b16 %v6055
    %v6537 = vunpack.c.l.b16 %v6056
    %v6538 = vunpack.c.h.b16 %v6056
    %v6539 = vunpack.c.l.b16 %v6057
    %v6540 = vunpack.c.h.b16 %v6057
    %v6541 = vunpack.c.l.b16 %v6058
    %v6542 = vunpack.c.h.b16 %v6058
    %v6543 = vunpack.c.l.b16 %v6059
    %v6544 = vunpack.c.h.b16 %v6059
    %v6545 = vunpack.c.l.b16 %v6060
    %v6546 = vunpack.c.h.b16 %v6060
    %v6547 = vunpack.c.l.b16 %v6061
    %v6548 = vunpack.c.h.b16 %v6061
    %v6549 = vunpack.c.l.b16 %v6062
    %v6550 = vunpack.c.h.b16 %v6062
    %v6551 = vunpack.c.l.b16 %v6063
    %v6552 = vunpack.c.h.b16 %v6063
    %v6553 = vunpack.c.l.b16 %v6064
    %v6554 = vunpack.c.h.b16 %v6064
    %v6555 = vunpack.c.l.b16 %v6065
    %v6556 = vunpack.c.h.b16 %v6065
    %v6557 = vunpack.c.l.b16 %v6066
    %v6558 = vunpack.c.h.b16 %v6066
    %v6559 = vunpack.c.l.b16 %v6067
    %v6560 = vunpack.c.h.b16 %v6067
    %v6561 = vunpack.c.l.b16 %v6068
    %v6562 = vunpack.c.h.b16 %v6068
    %v6563 = vunpack.c.l.b16 %v6069
    %v6564 = vunpack.c.h.b16 %v6069
    %v6565 = vunpack.c.l.b16 %v6070
    %v6566 = vunpack.c.h.b16 %v6070
    %v6567 = vunpack.c.l.b16 %v6071
    %v6568 = vunpack.c.h.b16 %v6071
    %v6569 = vunpack.c.l.b16 %v6072
    %v6570 = vunpack.c.h.b16 %v6072
    %v6571 = vunpack.c.l.b16 %v6073
    %v6572 = vunpack.c.h.b16 %v6073
    %v6573 = vunpack.c.l.b16 %v6074
    %v6574 = vunpack.c.h.b16 %v6074
    %v6575 = vunpack.c.l.b16 %v6075
    %v6576 = vunpack.c.h.b16 %v6075
    %v6577 = vunpack.c.l.b16 %v6076
    %v6578 = vunpack.c.h.b16 %v6076
    %v6579 = vpack.c.b16 %v6263, %v6259
    %v6580 = vpack.c.b16 %v6264, %v6260
    %v6581 = vpack.c.b16 %v6265, %v6261
    %v6582 = vpack.c.b16 %v6266, %v6262
    %v6583 = vpack.c.b16 %v6271, %v6267
    %v6584 = vpack.c.b16 %v6272, %v6268
    %v6585 = vpack.c.b16 %v6273, %v6269
    %v6586 = vpack.c.b16 %v6274, %v6270
    %v6587 = vpack.c.b16 %v6279, %v6275
    %v6588 = vpack.c.b16 %v6280, %v6276
    %v6589 = vpack.c.b16 %v6281, %v6277
    %v6590 = vpack.c.b16 %v6282, %v6278
    %v6591 = vpack.c.b16 %v6287, %v6283
    %v6592 = vpack.c.b16 %v6288, %v6284
    %v6593 = vpack.c.b16 %v6289, %v6285
    %v6594 = vpack.c.b16 %v6290, %v6286
    %v6595 = vpack.c.b16 %v6295, %v6291
    %v6596 = vpack.c.b16 %v6296, %v6292
    %v6597 = vpack.c.b16 %v6297, %v6293
    %v6598 = vpack.c.b16 %v6298, %v6294
    %v6599 = vpack.c.b16 %v6303, %v6299
    %v6600 = vpack.c.b16 %v6304, %v6300
    %v6601 = vpack.c.b16 %v6305, %v6301
    %v6602 = vpack.c.b16 %v6306, %v6302
    %v6603 = vpack.c.b16 %v6311, %v6307
    %v6604 = vpack.c.b16 %v6312, %v6308
    %v6605 = vpack.c.b16 %v6313, %v6309
    %v6606 = vpack.c.b16 %v6314, %v6310
    %v6607 = vpack.c.b16 %v6319, %v6315
    %v6608 = vpack.c.b16 %v6320, %v6316
    %v6609 = vpack.c.b16 %v6321, %v6317
    %v6610 = vpack.c.b16 %v6322, %v6318
    %v6611 = vpack.c.b16 %v6327, %v6323
    %v6612 = vpack.c.b16 %v6328, %v6324
    %v6613 = vpack.c.b16 %v6329, %v6325
    %v6614 = vpack.c.b16 %v6330, %v6326
    %v6615 = vpack.c.b16 %v6335, %v6331
    %v6616 = vpack.c.b16 %v6336, %v6332
    %v6617 = vpack.c.b16 %v6337, %v6333
    %v6618 = vpack.c.b16 %v6338, %v6334
    %v6619 = vpack.c.b16 %v6343, %v6339
    %v6620 = vpack.c.b16 %v6344, %v6340
    %v6621 = vpack.c.b16 %v6345, %v6341
    %v6622 = vpack.c.b16 %v6346, %v6342
    %v6623 = vpack.c.b16 %v6351, %v6347
    %v6624 = vpack.c.b16 %v6352, %v6348
    %v6625 = vpack.c.b16 %v6353, %v6349
    %v6626 = vpack.c.b16 %v6354, %v6350
    %v6627 = vpack.c.b16 %v6359, %v6355
    %v6628 = vpack.c.b16 %v6360, %v6356
    %v6629 = vpack.c.b16 %v6361, %v6357
    %v6630 = vpack.c.b16 %v6362, %v6358
    %v6631 = vpack.c.b16 %v6367, %v6363
    %v6632 = vpack.c.b16 %v6368, %v6364
    %v6633 = vpack.c.b16 %v6369, %v6365
    %v6634 = vpack.c.b16 %v6370, %v6366
    %v6635 = vpack.c.b16 %v6375, %v6371
    %v6636 = vpack.c.b16 %v6376, %v6372
    %v6637 = vpack.c.b16 %v6377, %v6373
    %v6638 = vpack.c.b16 %v6378, %v6374
    %v6639 = vpack.c.b16 %v6383, %v6379
    %v6640 = vpack.c.b16 %v6384, %v6380
    %v6641 = vpack.c.b16 %v6385, %v6381
    %v6642 = vpack.c.b16 %v6386, %v6382
    %v6643 = vpack.c.b16 %v6391, %v6387
    %v6644 = vpack.c.b16 %v6392, %v6388
    %v6645 = vpack.c.b16 %v6393, %v6389
    %v6646 = vpack.c.b16 %v6394, %v6390
    %v6647 = vpack.c.b16 %v6399, %v6395
    %v6648 = vpack.c.b16 %v6400, %v6396
    %v6649 = vpack.c.b16 %v6401, %v6397
    %v6650 = vpack.c.b16 %v6402, %v6398
    %v6651 = vpack.c.b16 %v6407, %v6403
    %v6652 = vpack.c.b16 %v6408, %v6404
    %v6653 = vpack.c.b16 %v6409, %v6405
    %v6654 = vpack.c.b16 %v6410, %v6406
    %v6655 = vpack.c.b16 %v6415, %v6411
    %v6656 = vpack.c.b16 %v6416, %v6412
    %v6657 = vpack.c.b16 %v6417, %v6413
    %v6658 = vpack.c.b16 %v6418, %v6414
    %v6659 = vpack.c.b16 %v6423, %v6419
    %v6660 = vpack.c.b16 %v6424, %v6420
    %v6661 = vpack.c.b16 %v6425, %v6421
    %v6662 = vpack.c.b16 %v6426, %v6422
    %v6663 = vpack.c.b16 %v6431, %v6427
    %v6664 = vpack.c.b16 %v6432, %v6428
    %v6665 = vpack.c.b16 %v6433, %v6429
    %v6666 = vpack.c.b16 %v6434, %v6430
    %v6667 = vpack.c.b16 %v6439, %v6435
    %v6668 = vpack.c.b16 %v6440, %v6436
    %v6669 = vpack.c.b16 %v6441, %v6437
    %v6670 = vpack.c.b16 %v6442, %v6438
    %v6671 = vpack.c.b16 %v6447, %v6443
    %v6672 = vpack.c.b16 %v6448, %v6444
    %v6673 = vpack.c.b16 %v6449, %v6445
    %v6674 = vpack.c.b16 %v6450, %v6446
    %v6675 = vpack.c.b16 %v6455, %v6451
    %v6676 = vpack.c.b16 %v6456, %v6452
    %v6677 = vpack.c.b16 %v6457, %v6453
    %v6678 = vpack.c.b16 %v6458, %v6454
    %v6679 = vpack.c.b16 %v6463, %v6459
    %v6680 = vpack.c.b16 %v6464, %v6460
    %v6681 = vpack.c.b16 %v6465, %v6461
    %v6682 = vpack.c.b16 %v6466, %v6462
    %v6683 = vpack.c.b16 %v6471, %v6467
    %v6684 = vpack.c.b16 %v6472, %v6468
    %v6685 = vpack.c.b16 %v6473, %v6469
    %v6686 = vpack.c.b16 %v6474, %v6470
    %v6687 = vpack.c.b16 %v6479, %v6475
    %v6688 = vpack.c.b16 %v6480, %v6476
    %v6689 = vpack.c.b16 %v6481, %v6477
    %v6690 = vpack.c.b16 %v6482, %v6478
    %v6691 = vpack.c.b16 %v6487, %v6483
    %v6692 = vpack.c.b16 %v6488, %v6484
    %v6693 = vpack.c.b16 %v6489, %v6485
    %v6694 = vpack.c.b16 %v6490, %v6486
    %v6695 = vpack.c.b16 %v6495, %v6491
    %v6696 = vpack.c.b16 %v6496, %v6492
    %v6697 = vpack.c.b16 %v6497, %v6493
    %v6698 = vpack.c.b16 %v6498, %v6494
    %v6699 = vpack.c.b16 %v6503, %v6499
    %v6700 = vpack.c.b16 %v6504, %v6500
    %v6701 = vpack.c.b16 %v6505, %v6501
    %v6702 = vpack.c.b16 %v6506, %v6502
    %v6703 = vpack.c.b16 %v6511, %v6507
    %v6704 = vpack.c.b16 %v6512, %v6508
    %v6705 = vpack.c.b16 %v6513, %v6509
    %v6706 = vpack.c.b16 %v6514, %v6510
    %v6707 = vpack.c.b16 %v6519, %v6515
    %v6708 = vpack.c.b16 %v6520, %v6516
    %v6709 = vpack.c.b16 %v6521, %v6517
    %v6710 = vpack.c.b16 %v6522, %v6518
    %v6711 = vpack.c.b16 %v6527, %v6523
    %v6712 = vpack.c.b16 %v6528, %v6524
    %v6713 = vpack.c.b16 %v6529, %v6525
    %v6714 = vpack.c.b16 %v6530, %v6526
    %v6715 = vpack.c.b16 %v6535, %v6531
    %v6716 = vpack.c.b16 %v6536, %v6532
    %v6717 = vpack.c.b16 %v6537, %v6533
    %v6718 = vpack.c.b16 %v6538, %v6534
    %v6719 = vpack.c.b16 %v6543, %v6539
    %v6720 = vpack.c.b16 %v6544, %v6540
    %v6721 = vpack.c.b16 %v6545, %v6541
    %v6722 = vpack.c.b16 %v6546, %v6542
    %v6723 = vpack.c.b16 %v6551, %v6547
    %v6724 = vpack.c.b16 %v6552, %v6548
    %v6725 = vpack.c.b16 %v6553, %v6549
    %v6726 = vpack.c.b16 %v6554, %v6550
    %v6727 = vpack.c.b16 %v6559, %v6555
    %v6728 = vpack.c.b16 %v6560, %v6556
    %v6729 = vpack.c.b16 %v6561, %v6557
    %v6730 = vpack.c.b16 %v6562, %v6558
    %v6731 = vpack.c.b16 %v6567, %v6563
    %v6732 = vpack.c.b16 %v6568, %v6564
    %v6733 = vpack.c.b16 %v6569, %v6565
    %v6734 = vpack.c.b16 %v6570, %v6566
    %v6735 = vpack.c.b16 %v6575, %v6571
    %v6736 = vpack.c.b16 %v6576, %v6572
    %v6737 = vpack.c.b16 %v6577, %v6573
    %v6738 = vpack.c.b16 %v6578, %v6574
    %6899 = vmatprep.subr.bf16.mxu0 %v6580
    %6900 = vmatpush1.bf16.msra.mxu0 %v6579
    %6901 = vmatprep.subr.bf16.mxu0 %v6584
    %6902 = vmatpush1.bf16.msra.mxu0 %v6583
    %6903 = vmatprep.subr.bf16.mxu0 %v6588
    %6904 = vmatpush1.bf16.msra.mxu0 %v6587
    %6905 = vmatprep.subr.bf16.mxu0 %v6592
    %6906 = vmatpush1.bf16.msra.mxu0 %v6591
    %6907 = vmatprep.subr.bf16.mxu0 %v6596
    %6908 = vmatpush1.bf16.msra.mxu0 %v6595
    %6909 = vmatprep.subr.bf16.mxu0 %v6600
    %6910 = vmatpush1.bf16.msra.mxu0 %v6599
    %6911 = vmatprep.subr.bf16.mxu0 %v6604
    %6912 = vmatpush1.bf16.msra.mxu0 %v6603
    %6913 = vmatprep.subr.bf16.mxu0 %v6608
    %6914 = vmatpush1.bf16.msra.mxu0 %v6607
    %6915 = vmatprep.subr.bf16.mxu0 %v6612
    %6916 = vmatpush1.bf16.msra.mxu0 %v6611
    %6917 = vmatprep.subr.bf16.mxu0 %v6616
    %6918 = vmatpush1.bf16.msra.mxu0 %v6615
    %6919 = vmatprep.subr.bf16.mxu0 %v6620
    %6920 = vmatpush1.bf16.msra.mxu0 %v6619
    %6921 = vmatprep.subr.bf16.mxu0 %v6624
    %6922 = vmatpush1.bf16.msra.mxu0 %v6623
    %6923 = vmatprep.subr.bf16.mxu0 %v6628
    %6924 = vmatpush1.bf16.msra.mxu0 %v6627
    %6925 = vmatprep.subr.bf16.mxu0 %v6632
    %6926 = vmatpush1.bf16.msra.mxu0 %v6631
    %6927 = vmatprep.subr.bf16.mxu0 %v6636
    %6928 = vmatpush1.bf16.msra.mxu0 %v6635
    %6929 = vmatprep.subr.bf16.mxu0 %v6640
    %6930 = vmatpush1.bf16.msra.mxu0 %v6639
    %6931 = vmatprep.mubr.bf16.mxu0 %v5878
    %6932 = vmatmul.mubr.bf16.gmra.mrb[0].mxu0 %v5877
    %v6933 = vpop.f32.mrb[0].mxu0
    %v6934 = vadd.f32 %v6082, %v6933
    %v6935 = vpop.f32.mrb[0].mxu0
    %v6936 = vadd.f32 %v6086, %v6935
    %v6937 = vpop.f32.mrb[0].mxu0
    %v6938 = vadd.f32 %v6082, %v6937
    %v6939 = vpop.f32.mrb[0].mxu0
    %v6940 = vadd.f32 %v6086, %v6939
    %6941 = vmatprep.mubr.bf16.mxu0 %v5883
    %6942 = vmatmul.mubr.bf16.gmra.mrb[0].mxu0 %v5882
    %v6943 = vpop.f32.mrb[0].mxu0
    %v6944 = vadd.f32 %v6082, %v6943
    %v6945 = vpop.f32.mrb[0].mxu0
    %v6946 = vadd.f32 %v6086, %v6945
    %v6947 = vpop.f32.mrb[0].mxu0
    %v6948 = vadd.f32 %v6082, %v6947
    %v6949 = vpop.f32.mrb[0].mxu0
    %v6950 = vadd.f32 %v6086, %v6949
    %6951 = vmatprep.mubr.bf16.mxu0 %v5888
    %6952 = vmatmul.mubr.bf16.gmra.mrb[0].mxu0 %v5887
    %v6953 = vpop.f32.mrb[0].mxu0
    %v6954 = vadd.f32 %v6082, %v6953
    %v6955 = vpop.f32.mrb[0].mxu0
    %v6956 = vadd.f32 %v6086, %v6955
    %v6957 = vpop.f32.mrb[0].mxu0
    %v6958 = vadd.f32 %v6082, %v6957
    %v6959 = vpop.f32.mrb[0].mxu0
    %v6960 = vadd.f32 %v6086, %v6959
    %6961 = vmatprep.mubr.bf16.mxu0 %v5893
    %6962 = vmatmul.mubr.bf16.gmra.mrb[0].mxu0 %v5892
    %v6963 = vpop.f32.mrb[0].mxu0
    %v6964 = vadd.f32 %v6082, %v6963
    %v6965 = vpop.f32.mrb[0].mxu0
    %v6966 = vadd.f32 %v6086, %v6965
    %v6967 = vpop.f32.mrb[0].mxu0
    %v6968 = vadd.f32 %v6082, %v6967
    %v6969 = vpop.f32.mrb[0].mxu0
    %v6970 = vadd.f32 %v6086, %v6969
    %6971 = vmatprep.mubr.bf16.mxu0 %v5898
    %6972 = vmatmul.mubr.bf16.gmra.mrb[0].mxu0 %v5897
    %v6973 = vpop.f32.mrb[0].mxu0
    %v6974 = vadd.f32 %v6082, %v6973
    %v6975 = vpop.f32.mrb[0].mxu0
    %v6976 = vadd.f32 %v6086, %v6975
    %v6977 = vpop.f32.mrb[0].mxu0
    %v6978 = vadd.f32 %v6082, %v6977
    %v6979 = vpop.f32.mrb[0].mxu0
    %v6980 = vadd.f32 %v6086, %v6979
    %6981 = vmatprep.mubr.bf16.mxu0 %v5903
    %6982 = vmatmul.mubr.bf16.gmra.mrb[0].mxu0 %v5902
    %v6983 = vpop.f32.mrb[0].mxu0
    %v6984 = vadd.f32 %v6082, %v6983
    %v6985 = vpop.f32.mrb[0].mxu0
    %v6986 = vadd.f32 %v6086, %v6985
    %v6987 = vpop.f32.mrb[0].mxu0
    %v6988 = vadd.f32 %v6082, %v6987
    %v6989 = vpop.f32.mrb[0].mxu0
    %v6990 = vadd.f32 %v6086, %v6989
    %6991 = vmatprep.mubr.bf16.mxu0 %v5908
    %6992 = vmatmul.mubr.bf16.gmra.mrb[0].mxu0 %v5907
    %v6993 = vpop.f32.mrb[0].mxu0
    %v6994 = vadd.f32 %v6082, %v6993
    %v6995 = vpop.f32.mrb[0].mxu0
    %v6996 = vadd.f32 %v6086, %v6995
    %v6997 = vpop.f32.mrb[0].mxu0
    %v6998 = vadd.f32 %v6082, %v6997
    %v6999 = vpop.f32.mrb[0].mxu0
    %v7000 = vadd.f32 %v6086, %v6999
    %7001 = vmatprep.mubr.bf16.mxu0 %v5913
    %7002 = vmatmul.mubr.bf16.gmra.mrb[0].mxu0 %v5912
    %v7003 = vpop.f32.mrb[0].mxu0
    %v7004 = vadd.f32 %v6082, %v7003
    %v7005 = vpop.f32.mrb[0].mxu0
    %v7006 = vadd.f32 %v6086, %v7005
    %v7007 = vpop.f32.mrb[0].mxu0
    %v7008 = vadd.f32 %v6082, %v7007
    %v7009 = vpop.f32.mrb[0].mxu0
    %v7010 = vadd.f32 %v6086, %v7009
    %7011 = vdwg.mxu0
    %7012 = vmatprep.subr.bf16.mxu0 %v6644
    %7013 = vmatpush1.bf16.msra.mxu0 %v6643
    %7014 = vmatprep.subr.bf16.mxu0 %v6648
    %7015 = vmatpush1.bf16.msra.mxu0 %v6647
    %7016 = vmatprep.subr.bf16.mxu0 %v6652
    %7017 = vmatpush1.bf16.msra.mxu0 %v6651
    %7018 = vmatprep.subr.bf16.mxu0 %v6656
    %7019 = vmatpush1.bf16.msra.mxu0 %v6655
    %7020 = vmatprep.subr.bf16.mxu0 %v6660
    %7021 = vmatpush1.bf16.msra.mxu0 %v6659
    %7022 = vmatprep.subr.bf16.mxu0 %v6664
    %7023 = vmatpush1.bf16.msra.mxu0 %v6663
    %7024 = vmatprep.subr.bf16.mxu0 %v6668
    %7025 = vmatpush1.bf16.msra.mxu0 %v6667
    %7026 = vmatprep.subr.bf16.mxu0 %v6672
    %7027 = vmatpush1.bf16.msra.mxu0 %v6671
    %7028 = vmatprep.subr.bf16.mxu0 %v6676
    %7029 = vmatpush1.bf16.msra.mxu0 %v6675
    %7030 = vmatprep.subr.bf16.mxu0 %v6680
    %7031 = vmatpush1.bf16.msra.mxu0 %v6679
    %7032 = vmatprep.subr.bf16.mxu0 %v6684
    %7033 = vmatpush1.bf16.msra.mxu0 %v6683
    %7034 = vmatprep.subr.bf16.mxu0 %v6688
    %7035 = vmatpush1.bf16.msra.mxu0 %v6687
    %7036 = vmatprep.subr.bf16.mxu0 %v6692
    %7037 = vmatpush1.bf16.msra.mxu0 %v6691
    %7038 = vmatprep.subr.bf16.mxu0 %v6696
    %7039 = vmatpush1.bf16.msra.mxu0 %v6695
    %7040 = vmatprep.subr.bf16.mxu0 %v6700
    %7041 = vmatpush1.bf16.msra.mxu0 %v6699
    %7042 = vmatprep.subr.bf16.mxu0 %v6704
    %7043 = vmatpush1.bf16.msra.mxu0 %v6703
    %7044 = vmatprep.mubr.bf16.mxu0 %v5880
    %7045 = vmatmul.mubr.bf16.gmra.mrb[0].mxu0 %v5879
    %v7046 = vpop.f32.mrb[0].mxu0
    %v7047 = vadd.f32 %v6934, %v7046
    %v7048 = vpop.f32.mrb[0].mxu0
    %v7049 = vadd.f32 %v6936, %v7048
    %v7050 = vpop.f32.mrb[0].mxu0
    %v7051 = vadd.f32 %v6938, %v7050
    %v7052 = vpop.f32.mrb[0].mxu0
    %v7053 = vadd.f32 %v6940, %v7052
    %7054 = vmatprep.mubr.bf16.mxu0 %v5885
    %7055 = vmatmul.mubr.bf16.gmra.mrb[0].mxu0 %v5884
    %v7056 = vpop.f32.mrb[0].mxu0
    %v7057 = vadd.f32 %v6944, %v7056
    %v7058 = vpop.f32.mrb[0].mxu0
    %v7059 = vadd.f32 %v6946, %v7058
    %v7060 = vpop.f32.mrb[0].mxu0
    %v7061 = vadd.f32 %v6948, %v7060
    %v7062 = vpop.f32.mrb[0].mxu0
    %v7063 = vadd.f32 %v6950, %v7062
    %7064 = vmatprep.mubr.bf16.mxu0 %v5890
    %7065 = vmatmul.mubr.bf16.gmra.mrb[0].mxu0 %v5889
    %v7066 = vpop.f32.mrb[0].mxu0
    %v7067 = vadd.f32 %v6954, %v7066
    %v7068 = vpop.f32.mrb[0].mxu0
    %v7069 = vadd.f32 %v6956, %v7068
    %v7070 = vpop.f32.mrb[0].mxu0
    %v7071 = vadd.f32 %v6958, %v7070
    %v7072 = vpop.f32.mrb[0].mxu0
    %v7073 = vadd.f32 %v6960, %v7072
    %7074 = vmatprep.mubr.bf16.mxu0 %v5895
    %7075 = vmatmul.mubr.bf16.gmra.mrb[0].mxu0 %v5894
    %v7076 = vpop.f32.mrb[0].mxu0
    %v7077 = vadd.f32 %v6964, %v7076
    %v7078 = vpop.f32.mrb[0].mxu0
    %v7079 = vadd.f32 %v6966, %v7078
    %v7080 = vpop.f32.mrb[0].mxu0
    %v7081 = vadd.f32 %v6968, %v7080
    %v7082 = vpop.f32.mrb[0].mxu0
    %v7083 = vadd.f32 %v6970, %v7082
    %7084 = vmatprep.mubr.bf16.mxu0 %v5900
    %7085 = vmatmul.mubr.bf16.gmra.mrb[0].mxu0 %v5899
    %v7086 = vpop.f32.mrb[0].mxu0
    %v7087 = vadd.f32 %v6974, %v7086
    %v7088 = vpop.f32.mrb[0].mxu0
    %v7089 = vadd.f32 %v6976, %v7088
    %v7090 = vpop.f32.mrb[0].mxu0
    %v7091 = vadd.f32 %v6978, %v7090
    %v7092 = vpop.f32.mrb[0].mxu0
    %v7093 = vadd.f32 %v6980, %v7092
    %7094 = vmatprep.mubr.bf16.mxu0 %v5905
    %7095 = vmatmul.mubr.bf16.gmra.mrb[0].mxu0 %v5904
    %v7096 = vpop.f32.mrb[0].mxu0
    %v7097 = vadd.f32 %v6984, %v7096
    %v7098 = vpop.f32.mrb[0].mxu0
    %v7099 = vadd.f32 %v6986, %v7098
    %v7100 = vpop.f32.mrb[0].mxu0
    %v7101 = vadd.f32 %v6988, %v7100
    %v7102 = vpop.f32.mrb[0].mxu0
    %v7103 = vadd.f32 %v6990, %v7102
    %7104 = vmatprep.mubr.bf16.mxu0 %v5910
    %7105 = vmatmul.mubr.bf16.gmra.mrb[0].mxu0 %v5909
    %v7106 = vpop.f32.mrb[0].mxu0
    %v7107 = vadd.f32 %v6994, %v7106
    %v7108 = vpop.f32.mrb[0].mxu0
    %v7109 = vadd.f32 %v6996, %v7108
    %v7110 = vpop.f32.mrb[0].mxu0
    %v7111 = vadd.f32 %v6998, %v7110
    %v7112 = vpop.f32.mrb[0].mxu0
    %v7113 = vadd.f32 %v7000, %v7112
    %7114 = vmatprep.mubr.bf16.mxu0 %v5915
    %7115 = vmatmul.mubr.bf16.gmra.mrb[0].mxu0 %v5914
    %v7116 = vpop.f32.mrb[0].mxu0
    %v7117 = vadd.f32 %v7004, %v7116
    %v7118 = vpop.f32.mrb[0].mxu0
    %v7119 = vadd.f32 %v7006, %v7118
    %v7120 = vpop.f32.mrb[0].mxu0
    %v7121 = vadd.f32 %v7008, %v7120
    %v7122 = vpop.f32.mrb[0].mxu0
    %v7123 = vadd.f32 %v7010, %v7122
    %7124 = vdwg.mxu0
    %7125 = vmatprep.subr.bf16.mxu0 %v6708
    %7126 = vmatpush1.bf16.msra.mxu0 %v6707
    %7127 = vmatprep.subr.bf16.mxu0 %v6712
    %7128 = vmatpush1.bf16.msra.mxu0 %v6711
    %7129 = vmatprep.subr.bf16.mxu0 %v6716
    %7130 = vmatpush1.bf16.msra.mxu0 %v6715
    %7131 = vmatprep.subr.bf16.mxu0 %v6720
    %7132 = vmatpush1.bf16.msra.mxu0 %v6719
    %7133 = vmatprep.subr.bf16.mxu0 %v6724
    %7134 = vmatpush1.bf16.msra.mxu0 %v6723
    %7135 = vmatprep.subr.bf16.mxu0 %v6728
    %7136 = vmatpush1.bf16.msra.mxu0 %v6727
    %7137 = vmatprep.subr.bf16.mxu0 %v6732
    %7138 = vmatpush1.bf16.msra.mxu0 %v6731
    %7139 = vmatprep.subr.bf16.mxu0 %v6736
    %7140 = vmatpush1.bf16.msra.mxu0 %v6735
    %7141 = vmatprep.subr.bf16.mxu0 0
    %7142 = vmatpush1.bf16.msra.mxu0 0
    %7143 = vmatprep.subr.bf16.mxu0 0
    %7144 = vmatpush1.bf16.msra.mxu0 0
    %7145 = vmatprep.subr.bf16.mxu0 0
    %7146 = vmatpush1.bf16.msra.mxu0 0
    %7147 = vmatprep.subr.bf16.mxu0 0
    %7148 = vmatpush1.bf16.msra.mxu0 0
    %7149 = vmatprep.subr.bf16.mxu0 0
    %7150 = vmatpush1.bf16.msra.mxu0 0
    %7151 = vmatprep.subr.bf16.mxu0 0
    %7152 = vmatpush1.bf16.msra.mxu0 0
    %7153 = vmatprep.subr.bf16.mxu0 0
    %7154 = vmatpush1.bf16.msra.mxu0 0
    %7155 = vmatprep.subr.bf16.mxu0 0
    %7156 = vmatpush1.bf16.msra.mxu0 0
    %7157 = vmatprep.mubr.bf16.mxu0 0
    %7158 = vmatmul.mubr.bf16.gmra.mrb[0].mxu0 %v5881
    %v7159 = vpop.f32.mrb[0].mxu0
    %v7160 = vadd.f32 %v7047, %v7159
    %v7161 = vpop.f32.mrb[0].mxu0
    %v7162 = vadd.f32 %v7049, %v7161
    %v7163 = vpop.f32.mrb[0].mxu0
    %v7164 = vadd.f32 %v7051, %v7163
    %v7165 = vpop.f32.mrb[0].mxu0
    %v7166 = vadd.f32 %v7053, %v7165
    %7167 = vmatprep.mubr.bf16.mxu0 0
    %7168 = vmatmul.mubr.bf16.gmra.mrb[0].mxu0 %v5886
    %v7169 = vpop.f32.mrb[0].mxu0
    %v7170 = vadd.f32 %v7057, %v7169
    %v7171 = vpop.f32.mrb[0].mxu0
    %v7172 = vadd.f32 %v7059, %v7171
    %v7173 = vpop.f32.mrb[0].mxu0
    %v7174 = vadd.f32 %v7061, %v7173
    %v7175 = vpop.f32.mrb[0].mxu0
    %v7176 = vadd.f32 %v7063, %v7175
    %7177 = vmatprep.mubr.bf16.mxu0 0
    %7178 = vmatmul.mubr.bf16.gmra.mrb[0].mxu0 %v5891
    %v7179 = vpop.f32.mrb[0].mxu0
    %v7180 = vadd.f32 %v7067, %v7179
    %v7181 = vpop.f32.mrb[0].mxu0
    %v7182 = vadd.f32 %v7069, %v7181
    %v7183 = vpop.f32.mrb[0].mxu0
    %v7184 = vadd.f32 %v7071, %v7183
    %v7185 = vpop.f32.mrb[0].mxu0
    %v7186 = vadd.f32 %v7073, %v7185
    %7187 = vmatprep.mubr.bf16.mxu0 0
    %7188 = vmatmul.mubr.bf16.gmra.mrb[0].mxu0 %v5896
    %v7189 = vpop.f32.mrb[0].mxu0
    %v7190 = vadd.f32 %v7077, %v7189
    %v7191 = vpop.f32.mrb[0].mxu0
    %v7192 = vadd.f32 %v7079, %v7191
    %v7193 = vpop.f32.mrb[0].mxu0
    %v7194 = vadd.f32 %v7081, %v7193
    %v7195 = vpop.f32.mrb[0].mxu0
    %v7196 = vadd.f32 %v7083, %v7195
    %7197 = vmatprep.mubr.bf16.mxu0 0
    %7198 = vmatmul.mubr.bf16.gmra.mrb[0].mxu0 %v5901
    %v7199 = vpop.f32.mrb[0].mxu0
    %v7200 = vadd.f32 %v7087, %v7199
    %v7201 = vpop.f32.mrb[0].mxu0
    %v7202 = vadd.f32 %v7089, %v7201
    %v7203 = vpop.f32.mrb[0].mxu0
    %v7204 = vadd.f32 %v7091, %v7203
    %v7205 = vpop.f32.mrb[0].mxu0
    %v7206 = vadd.f32 %v7093, %v7205
    %7207 = vmatprep.mubr.bf16.mxu0 0
    %7208 = vmatmul.mubr.bf16.gmra.mrb[0].mxu0 %v5906
    %v7209 = vpop.f32.mrb[0].mxu0
    %v7210 = vadd.f32 %v7097, %v7209
    %v7211 = vpop.f32.mrb[0].mxu0
    %v7212 = vadd.f32 %v7099, %v7211
    %v7213 = vpop.f32.mrb[0].mxu0
    %v7214 = vadd.f32 %v7101, %v7213
    %v7215 = vpop.f32.mrb[0].mxu0
    %v7216 = vadd.f32 %v7103, %v7215
    %7217 = vmatprep.mubr.bf16.mxu0 0
    %7218 = vmatmul.mubr.bf16.gmra.mrb[0].mxu0 %v5911
    %v7219 = vpop.f32.mrb[0].mxu0
    %v7220 = vadd.f32 %v7107, %v7219
    %v7221 = vpop.f32.mrb[0].mxu0
    %v7222 = vadd.f32 %v7109, %v7221
    %v7223 = vpop.f32.mrb[0].mxu0
    %v7224 = vadd.f32 %v7111, %v7223
    %v7225 = vpop.f32.mrb[0].mxu0
    %v7226 = vadd.f32 %v7113, %v7225
    %7227 = vmatprep.mubr.bf16.mxu0 0
    %7228 = vmatmul.mubr.bf16.gmra.mrb[0].mxu0 %v5916
    %v7229 = vpop.f32.mrb[0].mxu0
    %v7230 = vadd.f32 %v7117, %v7229
    %v7231 = vpop.f32.mrb[0].mxu0
    %v7232 = vadd.f32 %v7119, %v7231
    %v7233 = vpop.f32.mrb[0].mxu0
    %v7234 = vadd.f32 %v7121, %v7233
    %v7235 = vpop.f32.mrb[0].mxu0
    %v7236 = vadd.f32 %v7123, %v7235
    %7237 = vdwg.mxu0
    %7238 = vmatprep.subr.bf16.mxu0 %v6582
    %7239 = vmatpush1.bf16.msra.mxu0 %v6581
    %7240 = vmatprep.subr.bf16.mxu0 %v6586
    %7241 = vmatpush1.bf16.msra.mxu0 %v6585
    %7242 = vmatprep.subr.bf16.mxu0 %v6590
    %7243 = vmatpush1.bf16.msra.mxu0 %v6589
    %7244 = vmatprep.subr.bf16.mxu0 %v6594
    %7245 = vmatpush1.bf16.msra.mxu0 %v6593
    %7246 = vmatprep.subr.bf16.mxu0 %v6598
    %7247 = vmatpush1.bf16.msra.mxu0 %v6597
    %7248 = vmatprep.subr.bf16.mxu0 %v6602
    %7249 = vmatpush1.bf16.msra.mxu0 %v6601
    %7250 = vmatprep.subr.bf16.mxu0 %v6606
    %7251 = vmatpush1.bf16.msra.mxu0 %v6605
    %7252 = vmatprep.subr.bf16.mxu0 %v6610
    %7253 = vmatpush1.bf16.msra.mxu0 %v6609
    %7254 = vmatprep.subr.bf16.mxu0 %v6614
    %7255 = vmatpush1.bf16.msra.mxu0 %v6613
    %7256 = vmatprep.subr.bf16.mxu0 %v6618
    %7257 = vmatpush1.bf16.msra.mxu0 %v6617
    %7258 = vmatprep.subr.bf16.mxu0 %v6622
    %7259 = vmatpush1.bf16.msra.mxu0 %v6621
    %7260 = vmatprep.subr.bf16.mxu0 %v6626
    %7261 = vmatpush1.bf16.msra.mxu0 %v6625
    %7262 = vmatprep.subr.bf16.mxu0 %v6630
    %7263 = vmatpush1.bf16.msra.mxu0 %v6629
    %7264 = vmatprep.subr.bf16.mxu0 %v6634
    %7265 = vmatpush1.bf16.msra.mxu0 %v6633
    %7266 = vmatprep.subr.bf16.mxu0 %v6638
    %7267 = vmatpush1.bf16.msra.mxu0 %v6637
    %7268 = vmatprep.subr.bf16.mxu0 %v6642
    %7269 = vmatpush1.bf16.msra.mxu0 %v6641
    %7270 = vmatprep.mubr.bf16.mxu0 %v5878
    %7271 = vmatmul.mubr.bf16.gmra.mrb[0].mxu0 %v5877
    %v7272 = vpop.f32.mrb[0].mxu0
    %v7273 = vadd.f32 %v6090, %v7272
    %v7274 = vpop.f32.mrb[0].mxu0
    %v7275 = vadd.f32 %v6094, %v7274
    %v7276 = vpop.f32.mrb[0].mxu0
    %v7277 = vadd.f32 %v6090, %v7276
    %v7278 = vpop.f32.mrb[0].mxu0
    %v7279 = vadd.f32 %v6094, %v7278
    %7280 = vmatprep.mubr.bf16.mxu0 %v5883
    %7281 = vmatmul.mubr.bf16.gmra.mrb[0].mxu0 %v5882
    %v7282 = vpop.f32.mrb[0].mxu0
    %v7283 = vadd.f32 %v6090, %v7282
    %v7284 = vpop.f32.mrb[0].mxu0
    %v7285 = vadd.f32 %v6094, %v7284
    %v7286 = vpop.f32.mrb[0].mxu0
    %v7287 = vadd.f32 %v6090, %v7286
    %v7288 = vpop.f32.mrb[0].mxu0
    %v7289 = vadd.f32 %v6094, %v7288
    %7290 = vmatprep.mubr.bf16.mxu0 %v5888
    %7291 = vmatmul.mubr.bf16.gmra.mrb[0].mxu0 %v5887
    %v7292 = vpop.f32.mrb[0].mxu0
    %v7293 = vadd.f32 %v6090, %v7292
    %v7294 = vpop.f32.mrb[0].mxu0
    %v7295 = vadd.f32 %v6094, %v7294
    %v7296 = vpop.f32.mrb[0].mxu0
    %v7297 = vadd.f32 %v6090, %v7296
    %v7298 = vpop.f32.mrb[0].mxu0
    %v7299 = vadd.f32 %v6094, %v7298
    %7300 = vmatprep.mubr.bf16.mxu0 %v5893
    %7301 = vmatmul.mubr.bf16.gmra.mrb[0].mxu0 %v5892
    %v7302 = vpop.f32.mrb[0].mxu0
    %v7303 = vadd.f32 %v6090, %v7302
    %v7304 = vpop.f32.mrb[0].mxu0
    %v7305 = vadd.f32 %v6094, %v7304
    %v7306 = vpop.f32.mrb[0].mxu0
    %v7307 = vadd.f32 %v6090, %v7306
    %v7308 = vpop.f32.mrb[0].mxu0
    %v7309 = vadd.f32 %v6094, %v7308
    %7310 = vmatprep.mubr.bf16.mxu0 %v5898
    %7311 = vmatmul.mubr.bf16.gmra.mrb[0].mxu0 %v5897
    %v7312 = vpop.f32.mrb[0].mxu0
    %v7313 = vadd.f32 %v6090, %v7312
    %v7314 = vpop.f32.mrb[0].mxu0
    %v7315 = vadd.f32 %v6094, %v7314
    %v7316 = vpop.f32.mrb[0].mxu0
    %v7317 = vadd.f32 %v6090, %v7316
    %v7318 = vpop.f32.mrb[0].mxu0
    %v7319 = vadd.f32 %v6094, %v7318
    %7320 = vmatprep.mubr.bf16.mxu0 %v5903
    %7321 = vmatmul.mubr.bf16.gmra.mrb[0].mxu0 %v5902
    %v7322 = vpop.f32.mrb[0].mxu0
    %v7323 = vadd.f32 %v6090, %v7322
    %v7324 = vpop.f32.mrb[0].mxu0
    %v7325 = vadd.f32 %v6094, %v7324
    %v7326 = vpop.f32.mrb[0].mxu0
    %v7327 = vadd.f32 %v6090, %v7326
    %v7328 = vpop.f32.mrb[0].mxu0
    %v7329 = vadd.f32 %v6094, %v7328
    %7330 = vmatprep.mubr.bf16.mxu0 %v5908
    %7331 = vmatmul.mubr.bf16.gmra.mrb[0].mxu0 %v5907
    %v7332 = vpop.f32.mrb[0].mxu0
    %v7333 = vadd.f32 %v6090, %v7332
    %v7334 = vpop.f32.mrb[0].mxu0
    %v7335 = vadd.f32 %v6094, %v7334
    %v7336 = vpop.f32.mrb[0].mxu0
    %v7337 = vadd.f32 %v6090, %v7336
    %v7338 = vpop.f32.mrb[0].mxu0
    %v7339 = vadd.f32 %v6094, %v7338
    %7340 = vmatprep.mubr.bf16.mxu0 %v5913
    %7341 = vmatmul.mubr.bf16.gmra.mrb[0].mxu0 %v5912
    %v7342 = vpop.f32.mrb[0].mxu0
    %v7343 = vadd.f32 %v6090, %v7342
    %v7344 = vpop.f32.mrb[0].mxu0
    %v7345 = vadd.f32 %v6094, %v7344
    %v7346 = vpop.f32.mrb[0].mxu0
    %v7347 = vadd.f32 %v6090, %v7346
    %v7348 = vpop.f32.mrb[0].mxu0
    %v7349 = vadd.f32 %v6094, %v7348
    %7350 = vdwg.mxu0
    %7351 = vmatprep.subr.bf16.mxu0 %v6646
    %7352 = vmatpush1.bf16.msra.mxu0 %v6645
    %7353 = vmatprep.subr.bf16.mxu0 %v6650
    %7354 = vmatpush1.bf16.msra.mxu0 %v6649
    %7355 = vmatprep.subr.bf16.mxu0 %v6654
    %7356 = vmatpush1.bf16.msra.mxu0 %v6653
    %7357 = vmatprep.subr.bf16.mxu0 %v6658
    %7358 = vmatpush1.bf16.msra.mxu0 %v6657
    %7359 = vmatprep.subr.bf16.mxu0 %v6662
    %7360 = vmatpush1.bf16.msra.mxu0 %v6661
    %7361 = vmatprep.subr.bf16.mxu0 %v6666
    %7362 = vmatpush1.bf16.msra.mxu0 %v6665
    %7363 = vmatprep.subr.bf16.mxu0 %v6670
    %7364 = vmatpush1.bf16.msra.mxu0 %v6669
    %7365 = vmatprep.subr.bf16.mxu0 %v6674
    %7366 = vmatpush1.bf16.msra.mxu0 %v6673
    %7367 = vmatprep.subr.bf16.mxu0 %v6678
    %7368 = vmatpush1.bf16.msra.mxu0 %v6677
    %7369 = vmatprep.subr.bf16.mxu0 %v6682
    %7370 = vmatpush1.bf16.msra.mxu0 %v6681
    %7371 = vmatprep.subr.bf16.mxu0 %v6686
    %7372 = vmatpush1.bf16.msra.mxu0 %v6685
    %7373 = vmatprep.subr.bf16.mxu0 %v6690
    %7374 = vmatpush1.bf16.msra.mxu0 %v6689
    %7375 = vmatprep.subr.bf16.mxu0 %v6694
    %7376 = vmatpush1.bf16.msra.mxu0 %v6693
    %7377 = vmatprep.subr.bf16.mxu0 %v6698
    %7378 = vmatpush1.bf16.msra.mxu0 %v6697
    %7379 = vmatprep.subr.bf16.mxu0 %v6702
    %7380 = vmatpush1.bf16.msra.mxu0 %v6701
    %7381 = vmatprep.subr.bf16.mxu0 %v6706
    %7382 = vmatpush1.bf16.msra.mxu0 %v6705
    %7383 = vmatprep.mubr.bf16.mxu0 %v5880
    %7384 = vmatmul.mubr.bf16.gmra.mrb[0].mxu0 %v5879
    %v7385 = vpop.f32.mrb[0].mxu0
    %v7386 = vadd.f32 %v7273, %v7385
    %v7387 = vpop.f32.mrb[0].mxu0
    %v7388 = vadd.f32 %v7275, %v7387
    %v7389 = vpop.f32.mrb[0].mxu0
    %v7390 = vadd.f32 %v7277, %v7389
    %v7391 = vpop.f32.mrb[0].mxu0
    %v7392 = vadd.f32 %v7279, %v7391
    %7393 = vmatprep.mubr.bf16.mxu0 %v5885
    %7394 = vmatmul.mubr.bf16.gmra.mrb[0].mxu0 %v5884
    %v7395 = vpop.f32.mrb[0].mxu0
    %v7396 = vadd.f32 %v7283, %v7395
    %v7397 = vpop.f32.mrb[0].mxu0
    %v7398 = vadd.f32 %v7285, %v7397
    %v7399 = vpop.f32.mrb[0].mxu0
    %v7400 = vadd.f32 %v7287, %v7399
    %v7401 = vpop.f32.mrb[0].mxu0
    %v7402 = vadd.f32 %v7289, %v7401
    %7403 = vmatprep.mubr.bf16.mxu0 %v5890
    %7404 = vmatmul.mubr.bf16.gmra.mrb[0].mxu0 %v5889
    %v7405 = vpop.f32.mrb[0].mxu0
    %v7406 = vadd.f32 %v7293, %v7405
    %v7407 = vpop.f32.mrb[0].mxu0
    %v7408 = vadd.f32 %v7295, %v7407
    %v7409 = vpop.f32.mrb[0].mxu0
    %v7410 = vadd.f32 %v7297, %v7409
    %v7411 = vpop.f32.mrb[0].mxu0
    %v7412 = vadd.f32 %v7299, %v7411
    %7413 = vmatprep.mubr.bf16.mxu0 %v5895
    %7414 = vmatmul.mubr.bf16.gmra.mrb[0].mxu0 %v5894
    %v7415 = vpop.f32.mrb[0].mxu0
    %v7416 = vadd.f32 %v7303, %v7415
    %v7417 = vpop.f32.mrb[0].mxu0
    %v7418 = vadd.f32 %v7305, %v7417
    %v7419 = vpop.f32.mrb[0].mxu0
    %v7420 = vadd.f32 %v7307, %v7419
    %v7421 = vpop.f32.mrb[0].mxu0
    %v7422 = vadd.f32 %v7309, %v7421
    %7423 = vmatprep.mubr.bf16.mxu0 %v5900
    %7424 = vmatmul.mubr.bf16.gmra.mrb[0].mxu0 %v5899
    %v7425 = vpop.f32.mrb[0].mxu0
    %v7426 = vadd.f32 %v7313, %v7425
    %v7427 = vpop.f32.mrb[0].mxu0
    %v7428 = vadd.f32 %v7315, %v7427
    %v7429 = vpop.f32.mrb[0].mxu0
    %v7430 = vadd.f32 %v7317, %v7429
    %v7431 = vpop.f32.mrb[0].mxu0
    %v7432 = vadd.f32 %v7319, %v7431
    %7433 = vmatprep.mubr.bf16.mxu0 %v5905
    %7434 = vmatmul.mubr.bf16.gmra.mrb[0].mxu0 %v5904
    %v7435 = vpop.f32.mrb[0].mxu0
    %v7436 = vadd.f32 %v7323, %v7435
    %v7437 = vpop.f32.mrb[0].mxu0
    %v7438 = vadd.f32 %v7325, %v7437
    %v7439 = vpop.f32.mrb[0].mxu0
    %v7440 = vadd.f32 %v7327, %v7439
    %v7441 = vpop.f32.mrb[0].mxu0
    %v7442 = vadd.f32 %v7329, %v7441
    %7443 = vmatprep.mubr.bf16.mxu0 %v5910
    %7444 = vmatmul.mubr.bf16.gmra.mrb[0].mxu0 %v5909
    %v7445 = vpop.f32.mrb[0].mxu0
    %v7446 = vadd.f32 %v7333, %v7445
    %v7447 = vpop.f32.mrb[0].mxu0
    %v7448 = vadd.f32 %v7335, %v7447
    %v7449 = vpop.f32.mrb[0].mxu0
    %v7450 = vadd.f32 %v7337, %v7449
    %v7451 = vpop.f32.mrb[0].mxu0
    %v7452 = vadd.f32 %v7339, %v7451
    %7453 = vmatprep.mubr.bf16.mxu0 %v5915
    %7454 = vmatmul.mubr.bf16.gmra.mrb[0].mxu0 %v5914
    %v7455 = vpop.f32.mrb[0].mxu0
    %v7456 = vadd.f32 %v7343, %v7455
    %v7457 = vpop.f32.mrb[0].mxu0
    %v7458 = vadd.f32 %v7345, %v7457
    %v7459 = vpop.f32.mrb[0].mxu0
    %v7460 = vadd.f32 %v7347, %v7459
    %v7461 = vpop.f32.mrb[0].mxu0
    %v7462 = vadd.f32 %v7349, %v7461
    %7463 = vdwg.mxu0
    %7464 = vmatprep.subr.bf16.mxu0 %v6710
    %7465 = vmatpush1.bf16.msra.mxu0 %v6709
    %7466 = vmatprep.subr.bf16.mxu0 %v6714
    %7467 = vmatpush1.bf16.msra.mxu0 %v6713
    %7468 = vmatprep.subr.bf16.mxu0 %v6718
    %7469 = vmatpush1.bf16.msra.mxu0 %v6717
    %7470 = vmatprep.subr.bf16.mxu0 %v6722
    %7471 = vmatpush1.bf16.msra.mxu0 %v6721
    %7472 = vmatprep.subr.bf16.mxu0 %v6726
    %7473 = vmatpush1.bf16.msra.mxu0 %v6725
    %7474 = vmatprep.subr.bf16.mxu0 %v6730
    %7475 = vmatpush1.bf16.msra.mxu0 %v6729
    %7476 = vmatprep.subr.bf16.mxu0 %v6734
    %7477 = vmatpush1.bf16.msra.mxu0 %v6733
    %7478 = vmatprep.subr.bf16.mxu0 %v6738
    %7479 = vmatpush1.bf16.msra.mxu0 %v6737
    %7480 = vmatprep.subr.bf16.mxu0 0
    %7481 = vmatpush1.bf16.msra.mxu0 0
    %7482 = vmatprep.subr.bf16.mxu0 0
    %7483 = vmatpush1.bf16.msra.mxu0 0
    %7484 = vmatprep.subr.bf16.mxu0 0
    %7485 = vmatpush1.bf16.msra.mxu0 0
    %7486 = vmatprep.subr.bf16.mxu0 0
    %7487 = vmatpush1.bf16.msra.mxu0 0
    %7488 = vmatprep.subr.bf16.mxu0 0
    %7489 = vmatpush1.bf16.msra.mxu0 0
    %7490 = vmatprep.subr.bf16.mxu0 0
    %7491 = vmatpush1.bf16.msra.mxu0 0
    %7492 = vmatprep.subr.bf16.mxu0 0
    %7493 = vmatpush1.bf16.msra.mxu0 0
    %7494 = vmatprep.subr.bf16.mxu0 0
    %7495 = vmatpush1.bf16.msra.mxu0 0
    %7496 = vmatprep.mubr.bf16.mxu0 0
    %7497 = vmatmul.mubr.bf16.gmra.mrb[0].mxu0 %v5881
    %v7498 = vpop.f32.mrb[0].mxu0
    %v7499 = vadd.f32 %v7386, %v7498
    %v7500 = vpop.f32.mrb[0].mxu0
    %v7501 = vadd.f32 %v7388, %v7500
    %v7502 = vpop.f32.mrb[0].mxu0
    %v7503 = vadd.f32 %v7390, %v7502
    %v7504 = vpop.f32.mrb[0].mxu0
    %v7505 = vadd.f32 %v7392, %v7504
    %7506 = vmatprep.mubr.bf16.mxu0 0
    %7507 = vmatmul.mubr.bf16.gmra.mrb[0].mxu0 %v5886
    %v7508 = vpop.f32.mrb[0].mxu0
    %v7509 = vadd.f32 %v7396, %v7508
    %v7510 = vpop.f32.mrb[0].mxu0
    %v7511 = vadd.f32 %v7398, %v7510
    %v7512 = vpop.f32.mrb[0].mxu0
    %v7513 = vadd.f32 %v7400, %v7512
    %v7514 = vpop.f32.mrb[0].mxu0
    %v7515 = vadd.f32 %v7402, %v7514
    %7516 = vmatprep.mubr.bf16.mxu0 0
    %7517 = vmatmul.mubr.bf16.gmra.mrb[0].mxu0 %v5891
    %v7518 = vpop.f32.mrb[0].mxu0
    %v7519 = vadd.f32 %v7406, %v7518
    %v7520 = vpop.f32.mrb[0].mxu0
    %v7521 = vadd.f32 %v7408, %v7520
    %v7522 = vpop.f32.mrb[0].mxu0
    %v7523 = vadd.f32 %v7410, %v7522
    %v7524 = vpop.f32.mrb[0].mxu0
    %v7525 = vadd.f32 %v7412, %v7524
    %7526 = vmatprep.mubr.bf16.mxu0 0
    %7527 = vmatmul.mubr.bf16.gmra.mrb[0].mxu0 %v5896
    %v7528 = vpop.f32.mrb[0].mxu0
    %v7529 = vadd.f32 %v7416, %v7528
    %v7530 = vpop.f32.mrb[0].mxu0
    %v7531 = vadd.f32 %v7418, %v7530
    %v7532 = vpop.f32.mrb[0].mxu0
    %v7533 = vadd.f32 %v7420, %v7532
    %v7534 = vpop.f32.mrb[0].mxu0
    %v7535 = vadd.f32 %v7422, %v7534
    %7536 = vmatprep.mubr.bf16.mxu0 0
    %7537 = vmatmul.mubr.bf16.gmra.mrb[0].mxu0 %v5901
    %v7538 = vpop.f32.mrb[0].mxu0
    %v7539 = vadd.f32 %v7426, %v7538
    %v7540 = vpop.f32.mrb[0].mxu0
    %v7541 = vadd.f32 %v7428, %v7540
    %v7542 = vpop.f32.mrb[0].mxu0
    %v7543 = vadd.f32 %v7430, %v7542
    %v7544 = vpop.f32.mrb[0].mxu0
    %v7545 = vadd.f32 %v7432, %v7544
    %7546 = vmatprep.mubr.bf16.mxu0 0
    %7547 = vmatmul.mubr.bf16.gmra.mrb[0].mxu0 %v5906
    %v7548 = vpop.f32.mrb[0].mxu0
    %v7549 = vadd.f32 %v7436, %v7548
    %v7550 = vpop.f32.mrb[0].mxu0
    %v7551 = vadd.f32 %v7438, %v7550
    %v7552 = vpop.f32.mrb[0].mxu0
    %v7553 = vadd.f32 %v7440, %v7552
    %v7554 = vpop.f32.mrb[0].mxu0
    %v7555 = vadd.f32 %v7442, %v7554
    %7556 = vmatprep.mubr.bf16.mxu0 0
    %7557 = vmatmul.mubr.bf16.gmra.mrb[0].mxu0 %v5911
    %v7558 = vpop.f32.mrb[0].mxu0
    %v7559 = vadd.f32 %v7446, %v7558
    %v7560 = vpop.f32.mrb[0].mxu0
    %v7561 = vadd.f32 %v7448, %v7560
    %v7562 = vpop.f32.mrb[0].mxu0
    %v7563 = vadd.f32 %v7450, %v7562
    %v7564 = vpop.f32.mrb[0].mxu0
    %v7565 = vadd.f32 %v7452, %v7564
    %7566 = vmatprep.mubr.bf16.mxu0 0
    %7567 = vmatmul.mubr.bf16.gmra.mrb[0].mxu0 %v5916
    %v7568 = vpop.f32.mrb[0].mxu0
    %v7569 = vadd.f32 %v7456, %v7568
    %v7570 = vpop.f32.mrb[0].mxu0
    %v7571 = vadd.f32 %v7458, %v7570
    %v7572 = vpop.f32.mrb[0].mxu0
    %v7573 = vadd.f32 %v7460, %v7572
    %v7574 = vpop.f32.mrb[0].mxu0
    %v7575 = vadd.f32 %v7462, %v7574
    %7576 = vdwg.mxu0
    %v7577 = vmax.f32 %v7160, 0.0
    %v7578 = vmax.f32 %v7162, 0.0
    %v7579 = vmax.f32 %v7499, 0.0
    %v7580 = vmax.f32 %v7501, 0.0
    %v7581 = vmax.f32 %v7164, 0.0
    %v7582 = vmax.f32 %v7166, 0.0
    %v7583 = vmax.f32 %v7503, 0.0
    %v7584 = vmax.f32 %v7505, 0.0
    %v7585 = vmax.f32 %v7170, 0.0
    %v7586 = vmax.f32 %v7172, 0.0
    %v7587 = vmax.f32 %v7509, 0.0
    %v7588 = vmax.f32 %v7511, 0.0
    %v7589 = vmax.f32 %v7174, 0.0
    %v7590 = vmax.f32 %v7176, 0.0
    %v7591 = vmax.f32 %v7513, 0.0
    %v7592 = vmax.f32 %v7515, 0.0
    %v7593 = vmax.f32 %v7180, 0.0
    %v7594 = vmax.f32 %v7182, 0.0
    %v7595 = vmax.f32 %v7519, 0.0
    %v7596 = vmax.f32 %v7521, 0.0
    %v7597 = vmax.f32 %v7184, 0.0
    %v7598 = vmax.f32 %v7186, 0.0
    %v7599 = vmax.f32 %v7523, 0.0
    %v7600 = vmax.f32 %v7525, 0.0
    %v7601 = vmax.f32 %v7190, 0.0
    %v7602 = vmax.f32 %v7192, 0.0
    %v7603 = vmax.f32 %v7529, 0.0
    %v7604 = vmax.f32 %v7531, 0.0
    %v7605 = vmax.f32 %v7194, 0.0
    %v7606 = vmax.f32 %v7196, 0.0
    %v7607 = vmax.f32 %v7533, 0.0
    %v7608 = vmax.f32 %v7535, 0.0
    %v7609 = vmax.f32 %v7200, 0.0
    %v7610 = vmax.f32 %v7202, 0.0
    %v7611 = vmax.f32 %v7539, 0.0
    %v7612 = vmax.f32 %v7541, 0.0
    %v7613 = vmax.f32 %v7204, 0.0
    %v7614 = vmax.f32 %v7206, 0.0
    %v7615 = vmax.f32 %v7543, 0.0
    %v7616 = vmax.f32 %v7545, 0.0
    %v7617 = vmax.f32 %v7210, 0.0
    %v7618 = vmax.f32 %v7212, 0.0
    %v7619 = vmax.f32 %v7549, 0.0
    %v7620 = vmax.f32 %v7551, 0.0
    %v7621 = vmax.f32 %v7214, 0.0
    %v7622 = vmax.f32 %v7216, 0.0
    %v7623 = vmax.f32 %v7553, 0.0
    %v7624 = vmax.f32 %v7555, 0.0
    %v7625 = vmax.f32 %v7220, 0.0
    %v7626 = vmax.f32 %v7222, 0.0
    %v7627 = vmax.f32 %v7559, 0.0
    %v7628 = vmax.f32 %v7561, 0.0
    %v7629 = vmax.f32 %v7224, 0.0
    %v7630 = vmax.f32 %v7226, 0.0
    %v7631 = vmax.f32 %v7563, 0.0
    %v7632 = vmax.f32 %v7565, 0.0
    %v7633 = vmax.f32 %v7230, 0.0
    %v7634 = vmax.f32 %v7232, 0.0
    %v7635 = vmax.f32 %v7569, 0.0
    %v7636 = vmax.f32 %v7571, 0.0
    %v7637 = vmax.f32 %v7234, 0.0
    %v7638 = vmax.f32 %v7236, 0.0
    %v7639 = vmax.f32 %v7573, 0.0
    %v7640 = vmax.f32 %v7575, 0.0
    %v7641 = vunpack.c.l.bf16 %v94
    %v7642 = vunpack.c.h.bf16 %v94
    %v7643 = vunpack.c.l.bf16 %v95
    %v7644 = vunpack.c.h.bf16 %v95
    %v7645 = vunpack.c.l.bf16 %v96
    %v7646 = vunpack.c.h.bf16 %v96
    %v7647 = vunpack.c.l.bf16 %v97
    %v7648 = vunpack.c.h.bf16 %v97
    %v7649 = vunpack.c.l.bf16 %v98
    %v7650 = vunpack.c.h.bf16 %v98
    %v7651 = vunpack.c.l.bf16 %v99
    %v7652 = vunpack.c.h.bf16 %v99
    %v7653 = vunpack.c.l.bf16 %v100
    %v7654 = vunpack.c.h.bf16 %v100
    %v7655 = vunpack.c.l.bf16 %v101
    %v7656 = vunpack.c.h.bf16 %v101
    %v7657 = vunpack.c.l.bf16 %v102
    %v7658 = vunpack.c.h.bf16 %v102
    %v7659 = vunpack.c.l.bf16 %v103
    %v7660 = vunpack.c.h.bf16 %v103
    %v7661 = vunpack.c.l.bf16 %v104
    %v7662 = vunpack.c.h.bf16 %v104
    %v7663 = vunpack.c.l.bf16 %v105
    %v7664 = vunpack.c.h.bf16 %v105
    %v7665 = vunpack.c.l.bf16 %v106
    %v7666 = vunpack.c.h.bf16 %v106
    %v7667 = vunpack.c.l.bf16 %v107
    %v7668 = vunpack.c.h.bf16 %v107
    %v7669 = vunpack.c.l.bf16 %v108
    %v7670 = vunpack.c.h.bf16 %v108
    %v7671 = vunpack.c.l.bf16 %v109
    %v7672 = vunpack.c.h.bf16 %v109
    %v7673 = vunpack.c.l.bf16 %v110
    %v7674 = vunpack.c.h.bf16 %v110
    %v7675 = vunpack.c.l.bf16 %v111
    %v7676 = vunpack.c.h.bf16 %v111
    %v7677 = vunpack.c.l.bf16 %v112
    %v7678 = vunpack.c.h.bf16 %v112
    %v7679 = vunpack.c.l.bf16 %v113
    %v7680 = vunpack.c.h.bf16 %v113
    %v7681 = vunpack.c.l.bf16 %v114
    %v7682 = vunpack.c.h.bf16 %v114
    %v7683 = vunpack.c.l.bf16 %v115
    %v7684 = vunpack.c.h.bf16 %v115
    %v7685 = vunpack.c.l.bf16 %v116
    %v7686 = vunpack.c.h.bf16 %v116
    %v7687 = vunpack.c.l.bf16 %v117
    %v7688 = vunpack.c.h.bf16 %v117
    %v7689 = vunpack.c.l.bf16 %v118
    %v7690 = vunpack.c.h.bf16 %v118
    %v7691 = vunpack.c.l.bf16 %v119
    %v7692 = vunpack.c.h.bf16 %v119
    %v7693 = vunpack.c.l.bf16 %v120
    %v7694 = vunpack.c.h.bf16 %v120
    %v7695 = vunpack.c.l.bf16 %v121
    %v7696 = vunpack.c.h.bf16 %v121
    %v7697 = vunpack.c.l.bf16 %v122
    %v7698 = vunpack.c.h.bf16 %v122
    %v7699 = vunpack.c.l.bf16 %v123
    %v7700 = vunpack.c.h.bf16 %v123
    %v7701 = vunpack.c.l.bf16 %v124
    %v7702 = vunpack.c.h.bf16 %v124
    %v7703 = vunpack.c.l.bf16 %v125
    %v7704 = vunpack.c.h.bf16 %v125
    %v7705 = vadd.f32 %v7577, %v7641
    %v7706 = vadd.f32 %v7578, %v7642
    %v7707 = vadd.f32 %v7579, %v7643
    %v7708 = vadd.f32 %v7580, %v7644
    %v7709 = vadd.f32 %v7581, %v7645
    %v7710 = vadd.f32 %v7582, %v7646
    %v7711 = vadd.f32 %v7583, %v7647
    %v7712 = vadd.f32 %v7584, %v7648
    %v7713 = vadd.f32 %v7585, %v7649
    %v7714 = vadd.f32 %v7586, %v7650
    %v7715 = vadd.f32 %v7587, %v7651
    %v7716 = vadd.f32 %v7588, %v7652
    %v7717 = vadd.f32 %v7589, %v7653
    %v7718 = vadd.f32 %v7590, %v7654
    %v7719 = vadd.f32 %v7591, %v7655
    %v7720 = vadd.f32 %v7592, %v7656
    %v7721 = vadd.f32 %v7593, %v7657
    %v7722 = vadd.f32 %v7594, %v7658
    %v7723 = vadd.f32 %v7595, %v7659
    %v7724 = vadd.f32 %v7596, %v7660
    %v7725 = vadd.f32 %v7597, %v7661
    %v7726 = vadd.f32 %v7598, %v7662
    %v7727 = vadd.f32 %v7599, %v7663
    %v7728 = vadd.f32 %v7600, %v7664
    %v7729 = vadd.f32 %v7601, %v7665
    %v7730 = vadd.f32 %v7602, %v7666
    %v7731 = vadd.f32 %v7603, %v7667
    %v7732 = vadd.f32 %v7604, %v7668
    %v7733 = vadd.f32 %v7605, %v7669
    %v7734 = vadd.f32 %v7606, %v7670
    %v7735 = vadd.f32 %v7607, %v7671
    %v7736 = vadd.f32 %v7608, %v7672
    %v7737 = vadd.f32 %v7609, %v7673
    %v7738 = vadd.f32 %v7610, %v7674
    %v7739 = vadd.f32 %v7611, %v7675
    %v7740 = vadd.f32 %v7612, %v7676
    %v7741 = vadd.f32 %v7613, %v7677
    %v7742 = vadd.f32 %v7614, %v7678
    %v7743 = vadd.f32 %v7615, %v7679
    %v7744 = vadd.f32 %v7616, %v7680
    %v7745 = vadd.f32 %v7617, %v7681
    %v7746 = vadd.f32 %v7618, %v7682
    %v7747 = vadd.f32 %v7619, %v7683
    %v7748 = vadd.f32 %v7620, %v7684
    %v7749 = vadd.f32 %v7621, %v7685
    %v7750 = vadd.f32 %v7622, %v7686
    %v7751 = vadd.f32 %v7623, %v7687
    %v7752 = vadd.f32 %v7624, %v7688
    %v7753 = vadd.f32 %v7625, %v7689
    %v7754 = vadd.f32 %v7626, %v7690
    %v7755 = vadd.f32 %v7627, %v7691
    %v7756 = vadd.f32 %v7628, %v7692
    %v7757 = vadd.f32 %v7629, %v7693
    %v7758 = vadd.f32 %v7630, %v7694
    %v7759 = vadd.f32 %v7631, %v7695
    %v7760 = vadd.f32 %v7632, %v7696
    %v7761 = vadd.f32 %v7633, %v7697
    %v7762 = vadd.f32 %v7634, %v7698
    %v7763 = vadd.f32 %v7635, %v7699
    %v7764 = vadd.f32 %v7636, %v7700
    %v7765 = vadd.f32 %v7637, %v7701
    %v7766 = vadd.f32 %v7638, %v7702
    %v7767 = vadd.f32 %v7639, %v7703
    %v7768 = vadd.f32 %v7640, %v7704
    %v7769 = vmax.f32 %v7705, 0.0
    %v7770 = vmax.f32 %v7706, 0.0
    %v7771 = vmax.f32 %v7707, 0.0
    %v7772 = vmax.f32 %v7708, 0.0
    %v7773 = vmax.f32 %v7709, 0.0
    %v7774 = vmax.f32 %v7710, 0.0
    %v7775 = vmax.f32 %v7711, 0.0
    %v7776 = vmax.f32 %v7712, 0.0
    %v7777 = vmax.f32 %v7713, 0.0
    %v7778 = vmax.f32 %v7714, 0.0
    %v7779 = vmax.f32 %v7715, 0.0
    %v7780 = vmax.f32 %v7716, 0.0
    %v7781 = vmax.f32 %v7717, 0.0
    %v7782 = vmax.f32 %v7718, 0.0
    %v7783 = vmax.f32 %v7719, 0.0
    %v7784 = vmax.f32 %v7720, 0.0
    %v7785 = vmax.f32 %v7721, 0.0
    %v7786 = vmax.f32 %v7722, 0.0
    %v7787 = vmax.f32 %v7723, 0.0
    %v7788 = vmax.f32 %v7724, 0.0
    %v7789 = vmax.f32 %v7725, 0.0
    %v7790 = vmax.f32 %v7726, 0.0
    %v7791 = vmax.f32 %v7727, 0.0
    %v7792 = vmax.f32 %v7728, 0.0
    %v7793 = vmax.f32 %v7729, 0.0
    %v7794 = vmax.f32 %v7730, 0.0
    %v7795 = vmax.f32 %v7731, 0.0
    %v7796 = vmax.f32 %v7732, 0.0
    %v7797 = vmax.f32 %v7733, 0.0
    %v7798 = vmax.f32 %v7734, 0.0
    %v7799 = vmax.f32 %v7735, 0.0
    %v7800 = vmax.f32 %v7736, 0.0
    %v7801 = vmax.f32 %v7737, 0.0
    %v7802 = vmax.f32 %v7738, 0.0
    %v7803 = vmax.f32 %v7739, 0.0
    %v7804 = vmax.f32 %v7740, 0.0
    %v7805 = vmax.f32 %v7741, 0.0
    %v7806 = vmax.f32 %v7742, 0.0
    %v7807 = vmax.f32 %v7743, 0.0
    %v7808 = vmax.f32 %v7744, 0.0
    %v7809 = vmax.f32 %v7745, 0.0
    %v7810 = vmax.f32 %v7746, 0.0
    %v7811 = vmax.f32 %v7747, 0.0
    %v7812 = vmax.f32 %v7748, 0.0
    %v7813 = vmax.f32 %v7749, 0.0
    %v7814 = vmax.f32 %v7750, 0.0
    %v7815 = vmax.f32 %v7751, 0.0
    %v7816 = vmax.f32 %v7752, 0.0
    %v7817 = vmax.f32 %v7753, 0.0
    %v7818 = vmax.f32 %v7754, 0.0
    %v7819 = vmax.f32 %v7755, 0.0
    %v7820 = vmax.f32 %v7756, 0.0
    %v7821 = vmax.f32 %v7757, 0.0
    %v7822 = vmax.f32 %v7758, 0.0
    %v7823 = vmax.f32 %v7759, 0.0
    %v7824 = vmax.f32 %v7760, 0.0
    %v7825 = vmax.f32 %v7761, 0.0
    %v7826 = vmax.f32 %v7762, 0.0
    %v7827 = vmax.f32 %v7763, 0.0
    %v7828 = vmax.f32 %v7764, 0.0
    %v7829 = vmax.f32 %v7765, 0.0
    %v7830 = vmax.f32 %v7766, 0.0
    %v7831 = vmax.f32 %v7767, 0.0
    %v7832 = vmax.f32 %v7768, 0.0
    %7833 = vst [vmem:[#allocation5] sm:$0xff] %v7769
    %7834 = vst [vmem:[#allocation5 + $0x8] sm:$0xff] %v7770
    %7835 = vst [vmem:[#allocation5 + $0x10] sm:$0xff] %v7771
    %7836 = vst [vmem:[#allocation5 + $0x18] sm:$0xff] %v7772
    %7837 = vst [vmem:[#allocation5 + $0x20] sm:$0xff] %v7773
    %7838 = vst [vmem:[#allocation5 + $0x28] sm:$0xff] %v7774
    %7839 = vst [vmem:[#allocation5 + $0x30] sm:$0xff] %v7775
    %7840 = vst [vmem:[#allocation5 + $0x38] sm:$0xff] %v7776
    %7841 = vst [vmem:[#allocation5 + $0x40] sm:$0xff] %v7777
    %7842 = vst [vmem:[#allocation5 + $0x48] sm:$0xff] %v7778
    %7843 = vst [vmem:[#allocation5 + $0x50] sm:$0xff] %v7779
    %7844 = vst [vmem:[#allocation5 + $0x58] sm:$0xff] %v7780
    %7845 = vst [vmem:[#allocation5 + $0x60] sm:$0xff] %v7781
    %7846 = vst [vmem:[#allocation5 + $0x68] sm:$0xff] %v7782
    %7847 = vst [vmem:[#allocation5 + $0x70] sm:$0xff] %v7783
    %7848 = vst [vmem:[#allocation5 + $0x78] sm:$0xff] %v7784
    %7849 = vst [vmem:[#allocation5 + $0x80] sm:$0xff] %v7785
    %7850 = vst [vmem:[#allocation5 + $0x88] sm:$0xff] %v7786
    %7851 = vst [vmem:[#allocation5 + $0x90] sm:$0xff] %v7787
    %7852 = vst [vmem:[#allocation5 + $0x98] sm:$0xff] %v7788
    %7853 = vst [vmem:[#allocation5 + $0xa0] sm:$0xff] %v7789
    %7854 = vst [vmem:[#allocation5 + $0xa8] sm:$0xff] %v7790
    %7855 = vst [vmem:[#allocation5 + $0xb0] sm:$0xff] %v7791
    %7856 = vst [vmem:[#allocation5 + $0xb8] sm:$0xff] %v7792
    %7857 = vst [vmem:[#allocation5 + $0xc0] sm:$0xff] %v7793
    %7858 = vst [vmem:[#allocation5 + $0xc8] sm:$0xff] %v7794
    %7859 = vst [vmem:[#allocation5 + $0xd0] sm:$0xff] %v7795
    %7860 = vst [vmem:[#allocation5 + $0xd8] sm:$0xff] %v7796
    %7861 = vst [vmem:[#allocation5 + $0xe0] sm:$0xff] %v7797
    %7862 = vst [vmem:[#allocation5 + $0xe8] sm:$0xff] %v7798
    %7863 = vst [vmem:[#allocation5 + $0xf0] sm:$0xff] %v7799
    %7864 = vst [vmem:[#allocation5 + $0xf8] sm:$0xff] %v7800
    %7865 = vst [vmem:[#allocation5 + $0x100] sm:$0xff] %v7801
    %7866 = vst [vmem:[#allocation5 + $0x108] sm:$0xff] %v7802
    %7867 = vst [vmem:[#allocation5 + $0x110] sm:$0xff] %v7803
    %7868 = vst [vmem:[#allocation5 + $0x118] sm:$0xff] %v7804
    %7869 = vst [vmem:[#allocation5 + $0x120] sm:$0xff] %v7805
    %7870 = vst [vmem:[#allocation5 + $0x128] sm:$0xff] %v7806
    %7871 = vst [vmem:[#allocation5 + $0x130] sm:$0xff] %v7807
    %7872 = vst [vmem:[#allocation5 + $0x138] sm:$0xff] %v7808
    %7873 = vst [vmem:[#allocation5 + $0x140] sm:$0xff] %v7809
    %7874 = vst [vmem:[#allocation5 + $0x148] sm:$0xff] %v7810
    %7875 = vst [vmem:[#allocation5 + $0x150] sm:$0xff] %v7811
    %7876 = vst [vmem:[#allocation5 + $0x158] sm:$0xff] %v7812
    %7877 = vst [vmem:[#allocation5 + $0x160] sm:$0xff] %v7813
    %7878 = vst [vmem:[#allocation5 + $0x168] sm:$0xff] %v7814
    %7879 = vst [vmem:[#allocation5 + $0x170] sm:$0xff] %v7815
    %7880 = vst [vmem:[#allocation5 + $0x178] sm:$0xff] %v7816
    %7881 = vst [vmem:[#allocation5 + $0x180] sm:$0xff] %v7817
    %7882 = vst [vmem:[#allocation5 + $0x188] sm:$0xff] %v7818
    %7883 = vst [vmem:[#allocation5 + $0x190] sm:$0xff] %v7819
    %7884 = vst [vmem:[#allocation5 + $0x198] sm:$0xff] %v7820
    %7885 = vst [vmem:[#allocation5 + $0x1a0] sm:$0xff] %v7821
    %7886 = vst [vmem:[#allocation5 + $0x1a8] sm:$0xff] %v7822
    %7887 = vst [vmem:[#allocation5 + $0x1b0] sm:$0xff] %v7823
    %7888 = vst [vmem:[#allocation5 + $0x1b8] sm:$0xff] %v7824
    %7889 = vst [vmem:[#allocation5 + $0x1c0] sm:$0xff] %v7825
    %7890 = vst [vmem:[#allocation5 + $0x1c8] sm:$0xff] %v7826
    %7891 = vst [vmem:[#allocation5 + $0x1d0] sm:$0xff] %v7827
    %7892 = vst [vmem:[#allocation5 + $0x1d8] sm:$0xff] %v7828
    %7893 = vst [vmem:[#allocation5 + $0x1e0] sm:$0xff] %v7829
    %7894 = vst [vmem:[#allocation5 + $0x1e8] sm:$0xff] %v7830
    %7895 = vst [vmem:[#allocation5 + $0x1f0] sm:$0xff] %v7831
    %7896 = vst [vmem:[#allocation5 + $0x1f8] sm:$0xff] %v7832
    // Predicated region
    $region26: #{fems_forward.1} parent=1 // pred_check
      _
    $region27: #{fems_forward.1} parent=1 // pred_check_branch
      %7898 = sbr.rel (0) target = $region29
    $region28: #{fems_forward.1} parent=1 // pred_region
      %s7900 = ssub.s32 8192, 8192
      %7901 = vsyncadd [#allocation6], %s7900
      %s7902 = sshll.u32 [#allocation5], 4
      %s7903 = int_to_ptr.vmem [resolvable:$true] %s7902
      %7908 = dma.vmem_to_hbm [thread:$0]  %s7903, 8192, %s6, [#allocation6], 512, 512, 32
    $region29: #{fems_forward.1} parent=1 // pred_fallthru
      _
    // Predicated region
    $region30: #{fems_forward.1} parent=1 // pred_check
      _
    $region31: #{fems_forward.1} parent=1 // pred_check_branch
      %7910 = sbr.rel (0) target = $region33
    $region32: #{fems_forward.1} parent=1 // pred_region
      %7911 = dma.done [#allocation6], 8192
    $region33: #{fems_forward.1} parent=1 // pred_fallthru
      _
    %7912 = vsyncpa [#allocation6], 1

</llo_original>
